<compile_context>
chip_gen: v6e
topology: v6e:2x2x1
jax: 0.10.0
libtpu: 0.0.40
codegen_flags: <defaults>
</compile_context>

<pallas_src>
import functools
import math

import jax
import jax.numpy as jnp
from jax.experimental import pallas as pl
from jax.experimental.pallas import tpu as pltpu

_MXU_DTYPE = jnp.bfloat16        # matmul operand dtype (accumulate in f32)
_ACT_DTYPE = jnp.bfloat16        # activation (HBM stream) dtype
_LANE_TILE_CAP = 2048            # lane-tile cap (multiple of 128)
_VMEM_LIMIT = 48 * 1024 * 1024   # > v5e 16MiB / v6e 32MiB defaults, < v7x 64MiB


def _pick_tile(n, cap=_LANE_TILE_CAP):
    """Lane tile: full extent when small, else largest multiple of 128 <= cap."""
    if n <= cap:
        return int(n)
    return int((cap // 128) * 128)


# ----------------------------- Pallas kernels ------------------------------ #

def _conv_kernel(x_ref, w_ref, b_ref, o_ref, *, relu):
    """1x1 conv (channel matmul, scale-folded weight) + bias + optional ReLU."""
    x = x_ref[0].astype(_MXU_DTYPE)            # (Cin, TM)
    w = w_ref[...].astype(_MXU_DTYPE)          # (Cout, Cin)
    y = jnp.dot(w, x, preferred_element_type=jnp.float32)   # (Cout, TM) f32
    y = y + b_ref[...]                         # (Cout, 1) broadcast
    if relu:
        y = jnp.maximum(y, 0.0)
    o_ref[0] = y.astype(o_ref.dtype)


def _conv_res_kernel(x_ref, w_ref, b_ref, r_ref, o_ref):
    """1x1 conv + bias + residual add + ReLU (fused InvResMLP tail)."""
    x = x_ref[0].astype(_MXU_DTYPE)
    w = w_ref[...].astype(_MXU_DTYPE)
    y = jnp.dot(w, x, preferred_element_type=jnp.float32)
    y = y + b_ref[...] + r_ref[0].astype(jnp.float32)
    o_ref[0] = jnp.maximum(y, 0.0).astype(o_ref.dtype)


def conv_bn_act(x, params, residual=None, relu_override=None):
    """x: (B, Cin, M) -> (B, Cout, M) bf16; optional fused residual + ReLU."""
    B, Cin, M = x.shape
    Cout = params["w"].shape[0]
    TM = _pick_tile(M)
    grid = (B, pl.cdiv(M, TM))
    relu = params["relu"] if relu_override is None else relu_override

    in_specs = [
        pl.BlockSpec((1, Cin, TM), lambda b, m: (b, 0, m)),
        pl.BlockSpec((Cout, Cin), lambda b, m: (0, 0)),
        pl.BlockSpec((Cout, 1), lambda b, m: (0, 0)),
    ]
    args = [x, params["w"], params["bias"]]
    if residual is None:
        kern = functools.partial(_conv_kernel, relu=relu)
    else:
        kern = _conv_res_kernel
        in_specs.append(pl.BlockSpec((1, Cout, TM), lambda b, m: (b, 0, m)))
        args.append(residual)

    return pl.pallas_call(
        kern,
        out_shape=jax.ShapeDtypeStruct((B, Cout, M), _ACT_DTYPE),
        grid=grid,
        in_specs=in_specs,
        out_specs=pl.BlockSpec((1, Cout, TM), lambda b, m: (b, 0, m)),
        compiler_params=pltpu.CompilerParams(
            dimension_semantics=("parallel", "parallel"),
            vmem_limit_bytes=_VMEM_LIMIT),
    )(*args)


def _group_pool_kernel(g_ref, newp_ref, idx_ref, wdp_ref, b_ref, o_ref,
                       acc_ref, *, relu, n_support):
    """Fused neighbor gather + grouped conv + BN bias + ReLU + max over S.

    Grid = (B, P_tiles, S); S is the reduction ("arbitrary") axis reduced into
    a VMEM accumulator.  Per neighbor s:
        y = gather_cols(g, idx[:, s]) - (W_dp @ new_p) + bias  -> ReLU -> max.
    The gather is a one-hot MXU matmul (no data-dependent gather lowering);
    the W_dp @ new_p term is 3 VPU broadcast-FMAs (no K=3 MXU matmul).
    """
    s = pl.program_id(2)

    @pl.when(s == 0)
    def _():
        acc_ref[...] = jnp.full(acc_ref.shape, -jnp.inf, acc_ref.dtype)

    ids = idx_ref[0, 0]                                      # (1, TP) int32
    tp = ids.shape[-1]
    iota = jax.lax.broadcasted_iota(jnp.int32, (n_support, tp), 0)
    onehot = jnp.where(iota == ids, 1.0, 0.0).astype(_MXU_DTYPE)   # (N, TP)

    g = g_ref[0].astype(_MXU_DTYPE)                          # (Cout, N)
    gathered = jnp.dot(g, onehot, preferred_element_type=jnp.float32)  # (Cout,TP)

    newp = newp_ref[0].astype(jnp.float32)                   # (3, TP)
    qterm = (wdp_ref[0] * newp[0:1, :]
             + wdp_ref[1] * newp[1:2, :]
             + wdp_ref[2] * newp[2:3, :])                    # (Cout, TP) f32

    y = gathered - qterm + b_ref[...]
    if relu:
        y = jnp.maximum(y, 0.0)
    acc_ref[...] = jnp.maximum(acc_ref[...], y)

    @pl.when(s == pl.num_programs(2) - 1)
    def _():
        o_ref[0] = acc_ref[...].astype(o_ref.dtype)


def grouped_conv_max_pool(g, newp_t, idx, conv):
    """g: (B, Cout, N) pre-convolved support features (W_all @ [f; p]),
    newp_t: (B, 3, P), idx: (B, S, 1, P) int32 -> (B, Cout, P) bf16."""
    B, Cout, N = g.shape
    P = newp_t.shape[2]
    S = idx.shape[1]
    TP = _pick_tile(P)
    grid = (B, pl.cdiv(P, TP), S)

    return pl.pallas_call(
        functools.partial(_group_pool_kernel, relu=conv["relu"], n_support=N),
        out_shape=jax.ShapeDtypeStruct((B, Cout, P), _ACT_DTYPE),
        grid=grid,
        in_specs=[
            pl.BlockSpec((1, Cout, N), lambda b, t, s: (b, 0, 0)),
            pl.BlockSpec((1, 3, TP), lambda b, t, s: (b, 0, t)),
            pl.BlockSpec((1, 1, 1, TP), lambda b, t, s: (b, s, 0, t)),
            pl.BlockSpec((3, Cout, 1), lambda b, t, s: (0, 0, 0)),
            pl.BlockSpec((Cout, 1), lambda b, t, s: (0, 0)),
        ],
        out_specs=pl.BlockSpec((1, Cout, TP), lambda b, t, s: (b, 0, t)),
        scratch_shapes=[pltpu.VMEM((Cout, TP), jnp.float32)],
        compiler_params=pltpu.CompilerParams(
            dimension_semantics=("parallel", "parallel", "arbitrary"),
            vmem_limit_bytes=_VMEM_LIMIT),
    )(g, newp_t, idx, conv["w_dp"], conv["bias"])


def _point_pool_kernel(x_ref, o_ref):
    o_ref[0] = jnp.max(x_ref[0], axis=-1, keepdims=True)


def point_max_pool(f):
    """f: (B, C, P) -> (B, C)  (torch.max over points)."""
    B, C, P = f.shape
    out = pl.pallas_call(
        _point_pool_kernel,
        out_shape=jax.ShapeDtypeStruct((B, C, 1), f.dtype),
        grid=(B,),
        in_specs=[pl.BlockSpec((1, C, P), lambda b: (b, 0, 0))],
        out_specs=pl.BlockSpec((1, C, 1), lambda b: (b, 0, 0)),
        compiler_params=pltpu.CompilerParams(
            dimension_semantics=("parallel",),
            vmem_limit_bytes=_VMEM_LIMIT),
    )(f)
    return out[:, :, 0]


# --------------------------- plain-JAX glue ops ----------------------------- #

def furthest_point_sample(p, n_samples):
    """p: (B, N, 3) -> (B, n_samples) int32 indices (first index is 0)."""
    # TODO(synk): sequential data-dependent argmax; no clean Pallas equivalent.
    B, N, _ = p.shape

    def one(pts):
        def body(i, state):
            idxs, dists, last = state
            d = jnp.sum((pts - pts[last]) ** 2, axis=-1)
            dists = jnp.minimum(dists, d)
            nxt = jnp.argmax(dists).astype(jnp.int32)
            idxs = idxs.at[i].set(nxt)
            return idxs, dists, nxt

        idxs = jnp.zeros((n_samples,), jnp.int32)
        dists = jnp.full((N,), 1e10, jnp.float32)
        idxs, _, _ = jax.lax.fori_loop(1, n_samples, body, (idxs, dists, jnp.int32(0)))
        return idxs

    return jax.vmap(one)(p)


def ball_query(radius, nsample, xyz, new_xyz):
    """CUDA ball_query semantics: first `nsample` support points (in original
    order) with dist < radius, padded with the first found index (0 if none)."""
    # TODO(synk): data-dependent neighbor search; kept in plain JAX (top_k,
    #             not a full sort).
    N = xyz.shape[1]
    d2 = jnp.sum((new_xyz[:, :, None, :] - xyz[:, None, :, :]) ** 2, axis=-1)  # (B,P,N)
    mask = d2 < radius * radius
    key = jnp.where(mask, jnp.arange(N, dtype=jnp.int32)[None, None, :], N)
    k = min(nsample, N)
    neg_vals, _ = jax.lax.top_k(-key, k)          # k smallest keys (ascending)
    sel = -neg_vals                               # (B, P, k)
    if k < nsample:
        Bq, Pq = sel.shape[:2]
        pad = jnp.full((Bq, Pq, nsample - k), N, sel.dtype)
        sel = jnp.concatenate([sel, pad], axis=-1)
    first = sel[:, :, :1]
    idx = jnp.where(sel < N, sel, first)
    idx = jnp.where(idx >= N, 0, idx)
    return idx.astype(jnp.int32)


def group_conv_pool(new_p, p, f, conv, radius, nsample):
    """Grouped conv over feature_type='dp_fj' + BN + ReLU + max over neighbors.

    conv(concat(dp, fj)) is rewritten as
        gather(W_all @ [f; p])  -  W_dp @ new_p  +  bias
    so the heavy conv runs un-gathered once; the gather / dp-term / pool are
    fused in the Pallas kernel.  Returns (B, Cout, P) bf16.
    """
    Cout = conv["w_all"].shape[0]

    p_t = jnp.transpose(p, (0, 2, 1)).astype(f.dtype)          # (B, 3, N)
    support = jnp.concatenate([f, p_t], axis=1)                # (B, C+3, N)
    g = conv_bn_act(support, {"w": conv["w_all"],
                              "bias": jnp.zeros((Cout, 1), jnp.float32),
                              "relu": False})                  # (B, Cout, N)

    idx = ball_query(radius, nsample, p, new_p)                # (B, P, S)
    idx_t = jnp.transpose(idx, (0, 2, 1))[:, :, None, :]       # (B, S, 1, P)
    newp_t = jnp.transpose(new_p, (0, 2, 1))                   # (B, 3, P) f32

    return grouped_conv_max_pool(g, newp_t, idx_t, conv)       # (B, Cout, P)


# ------------------------ parameter init / model build ---------------------- #

def _bn_fold(key, cout):
    kg, kbe, km, kv = jax.random.split(key, 4)
    eps = 1e-5
    gamma = jax.random.uniform(kg, (cout,), jnp.float32, 0.5, 1.5)
    beta = 0.1 * jax.random.normal(kbe, (cout,), jnp.float32)
    rmean = 0.1 * jax.random.normal(km, (cout,), jnp.float32)
    rvar = jax.random.uniform(kv, (cout,), jnp.float32, 0.5, 1.5)
    scale = gamma / jnp.sqrt(rvar + eps)
    bias = beta - rmean * scale
    return scale, bias


def init_conv_block(key, cin, cout, has_norm, relu):
    kw, kb, kn = jax.random.split(key, 3)
    w = jax.random.normal(kw, (cout, cin), jnp.float32) * (1.0 / math.sqrt(cin))
    if has_norm:
        scale, bias = _bn_fold(kn, cout)
        w = w * scale[:, None]                      # fold BN scale into weights
    else:
        bias = 0.1 * jax.random.normal(kb, (cout,), jnp.float32)  # conv bias (head)
    return {"w": w,                                              # f32 master
            "bias": bias.reshape(cout, 1).astype(jnp.float32),
            "relu": relu}


def init_grouped_conv_block(key, c_feat, cout, relu):
    """Grouped conv over concat(dp, fj): weight (cout, 3 + c_feat), BN folded.
    Stored as w_all (over [f; p], for the un-gathered support conv) and w_dp
    (3, cout, 1) for the per-query dp term."""
    kw, kn = jax.random.split(key, 2)
    cin = 3 + c_feat
    w = jax.random.normal(kw, (cout, cin), jnp.float32) * (1.0 / math.sqrt(cin))
    scale, bias = _bn_fold(kn, cout)
    w = w * scale[:, None]
    w_dp = w[:, :3]                                  # (Cout, 3)
    w_f = w[:, 3:]                                   # (Cout, C)
    return {"w_all": jnp.concatenate([w_f, w_dp], axis=1),      # acts on [f; p]
            "w_dp": jnp.transpose(w_dp)[:, :, None],            # (3, Cout, 1)
            "bias": bias.reshape(cout, 1).astype(jnp.float32),
            "relu": relu}


def build_pointnext(key, in_channels=4, width=8, num_blocks=(1, 2, 2),
                    strides=(1, 4, 4), nsample=8, radius=0.3, expansion=4,
                    sa_use_res=False, use_res=True,
                    radius_scaling=2, nsample_scaling=1):
    # _to_full_list for radius / nsample
    radii, r = [], radius
    for i, s in enumerate(strides):
        if s == 1:
            radii.append([r] * num_blocks[i])
        else:
            radii.append([r] + [r * radius_scaling] * (num_blocks[i] - 1))
            r *= radius_scaling
    nsamples, ns = [], nsample
    for i, s in enumerate(strides):
        if s == 1:
            nsamples.append([ns] * num_blocks[i])
        else:
            nsamples.append([ns] + [ns * nsample_scaling] * (num_blocks[i] - 1))
            ns *= nsample_scaling

    channels, w = [], width
    for s in strides:
        if s != 1:
            w *= 2
        channels.append(w)

    keys = iter(jax.random.split(key, 128))
    layers, cur_in = [], in_channels
    for i in range(len(num_blocks)):
        is_head = (i == 0 and strides[i] == 1)
        out_c = channels[i]
        if is_head:
            # conv1d, no norm, no act (head)
            layers.append({"type": "sa_head",
                           "conv": init_conv_block(next(keys), cur_in, out_c,
                                                   has_norm=False, relu=False)})
        else:
            # SetAbstraction stride>1, feature_type='dp_fj' -> cin = 3 + C
            layers.append({"type": "sa", "stride": strides[i],
                           "radius": radii[i][0], "nsample": nsamples[i][0],
                           "conv": init_grouped_conv_block(next(keys), cur_in, out_c,
                                                           relu=not sa_use_res)})
        cur_in = out_c
        for j in range(1, num_blocks[i]):
            # InvResMLP: LocalAggregation conv (3+C -> C, BN+ReLU) + neighbor max,
            #            pwconv C->C*exp (BN+ReLU), C*exp->C (BN), +res, ReLU
            la = init_grouped_conv_block(next(keys), cur_in, cur_in, relu=True)
            mid = cur_in * expansion
            pw1 = init_conv_block(next(keys), cur_in, mid, True, True)
            pw2 = init_conv_block(next(keys), mid, cur_in, True, False)
            layers.append({"type": "invres", "radius": radii[i][j],
                           "nsample": nsamples[i][j], "la_conv": la,
                           "pw1": pw1, "pw2": pw2, "use_res": use_res})
    return {"layers": layers, "out_dim": channels[-1]}


# --------------------------------- forward ---------------------------------- #

def pointnext_forward(x, model):
    """x: (B, N, 3 + C_feat) -> (B, out_dim)  (forward_cls_feat, ndim==3 path)."""
    p = x[..., :3]                                  # (B, N, 3) f32
    f = jnp.transpose(x[..., 3:], (0, 2, 1))        # (B, C, N)   channels-first

    for layer in model["layers"]:
        t = layer["type"]
        if t == "sa_head":
            f = conv_bn_act(f, layer["conv"])
        elif t == "sa":
            P = p.shape[1] // layer["stride"]
            idx = furthest_point_sample(p, P)                              # (B, P)
            new_p = jnp.take_along_axis(
                p, jnp.broadcast_to(idx[..., None], idx.shape + (3,)), axis=1)
            f = group_conv_pool(new_p, p, f, layer["conv"],
                                layer["radius"], layer["nsample"])
            p = new_p
        else:  # InvResMLP
            identity = f
            fa = group_conv_pool(p, p, f, layer["la_conv"],
                                 layer["radius"], layer["nsample"])
            fa = conv_bn_act(fa, layer["pw1"])
            if layer["use_res"]:
                f = conv_bn_act(fa, layer["pw2"], residual=identity)   # +res, ReLU
            else:
                f = conv_bn_act(fa, layer["pw2"], relu_override=True)  # no zeros DMA

    # final pool: reduction='max' over points
    return point_max_pool(f)


# ----------------------------------- main ------------------------------------ #

if __name__ == "__main__":
    key = jax.random.PRNGKey(0)
    k_data, k_model = jax.random.split(key)

    B, N, C_feat = 2, 64, 4                 # small shapes: x = (B, N, 3 + C_feat)
    x = jax.random.uniform(k_data, (B, N, 3 + C_feat), jnp.float32)

    model = build_pointnext(k_model, in_channels=C_feat, width=8,
                            num_blocks=(1, 2, 2), strides=(1, 4, 4),
                            nsample=8, radius=0.3, expansion=4)

    fwd = jax.jit(lambda inp: pointnext_forward(inp, model))
    out = fwd(x)
    jax.block_until_ready(out)
    assert out.shape == (B, model["out_dim"]), out.shape
    assert bool(jnp.all(jnp.isfinite(out.astype(jnp.float32))))
    print("KERNEL_OK")
</pallas_src>

<mosaic_0001>
module attributes {stable_mosaic.version = 11 : i64} {
  func.func @_conv_kernel(%arg0: i32, %arg1: i32, %arg2: memref<1x4x64xf32, #tpu.memory_space<vmem>>, %arg3: memref<8x4xf32, #tpu.memory_space<vmem>>, %arg4: memref<8x1xf32, #tpu.memory_space<vmem>>, %arg5: memref<1x8x64xbf16, #tpu.memory_space<vmem>>) attributes {dimension_semantics = [#tpu.dimension_semantics<parallel>, #tpu.dimension_semantics<parallel>], iteration_bounds = array<i64: 2, 1>, scalar_prefetch = 0 : i64, scratch_operands = 0 : i64, tpu.core_type = #tpu.core_type<tc>, window_params = [{transform_indices = @transform_0, window_bounds = array<i64: 1, 4, 64>}, {pipeline_mode = #tpu.pipeline_mode<synchronous>, transform_indices = @transform_1, window_bounds = array<i64: 8, 4>}, {pipeline_mode = #tpu.pipeline_mode<synchronous>, transform_indices = @transform_2, window_bounds = array<i64: 8, 1>}, {transform_indices = @transform_3, window_bounds = array<i64: 1, 8, 64>}]} {
    %c0 = arith.constant 0 : index
    %c0_0 = arith.constant 0 : index
    %c0_1 = arith.constant 0 : index
    %0 = vector.load %arg2[%c0, %c0_0, %c0_1] : memref<1x4x64xf32, #tpu.memory_space<vmem>>, vector<1x4x64xf32>
    %1 = vector.shape_cast %0 : vector<1x4x64xf32> to vector<4x64xf32>
    %2 = arith.truncf %1 : vector<4x64xf32> to vector<4x64xbf16>
    %c0_2 = arith.constant 0 : index
    %c0_3 = arith.constant 0 : index
    %3 = vector.load %arg3[%c0_2, %c0_3] : memref<8x4xf32, #tpu.memory_space<vmem>>, vector<8x4xf32>
    %4 = arith.truncf %3 : vector<8x4xf32> to vector<8x4xbf16>
    %cst = arith.constant dense<0.000000e+00> : vector<8x64xf32>
    %5 = tpu.matmul %4, %2, %cst {dimension_numbers = #tpu.dot_dimension_numbers<[1], [0], [0], [1], [0, 0, 1, 1], [], []>} : vector<8x4xbf16>, vector<4x64xbf16>, vector<8x64xf32> -> vector<8x64xf32>
    %c0_4 = arith.constant 0 : index
    %c0_5 = arith.constant 0 : index
    %6 = vector.load %arg4[%c0_4, %c0_5] : memref<8x1xf32, #tpu.memory_space<vmem>>, vector<8x1xf32>
    %7 = vector.broadcast %6 : vector<8x1xf32> to vector<8x64xf32>
    %8 = arith.addf %5, %7 : vector<8x64xf32>
    %9 = arith.truncf %8 : vector<8x64xf32> to vector<8x64xbf16>
    %c0_6 = arith.constant 0 : index
    %c0_7 = arith.constant 0 : index
    %c0_8 = arith.constant 0 : index
    %10 = vector.load %arg5[%c0_6, %c0_7, %c0_8] : memref<1x8x64xbf16, #tpu.memory_space<vmem>>, vector<1x8x64xbf16>
    %11 = vector.shape_cast %10 : vector<1x8x64xbf16> to vector<8x64xbf16>
    %12 = vector.shape_cast %9 : vector<8x64xbf16> to vector<1x8x64xbf16>
    tpu.vector_store %arg5[%c0_6, %c0_7, %c0_8], %12 {strides = array<i32>} : memref<1x8x64xbf16, #tpu.memory_space<vmem>>, vector<1x8x64xbf16>,
    return
  }
  func.func @transform_0(%arg0: i32, %arg1: i32) -> (i32, i32, i32) {
    %c0_i32 = arith.constant 0 : i32
    %c0_i32_0 = arith.constant 0 : i32
    return %arg0, %c0_i32, %arg1 : i32, i32, i32
  }
  func.func @transform_1(%arg0: i32, %arg1: i32) -> (i32, i32) {
    %c0_i32 = arith.constant 0 : i32
    %c0_i32_0 = arith.constant 0 : i32
    %c0_i32_1 = arith.constant 0 : i32
    return %c0_i32, %c0_i32_0 : i32, i32
  }
  func.func @transform_2(%arg0: i32, %arg1: i32) -> (i32, i32) {
    %c0_i32 = arith.constant 0 : i32
    %c0_i32_0 = arith.constant 0 : i32
    %c0_i32_1 = arith.constant 0 : i32
    return %c0_i32, %c0_i32_0 : i32, i32
  }
  func.func @transform_3(%arg0: i32, %arg1: i32) -> (i32, i32, i32) {
    %c0_i32 = arith.constant 0 : i32
    %c0_i32_0 = arith.constant 0 : i32
    return %arg0, %c0_i32, %arg1 : i32, i32, i32
  }
}

module attributes {stable_mosaic.version = 11 : i64} {
  func.func @_conv_kernel(%arg0: i32, %arg1: i32, %arg2: memref<1x11x64xbf16, #tpu.memory_space<vmem>>, %arg3: memref<16x11xf32, #tpu.memory_space<vmem>>, %arg4: memref<16x1xf32, #tpu.memory_space<vmem>>, %arg5: memref<1x16x64xbf16, #tpu.memory_space<vmem>>) attributes {dimension_semantics = [#tpu.dimension_semantics<parallel>, #tpu.dimension_semantics<parallel>], iteration_bounds = array<i64: 2, 1>, scalar_prefetch = 0 : i64, scratch_operands = 0 : i64, tpu.core_type = #tpu.core_type<tc>, window_params = [{transform_indices = @transform_0, window_bounds = array<i64: 1, 11, 64>}, {pipeline_mode = #tpu.pipeline_mode<synchronous>, transform_indices = @transform_1, window_bounds = array<i64: 16, 11>}, {pipeline_mode = #tpu.pipeline_mode<synchronous>, transform_indices = @transform_2, window_bounds = array<i64: 16, 1>}, {transform_indices = @transform_3, window_bounds = array<i64: 1, 16, 64>}]} {
    %c0 = arith.constant 0 : index
    %c0_0 = arith.constant 0 : index
    %c0_1 = arith.constant 0 : index
    %0 = vector.load %arg2[%c0, %c0_0, %c0_1] : memref<1x11x64xbf16, #tpu.memory_space<vmem>>, vector<1x11x64xbf16>
    %1 = vector.shape_cast %0 : vector<1x11x64xbf16> to vector<11x64xbf16>
    %c0_2 = arith.constant 0 : index
    %c0_3 = arith.constant 0 : index
    %2 = vector.load %arg3[%c0_2, %c0_3] : memref<16x11xf32, #tpu.memory_space<vmem>>, vector<16x11xf32>
    %3 = arith.truncf %2 : vector<16x11xf32> to vector<16x11xbf16>
    %cst = arith.constant dense<0.000000e+00> : vector<16x64xf32>
    %4 = tpu.matmul %3, %1, %cst {dimension_numbers = #tpu.dot_dimension_numbers<[1], [0], [0], [1], [0, 0, 1, 1], [], []>} : vector<16x11xbf16>, vector<11x64xbf16>, vector<16x64xf32> -> vector<16x64xf32>
    %c0_4 = arith.constant 0 : index
    %c0_5 = arith.constant 0 : index
    %5 = vector.load %arg4[%c0_4, %c0_5] : memref<16x1xf32, #tpu.memory_space<vmem>>, vector<16x1xf32>
    %6 = vector.broadcast %5 : vector<16x1xf32> to vector<16x64xf32>
    %7 = arith.addf %4, %6 : vector<16x64xf32>
    %8 = arith.truncf %7 : vector<16x64xf32> to vector<16x64xbf16>
    %c0_6 = arith.constant 0 : index
    %c0_7 = arith.constant 0 : index
    %c0_8 = arith.constant 0 : index
    %9 = vector.load %arg5[%c0_6, %c0_7, %c0_8] : memref<1x16x64xbf16, #tpu.memory_space<vmem>>, vector<1x16x64xbf16>
    %10 = vector.shape_cast %9 : vector<1x16x64xbf16> to vector<16x64xbf16>
    %11 = vector.shape_cast %8 : vector<16x64xbf16> to vector<1x16x64xbf16>
    tpu.vector_store %arg5[%c0_6, %c0_7, %c0_8], %11 {strides = array<i32>} : memref<1x16x64xbf16, #tpu.memory_space<vmem>>, vector<1x16x64xbf16>,
    return
  }
  func.func @transform_0(%arg0: i32, %arg1: i32) -> (i32, i32, i32) {
    %c0_i32 = arith.constant 0 : i32
    %c0_i32_0 = arith.constant 0 : i32
    return %arg0, %c0_i32, %arg1 : i32, i32, i32
  }
  func.func @transform_1(%arg0: i32, %arg1: i32) -> (i32, i32) {
    %c0_i32 = arith.constant 0 : i32
    %c0_i32_0 = arith.constant 0 : i32
    %c0_i32_1 = arith.constant 0 : i32
    return %c0_i32, %c0_i32_0 : i32, i32
  }
  func.func @transform_2(%arg0: i32, %arg1: i32) -> (i32, i32) {
    %c0_i32 = arith.constant 0 : i32
    %c0_i32_0 = arith.constant 0 : i32
    %c0_i32_1 = arith.constant 0 : i32
    return %c0_i32, %c0_i32_0 : i32, i32
  }
  func.func @transform_3(%arg0: i32, %arg1: i32) -> (i32, i32, i32) {
    %c0_i32 = arith.constant 0 : i32
    %c0_i32_0 = arith.constant 0 : i32
    return %arg0, %c0_i32, %arg1 : i32, i32, i32
  }
}

module attributes {stable_mosaic.version = 11 : i64} {
  func.func @_group_pool_kernel(%arg0: i32, %arg1: i32, %arg2: i32, %arg3: memref<1x16x64xbf16, #tpu.memory_space<vmem>>, %arg4: memref<1x3x16xf32, #tpu.memory_space<vmem>>, %arg5: memref<1x1x1x16xi32, #tpu.memory_space<vmem>>, %arg6: memref<3x16x1xf32, #tpu.memory_space<vmem>>, %arg7: memref<16x1xf32, #tpu.memory_space<vmem>>, %arg8: memref<1x16x16xbf16, #tpu.memory_space<vmem>>, %arg9: memref<16x16xf32, #tpu.memory_space<vmem>>) attributes {dimension_semantics = [#tpu.dimension_semantics<parallel>, #tpu.dimension_semantics<parallel>, #tpu.dimension_semantics<arbitrary>], iteration_bounds = array<i64: 2, 1, 8>, scalar_prefetch = 0 : i64, scratch_operands = 1 : i64, tpu.core_type = #tpu.core_type<tc>, window_params = [{transform_indices = @transform_0, window_bounds = array<i64: 1, 16, 64>}, {transform_indices = @transform_1, window_bounds = array<i64: 1, 3, 16>}, {transform_indices = @transform_2, window_bounds = array<i64: 1, 1, 1, 16>}, {pipeline_mode = #tpu.pipeline_mode<synchronous>, transform_indices = @transform_3, window_bounds = array<i64: 3, 16, 1>}, {pipeline_mode = #tpu.pipeline_mode<synchronous>, transform_indices = @transform_4, window_bounds = array<i64: 16, 1>}, {transform_indices = @transform_5, window_bounds = array<i64: 1, 16, 16>}]} {
    %c0_i32 = arith.constant 0 : i32
    %0 = arith.cmpi eq, %arg2, %c0_i32 : i32
    %1 = arith.extui %0 : i1 to i32
    %c0_i32_0 = arith.constant 0 : i32
    %2 = arith.cmpi ne, %1, %c0_i32_0 : i32
    scf.if %2 {
      %cst_27 = arith.constant 0xFF800000 : f32
      %49 = vector.broadcast %cst_27 : f32 to vector<16x16xf32>
      %c0_28 = arith.constant 0 : index
      %c0_29 = arith.constant 0 : index
      %50 = vector.load %arg9[%c0_28, %c0_29] : memref<16x16xf32, #tpu.memory_space<vmem>>, vector<16x16xf32>
      tpu.vector_store %arg9[%c0_28, %c0_29], %49 {strides = array<i32>} : memref<16x16xf32, #tpu.memory_space<vmem>>, vector<16x16xf32>,
    } else {
    }
    %c0 = arith.constant 0 : index
    %c0_1 = arith.constant 0 : index
    %c0_2 = arith.constant 0 : index
    %c0_3 = arith.constant 0 : index
    %3 = vector.load %arg5[%c0, %c0_1, %c0_2, %c0_3] : memref<1x1x1x16xi32, #tpu.memory_space<vmem>>, vector<1x1x1x16xi32>
    %4 = vector.shape_cast %3 : vector<1x1x1x16xi32> to vector<1x16xi32>
    %5 = tpu.iota {dimensions = array<i32: 0>} : vector<64x16xi32>
    %6 = vector.broadcast %4 : vector<1x16xi32> to vector<64x16xi32>
    %7 = arith.cmpi eq, %5, %6 : vector<64x16xi32>
    %cst = arith.constant 1.000000e+00 : f32
    %cst_4 = arith.constant 0.000000e+00 : f32
    %8 = vector.broadcast %cst : f32 to vector<64x16xf32>
    %9 = vector.broadcast %cst_4 : f32 to vector<64x16xf32>
    %10 = arith.select %7, %8, %9 : vector<64x16xi1>, vector<64x16xf32>
    %11 = arith.truncf %10 : vector<64x16xf32> to vector<64x16xbf16>
    %c0_5 = arith.constant 0 : index
    %c0_6 = arith.constant 0 : index
    %c0_7 = arith.constant 0 : index
    %12 = vector.load %arg3[%c0_5, %c0_6, %c0_7] : memref<1x16x64xbf16, #tpu.memory_space<vmem>>, vector<1x16x64xbf16>
    %13 = vector.shape_cast %12 : vector<1x16x64xbf16> to vector<16x64xbf16>
    %cst_8 = arith.constant dense<0.000000e+00> : vector<16x16xf32>
    %14 = tpu.matmul %13, %11, %cst_8 {dimension_numbers = #tpu.dot_dimension_numbers<[1], [0], [0], [1], [0, 0, 1, 1], [], []>} : vector<16x64xbf16>, vector<64x16xbf16>, vector<16x16xf32> -> vector<16x16xf32>
    %c0_9 = arith.constant 0 : index
    %c0_10 = arith.constant 0 : index
    %c0_11 = arith.constant 0 : index
    %15 = vector.load %arg4[%c0_9, %c0_10, %c0_11] : memref<1x3x16xf32, #tpu.memory_space<vmem>>, vector<1x3x16xf32>
    %16 = vector.shape_cast %15 : vector<1x3x16xf32> to vector<3x16xf32>
    %c0_12 = arith.constant 0 : index
    %c0_13 = arith.constant 0 : index
    %c0_14 = arith.constant 0 : index
    %17 = vector.load %arg6[%c0_12, %c0_13, %c0_14] : memref<3x16x1xf32, #tpu.memory_space<vmem>>, vector<1x16x1xf32>
    %18 = vector.shape_cast %17 : vector<1x16x1xf32> to vector<16x1xf32>
    %19 = vector.extract_strided_slice %16 {offsets = [0, 0], sizes = [1, 16], strides = [1, 1]} : vector<3x16xf32> to vector<1x16xf32>
    %20 = vector.broadcast %18 : vector<16x1xf32> to vector<16x16xf32>
    %21 = vector.broadcast %19 : vector<1x16xf32> to vector<16x16xf32>
    %22 = arith.mulf %20, %21 : vector<16x16xf32>
    %c1 = arith.constant 1 : index
    %c0_15 = arith.constant 0 : index
    %c0_16 = arith.constant 0 : index
    %23 = vector.load %arg6[%c1, %c0_15, %c0_16] : memref<3x16x1xf32, #tpu.memory_space<vmem>>, vector<1x16x1xf32>
    %24 = vector.shape_cast %23 : vector<1x16x1xf32> to vector<16x1xf32>
    %25 = vector.extract_strided_slice %16 {offsets = [1, 0], sizes = [1, 16], strides = [1, 1]} : vector<3x16xf32> to vector<1x16xf32>
    %26 = vector.broadcast %24 : vector<16x1xf32> to vector<16x16xf32>
    %27 = vector.broadcast %25 : vector<1x16xf32> to vector<16x16xf32>
    %28 = arith.mulf %26, %27 : vector<16x16xf32>
    %29 = arith.addf %22, %28 : vector<16x16xf32>
    %c2 = arith.constant 2 : index
    %c0_17 = arith.constant 0 : index
    %c0_18 = arith.constant 0 : index
    %30 = vector.load %arg6[%c2, %c0_17, %c0_18] : memref<3x16x1xf32, #tpu.memory_space<vmem>>, vector<1x16x1xf32>
    %31 = vector.shape_cast %30 : vector<1x16x1xf32> to vector<16x1xf32>
    %32 = vector.extract_strided_slice %16 {offsets = [2, 0], sizes = [1, 16], strides = [1, 1]} : vector<3x16xf32> to vector<1x16xf32>
    %33 = vector.broadcast %31 : vector<16x1xf32> to vector<16x16xf32>
    %34 = vector.broadcast %32 : vector<1x16xf32> to vector<16x16xf32>
    %35 = arith.mulf %33, %34 : vector<16x16xf32>
    %36 = arith.addf %29, %35 : vector<16x16xf32>
    %37 = arith.subf %14, %36 : vector<16x16xf32>
    %c0_19 = arith.constant 0 : index
    %c0_20 = arith.constant 0 : index
    %38 = vector.load %arg7[%c0_19, %c0_20] : memref<16x1xf32, #tpu.memory_space<vmem>>, vector<16x1xf32>
    %39 = vector.broadcast %38 : vector<16x1xf32> to vector<16x16xf32>
    %40 = arith.addf %37, %39 : vector<16x16xf32>
    %cst_21 = arith.constant 0.000000e+00 : f32
    %41 = vector.broadcast %cst_21 : f32 to vector<16x16xf32>
    %42 = arith.maximumf %40, %41 : vector<16x16xf32>
    %c0_22 = arith.constant 0 : index
    %c0_23 = arith.constant 0 : index
    %43 = vector.load %arg9[%c0_22, %c0_23] : memref<16x16xf32, #tpu.memory_space<vmem>>, vector<16x16xf32>
    %44 = arith.maximumf %43, %42 : vector<16x16xf32>
    %c0_24 = arith.constant 0 : index
    %c0_25 = arith.constant 0 : index
    %45 = vector.load %arg9[%c0_24, %c0_25] : memref<16x16xf32, #tpu.memory_space<vmem>>, vector<16x16xf32>
    tpu.vector_store %arg9[%c0_24, %c0_25], %44 {strides = array<i32>} : memref<16x16xf32, #tpu.memory_space<vmem>>, vector<16x16xf32>,
    %c7_i32 = arith.constant 7 : i32
    %46 = arith.cmpi eq, %arg2, %c7_i32 : i32
    %47 = arith.extui %46 : i1 to i32
    %c0_i32_26 = arith.constant 0 : i32
    %48 = arith.cmpi ne, %47, %c0_i32_26 : i32
    scf.if %48 {
      %c0_27 = arith.constant 0 : index
      %c0_28 = arith.constant 0 : index
      %49 = vector.load %arg9[%c0_27, %c0_28] : memref<16x16xf32, #tpu.memory_space<vmem>>, vector<16x16xf32>
      %50 = arith.truncf %49 : vector<16x16xf32> to vector<16x16xbf16>
      %c0_29 = arith.constant 0 : index
      %c0_30 = arith.constant 0 : index
      %c0_31 = arith.constant 0 : index
      %51 = vector.load %arg8[%c0_29, %c0_30, %c0_31] : memref<1x16x16xbf16, #tpu.memory_space<vmem>>, vector<1x16x16xbf16>
      %52 = vector.shape_cast %51 : vector<1x16x16xbf16> to vector<16x16xbf16>
      %53 = vector.shape_cast %50 : vector<16x16xbf16> to vector<1x16x16xbf16>
      tpu.vector_store %arg8[%c0_29, %c0_30, %c0_31], %53 {strides = array<i32>} : memref<1x16x16xbf16, #tpu.memory_space<vmem>>, vector<1x16x16xbf16>,
    } else {
    }
    return
  }
  func.func @transform_0(%arg0: i32, %arg1: i32, %arg2: i32) -> (i32, i32, i32) {
    %c0_i32 = arith.constant 0 : i32
    %c0_i32_0 = arith.constant 0 : i32
    %c0_i32_1 = arith.constant 0 : i32
    return %arg0, %c0_i32, %c0_i32_0 : i32, i32, i32
  }
  func.func @transform_1(%arg0: i32, %arg1: i32, %arg2: i32) -> (i32, i32, i32) {
    %c0_i32 = arith.constant 0 : i32
    %c0_i32_0 = arith.constant 0 : i32
    return %arg0, %c0_i32, %arg1 : i32, i32, i32
  }
  func.func @transform_2(%arg0: i32, %arg1: i32, %arg2: i32) -> (i32, i32, i32, i32) {
    %c0_i32 = arith.constant 0 : i32
    %c0_i32_0 = arith.constant 0 : i32
    return %arg0, %arg2, %c0_i32, %arg1 : i32, i32, i32, i32
  }
  func.func @transform_3(%arg0: i32, %arg1: i32, %arg2: i32) -> (i32, i32, i32) {
    %c0_i32 = arith.constant 0 : i32
    %c0_i32_0 = arith.constant 0 : i32
    %c0_i32_1 = arith.constant 0 : i32
    %c0_i32_2 = arith.constant 0 : i32
    return %c0_i32, %c0_i32_0, %c0_i32_1 : i32, i32, i32
  }
  func.func @transform_4(%arg0: i32, %arg1: i32, %arg2: i32) -> (i32, i32) {
    %c0_i32 = arith.constant 0 : i32
    %c0_i32_0 = arith.constant 0 : i32
    %c0_i32_1 = arith.constant 0 : i32
    return %c0_i32, %c0_i32_0 : i32, i32
  }
  func.func @transform_5(%arg0: i32, %arg1: i32, %arg2: i32) -> (i32, i32, i32) {
    %c0_i32 = arith.constant 0 : i32
    %c0_i32_0 = arith.constant 0 : i32
    return %arg0, %c0_i32, %arg1 : i32, i32, i32
  }
}

module attributes {stable_mosaic.version = 11 : i64} {
  func.func @_conv_kernel(%arg0: i32, %arg1: i32, %arg2: memref<1x19x16xbf16, #tpu.memory_space<vmem>>, %arg3: memref<16x19xf32, #tpu.memory_space<vmem>>, %arg4: memref<16x1xf32, #tpu.memory_space<vmem>>, %arg5: memref<1x16x16xbf16, #tpu.memory_space<vmem>>) attributes {dimension_semantics = [#tpu.dimension_semantics<parallel>, #tpu.dimension_semantics<parallel>], iteration_bounds = array<i64: 2, 1>, scalar_prefetch = 0 : i64, scratch_operands = 0 : i64, tpu.core_type = #tpu.core_type<tc>, window_params = [{transform_indices = @transform_0, window_bounds = array<i64: 1, 19, 16>}, {pipeline_mode = #tpu.pipeline_mode<synchronous>, transform_indices = @transform_1, window_bounds = array<i64: 16, 19>}, {pipeline_mode = #tpu.pipeline_mode<synchronous>, transform_indices = @transform_2, window_bounds = array<i64: 16, 1>}, {transform_indices = @transform_3, window_bounds = array<i64: 1, 16, 16>}]} {
    %c0 = arith.constant 0 : index
    %c0_0 = arith.constant 0 : index
    %c0_1 = arith.constant 0 : index
    %0 = vector.load %arg2[%c0, %c0_0, %c0_1] : memref<1x19x16xbf16, #tpu.memory_space<vmem>>, vector<1x19x16xbf16>
    %1 = vector.shape_cast %0 : vector<1x19x16xbf16> to vector<19x16xbf16>
    %c0_2 = arith.constant 0 : index
    %c0_3 = arith.constant 0 : index
    %2 = vector.load %arg3[%c0_2, %c0_3] : memref<16x19xf32, #tpu.memory_space<vmem>>, vector<16x19xf32>
    %3 = arith.truncf %2 : vector<16x19xf32> to vector<16x19xbf16>
    %cst = arith.constant dense<0.000000e+00> : vector<16x16xf32>
    %4 = tpu.matmul %3, %1, %cst {dimension_numbers = #tpu.dot_dimension_numbers<[1], [0], [0], [1], [0, 0, 1, 1], [], []>} : vector<16x19xbf16>, vector<19x16xbf16>, vector<16x16xf32> -> vector<16x16xf32>
    %c0_4 = arith.constant 0 : index
    %c0_5 = arith.constant 0 : index
    %5 = vector.load %arg4[%c0_4, %c0_5] : memref<16x1xf32, #tpu.memory_space<vmem>>, vector<16x1xf32>
    %6 = vector.broadcast %5 : vector<16x1xf32> to vector<16x16xf32>
    %7 = arith.addf %4, %6 : vector<16x16xf32>
    %8 = arith.truncf %7 : vector<16x16xf32> to vector<16x16xbf16>
    %c0_6 = arith.constant 0 : index
    %c0_7 = arith.constant 0 : index
    %c0_8 = arith.constant 0 : index
    %9 = vector.load %arg5[%c0_6, %c0_7, %c0_8] : memref<1x16x16xbf16, #tpu.memory_space<vmem>>, vector<1x16x16xbf16>
    %10 = vector.shape_cast %9 : vector<1x16x16xbf16> to vector<16x16xbf16>
    %11 = vector.shape_cast %8 : vector<16x16xbf16> to vector<1x16x16xbf16>
    tpu.vector_store %arg5[%c0_6, %c0_7, %c0_8], %11 {strides = array<i32>} : memref<1x16x16xbf16, #tpu.memory_space<vmem>>, vector<1x16x16xbf16>,
    return
  }
  func.func @transform_0(%arg0: i32, %arg1: i32) -> (i32, i32, i32) {
    %c0_i32 = arith.constant 0 : i32
    %c0_i32_0 = arith.constant 0 : i32
    return %arg0, %c0_i32, %arg1 : i32, i32, i32
  }
  func.func @transform_1(%arg0: i32, %arg1: i32) -> (i32, i32) {
    %c0_i32 = arith.constant 0 : i32
    %c0_i32_0 = arith.constant 0 : i32
    %c0_i32_1 = arith.constant 0 : i32
    return %c0_i32, %c0_i32_0 : i32, i32
  }
  func.func @transform_2(%arg0: i32, %arg1: i32) -> (i32, i32) {
    %c0_i32 = arith.constant 0 : i32
    %c0_i32_0 = arith.constant 0 : i32
    %c0_i32_1 = arith.constant 0 : i32
    return %c0_i32, %c0_i32_0 : i32, i32
  }
  func.func @transform_3(%arg0: i32, %arg1: i32) -> (i32, i32, i32) {
    %c0_i32 = arith.constant 0 : i32
    %c0_i32_0 = arith.constant 0 : i32
    return %arg0, %c0_i32, %arg1 : i32, i32, i32
  }
}

module attributes {stable_mosaic.version = 11 : i64} {
  func.func @_group_pool_kernel(%arg0: i32, %arg1: i32, %arg2: i32, %arg3: memref<1x16x16xbf16, #tpu.memory_space<vmem>>, %arg4: memref<1x3x16xf32, #tpu.memory_space<vmem>>, %arg5: memref<1x1x1x16xi32, #tpu.memory_space<vmem>>, %arg6: memref<3x16x1xf32, #tpu.memory_space<vmem>>, %arg7: memref<16x1xf32, #tpu.memory_space<vmem>>, %arg8: memref<1x16x16xbf16, #tpu.memory_space<vmem>>, %arg9: memref<16x16xf32, #tpu.memory_space<vmem>>) attributes {dimension_semantics = [#tpu.dimension_semantics<parallel>, #tpu.dimension_semantics<parallel>, #tpu.dimension_semantics<arbitrary>], iteration_bounds = array<i64: 2, 1, 8>, scalar_prefetch = 0 : i64, scratch_operands = 1 : i64, tpu.core_type = #tpu.core_type<tc>, window_params = [{transform_indices = @transform_0, window_bounds = array<i64: 1, 16, 16>}, {transform_indices = @transform_1, window_bounds = array<i64: 1, 3, 16>}, {transform_indices = @transform_2, window_bounds = array<i64: 1, 1, 1, 16>}, {pipeline_mode = #tpu.pipeline_mode<synchronous>, transform_indices = @transform_3, window_bounds = array<i64: 3, 16, 1>}, {pipeline_mode = #tpu.pipeline_mode<synchronous>, transform_indices = @transform_4, window_bounds = array<i64: 16, 1>}, {transform_indices = @transform_5, window_bounds = array<i64: 1, 16, 16>}]} {
    %c0_i32 = arith.constant 0 : i32
    %0 = arith.cmpi eq, %arg2, %c0_i32 : i32
    %1 = arith.extui %0 : i1 to i32
    %c0_i32_0 = arith.constant 0 : i32
    %2 = arith.cmpi ne, %1, %c0_i32_0 : i32
    scf.if %2 {
      %cst_27 = arith.constant 0xFF800000 : f32
      %49 = vector.broadcast %cst_27 : f32 to vector<16x16xf32>
      %c0_28 = arith.constant 0 : index
      %c0_29 = arith.constant 0 : index
      %50 = vector.load %arg9[%c0_28, %c0_29] : memref<16x16xf32, #tpu.memory_space<vmem>>, vector<16x16xf32>
      tpu.vector_store %arg9[%c0_28, %c0_29], %49 {strides = array<i32>} : memref<16x16xf32, #tpu.memory_space<vmem>>, vector<16x16xf32>,
    } else {
    }
    %c0 = arith.constant 0 : index
    %c0_1 = arith.constant 0 : index
    %c0_2 = arith.constant 0 : index
    %c0_3 = arith.constant 0 : index
    %3 = vector.load %arg5[%c0, %c0_1, %c0_2, %c0_3] : memref<1x1x1x16xi32, #tpu.memory_space<vmem>>, vector<1x1x1x16xi32>
    %4 = vector.shape_cast %3 : vector<1x1x1x16xi32> to vector<1x16xi32>
    %5 = tpu.iota {dimensions = array<i32: 0>} : vector<16x16xi32>
    %6 = vector.broadcast %4 : vector<1x16xi32> to vector<16x16xi32>
    %7 = arith.cmpi eq, %5, %6 : vector<16x16xi32>
    %cst = arith.constant 1.000000e+00 : f32
    %cst_4 = arith.constant 0.000000e+00 : f32
    %8 = vector.broadcast %cst : f32 to vector<16x16xf32>
    %9 = vector.broadcast %cst_4 : f32 to vector<16x16xf32>
    %10 = arith.select %7, %8, %9 : vector<16x16xi1>, vector<16x16xf32>
    %11 = arith.truncf %10 : vector<16x16xf32> to vector<16x16xbf16>
    %c0_5 = arith.constant 0 : index
    %c0_6 = arith.constant 0 : index
    %c0_7 = arith.constant 0 : index
    %12 = vector.load %arg3[%c0_5, %c0_6, %c0_7] : memref<1x16x16xbf16, #tpu.memory_space<vmem>>, vector<1x16x16xbf16>
    %13 = vector.shape_cast %12 : vector<1x16x16xbf16> to vector<16x16xbf16>
    %cst_8 = arith.constant dense<0.000000e+00> : vector<16x16xf32>
    %14 = tpu.matmul %13, %11, %cst_8 {dimension_numbers = #tpu.dot_dimension_numbers<[1], [0], [0], [1], [0, 0, 1, 1], [], []>} : vector<16x16xbf16>, vector<16x16xbf16>, vector<16x16xf32> -> vector<16x16xf32>
    %c0_9 = arith.constant 0 : index
    %c0_10 = arith.constant 0 : index
    %c0_11 = arith.constant 0 : index
    %15 = vector.load %arg4[%c0_9, %c0_10, %c0_11] : memref<1x3x16xf32, #tpu.memory_space<vmem>>, vector<1x3x16xf32>
    %16 = vector.shape_cast %15 : vector<1x3x16xf32> to vector<3x16xf32>
    %c0_12 = arith.constant 0 : index
    %c0_13 = arith.constant 0 : index
    %c0_14 = arith.constant 0 : index
    %17 = vector.load %arg6[%c0_12, %c0_13, %c0_14] : memref<3x16x1xf32, #tpu.memory_space<vmem>>, vector<1x16x1xf32>
    %18 = vector.shape_cast %17 : vector<1x16x1xf32> to vector<16x1xf32>
    %19 = vector.extract_strided_slice %16 {offsets = [0, 0], sizes = [1, 16], strides = [1, 1]} : vector<3x16xf32> to vector<1x16xf32>
    %20 = vector.broadcast %18 : vector<16x1xf32> to vector<16x16xf32>
    %21 = vector.broadcast %19 : vector<1x16xf32> to vector<16x16xf32>
    %22 = arith.mulf %20, %21 : vector<16x16xf32>
    %c1 = arith.constant 1 : index
    %c0_15 = arith.constant 0 : index
    %c0_16 = arith.constant 0 : index
    %23 = vector.load %arg6[%c1, %c0_15, %c0_16] : memref<3x16x1xf32, #tpu.memory_space<vmem>>, vector<1x16x1xf32>
    %24 = vector.shape_cast %23 : vector<1x16x1xf32> to vector<16x1xf32>
    %25 = vector.extract_strided_slice %16 {offsets = [1, 0], sizes = [1, 16], strides = [1, 1]} : vector<3x16xf32> to vector<1x16xf32>
    %26 = vector.broadcast %24 : vector<16x1xf32> to vector<16x16xf32>
    %27 = vector.broadcast %25 : vector<1x16xf32> to vector<16x16xf32>
    %28 = arith.mulf %26, %27 : vector<16x16xf32>
    %29 = arith.addf %22, %28 : vector<16x16xf32>
    %c2 = arith.constant 2 : index
    %c0_17 = arith.constant 0 : index
    %c0_18 = arith.constant 0 : index
    %30 = vector.load %arg6[%c2, %c0_17, %c0_18] : memref<3x16x1xf32, #tpu.memory_space<vmem>>, vector<1x16x1xf32>
    %31 = vector.shape_cast %30 : vector<1x16x1xf32> to vector<16x1xf32>
    %32 = vector.extract_strided_slice %16 {offsets = [2, 0], sizes = [1, 16], strides = [1, 1]} : vector<3x16xf32> to vector<1x16xf32>
    %33 = vector.broadcast %31 : vector<16x1xf32> to vector<16x16xf32>
    %34 = vector.broadcast %32 : vector<1x16xf32> to vector<16x16xf32>
    %35 = arith.mulf %33, %34 : vector<16x16xf32>
    %36 = arith.addf %29, %35 : vector<16x16xf32>
    %37 = arith.subf %14, %36 : vector<16x16xf32>
    %c0_19 = arith.constant 0 : index
    %c0_20 = arith.constant 0 : index
    %38 = vector.load %arg7[%c0_19, %c0_20] : memref<16x1xf32, #tpu.memory_space<vmem>>, vector<16x1xf32>
    %39 = vector.broadcast %38 : vector<16x1xf32> to vector<16x16xf32>
    %40 = arith.addf %37, %39 : vector<16x16xf32>
    %cst_21 = arith.constant 0.000000e+00 : f32
    %41 = vector.broadcast %cst_21 : f32 to vector<16x16xf32>
    %42 = arith.maximumf %40, %41 : vector<16x16xf32>
    %c0_22 = arith.constant 0 : index
    %c0_23 = arith.constant 0 : index
    %43 = vector.load %arg9[%c0_22, %c0_23] : memref<16x16xf32, #tpu.memory_space<vmem>>, vector<16x16xf32>
    %44 = arith.maximumf %43, %42 : vector<16x16xf32>
    %c0_24 = arith.constant 0 : index
    %c0_25 = arith.constant 0 : index
    %45 = vector.load %arg9[%c0_24, %c0_25] : memref<16x16xf32, #tpu.memory_space<vmem>>, vector<16x16xf32>
    tpu.vector_store %arg9[%c0_24, %c0_25], %44 {strides = array<i32>} : memref<16x16xf32, #tpu.memory_space<vmem>>, vector<16x16xf32>,
    %c7_i32 = arith.constant 7 : i32
    %46 = arith.cmpi eq, %arg2, %c7_i32 : i32
    %47 = arith.extui %46 : i1 to i32
    %c0_i32_26 = arith.constant 0 : i32
    %48 = arith.cmpi ne, %47, %c0_i32_26 : i32
    scf.if %48 {
      %c0_27 = arith.constant 0 : index
      %c0_28 = arith.constant 0 : index
      %49 = vector.load %arg9[%c0_27, %c0_28] : memref<16x16xf32, #tpu.memory_space<vmem>>, vector<16x16xf32>
      %50 = arith.truncf %49 : vector<16x16xf32> to vector<16x16xbf16>
      %c0_29 = arith.constant 0 : index
      %c0_30 = arith.constant 0 : index
      %c0_31 = arith.constant 0 : index
      %51 = vector.load %arg8[%c0_29, %c0_30, %c0_31] : memref<1x16x16xbf16, #tpu.memory_space<vmem>>, vector<1x16x16xbf16>
      %52 = vector.shape_cast %51 : vector<1x16x16xbf16> to vector<16x16xbf16>
      %53 = vector.shape_cast %50 : vector<16x16xbf16> to vector<1x16x16xbf16>
      tpu.vector_store %arg8[%c0_29, %c0_30, %c0_31], %53 {strides = array<i32>} : memref<1x16x16xbf16, #tpu.memory_space<vmem>>, vector<1x16x16xbf16>,
    } else {
    }
    return
  }
  func.func @transform_0(%arg0: i32, %arg1: i32, %arg2: i32) -> (i32, i32, i32) {
    %c0_i32 = arith.constant 0 : i32
    %c0_i32_0 = arith.constant 0 : i32
    %c0_i32_1 = arith.constant 0 : i32
    return %arg0, %c0_i32, %c0_i32_0 : i32, i32, i32
  }
  func.func @transform_1(%arg0: i32, %arg1: i32, %arg2: i32) -> (i32, i32, i32) {
    %c0_i32 = arith.constant 0 : i32
    %c0_i32_0 = arith.constant 0 : i32
    return %arg0, %c0_i32, %arg1 : i32, i32, i32
  }
  func.func @transform_2(%arg0: i32, %arg1: i32, %arg2: i32) -> (i32, i32, i32, i32) {
    %c0_i32 = arith.constant 0 : i32
    %c0_i32_0 = arith.constant 0 : i32
    return %arg0, %arg2, %c0_i32, %arg1 : i32, i32, i32, i32
  }
  func.func @transform_3(%arg0: i32, %arg1: i32, %arg2: i32) -> (i32, i32, i32) {
    %c0_i32 = arith.constant 0 : i32
    %c0_i32_0 = arith.constant 0 : i32
    %c0_i32_1 = arith.constant 0 : i32
    %c0_i32_2 = arith.constant 0 : i32
    return %c0_i32, %c0_i32_0, %c0_i32_1 : i32, i32, i32
  }
  func.func @transform_4(%arg0: i32, %arg1: i32, %arg2: i32) -> (i32, i32) {
    %c0_i32 = arith.constant 0 : i32
    %c0_i32_0 = arith.constant 0 : i32
    %c0_i32_1 = arith.constant 0 : i32
    return %c0_i32, %c0_i32_0 : i32, i32
  }
  func.func @transform_5(%arg0: i32, %arg1: i32, %arg2: i32) -> (i32, i32, i32) {
    %c0_i32 = arith.constant 0 : i32
    %c0_i32_0 = arith.constant 0 : i32
    return %arg0, %c0_i32, %arg1 : i32, i32, i32
  }
}

module attributes {stable_mosaic.version = 11 : i64} {
  func.func @_conv_kernel(%arg0: i32, %arg1: i32, %arg2: memref<1x16x16xbf16, #tpu.memory_space<vmem>>, %arg3: memref<64x16xf32, #tpu.memory_space<vmem>>, %arg4: memref<64x1xf32, #tpu.memory_space<vmem>>, %arg5: memref<1x64x16xbf16, #tpu.memory_space<vmem>>) attributes {dimension_semantics = [#tpu.dimension_semantics<parallel>, #tpu.dimension_semantics<parallel>], iteration_bounds = array<i64: 2, 1>, scalar_prefetch = 0 : i64, scratch_operands = 0 : i64, tpu.core_type = #tpu.core_type<tc>, window_params = [{transform_indices = @transform_0, window_bounds = array<i64: 1, 16, 16>}, {pipeline_mode = #tpu.pipeline_mode<synchronous>, transform_indices = @transform_1, window_bounds = array<i64: 64, 16>}, {pipeline_mode = #tpu.pipeline_mode<synchronous>, transform_indices = @transform_2, window_bounds = array<i64: 64, 1>}, {transform_indices = @transform_3, window_bounds = array<i64: 1, 64, 16>}]} {
    %c0 = arith.constant 0 : index
    %c0_0 = arith.constant 0 : index
    %c0_1 = arith.constant 0 : index
    %0 = vector.load %arg2[%c0, %c0_0, %c0_1] : memref<1x16x16xbf16, #tpu.memory_space<vmem>>, vector<1x16x16xbf16>
    %1 = vector.shape_cast %0 : vector<1x16x16xbf16> to vector<16x16xbf16>
    %c0_2 = arith.constant 0 : index
    %c0_3 = arith.constant 0 : index
    %2 = vector.load %arg3[%c0_2, %c0_3] : memref<64x16xf32, #tpu.memory_space<vmem>>, vector<64x16xf32>
    %3 = arith.truncf %2 : vector<64x16xf32> to vector<64x16xbf16>
    %cst = arith.constant dense<0.000000e+00> : vector<64x16xf32>
    %4 = tpu.matmul %3, %1, %cst {dimension_numbers = #tpu.dot_dimension_numbers<[1], [0], [0], [1], [0, 0, 1, 1], [], []>} : vector<64x16xbf16>, vector<16x16xbf16>, vector<64x16xf32> -> vector<64x16xf32>
    %c0_4 = arith.constant 0 : index
    %c0_5 = arith.constant 0 : index
    %5 = vector.load %arg4[%c0_4, %c0_5] : memref<64x1xf32, #tpu.memory_space<vmem>>, vector<64x1xf32>
    %6 = vector.broadcast %5 : vector<64x1xf32> to vector<64x16xf32>
    %7 = arith.addf %4, %6 : vector<64x16xf32>
    %cst_6 = arith.constant 0.000000e+00 : f32
    %8 = vector.broadcast %cst_6 : f32 to vector<64x16xf32>
    %9 = arith.maximumf %7, %8 : vector<64x16xf32>
    %10 = arith.truncf %9 : vector<64x16xf32> to vector<64x16xbf16>
    %c0_7 = arith.constant 0 : index
    %c0_8 = arith.constant 0 : index
    %c0_9 = arith.constant 0 : index
    %11 = vector.load %arg5[%c0_7, %c0_8, %c0_9] : memref<1x64x16xbf16, #tpu.memory_space<vmem>>, vector<1x64x16xbf16>
    %12 = vector.shape_cast %11 : vector<1x64x16xbf16> to vector<64x16xbf16>
    %13 = vector.shape_cast %10 : vector<64x16xbf16> to vector<1x64x16xbf16>
    tpu.vector_store %arg5[%c0_7, %c0_8, %c0_9], %13 {strides = array<i32>} : memref<1x64x16xbf16, #tpu.memory_space<vmem>>, vector<1x64x16xbf16>,
    return
  }
  func.func @transform_0(%arg0: i32, %arg1: i32) -> (i32, i32, i32) {
    %c0_i32 = arith.constant 0 : i32
    %c0_i32_0 = arith.constant 0 : i32
    return %arg0, %c0_i32, %arg1 : i32, i32, i32
  }
  func.func @transform_1(%arg0: i32, %arg1: i32) -> (i32, i32) {
    %c0_i32 = arith.constant 0 : i32
    %c0_i32_0 = arith.constant 0 : i32
    %c0_i32_1 = arith.constant 0 : i32
    return %c0_i32, %c0_i32_0 : i32, i32
  }
  func.func @transform_2(%arg0: i32, %arg1: i32) -> (i32, i32) {
    %c0_i32 = arith.constant 0 : i32
    %c0_i32_0 = arith.constant 0 : i32
    %c0_i32_1 = arith.constant 0 : i32
    return %c0_i32, %c0_i32_0 : i32, i32
  }
  func.func @transform_3(%arg0: i32, %arg1: i32) -> (i32, i32, i32) {
    %c0_i32 = arith.constant 0 : i32
    %c0_i32_0 = arith.constant 0 : i32
    return %arg0, %c0_i32, %arg1 : i32, i32, i32
  }
}

module attributes {stable_mosaic.version = 11 : i64} {
  func.func @_conv_res_kernel(%arg0: i32, %arg1: i32, %arg2: memref<1x64x16xbf16, #tpu.memory_space<vmem>>, %arg3: memref<16x64xf32, #tpu.memory_space<vmem>>, %arg4: memref<16x1xf32, #tpu.memory_space<vmem>>, %arg5: memref<1x16x16xbf16, #tpu.memory_space<vmem>>, %arg6: memref<1x16x16xbf16, #tpu.memory_space<vmem>>) attributes {dimension_semantics = [#tpu.dimension_semantics<parallel>, #tpu.dimension_semantics<parallel>], iteration_bounds = array<i64: 2, 1>, scalar_prefetch = 0 : i64, scratch_operands = 0 : i64, tpu.core_type = #tpu.core_type<tc>, window_params = [{transform_indices = @transform_0, window_bounds = array<i64: 1, 64, 16>}, {pipeline_mode = #tpu.pipeline_mode<synchronous>, transform_indices = @transform_1, window_bounds = array<i64: 16, 64>}, {pipeline_mode = #tpu.pipeline_mode<synchronous>, transform_indices = @transform_2, window_bounds = array<i64: 16, 1>}, {transform_indices = @transform_3, window_bounds = array<i64: 1, 16, 16>}, {transform_indices = @transform_4, window_bounds = array<i64: 1, 16, 16>}]} {
    %c0 = arith.constant 0 : index
    %c0_0 = arith.constant 0 : index
    %c0_1 = arith.constant 0 : index
    %0 = vector.load %arg2[%c0, %c0_0, %c0_1] : memref<1x64x16xbf16, #tpu.memory_space<vmem>>, vector<1x64x16xbf16>
    %1 = vector.shape_cast %0 : vector<1x64x16xbf16> to vector<64x16xbf16>
    %c0_2 = arith.constant 0 : index
    %c0_3 = arith.constant 0 : index
    %2 = vector.load %arg3[%c0_2, %c0_3] : memref<16x64xf32, #tpu.memory_space<vmem>>, vector<16x64xf32>
    %3 = arith.truncf %2 : vector<16x64xf32> to vector<16x64xbf16>
    %cst = arith.constant dense<0.000000e+00> : vector<16x16xf32>
    %4 = tpu.matmul %3, %1, %cst {dimension_numbers = #tpu.dot_dimension_numbers<[1], [0], [0], [1], [0, 0, 1, 1], [], []>} : vector<16x64xbf16>, vector<64x16xbf16>, vector<16x16xf32> -> vector<16x16xf32>
    %c0_4 = arith.constant 0 : index
    %c0_5 = arith.constant 0 : index
    %5 = vector.load %arg4[%c0_4, %c0_5] : memref<16x1xf32, #tpu.memory_space<vmem>>, vector<16x1xf32>
    %6 = vector.broadcast %5 : vector<16x1xf32> to vector<16x16xf32>
    %7 = arith.addf %4, %6 : vector<16x16xf32>
    %c0_6 = arith.constant 0 : index
    %c0_7 = arith.constant 0 : index
    %c0_8 = arith.constant 0 : index
    %8 = vector.load %arg5[%c0_6, %c0_7, %c0_8] : memref<1x16x16xbf16, #tpu.memory_space<vmem>>, vector<1x16x16xbf16>
    %9 = vector.shape_cast %8 : vector<1x16x16xbf16> to vector<16x16xbf16>
    %10 = arith.extf %9 : vector<16x16xbf16> to vector<16x16xf32>
    %11 = arith.addf %7, %10 : vector<16x16xf32>
    %cst_9 = arith.constant 0.000000e+00 : f32
    %12 = vector.broadcast %cst_9 : f32 to vector<16x16xf32>
    %13 = arith.maximumf %11, %12 : vector<16x16xf32>
    %14 = arith.truncf %13 : vector<16x16xf32> to vector<16x16xbf16>
    %c0_10 = arith.constant 0 : index
    %c0_11 = arith.constant 0 : index
    %c0_12 = arith.constant 0 : index
    %15 = vector.load %arg6[%c0_10, %c0_11, %c0_12] : memref<1x16x16xbf16, #tpu.memory_space<vmem>>, vector<1x16x16xbf16>
    %16 = vector.shape_cast %15 : vector<1x16x16xbf16> to vector<16x16xbf16>
    %17 = vector.shape_cast %14 : vector<16x16xbf16> to vector<1x16x16xbf16>
    tpu.vector_store %arg6[%c0_10, %c0_11, %c0_12], %17 {strides = array<i32>} : memref<1x16x16xbf16, #tpu.memory_space<vmem>>, vector<1x16x16xbf16>,
    return
  }
  func.func @transform_0(%arg0: i32, %arg1: i32) -> (i32, i32, i32) {
    %c0_i32 = arith.constant 0 : i32
    %c0_i32_0 = arith.constant 0 : i32
    return %arg0, %c0_i32, %arg1 : i32, i32, i32
  }
  func.func @transform_1(%arg0: i32, %arg1: i32) -> (i32, i32) {
    %c0_i32 = arith.constant 0 : i32
    %c0_i32_0 = arith.constant 0 : i32
    %c0_i32_1 = arith.constant 0 : i32
    return %c0_i32, %c0_i32_0 : i32, i32
  }
  func.func @transform_2(%arg0: i32, %arg1: i32) -> (i32, i32) {
    %c0_i32 = arith.constant 0 : i32
    %c0_i32_0 = arith.constant 0 : i32
    %c0_i32_1 = arith.constant 0 : i32
    return %c0_i32, %c0_i32_0 : i32, i32
  }
  func.func @transform_3(%arg0: i32, %arg1: i32) -> (i32, i32, i32) {
    %c0_i32 = arith.constant 0 : i32
    %c0_i32_0 = arith.constant 0 : i32
    return %arg0, %c0_i32, %arg1 : i32, i32, i32
  }
  func.func @transform_4(%arg0: i32, %arg1: i32) -> (i32, i32, i32) {
    %c0_i32 = arith.constant 0 : i32
    %c0_i32_0 = arith.constant 0 : i32
    return %arg0, %c0_i32, %arg1 : i32, i32, i32
  }
}

module attributes {stable_mosaic.version = 11 : i64} {
  func.func @_conv_kernel(%arg0: i32, %arg1: i32, %arg2: memref<1x19x16xbf16, #tpu.memory_space<vmem>>, %arg3: memref<32x19xf32, #tpu.memory_space<vmem>>, %arg4: memref<32x1xf32, #tpu.memory_space<vmem>>, %arg5: memref<1x32x16xbf16, #tpu.memory_space<vmem>>) attributes {dimension_semantics = [#tpu.dimension_semantics<parallel>, #tpu.dimension_semantics<parallel>], iteration_bounds = array<i64: 2, 1>, scalar_prefetch = 0 : i64, scratch_operands = 0 : i64, tpu.core_type = #tpu.core_type<tc>, window_params = [{transform_indices = @transform_0, window_bounds = array<i64: 1, 19, 16>}, {pipeline_mode = #tpu.pipeline_mode<synchronous>, transform_indices = @transform_1, window_bounds = array<i64: 32, 19>}, {pipeline_mode = #tpu.pipeline_mode<synchronous>, transform_indices = @transform_2, window_bounds = array<i64: 32, 1>}, {transform_indices = @transform_3, window_bounds = array<i64: 1, 32, 16>}]} {
    %c0 = arith.constant 0 : index
    %c0_0 = arith.constant 0 : index
    %c0_1 = arith.constant 0 : index
    %0 = vector.load %arg2[%c0, %c0_0, %c0_1] : memref<1x19x16xbf16, #tpu.memory_space<vmem>>, vector<1x19x16xbf16>
    %1 = vector.shape_cast %0 : vector<1x19x16xbf16> to vector<19x16xbf16>
    %c0_2 = arith.constant 0 : index
    %c0_3 = arith.constant 0 : index
    %2 = vector.load %arg3[%c0_2, %c0_3] : memref<32x19xf32, #tpu.memory_space<vmem>>, vector<32x19xf32>
    %3 = arith.truncf %2 : vector<32x19xf32> to vector<32x19xbf16>
    %cst = arith.constant dense<0.000000e+00> : vector<32x16xf32>
    %4 = tpu.matmul %3, %1, %cst {dimension_numbers = #tpu.dot_dimension_numbers<[1], [0], [0], [1], [0, 0, 1, 1], [], []>} : vector<32x19xbf16>, vector<19x16xbf16>, vector<32x16xf32> -> vector<32x16xf32>
    %c0_4 = arith.constant 0 : index
    %c0_5 = arith.constant 0 : index
    %5 = vector.load %arg4[%c0_4, %c0_5] : memref<32x1xf32, #tpu.memory_space<vmem>>, vector<32x1xf32>
    %6 = vector.broadcast %5 : vector<32x1xf32> to vector<32x16xf32>
    %7 = arith.addf %4, %6 : vector<32x16xf32>
    %8 = arith.truncf %7 : vector<32x16xf32> to vector<32x16xbf16>
    %c0_6 = arith.constant 0 : index
    %c0_7 = arith.constant 0 : index
    %c0_8 = arith.constant 0 : index
    %9 = vector.load %arg5[%c0_6, %c0_7, %c0_8] : memref<1x32x16xbf16, #tpu.memory_space<vmem>>, vector<1x32x16xbf16>
    %10 = vector.shape_cast %9 : vector<1x32x16xbf16> to vector<32x16xbf16>
    %11 = vector.shape_cast %8 : vector<32x16xbf16> to vector<1x32x16xbf16>
    tpu.vector_store %arg5[%c0_6, %c0_7, %c0_8], %11 {strides = array<i32>} : memref<1x32x16xbf16, #tpu.memory_space<vmem>>, vector<1x32x16xbf16>,
    return
  }
  func.func @transform_0(%arg0: i32, %arg1: i32) -> (i32, i32, i32) {
    %c0_i32 = arith.constant 0 : i32
    %c0_i32_0 = arith.constant 0 : i32
    return %arg0, %c0_i32, %arg1 : i32, i32, i32
  }
  func.func @transform_1(%arg0: i32, %arg1: i32) -> (i32, i32) {
    %c0_i32 = arith.constant 0 : i32
    %c0_i32_0 = arith.constant 0 : i32
    %c0_i32_1 = arith.constant 0 : i32
    return %c0_i32, %c0_i32_0 : i32, i32
  }
  func.func @transform_2(%arg0: i32, %arg1: i32) -> (i32, i32) {
    %c0_i32 = arith.constant 0 : i32
    %c0_i32_0 = arith.constant 0 : i32
    %c0_i32_1 = arith.constant 0 : i32
    return %c0_i32, %c0_i32_0 : i32, i32
  }
  func.func @transform_3(%arg0: i32, %arg1: i32) -> (i32, i32, i32) {
    %c0_i32 = arith.constant 0 : i32
    %c0_i32_0 = arith.constant 0 : i32
    return %arg0, %c0_i32, %arg1 : i32, i32, i32
  }
}

module attributes {stable_mosaic.version = 11 : i64} {
  func.func @_group_pool_kernel(%arg0: i32, %arg1: i32, %arg2: i32, %arg3: memref<1x32x16xbf16, #tpu.memory_space<vmem>>, %arg4: memref<1x3x4xf32, #tpu.memory_space<vmem>>, %arg5: memref<1x1x1x4xi32, #tpu.memory_space<vmem>>, %arg6: memref<3x32x1xf32, #tpu.memory_space<vmem>>, %arg7: memref<32x1xf32, #tpu.memory_space<vmem>>, %arg8: memref<1x32x4xbf16, #tpu.memory_space<vmem>>, %arg9: memref<32x4xf32, #tpu.memory_space<vmem>>) attributes {dimension_semantics = [#tpu.dimension_semantics<parallel>, #tpu.dimension_semantics<parallel>, #tpu.dimension_semantics<arbitrary>], iteration_bounds = array<i64: 2, 1, 8>, scalar_prefetch = 0 : i64, scratch_operands = 1 : i64, tpu.core_type = #tpu.core_type<tc>, window_params = [{transform_indices = @transform_0, window_bounds = array<i64: 1, 32, 16>}, {transform_indices = @transform_1, window_bounds = array<i64: 1, 3, 4>}, {transform_indices = @transform_2, window_bounds = array<i64: 1, 1, 1, 4>}, {pipeline_mode = #tpu.pipeline_mode<synchronous>, transform_indices = @transform_3, window_bounds = array<i64: 3, 32, 1>}, {pipeline_mode = #tpu.pipeline_mode<synchronous>, transform_indices = @transform_4, window_bounds = array<i64: 32, 1>}, {transform_indices = @transform_5, window_bounds = array<i64: 1, 32, 4>}]} {
    %c0_i32 = arith.constant 0 : i32
    %0 = arith.cmpi eq, %arg2, %c0_i32 : i32
    %1 = arith.extui %0 : i1 to i32
    %c0_i32_0 = arith.constant 0 : i32
    %2 = arith.cmpi ne, %1, %c0_i32_0 : i32
    scf.if %2 {
      %cst_27 = arith.constant 0xFF800000 : f32
      %49 = vector.broadcast %cst_27 : f32 to vector<32x4xf32>
      %c0_28 = arith.constant 0 : index
      %c0_29 = arith.constant 0 : index
      %50 = vector.load %arg9[%c0_28, %c0_29] : memref<32x4xf32, #tpu.memory_space<vmem>>, vector<32x4xf32>
      tpu.vector_store %arg9[%c0_28, %c0_29], %49 {strides = array<i32>} : memref<32x4xf32, #tpu.memory_space<vmem>>, vector<32x4xf32>,
    } else {
    }
    %c0 = arith.constant 0 : index
    %c0_1 = arith.constant 0 : index
    %c0_2 = arith.constant 0 : index
    %c0_3 = arith.constant 0 : index
    %3 = vector.load %arg5[%c0, %c0_1, %c0_2, %c0_3] : memref<1x1x1x4xi32, #tpu.memory_space<vmem>>, vector<1x1x1x4xi32>
    %4 = vector.shape_cast %3 : vector<1x1x1x4xi32> to vector<1x4xi32>
    %5 = tpu.iota {dimensions = array<i32: 0>} : vector<16x4xi32>
    %6 = vector.broadcast %4 : vector<1x4xi32> to vector<16x4xi32>
    %7 = arith.cmpi eq, %5, %6 : vector<16x4xi32>
    %cst = arith.constant 1.000000e+00 : f32
    %cst_4 = arith.constant 0.000000e+00 : f32
    %8 = vector.broadcast %cst : f32 to vector<16x4xf32>
    %9 = vector.broadcast %cst_4 : f32 to vector<16x4xf32>
    %10 = arith.select %7, %8, %9 : vector<16x4xi1>, vector<16x4xf32>
    %11 = arith.truncf %10 : vector<16x4xf32> to vector<16x4xbf16>
    %c0_5 = arith.constant 0 : index
    %c0_6 = arith.constant 0 : index
    %c0_7 = arith.constant 0 : index
    %12 = vector.load %arg3[%c0_5, %c0_6, %c0_7] : memref<1x32x16xbf16, #tpu.memory_space<vmem>>, vector<1x32x16xbf16>
    %13 = vector.shape_cast %12 : vector<1x32x16xbf16> to vector<32x16xbf16>
    %cst_8 = arith.constant dense<0.000000e+00> : vector<32x4xf32>
    %14 = tpu.matmul %13, %11, %cst_8 {dimension_numbers = #tpu.dot_dimension_numbers<[1], [0], [0], [1], [0, 0, 1, 1], [], []>} : vector<32x16xbf16>, vector<16x4xbf16>, vector<32x4xf32> -> vector<32x4xf32>
    %c0_9 = arith.constant 0 : index
    %c0_10 = arith.constant 0 : index
    %c0_11 = arith.constant 0 : index
    %15 = vector.load %arg4[%c0_9, %c0_10, %c0_11] : memref<1x3x4xf32, #tpu.memory_space<vmem>>, vector<1x3x4xf32>
    %16 = vector.shape_cast %15 : vector<1x3x4xf32> to vector<3x4xf32>
    %c0_12 = arith.constant 0 : index
    %c0_13 = arith.constant 0 : index
    %c0_14 = arith.constant 0 : index
    %17 = vector.load %arg6[%c0_12, %c0_13, %c0_14] : memref<3x32x1xf32, #tpu.memory_space<vmem>>, vector<1x32x1xf32>
    %18 = vector.shape_cast %17 : vector<1x32x1xf32> to vector<32x1xf32>
    %19 = vector.extract_strided_slice %16 {offsets = [0, 0], sizes = [1, 4], strides = [1, 1]} : vector<3x4xf32> to vector<1x4xf32>
    %20 = vector.broadcast %18 : vector<32x1xf32> to vector<32x4xf32>
    %21 = vector.broadcast %19 : vector<1x4xf32> to vector<32x4xf32>
    %22 = arith.mulf %20, %21 : vector<32x4xf32>
    %c1 = arith.constant 1 : index
    %c0_15 = arith.constant 0 : index
    %c0_16 = arith.constant 0 : index
    %23 = vector.load %arg6[%c1, %c0_15, %c0_16] : memref<3x32x1xf32, #tpu.memory_space<vmem>>, vector<1x32x1xf32>
    %24 = vector.shape_cast %23 : vector<1x32x1xf32> to vector<32x1xf32>
    %25 = vector.extract_strided_slice %16 {offsets = [1, 0], sizes = [1, 4], strides = [1, 1]} : vector<3x4xf32> to vector<1x4xf32>
    %26 = vector.broadcast %24 : vector<32x1xf32> to vector<32x4xf32>
    %27 = vector.broadcast %25 : vector<1x4xf32> to vector<32x4xf32>
    %28 = arith.mulf %26, %27 : vector<32x4xf32>
    %29 = arith.addf %22, %28 : vector<32x4xf32>
    %c2 = arith.constant 2 : index
    %c0_17 = arith.constant 0 : index
    %c0_18 = arith.constant 0 : index
    %30 = vector.load %arg6[%c2, %c0_17, %c0_18] : memref<3x32x1xf32, #tpu.memory_space<vmem>>, vector<1x32x1xf32>
    %31 = vector.shape_cast %30 : vector<1x32x1xf32> to vector<32x1xf32>
    %32 = vector.extract_strided_slice %16 {offsets = [2, 0], sizes = [1, 4], strides = [1, 1]} : vector<3x4xf32> to vector<1x4xf32>
    %33 = vector.broadcast %31 : vector<32x1xf32> to vector<32x4xf32>
    %34 = vector.broadcast %32 : vector<1x4xf32> to vector<32x4xf32>
    %35 = arith.mulf %33, %34 : vector<32x4xf32>
    %36 = arith.addf %29, %35 : vector<32x4xf32>
    %37 = arith.subf %14, %36 : vector<32x4xf32>
    %c0_19 = arith.constant 0 : index
    %c0_20 = arith.constant 0 : index
    %38 = vector.load %arg7[%c0_19, %c0_20] : memref<32x1xf32, #tpu.memory_space<vmem>>, vector<32x1xf32>
    %39 = vector.broadcast %38 : vector<32x1xf32> to vector<32x4xf32>
    %40 = arith.addf %37, %39 : vector<32x4xf32>
    %cst_21 = arith.constant 0.000000e+00 : f32
    %41 = vector.broadcast %cst_21 : f32 to vector<32x4xf32>
    %42 = arith.maximumf %40, %41 : vector<32x4xf32>
    %c0_22 = arith.constant 0 : index
    %c0_23 = arith.constant 0 : index
    %43 = vector.load %arg9[%c0_22, %c0_23] : memref<32x4xf32, #tpu.memory_space<vmem>>, vector<32x4xf32>
    %44 = arith.maximumf %43, %42 : vector<32x4xf32>
    %c0_24 = arith.constant 0 : index
    %c0_25 = arith.constant 0 : index
    %45 = vector.load %arg9[%c0_24, %c0_25] : memref<32x4xf32, #tpu.memory_space<vmem>>, vector<32x4xf32>
    tpu.vector_store %arg9[%c0_24, %c0_25], %44 {strides = array<i32>} : memref<32x4xf32, #tpu.memory_space<vmem>>, vector<32x4xf32>,
    %c7_i32 = arith.constant 7 : i32
    %46 = arith.cmpi eq, %arg2, %c7_i32 : i32
    %47 = arith.extui %46 : i1 to i32
    %c0_i32_26 = arith.constant 0 : i32
    %48 = arith.cmpi ne, %47, %c0_i32_26 : i32
    scf.if %48 {
      %c0_27 = arith.constant 0 : index
      %c0_28 = arith.constant 0 : index
      %49 = vector.load %arg9[%c0_27, %c0_28] : memref<32x4xf32, #tpu.memory_space<vmem>>, vector<32x4xf32>
      %50 = arith.truncf %49 : vector<32x4xf32> to vector<32x4xbf16>
      %c0_29 = arith.constant 0 : index
      %c0_30 = arith.constant 0 : index
      %c0_31 = arith.constant 0 : index
      %51 = vector.load %arg8[%c0_29, %c0_30, %c0_31] : memref<1x32x4xbf16, #tpu.memory_space<vmem>>, vector<1x32x4xbf16>
      %52 = vector.shape_cast %51 : vector<1x32x4xbf16> to vector<32x4xbf16>
      %53 = vector.shape_cast %50 : vector<32x4xbf16> to vector<1x32x4xbf16>
      tpu.vector_store %arg8[%c0_29, %c0_30, %c0_31], %53 {strides = array<i32>} : memref<1x32x4xbf16, #tpu.memory_space<vmem>>, vector<1x32x4xbf16>,
    } else {
    }
    return
  }
  func.func @transform_0(%arg0: i32, %arg1: i32, %arg2: i32) -> (i32, i32, i32) {
    %c0_i32 = arith.constant 0 : i32
    %c0_i32_0 = arith.constant 0 : i32
    %c0_i32_1 = arith.constant 0 : i32
    return %arg0, %c0_i32, %c0_i32_0 : i32, i32, i32
  }
  func.func @transform_1(%arg0: i32, %arg1: i32, %arg2: i32) -> (i32, i32, i32) {
    %c0_i32 = arith.constant 0 : i32
    %c0_i32_0 = arith.constant 0 : i32
    return %arg0, %c0_i32, %arg1 : i32, i32, i32
  }
  func.func @transform_2(%arg0: i32, %arg1: i32, %arg2: i32) -> (i32, i32, i32, i32) {
    %c0_i32 = arith.constant 0 : i32
    %c0_i32_0 = arith.constant 0 : i32
    return %arg0, %arg2, %c0_i32, %arg1 : i32, i32, i32, i32
  }
  func.func @transform_3(%arg0: i32, %arg1: i32, %arg2: i32) -> (i32, i32, i32) {
    %c0_i32 = arith.constant 0 : i32
    %c0_i32_0 = arith.constant 0 : i32
    %c0_i32_1 = arith.constant 0 : i32
    %c0_i32_2 = arith.constant 0 : i32
    return %c0_i32, %c0_i32_0, %c0_i32_1 : i32, i32, i32
  }
  func.func @transform_4(%arg0: i32, %arg1: i32, %arg2: i32) -> (i32, i32) {
    %c0_i32 = arith.constant 0 : i32
    %c0_i32_0 = arith.constant 0 : i32
    %c0_i32_1 = arith.constant 0 : i32
    return %c0_i32, %c0_i32_0 : i32, i32
  }
  func.func @transform_5(%arg0: i32, %arg1: i32, %arg2: i32) -> (i32, i32, i32) {
    %c0_i32 = arith.constant 0 : i32
    %c0_i32_0 = arith.constant 0 : i32
    return %arg0, %c0_i32, %arg1 : i32, i32, i32
  }
}

module attributes {stable_mosaic.version = 11 : i64} {
  func.func @_conv_kernel(%arg0: i32, %arg1: i32, %arg2: memref<1x35x4xbf16, #tpu.memory_space<vmem>>, %arg3: memref<32x35xf32, #tpu.memory_space<vmem>>, %arg4: memref<32x1xf32, #tpu.memory_space<vmem>>, %arg5: memref<1x32x4xbf16, #tpu.memory_space<vmem>>) attributes {dimension_semantics = [#tpu.dimension_semantics<parallel>, #tpu.dimension_semantics<parallel>], iteration_bounds = array<i64: 2, 1>, scalar_prefetch = 0 : i64, scratch_operands = 0 : i64, tpu.core_type = #tpu.core_type<tc>, window_params = [{transform_indices = @transform_0, window_bounds = array<i64: 1, 35, 4>}, {pipeline_mode = #tpu.pipeline_mode<synchronous>, transform_indices = @transform_1, window_bounds = array<i64: 32, 35>}, {pipeline_mode = #tpu.pipeline_mode<synchronous>, transform_indices = @transform_2, window_bounds = array<i64: 32, 1>}, {transform_indices = @transform_3, window_bounds = array<i64: 1, 32, 4>}]} {
    %c0 = arith.constant 0 : index
    %c0_0 = arith.constant 0 : index
    %c0_1 = arith.constant 0 : index
    %0 = vector.load %arg2[%c0, %c0_0, %c0_1] : memref<1x35x4xbf16, #tpu.memory_space<vmem>>, vector<1x35x4xbf16>
    %1 = vector.shape_cast %0 : vector<1x35x4xbf16> to vector<35x4xbf16>
    %c0_2 = arith.constant 0 : index
    %c0_3 = arith.constant 0 : index
    %2 = vector.load %arg3[%c0_2, %c0_3] : memref<32x35xf32, #tpu.memory_space<vmem>>, vector<32x35xf32>
    %3 = arith.truncf %2 : vector<32x35xf32> to vector<32x35xbf16>
    %cst = arith.constant dense<0.000000e+00> : vector<32x4xf32>
    %4 = tpu.matmul %3, %1, %cst {dimension_numbers = #tpu.dot_dimension_numbers<[1], [0], [0], [1], [0, 0, 1, 1], [], []>} : vector<32x35xbf16>, vector<35x4xbf16>, vector<32x4xf32> -> vector<32x4xf32>
    %c0_4 = arith.constant 0 : index
    %c0_5 = arith.constant 0 : index
    %5 = vector.load %arg4[%c0_4, %c0_5] : memref<32x1xf32, #tpu.memory_space<vmem>>, vector<32x1xf32>
    %6 = vector.broadcast %5 : vector<32x1xf32> to vector<32x4xf32>
    %7 = arith.addf %4, %6 : vector<32x4xf32>
    %8 = arith.truncf %7 : vector<32x4xf32> to vector<32x4xbf16>
    %c0_6 = arith.constant 0 : index
    %c0_7 = arith.constant 0 : index
    %c0_8 = arith.constant 0 : index
    %9 = vector.load %arg5[%c0_6, %c0_7, %c0_8] : memref<1x32x4xbf16, #tpu.memory_space<vmem>>, vector<1x32x4xbf16>
    %10 = vector.shape_cast %9 : vector<1x32x4xbf16> to vector<32x4xbf16>
    %11 = vector.shape_cast %8 : vector<32x4xbf16> to vector<1x32x4xbf16>
    tpu.vector_store %arg5[%c0_6, %c0_7, %c0_8], %11 {strides = array<i32>} : memref<1x32x4xbf16, #tpu.memory_space<vmem>>, vector<1x32x4xbf16>,
    return
  }
  func.func @transform_0(%arg0: i32, %arg1: i32) -> (i32, i32, i32) {
    %c0_i32 = arith.constant 0 : i32
    %c0_i32_0 = arith.constant 0 : i32
    return %arg0, %c0_i32, %arg1 : i32, i32, i32
  }
  func.func @transform_1(%arg0: i32, %arg1: i32) -> (i32, i32) {
    %c0_i32 = arith.constant 0 : i32
    %c0_i32_0 = arith.constant 0 : i32
    %c0_i32_1 = arith.constant 0 : i32
    return %c0_i32, %c0_i32_0 : i32, i32
  }
  func.func @transform_2(%arg0: i32, %arg1: i32) -> (i32, i32) {
    %c0_i32 = arith.constant 0 : i32
    %c0_i32_0 = arith.constant 0 : i32
    %c0_i32_1 = arith.constant 0 : i32
    return %c0_i32, %c0_i32_0 : i32, i32
  }
  func.func @transform_3(%arg0: i32, %arg1: i32) -> (i32, i32, i32) {
    %c0_i32 = arith.constant 0 : i32
    %c0_i32_0 = arith.constant 0 : i32
    return %arg0, %c0_i32, %arg1 : i32, i32, i32
  }
}

module attributes {stable_mosaic.version = 11 : i64} {
  func.func @_group_pool_kernel(%arg0: i32, %arg1: i32, %arg2: i32, %arg3: memref<1x32x4xbf16, #tpu.memory_space<vmem>>, %arg4: memref<1x3x4xf32, #tpu.memory_space<vmem>>, %arg5: memref<1x1x1x4xi32, #tpu.memory_space<vmem>>, %arg6: memref<3x32x1xf32, #tpu.memory_space<vmem>>, %arg7: memref<32x1xf32, #tpu.memory_space<vmem>>, %arg8: memref<1x32x4xbf16, #tpu.memory_space<vmem>>, %arg9: memref<32x4xf32, #tpu.memory_space<vmem>>) attributes {dimension_semantics = [#tpu.dimension_semantics<parallel>, #tpu.dimension_semantics<parallel>, #tpu.dimension_semantics<arbitrary>], iteration_bounds = array<i64: 2, 1, 8>, scalar_prefetch = 0 : i64, scratch_operands = 1 : i64, tpu.core_type = #tpu.core_type<tc>, window_params = [{transform_indices = @transform_0, window_bounds = array<i64: 1, 32, 4>}, {transform_indices = @transform_1, window_bounds = array<i64: 1, 3, 4>}, {transform_indices = @transform_2, window_bounds = array<i64: 1, 1, 1, 4>}, {pipeline_mode = #tpu.pipeline_mode<synchronous>, transform_indices = @transform_3, window_bounds = array<i64: 3, 32, 1>}, {pipeline_mode = #tpu.pipeline_mode<synchronous>, transform_indices = @transform_4, window_bounds = array<i64: 32, 1>}, {transform_indices = @transform_5, window_bounds = array<i64: 1, 32, 4>}]} {
    %c0_i32 = arith.constant 0 : i32
    %0 = arith.cmpi eq, %arg2, %c0_i32 : i32
    %1 = arith.extui %0 : i1 to i32
    %c0_i32_0 = arith.constant 0 : i32
    %2 = arith.cmpi ne, %1, %c0_i32_0 : i32
    scf.if %2 {
      %cst_27 = arith.constant 0xFF800000 : f32
      %49 = vector.broadcast %cst_27 : f32 to vector<32x4xf32>
      %c0_28 = arith.constant 0 : index
      %c0_29 = arith.constant 0 : index
      %50 = vector.load %arg9[%c0_28, %c0_29] : memref<32x4xf32, #tpu.memory_space<vmem>>, vector<32x4xf32>
      tpu.vector_store %arg9[%c0_28, %c0_29], %49 {strides = array<i32>} : memref<32x4xf32, #tpu.memory_space<vmem>>, vector<32x4xf32>,
    } else {
    }
    %c0 = arith.constant 0 : index
    %c0_1 = arith.constant 0 : index
    %c0_2 = arith.constant 0 : index
    %c0_3 = arith.constant 0 : index
    %3 = vector.load %arg5[%c0, %c0_1, %c0_2, %c0_3] : memref<1x1x1x4xi32, #tpu.memory_space<vmem>>, vector<1x1x1x4xi32>
    %4 = vector.shape_cast %3 : vector<1x1x1x4xi32> to vector<1x4xi32>
    %5 = tpu.iota {dimensions = array<i32: 0>} : vector<4x4xi32>
    %6 = vector.broadcast %4 : vector<1x4xi32> to vector<4x4xi32>
    %7 = arith.cmpi eq, %5, %6 : vector<4x4xi32>
    %cst = arith.constant 1.000000e+00 : f32
    %cst_4 = arith.constant 0.000000e+00 : f32
    %8 = vector.broadcast %cst : f32 to vector<4x4xf32>
    %9 = vector.broadcast %cst_4 : f32 to vector<4x4xf32>
    %10 = arith.select %7, %8, %9 : vector<4x4xi1>, vector<4x4xf32>
    %11 = arith.truncf %10 : vector<4x4xf32> to vector<4x4xbf16>
    %c0_5 = arith.constant 0 : index
    %c0_6 = arith.constant 0 : index
    %c0_7 = arith.constant 0 : index
    %12 = vector.load %arg3[%c0_5, %c0_6, %c0_7] : memref<1x32x4xbf16, #tpu.memory_space<vmem>>, vector<1x32x4xbf16>
    %13 = vector.shape_cast %12 : vector<1x32x4xbf16> to vector<32x4xbf16>
    %cst_8 = arith.constant dense<0.000000e+00> : vector<32x4xf32>
    %14 = tpu.matmul %13, %11, %cst_8 {dimension_numbers = #tpu.dot_dimension_numbers<[1], [0], [0], [1], [0, 0, 1, 1], [], []>} : vector<32x4xbf16>, vector<4x4xbf16>, vector<32x4xf32> -> vector<32x4xf32>
    %c0_9 = arith.constant 0 : index
    %c0_10 = arith.constant 0 : index
    %c0_11 = arith.constant 0 : index
    %15 = vector.load %arg4[%c0_9, %c0_10, %c0_11] : memref<1x3x4xf32, #tpu.memory_space<vmem>>, vector<1x3x4xf32>
    %16 = vector.shape_cast %15 : vector<1x3x4xf32> to vector<3x4xf32>
    %c0_12 = arith.constant 0 : index
    %c0_13 = arith.constant 0 : index
    %c0_14 = arith.constant 0 : index
    %17 = vector.load %arg6[%c0_12, %c0_13, %c0_14] : memref<3x32x1xf32, #tpu.memory_space<vmem>>, vector<1x32x1xf32>
    %18 = vector.shape_cast %17 : vector<1x32x1xf32> to vector<32x1xf32>
    %19 = vector.extract_strided_slice %16 {offsets = [0, 0], sizes = [1, 4], strides = [1, 1]} : vector<3x4xf32> to vector<1x4xf32>
    %20 = vector.broadcast %18 : vector<32x1xf32> to vector<32x4xf32>
    %21 = vector.broadcast %19 : vector<1x4xf32> to vector<32x4xf32>
    %22 = arith.mulf %20, %21 : vector<32x4xf32>
    %c1 = arith.constant 1 : index
    %c0_15 = arith.constant 0 : index
    %c0_16 = arith.constant 0 : index
    %23 = vector.load %arg6[%c1, %c0_15, %c0_16] : memref<3x32x1xf32, #tpu.memory_space<vmem>>, vector<1x32x1xf32>
    %24 = vector.shape_cast %23 : vector<1x32x1xf32> to vector<32x1xf32>
    %25 = vector.extract_strided_slice %16 {offsets = [1, 0], sizes = [1, 4], strides = [1, 1]} : vector<3x4xf32> to vector<1x4xf32>
    %26 = vector.broadcast %24 : vector<32x1xf32> to vector<32x4xf32>
    %27 = vector.broadcast %25 : vector<1x4xf32> to vector<32x4xf32>
    %28 = arith.mulf %26, %27 : vector<32x4xf32>
    %29 = arith.addf %22, %28 : vector<32x4xf32>
    %c2 = arith.constant 2 : index
    %c0_17 = arith.constant 0 : index
    %c0_18 = arith.constant 0 : index
    %30 = vector.load %arg6[%c2, %c0_17, %c0_18] : memref<3x32x1xf32, #tpu.memory_space<vmem>>, vector<1x32x1xf32>
    %31 = vector.shape_cast %30 : vector<1x32x1xf32> to vector<32x1xf32>
    %32 = vector.extract_strided_slice %16 {offsets = [2, 0], sizes = [1, 4], strides = [1, 1]} : vector<3x4xf32> to vector<1x4xf32>
    %33 = vector.broadcast %31 : vector<32x1xf32> to vector<32x4xf32>
    %34 = vector.broadcast %32 : vector<1x4xf32> to vector<32x4xf32>
    %35 = arith.mulf %33, %34 : vector<32x4xf32>
    %36 = arith.addf %29, %35 : vector<32x4xf32>
    %37 = arith.subf %14, %36 : vector<32x4xf32>
    %c0_19 = arith.constant 0 : index
    %c0_20 = arith.constant 0 : index
    %38 = vector.load %arg7[%c0_19, %c0_20] : memref<32x1xf32, #tpu.memory_space<vmem>>, vector<32x1xf32>
    %39 = vector.broadcast %38 : vector<32x1xf32> to vector<32x4xf32>
    %40 = arith.addf %37, %39 : vector<32x4xf32>
    %cst_21 = arith.constant 0.000000e+00 : f32
    %41 = vector.broadcast %cst_21 : f32 to vector<32x4xf32>
    %42 = arith.maximumf %40, %41 : vector<32x4xf32>
    %c0_22 = arith.constant 0 : index
    %c0_23 = arith.constant 0 : index
    %43 = vector.load %arg9[%c0_22, %c0_23] : memref<32x4xf32, #tpu.memory_space<vmem>>, vector<32x4xf32>
    %44 = arith.maximumf %43, %42 : vector<32x4xf32>
    %c0_24 = arith.constant 0 : index
    %c0_25 = arith.constant 0 : index
    %45 = vector.load %arg9[%c0_24, %c0_25] : memref<32x4xf32, #tpu.memory_space<vmem>>, vector<32x4xf32>
    tpu.vector_store %arg9[%c0_24, %c0_25], %44 {strides = array<i32>} : memref<32x4xf32, #tpu.memory_space<vmem>>, vector<32x4xf32>,
    %c7_i32 = arith.constant 7 : i32
    %46 = arith.cmpi eq, %arg2, %c7_i32 : i32
    %47 = arith.extui %46 : i1 to i32
    %c0_i32_26 = arith.constant 0 : i32
    %48 = arith.cmpi ne, %47, %c0_i32_26 : i32
    scf.if %48 {
      %c0_27 = arith.constant 0 : index
      %c0_28 = arith.constant 0 : index
      %49 = vector.load %arg9[%c0_27, %c0_28] : memref<32x4xf32, #tpu.memory_space<vmem>>, vector<32x4xf32>
      %50 = arith.truncf %49 : vector<32x4xf32> to vector<32x4xbf16>
      %c0_29 = arith.constant 0 : index
      %c0_30 = arith.constant 0 : index
      %c0_31 = arith.constant 0 : index
      %51 = vector.load %arg8[%c0_29, %c0_30, %c0_31] : memref<1x32x4xbf16, #tpu.memory_space<vmem>>, vector<1x32x4xbf16>
      %52 = vector.shape_cast %51 : vector<1x32x4xbf16> to vector<32x4xbf16>
      %53 = vector.shape_cast %50 : vector<32x4xbf16> to vector<1x32x4xbf16>
      tpu.vector_store %arg8[%c0_29, %c0_30, %c0_31], %53 {strides = array<i32>} : memref<1x32x4xbf16, #tpu.memory_space<vmem>>, vector<1x32x4xbf16>,
    } else {
    }
    return
  }
  func.func @transform_0(%arg0: i32, %arg1: i32, %arg2: i32) -> (i32, i32, i32) {
    %c0_i32 = arith.constant 0 : i32
    %c0_i32_0 = arith.constant 0 : i32
    %c0_i32_1 = arith.constant 0 : i32
    return %arg0, %c0_i32, %c0_i32_0 : i32, i32, i32
  }
  func.func @transform_1(%arg0: i32, %arg1: i32, %arg2: i32) -> (i32, i32, i32) {
    %c0_i32 = arith.constant 0 : i32
    %c0_i32_0 = arith.constant 0 : i32
    return %arg0, %c0_i32, %arg1 : i32, i32, i32
  }
  func.func @transform_2(%arg0: i32, %arg1: i32, %arg2: i32) -> (i32, i32, i32, i32) {
    %c0_i32 = arith.constant 0 : i32
    %c0_i32_0 = arith.constant 0 : i32
    return %arg0, %arg2, %c0_i32, %arg1 : i32, i32, i32, i32
  }
  func.func @transform_3(%arg0: i32, %arg1: i32, %arg2: i32) -> (i32, i32, i32) {
    %c0_i32 = arith.constant 0 : i32
    %c0_i32_0 = arith.constant 0 : i32
    %c0_i32_1 = arith.constant 0 : i32
    %c0_i32_2 = arith.constant 0 : i32
    return %c0_i32, %c0_i32_0, %c0_i32_1 : i32, i32, i32
  }
  func.func @transform_4(%arg0: i32, %arg1: i32, %arg2: i32) -> (i32, i32) {
    %c0_i32 = arith.constant 0 : i32
    %c0_i32_0 = arith.constant 0 : i32
    %c0_i32_1 = arith.constant 0 : i32
    return %c0_i32, %c0_i32_0 : i32, i32
  }
  func.func @transform_5(%arg0: i32, %arg1: i32, %arg2: i32) -> (i32, i32, i32) {
    %c0_i32 = arith.constant 0 : i32
    %c0_i32_0 = arith.constant 0 : i32
    return %arg0, %c0_i32, %arg1 : i32, i32, i32
  }
}

module attributes {stable_mosaic.version = 11 : i64} {
  func.func @_conv_kernel(%arg0: i32, %arg1: i32, %arg2: memref<1x32x4xbf16, #tpu.memory_space<vmem>>, %arg3: memref<128x32xf32, #tpu.memory_space<vmem>>, %arg4: memref<128x1xf32, #tpu.memory_space<vmem>>, %arg5: memref<1x128x4xbf16, #tpu.memory_space<vmem>>) attributes {dimension_semantics = [#tpu.dimension_semantics<parallel>, #tpu.dimension_semantics<parallel>], iteration_bounds = array<i64: 2, 1>, scalar_prefetch = 0 : i64, scratch_operands = 0 : i64, tpu.core_type = #tpu.core_type<tc>, window_params = [{transform_indices = @transform_0, window_bounds = array<i64: 1, 32, 4>}, {pipeline_mode = #tpu.pipeline_mode<synchronous>, transform_indices = @transform_1, window_bounds = array<i64: 128, 32>}, {pipeline_mode = #tpu.pipeline_mode<synchronous>, transform_indices = @transform_2, window_bounds = array<i64: 128, 1>}, {transform_indices = @transform_3, window_bounds = array<i64: 1, 128, 4>}]} {
    %c0 = arith.constant 0 : index
    %c0_0 = arith.constant 0 : index
    %c0_1 = arith.constant 0 : index
    %0 = vector.load %arg2[%c0, %c0_0, %c0_1] : memref<1x32x4xbf16, #tpu.memory_space<vmem>>, vector<1x32x4xbf16>
    %1 = vector.shape_cast %0 : vector<1x32x4xbf16> to vector<32x4xbf16>
    %c0_2 = arith.constant 0 : index
    %c0_3 = arith.constant 0 : index
    %2 = vector.load %arg3[%c0_2, %c0_3] : memref<128x32xf32, #tpu.memory_space<vmem>>, vector<128x32xf32>
    %3 = arith.truncf %2 : vector<128x32xf32> to vector<128x32xbf16>
    %cst = arith.constant dense<0.000000e+00> : vector<128x4xf32>
    %4 = tpu.matmul %3, %1, %cst {dimension_numbers = #tpu.dot_dimension_numbers<[1], [0], [0], [1], [0, 0, 1, 1], [], []>} : vector<128x32xbf16>, vector<32x4xbf16>, vector<128x4xf32> -> vector<128x4xf32>
    %c0_4 = arith.constant 0 : index
    %c0_5 = arith.constant 0 : index
    %5 = vector.load %arg4[%c0_4, %c0_5] : memref<128x1xf32, #tpu.memory_space<vmem>>, vector<128x1xf32>
    %6 = vector.broadcast %5 : vector<128x1xf32> to vector<128x4xf32>
    %7 = arith.addf %4, %6 : vector<128x4xf32>
    %cst_6 = arith.constant 0.000000e+00 : f32
    %8 = vector.broadcast %cst_6 : f32 to vector<128x4xf32>
    %9 = arith.maximumf %7, %8 : vector<128x4xf32>
    %10 = arith.truncf %9 : vector<128x4xf32> to vector<128x4xbf16>
    %c0_7 = arith.constant 0 : index
    %c0_8 = arith.constant 0 : index
    %c0_9 = arith.constant 0 : index
    %11 = vector.load %arg5[%c0_7, %c0_8, %c0_9] : memref<1x128x4xbf16, #tpu.memory_space<vmem>>, vector<1x128x4xbf16>
    %12 = vector.shape_cast %11 : vector<1x128x4xbf16> to vector<128x4xbf16>
    %13 = vector.shape_cast %10 : vector<128x4xbf16> to vector<1x128x4xbf16>
    tpu.vector_store %arg5[%c0_7, %c0_8, %c0_9], %13 {strides = array<i32>} : memref<1x128x4xbf16, #tpu.memory_space<vmem>>, vector<1x128x4xbf16>,
    return
  }
  func.func @transform_0(%arg0: i32, %arg1: i32) -> (i32, i32, i32) {
    %c0_i32 = arith.constant 0 : i32
    %c0_i32_0 = arith.constant 0 : i32
    return %arg0, %c0_i32, %arg1 : i32, i32, i32
  }
  func.func @transform_1(%arg0: i32, %arg1: i32) -> (i32, i32) {
    %c0_i32 = arith.constant 0 : i32
    %c0_i32_0 = arith.constant 0 : i32
    %c0_i32_1 = arith.constant 0 : i32
    return %c0_i32, %c0_i32_0 : i32, i32
  }
  func.func @transform_2(%arg0: i32, %arg1: i32) -> (i32, i32) {
    %c0_i32 = arith.constant 0 : i32
    %c0_i32_0 = arith.constant 0 : i32
    %c0_i32_1 = arith.constant 0 : i32
    return %c0_i32, %c0_i32_0 : i32, i32
  }
  func.func @transform_3(%arg0: i32, %arg1: i32) -> (i32, i32, i32) {
    %c0_i32 = arith.constant 0 : i32
    %c0_i32_0 = arith.constant 0 : i32
    return %arg0, %c0_i32, %arg1 : i32, i32, i32
  }
}

module attributes {stable_mosaic.version = 11 : i64} {
  func.func @_point_pool_kernel(%arg0: i32, %arg1: memref<1x32x4xbf16, #tpu.memory_space<vmem>>, %arg2: memref<1x32x1xbf16, #tpu.memory_space<vmem>>) attributes {dimension_semantics = [#tpu.dimension_semantics<parallel>], iteration_bounds = array<i64: 2>, scalar_prefetch = 0 : i64, scratch_operands = 0 : i64, tpu.core_type = #tpu.core_type<tc>, window_params = [{transform_indices = @transform_0, window_bounds = array<i64: 1, 32, 4>}, {transform_indices = @transform_1, window_bounds = array<i64: 1, 32, 1>}]} {
    %c0 = arith.constant 0 : index
    %c0_0 = arith.constant 0 : index
    %c0_1 = arith.constant 0 : index
    %0 = vector.load %arg1[%c0, %c0_0, %c0_1] : memref<1x32x4xbf16, #tpu.memory_space<vmem>>, vector<1x32x4xbf16>
    %1 = vector.shape_cast %0 : vector<1x32x4xbf16> to vector<32x4xbf16>
    %cst = arith.constant dense<0xFF80> : vector<32xbf16>
    %2 = vector.multi_reduction <maximumf>, %1, %cst [1] : vector<32x4xbf16> to vector<32xbf16>
    %3 = vector.shape_cast %2 : vector<32xbf16> to vector<32x1xbf16>
    %c0_2 = arith.constant 0 : index
    %c0_3 = arith.constant 0 : index
    %c0_4 = arith.constant 0 : index
    %4 = vector.load %arg2[%c0_2, %c0_3, %c0_4] : memref<1x32x1xbf16, #tpu.memory_space<vmem>>, vector<1x32x1xbf16>
    %5 = vector.shape_cast %4 : vector<1x32x1xbf16> to vector<32x1xbf16>
    %6 = vector.shape_cast %3 : vector<32x1xbf16> to vector<1x32x1xbf16>
    tpu.vector_store %arg2[%c0_2, %c0_3, %c0_4], %6 {strides = array<i32>} : memref<1x32x1xbf16, #tpu.memory_space<vmem>>, vector<1x32x1xbf16>,
    return
  }
  func.func @transform_0(%arg0: i32) -> (i32, i32, i32) {
    %c0_i32 = arith.constant 0 : i32
    %c0_i32_0 = arith.constant 0 : i32
    %c0_i32_1 = arith.constant 0 : i32
    return %arg0, %c0_i32, %c0_i32_0 : i32, i32, i32
  }
  func.func @transform_1(%arg0: i32) -> (i32, i32, i32) {
    %c0_i32 = arith.constant 0 : i32
    %c0_i32_0 = arith.constant 0 : i32
    %c0_i32_1 = arith.constant 0 : i32
    return %arg0, %c0_i32, %c0_i32_0 : i32, i32, i32
  }
}

module attributes {stable_mosaic.version = 11 : i64} {
  func.func @_conv_res_kernel(%arg0: i32, %arg1: i32, %arg2: memref<1x128x4xbf16, #tpu.memory_space<vmem>>, %arg3: memref<32x128xf32, #tpu.memory_space<vmem>>, %arg4: memref<32x1xf32, #tpu.memory_space<vmem>>, %arg5: memref<1x32x4xbf16, #tpu.memory_space<vmem>>, %arg6: memref<1x32x4xbf16, #tpu.memory_space<vmem>>) attributes {dimension_semantics = [#tpu.dimension_semantics<parallel>, #tpu.dimension_semantics<parallel>], iteration_bounds = array<i64: 2, 1>, scalar_prefetch = 0 : i64, scratch_operands = 0 : i64, tpu.core_type = #tpu.core_type<tc>, window_params = [{transform_indices = @transform_0, window_bounds = array<i64: 1, 128, 4>}, {pipeline_mode = #tpu.pipeline_mode<synchronous>, transform_indices = @transform_1, window_bounds = array<i64: 32, 128>}, {pipeline_mode = #tpu.pipeline_mode<synchronous>, transform_indices = @transform_2, window_bounds = array<i64: 32, 1>}, {transform_indices = @transform_3, window_bounds = array<i64: 1, 32, 4>}, {transform_indices = @transform_4, window_bounds = array<i64: 1, 32, 4>}]} {
    %c0 = arith.constant 0 : index
    %c0_0 = arith.constant 0 : index
    %c0_1 = arith.constant 0 : index
    %0 = vector.load %arg2[%c0, %c0_0, %c0_1] : memref<1x128x4xbf16, #tpu.memory_space<vmem>>, vector<1x128x4xbf16>
    %1 = vector.shape_cast %0 : vector<1x128x4xbf16> to vector<128x4xbf16>
    %c0_2 = arith.constant 0 : index
    %c0_3 = arith.constant 0 : index
    %2 = vector.load %arg3[%c0_2, %c0_3] : memref<32x128xf32, #tpu.memory_space<vmem>>, vector<32x128xf32>
    %3 = arith.truncf %2 : vector<32x128xf32> to vector<32x128xbf16>
    %cst = arith.constant dense<0.000000e+00> : vector<32x4xf32>
    %4 = tpu.matmul %3, %1, %cst {dimension_numbers = #tpu.dot_dimension_numbers<[1], [0], [0], [1], [0, 0, 1, 1], [], []>} : vector<32x128xbf16>, vector<128x4xbf16>, vector<32x4xf32> -> vector<32x4xf32>
    %c0_4 = arith.constant 0 : index
    %c0_5 = arith.constant 0 : index
    %5 = vector.load %arg4[%c0_4, %c0_5] : memref<32x1xf32, #tpu.memory_space<vmem>>, vector<32x1xf32>
    %6 = vector.broadcast %5 : vector<32x1xf32> to vector<32x4xf32>
    %7 = arith.addf %4, %6 : vector<32x4xf32>
    %c0_6 = arith.constant 0 : index
    %c0_7 = arith.constant 0 : index
    %c0_8 = arith.constant 0 : index
    %8 = vector.load %arg5[%c0_6, %c0_7, %c0_8] : memref<1x32x4xbf16, #tpu.memory_space<vmem>>, vector<1x32x4xbf16>
    %9 = vector.shape_cast %8 : vector<1x32x4xbf16> to vector<32x4xbf16>
    %10 = arith.extf %9 : vector<32x4xbf16> to vector<32x4xf32>
    %11 = arith.addf %7, %10 : vector<32x4xf32>
    %cst_9 = arith.constant 0.000000e+00 : f32
    %12 = vector.broadcast %cst_9 : f32 to vector<32x4xf32>
    %13 = arith.maximumf %11, %12 : vector<32x4xf32>
    %14 = arith.truncf %13 : vector<32x4xf32> to vector<32x4xbf16>
    %c0_10 = arith.constant 0 : index
    %c0_11 = arith.constant 0 : index
    %c0_12 = arith.constant 0 : index
    %15 = vector.load %arg6[%c0_10, %c0_11, %c0_12] : memref<1x32x4xbf16, #tpu.memory_space<vmem>>, vector<1x32x4xbf16>
    %16 = vector.shape_cast %15 : vector<1x32x4xbf16> to vector<32x4xbf16>
    %17 = vector.shape_cast %14 : vector<32x4xbf16> to vector<1x32x4xbf16>
    tpu.vector_store %arg6[%c0_10, %c0_11, %c0_12], %17 {strides = array<i32>} : memref<1x32x4xbf16, #tpu.memory_space<vmem>>, vector<1x32x4xbf16>,
    return
  }
  func.func @transform_0(%arg0: i32, %arg1: i32) -> (i32, i32, i32) {
    %c0_i32 = arith.constant 0 : i32
    %c0_i32_0 = arith.constant 0 : i32
    return %arg0, %c0_i32, %arg1 : i32, i32, i32
  }
  func.func @transform_1(%arg0: i32, %arg1: i32) -> (i32, i32) {
    %c0_i32 = arith.constant 0 : i32
    %c0_i32_0 = arith.constant 0 : i32
    %c0_i32_1 = arith.constant 0 : i32
    return %c0_i32, %c0_i32_0 : i32, i32
  }
  func.func @transform_2(%arg0: i32, %arg1: i32) -> (i32, i32) {
    %c0_i32 = arith.constant 0 : i32
    %c0_i32_0 = arith.constant 0 : i32
    %c0_i32_1 = arith.constant 0 : i32
    return %c0_i32, %c0_i32_0 : i32, i32
  }
  func.func @transform_3(%arg0: i32, %arg1: i32) -> (i32, i32, i32) {
    %c0_i32 = arith.constant 0 : i32
    %c0_i32_0 = arith.constant 0 : i32
    return %arg0, %c0_i32, %arg1 : i32, i32, i32
  }
  func.func @transform_4(%arg0: i32, %arg1: i32) -> (i32, i32, i32) {
    %c0_i32 = arith.constant 0 : i32
    %c0_i32_0 = arith.constant 0 : i32
    return %arg0, %c0_i32, %arg1 : i32, i32, i32
  }
}

</mosaic_0001>

<llo_original>
// kernel: custom-call.8
$region0: #{custom-call.8}
  %s0 = inlined_call_operand.vmem [shape: f32[2,64], index: 0, kind: output, shape index: {}]

// kernel: custom-call.9
$region0: #{custom-call.9}
  %s0 = inlined_call_operand.vmem [shape: f32[2,16], index: 0, kind: output, shape index: {}]

// kernel: _lambda_.14
$region0: #{_lambda_.14}
  #allocation0 [shape = 'u32[]', space=smem, size = 0x4, offset = 0x4, fixed_abs, tag = 'smem constant byte address 0x4 - core index']
  #allocation1 [shape = 'u32[144,128]{1,0:T(1,128)}', space=vmem, size = 0x12000, scoped, tag = 'internal scratch']
  %s0 = inlined_call_operand.vmem [shape: f32[2,4,64], index: 0, kind: input, shape index: {}]
  %s1 = inlined_call_operand.vmem [shape: f32[8,4], index: 1, kind: input, shape index: {}]
  %s2 = inlined_call_operand.vmem [shape: f32[8,1], index: 2, kind: input, shape index: {}]
  %s3 = inlined_call_operand.vmem [shape: bf16[2,8,64], index: 3, kind: output, shape index: {}]
  %s4 = sld [smem:[#allocation0]]
  $region45: #{_lambda_.14} parent=0
    _
  %s6 = ssub.s32 1, %s4
  %s7 = scalar_select 0, %s6, %s4
  loop: start=0, step=1, limit=4
  $region2: #{_lambda_.14} parent=0 // loop_pre_header
    _
  $region3: #{_lambda_.14} parent=0 // loop_header
    %s9 = sphi 0, %s13
    %p10 = scmp.ge.s32.totalorder %s9, 4
    %s16 = sphi 0, %s28
    %s17 = sphi 0, %s24
    %s18 = sphi 0, %s16
    %s19 = sphi 0, %s17
    %s20 = sphi 0, %s18
    %s21 = sphi 0, %s19
    %s33 = sphi 0, %s35
    %s36 = sphi 0, %s33
    %s37 = sphi 0, %s36
    %s53 = sphi 0, %s37
    %s57 = sphi 0, %s57
    %s59 = sphi 0, %s57
    %s60 = sphi 0, %s59
    %s74 = sphi 0, %s60
    %s78 = sphi 0, %s78
    %s80 = sphi 0, %s78
    %s81 = sphi 0, %s80
    %s95 = sphi 0, %s81
    %s103 = sphi 0, %s105
    %s106 = sphi 0, %s103
    %s107 = sphi 0, %s106
    %s123 = sphi 0, %s107
  $region4: #{_lambda_.14} parent=0 // loop_header_branch
    %12 = sbr.rel (%p10) target = $region8
  $region5: #{_lambda_.14} parent=0 // loop_body
    %s14 = ssub.s32 %s9, 1
    %s15 = ssub.s32 %s9, 2
    %s22 = sadd.s32 1, %s17
    %p23 = scmp.ge.s32.totalorder %s22, 1
    %s24 = scalar_select %p23, 0, %s22
    %s25 = sadd.s32 1, %s16
    %s26 = scalar_select %p23, %s25, %s16
    %p27 = scmp.ge.s32.totalorder %s26, 2
    %s28 = scalar_select %p27, 0, %s26
    %s29 = ssub.s32 %s16, %s28
    %s30 = ssub.s32 %s17, %s24
    %s31 = sor.u32 %s29, %s30
    %p32 = scmp.eq.s32.totalorder %s31, 0
    %s34 = sadd.s32 %s33, 1
    %s35 = scalar_select %p32, %s33, %s34
    %p38 = pneg %p32
    %p39 = scmp.eq.s32.totalorder %s9, 1
    %p40 = por %p38, %p39
    %p41 = scmp.ne.s32.totalorder %s33, %s36
    %p42 = scmp.eq.s32.totalorder %s9, 0
    %p43 = por %p41, %p42
    %p44 = scmp.ne.s32.totalorder %s33, %s36
    %p45 = scmp.eq.s32.totalorder %s14, 1
    %p46 = por %p44, %p45
    %p47 = scmp.ne.s32.totalorder %s36, %s37
    %p48 = scmp.eq.s32.totalorder %s14, 0
    %p49 = por %p47, %p48
    %p50 = scmp.ne.s32.totalorder %s36, %s37
    %p51 = scmp.eq.s32.totalorder %s15, 1
    %p52 = por %p50, %p51
    %p54 = scmp.ne.s32.totalorder %s37, %s53
    %p55 = scmp.eq.s32.totalorder %s15, 0
    %p56 = por %p54, %p55
    %s58 = sadd.s32 %s57, 1
    %p61 = scmp.eq.s32.totalorder %s9, 1
    %p62 = scmp.ne.s32.totalorder %s57, %s59
    %p63 = scmp.eq.s32.totalorder %s9, 0
    %p64 = por %p62, %p63
    %p65 = scmp.ne.s32.totalorder %s57, %s59
    %p66 = scmp.eq.s32.totalorder %s14, 1
    %p67 = por %p65, %p66
    %p68 = scmp.ne.s32.totalorder %s59, %s60
    %p69 = scmp.eq.s32.totalorder %s14, 0
    %p70 = por %p68, %p69
    %p71 = scmp.ne.s32.totalorder %s59, %s60
    %p72 = scmp.eq.s32.totalorder %s15, 1
    %p73 = por %p71, %p72
    %p75 = scmp.ne.s32.totalorder %s60, %s74
    %p76 = scmp.eq.s32.totalorder %s15, 0
    %p77 = por %p75, %p76
    %s79 = sadd.s32 %s78, 1
    %p82 = scmp.eq.s32.totalorder %s9, 1
    %p83 = scmp.ne.s32.totalorder %s78, %s80
    %p84 = scmp.eq.s32.totalorder %s9, 0
    %p85 = por %p83, %p84
    %p86 = scmp.ne.s32.totalorder %s78, %s80
    %p87 = scmp.eq.s32.totalorder %s14, 1
    %p88 = por %p86, %p87
    %p89 = scmp.ne.s32.totalorder %s80, %s81
    %p90 = scmp.eq.s32.totalorder %s14, 0
    %p91 = por %p89, %p90
    %p92 = scmp.ne.s32.totalorder %s80, %s81
    %p93 = scmp.eq.s32.totalorder %s15, 1
    %p94 = por %p92, %p93
    %p96 = scmp.ne.s32.totalorder %s81, %s95
    %p97 = scmp.eq.s32.totalorder %s15, 0
    %p98 = por %p96, %p97
    %s99 = ssub.s32 %s16, %s28
    %s100 = ssub.s32 %s17, %s24
    %s101 = sor.u32 %s99, %s100
    %p102 = scmp.eq.s32.totalorder %s101, 0
    %s104 = sadd.s32 %s103, 1
    %s105 = scalar_select %p102, %s103, %s104
    %p108 = pneg %p102
    %p109 = scmp.eq.s32.totalorder %s9, 1
    %p110 = por %p108, %p109
    %p111 = scmp.ne.s32.totalorder %s103, %s106
    %p112 = scmp.eq.s32.totalorder %s9, 0
    %p113 = por %p111, %p112
    %p114 = scmp.ne.s32.totalorder %s103, %s106
    %p115 = scmp.eq.s32.totalorder %s14, 1
    %p116 = por %p114, %p115
    %p117 = scmp.ne.s32.totalorder %s106, %s107
    %p118 = scmp.eq.s32.totalorder %s14, 0
    %p119 = por %p117, %p118
    %p120 = scmp.ne.s32.totalorder %s106, %s107
    %p121 = scmp.eq.s32.totalorder %s15, 1
    %p122 = por %p120, %p121
    %p124 = scmp.ne.s32.totalorder %s107, %s123
    %p125 = scmp.eq.s32.totalorder %s15, 0
    %p126 = por %p124, %p125
    %p127 = scmp.le.s32.totalorder 1, %s9
    %p128 = scmp.lt.s32.totalorder %s9, 3
    %p129 = pnand %p127, %p128
    %p130 = pneg %p129
    // Predicated region
    $region9: #{_lambda_.14} parent=5 // pred_check
      _
    $region10: #{_lambda_.14} parent=5 // pred_check_branch
      %132 = sbr.rel (%p129) target = $region12
    $region11: #{_lambda_.14} parent=5 // pred_region
      %s133 = ssub.s32 %s9, 1
      // Predicated region
      $region13: #{_lambda_.14} parent=11 // pred_check
        %p134 = pneg %p70
      $region14: #{_lambda_.14} parent=11 // pred_check_branch
        %136 = sbr.rel (%p134) target = $region16
      $region15: #{_lambda_.14} parent=11 // pred_region
        _
      $region16: #{_lambda_.14} parent=11 // pred_fallthru
        _
      // Predicated region
      $region17: #{_lambda_.14} parent=11 // pred_check
        %p137 = pneg %p91
      $region18: #{_lambda_.14} parent=11 // pred_check_branch
        %139 = sbr.rel (%p137) target = $region20
      $region19: #{_lambda_.14} parent=11 // pred_region
        _
      $region20: #{_lambda_.14} parent=11 // pred_fallthru
        _
    $region12: #{_lambda_.14} parent=5 // pred_fallthru
      _
    %p140 = scmp.lt.s32.totalorder %s9, 2
    // Predicated region
    $region21: #{_lambda_.14} parent=5 // pred_check
      %p141 = pneg %p140
    $region22: #{_lambda_.14} parent=5 // pred_check_branch
      %143 = sbr.rel (%p141) target = $region24
    $region23: #{_lambda_.14} parent=5 // pred_region
      // Predicated region
      $region25: #{_lambda_.14} parent=23 // pred_check
        %p144 = pneg %p43
      $region26: #{_lambda_.14} parent=23 // pred_check_branch
        %146 = sbr.rel (%p144) target = $region28
      $region27: #{_lambda_.14} parent=23 // pred_region
        %p147 = scmp.lt.s32.totalorder %s16, 1
        %s148 = scalar_select %p147, %s16, 1
        %p149 = scmp.lt.s32.totalorder %s17, 0
        %s150 = scalar_select %p149, %s17, 0
        %s151 = sadd.s32 %s150, %s148
        %s152 = smul.addr %s151, 4
        %s153 = scalar_lea.vmem %s0, %s152
      $region28: #{_lambda_.14} parent=23 // pred_fallthru
        _
    $region24: #{_lambda_.14} parent=5 // pred_fallthru
      _
    %p154 = scmp.le.s32.totalorder 1, %s9
    %p155 = scmp.lt.s32.totalorder %s9, 3
    %p156 = pnand %p154, %p155
    %p157 = pneg %p156
    // Predicated region
    $region29: #{_lambda_.14} parent=5 // pred_check
      _
    $region30: #{_lambda_.14} parent=5 // pred_check_branch
      %159 = sbr.rel (%p156) target = $region32
    $region31: #{_lambda_.14} parent=5 // pred_region
      %s160 = ssub.s32 %s9, 1
      %p161 = scmp.lt.s32.totalorder %s18, 1
      %s162 = scalar_select %p161, %s18, 1
      %p163 = scmp.lt.s32.totalorder %s19, 0
      %s164 = scalar_select %p163, %s19, 0
      %s165 = sadd.s32 %s164, %s162
      %s166 = smul.addr %s165, 4
      %s167 = scalar_lea.vmem %s0, %s166
      %p168 = pneg %p49
      %p169 = pneg %p46
      %p170 = pneg %p70
      %p171 = pneg %p67
      %p172 = pneg %p91
      %p173 = pneg %p88
      %p174 = pneg %p119
      %p175 = pneg %p116
      %p176 = scmp.lt.s32.totalorder %s18, 1
      %s177 = scalar_select %p176, %s18, 1
      %p178 = scmp.lt.s32.totalorder %s19, 0
      %s179 = scalar_select %p178, %s19, 0
      %s180 = sadd.s32 %s179, %s177
      %s181 = smul.addr %s180, 4
      %s182 = scalar_lea.vmem %s3, %s181
      %p183 = scmp.lt.s32.totalorder %s18, 1
      %s184 = scalar_select %p183, %s18, 1
      %p185 = scmp.lt.s32.totalorder %s19, 0
      %s186 = scalar_select %p185, %s19, 0
      %s187 = sadd.s32 %s186, %s184
      %s188 = smul.addr %s187, 4
      %s189 = scalar_lea.vmem %s0, %s188
      %p190 = scmp.lt.s32.totalorder %s18, 1
      %s191 = scalar_select %p190, %s18, 1
      %p192 = scmp.lt.s32.totalorder %s19, 0
      %s193 = scalar_select %p192, %s19, 0
      %s194 = sadd.s32 %s193, %s191
      %s195 = smul.addr %s194, 4
      %s196 = scalar_lea.vmem %s3, %s195
      %v198 = vld [vmem:[%s189] sm:$0xf]
      %v199 = vpack.c.bf16 %v198, %v198
      %v200 = vld [vmem:[%s1] sm:$0xff]
      %v201 = vpack.c.bf16 %v200, %v200
      %v202 = vld [vmem:[%s2] sm:$0xff]
      %204 = vset.pattern.permute.xlu0 0
      %205 = vperm.xlu0 %204, %v202
      %v206 = vpop.permute.xlu0 %205
      %vm208 = vcmask 31744
      %v210 = vsel %vm208, %v201, 0
      %vm212 = vcmask 1041408
      %v214 = vsel %vm212, %v199, 0
      %216 = vmatprep.subr.bf16.mxu0 0
      %217 = vmatpush1.bf16.msra.mxu0 0
      %218 = vmatprep.subr.bf16.mxu0 0
      %219 = vmatpush1.bf16.msra.mxu0 0
      %220 = vmatprep.subr.bf16.mxu0 0
      %221 = vmatpush1.bf16.msra.mxu0 0
      %222 = vmatprep.subr.bf16.mxu0 0
      %223 = vmatpush1.bf16.msra.mxu0 0
      %224 = vmatprep.subr.bf16.mxu0 0
      %225 = vmatpush1.bf16.msra.mxu0 0
      %226 = vmatprep.subr.bf16.mxu0 0
      %227 = vmatpush1.bf16.msra.mxu0 0
      %228 = vmatprep.subr.bf16.mxu0 0
      %229 = vmatpush1.bf16.msra.mxu0 0
      %230 = vmatprep.subr.bf16.mxu0 0
      %231 = vmatpush1.bf16.msra.mxu0 %v214
      %232 = vmatprep.subr.bf16.mxu0 0
      %233 = vmatpush2.bf16.msra.mxu0 0
      %234 = vmatprep.subr.bf16.mxu0 0
      %235 = vmatpush2.bf16.msra.mxu0 0
      %236 = vmatprep.subr.bf16.mxu0 0
      %237 = vmatpush2.bf16.msra.mxu0 0
      %238 = vmatprep.subr.bf16.mxu0 0
      %239 = vmatpush2.bf16.msra.mxu0 0
      %240 = vmatprep.subr.bf16.mxu0 0
      %241 = vmatpush2.bf16.msra.mxu0 0
      %242 = vmatprep.subr.bf16.mxu0 0
      %243 = vmatpush2.bf16.msra.mxu0 0
      %244 = vmatprep.subr.bf16.mxu0 0
      %245 = vmatpush2.bf16.msra.mxu0 0
      %246 = vmatprep.subr.bf16.mxu0 0
      %247 = vmatpush2.bf16.msra.mxu0 0
      %248 = vmatprep.mubr.bf16.mxu0 0
      %249 = vmatmul.mubr.bf16.gmra.mxu0 %v210
      %v250 = vpop.f32.mrf.mxu0
      %v251 = vadd.f32 %v206, %v250
      %v252 = vpop.f32.mrf.mxu0
      %v253 = vpop.f32.mrf.mxu0
      %v254 = vpop.f32.mrf.mxu0
      %255 = vdwg.mxu0
      %v256 = vpack.c.bf16 %v251, %v251
      %vm257 = vcmask 519168
      %258 = vst.msk [vmem:[%s196] sm:$0xf] %vm257, %v256
      %p259 = scmp.lt.s32.totalorder %s18, 1
      %s260 = scalar_select %p259, %s18, 1
      %p261 = scmp.lt.s32.totalorder %s19, 0
      %s262 = scalar_select %p261, %s19, 0
      %s263 = sadd.s32 %s262, %s260
      %s264 = smul.addr %s263, 4
      %s265 = scalar_lea.vmem %s3, %s264
      // Predicated region
      $region33: #{_lambda_.14} parent=31 // pred_check
        %p266 = pneg %p116
      $region34: #{_lambda_.14} parent=31 // pred_check_branch
        %268 = sbr.rel (%p266) target = $region36
      $region35: #{_lambda_.14} parent=31 // pred_region
        _
      $region36: #{_lambda_.14} parent=31 // pred_fallthru
        _
    $region32: #{_lambda_.14} parent=5 // pred_fallthru
      _
    %p269 = scmp.le.s32.totalorder 2, %s9
    // Predicated region
    $region37: #{_lambda_.14} parent=5 // pred_check
      %p270 = pneg %p269
    $region38: #{_lambda_.14} parent=5 // pred_check_branch
      %272 = sbr.rel (%p270) target = $region40
    $region39: #{_lambda_.14} parent=5 // pred_region
      %s273 = ssub.s32 %s9, 2
      // Predicated region
      $region41: #{_lambda_.14} parent=39 // pred_check
        %p274 = pneg %p122
      $region42: #{_lambda_.14} parent=39 // pred_check_branch
        %276 = sbr.rel (%p274) target = $region44
      $region43: #{_lambda_.14} parent=39 // pred_region
        %p277 = scmp.lt.s32.totalorder %s20, 1
        %s278 = scalar_select %p277, %s20, 1
        %p279 = scmp.lt.s32.totalorder %s21, 0
        %s280 = scalar_select %p279, %s21, 0
        %s281 = sadd.s32 %s280, %s278
        %s282 = smul.addr %s281, 4
        %s283 = scalar_lea.vmem %s3, %s282
      $region44: #{_lambda_.14} parent=39 // pred_fallthru
        _
    $region40: #{_lambda_.14} parent=5 // pred_fallthru
      _
  $region6: #{_lambda_.14} parent=0 // loop_footer
    %s13 = sadd.s32 1, %s9
  $region7: #{_lambda_.14} parent=0 // loop_footer_branch
    %8 = sbr.rel target = $region3
  $region8: #{_lambda_.14} parent=0 // loop_exit
    _

// kernel: _lambda_.15
$region0: #{_lambda_.15}
  #allocation0 [shape = 'u32[]', space=smem, size = 0x4, offset = 0x4, fixed_abs, tag = 'smem constant byte address 0x4 - core index']
  #allocation1 [shape = 'u32[144,128]{1,0:T(1,128)}', space=vmem, size = 0x12000, scoped, tag = 'internal scratch']
  %s0 = inlined_call_operand.vmem [shape: bf16[2,11,64], index: 0, kind: input, shape index: {}]
  %s1 = inlined_call_operand.vmem [shape: f32[16,11], index: 1, kind: input, shape index: {}]
  %s2 = inlined_call_operand.vmem [shape: f32[16,1], index: 2, kind: input, shape index: {}]
  %s3 = inlined_call_operand.vmem [shape: bf16[2,16,64], index: 3, kind: output, shape index: {}]
  %s4 = sld [smem:[#allocation0]]
  $region45: #{_lambda_.15} parent=0
    _
  %s6 = ssub.s32 1, %s4
  %s7 = scalar_select 0, %s6, %s4
  loop: start=0, step=1, limit=4
  $region2: #{_lambda_.15} parent=0 // loop_pre_header
    _
  $region3: #{_lambda_.15} parent=0 // loop_header
    %s9 = sphi 0, %s13
    %p10 = scmp.ge.s32.totalorder %s9, 4
    %s16 = sphi 0, %s28
    %s17 = sphi 0, %s24
    %s18 = sphi 0, %s16
    %s19 = sphi 0, %s17
    %s20 = sphi 0, %s18
    %s21 = sphi 0, %s19
    %s33 = sphi 0, %s35
    %s36 = sphi 0, %s33
    %s37 = sphi 0, %s36
    %s53 = sphi 0, %s37
    %s57 = sphi 0, %s57
    %s59 = sphi 0, %s57
    %s60 = sphi 0, %s59
    %s74 = sphi 0, %s60
    %s78 = sphi 0, %s78
    %s80 = sphi 0, %s78
    %s81 = sphi 0, %s80
    %s95 = sphi 0, %s81
    %s103 = sphi 0, %s105
    %s106 = sphi 0, %s103
    %s107 = sphi 0, %s106
    %s123 = sphi 0, %s107
  $region4: #{_lambda_.15} parent=0 // loop_header_branch
    %12 = sbr.rel (%p10) target = $region8
  $region5: #{_lambda_.15} parent=0 // loop_body
    %s14 = ssub.s32 %s9, 1
    %s15 = ssub.s32 %s9, 2
    %s22 = sadd.s32 1, %s17
    %p23 = scmp.ge.s32.totalorder %s22, 1
    %s24 = scalar_select %p23, 0, %s22
    %s25 = sadd.s32 1, %s16
    %s26 = scalar_select %p23, %s25, %s16
    %p27 = scmp.ge.s32.totalorder %s26, 2
    %s28 = scalar_select %p27, 0, %s26
    %s29 = ssub.s32 %s16, %s28
    %s30 = ssub.s32 %s17, %s24
    %s31 = sor.u32 %s29, %s30
    %p32 = scmp.eq.s32.totalorder %s31, 0
    %s34 = sadd.s32 %s33, 1
    %s35 = scalar_select %p32, %s33, %s34
    %p38 = pneg %p32
    %p39 = scmp.eq.s32.totalorder %s9, 1
    %p40 = por %p38, %p39
    %p41 = scmp.ne.s32.totalorder %s33, %s36
    %p42 = scmp.eq.s32.totalorder %s9, 0
    %p43 = por %p41, %p42
    %p44 = scmp.ne.s32.totalorder %s33, %s36
    %p45 = scmp.eq.s32.totalorder %s14, 1
    %p46 = por %p44, %p45
    %p47 = scmp.ne.s32.totalorder %s36, %s37
    %p48 = scmp.eq.s32.totalorder %s14, 0
    %p49 = por %p47, %p48
    %p50 = scmp.ne.s32.totalorder %s36, %s37
    %p51 = scmp.eq.s32.totalorder %s15, 1
    %p52 = por %p50, %p51
    %p54 = scmp.ne.s32.totalorder %s37, %s53
    %p55 = scmp.eq.s32.totalorder %s15, 0
    %p56 = por %p54, %p55
    %s58 = sadd.s32 %s57, 1
    %p61 = scmp.eq.s32.totalorder %s9, 1
    %p62 = scmp.ne.s32.totalorder %s57, %s59
    %p63 = scmp.eq.s32.totalorder %s9, 0
    %p64 = por %p62, %p63
    %p65 = scmp.ne.s32.totalorder %s57, %s59
    %p66 = scmp.eq.s32.totalorder %s14, 1
    %p67 = por %p65, %p66
    %p68 = scmp.ne.s32.totalorder %s59, %s60
    %p69 = scmp.eq.s32.totalorder %s14, 0
    %p70 = por %p68, %p69
    %p71 = scmp.ne.s32.totalorder %s59, %s60
    %p72 = scmp.eq.s32.totalorder %s15, 1
    %p73 = por %p71, %p72
    %p75 = scmp.ne.s32.totalorder %s60, %s74
    %p76 = scmp.eq.s32.totalorder %s15, 0
    %p77 = por %p75, %p76
    %s79 = sadd.s32 %s78, 1
    %p82 = scmp.eq.s32.totalorder %s9, 1
    %p83 = scmp.ne.s32.totalorder %s78, %s80
    %p84 = scmp.eq.s32.totalorder %s9, 0
    %p85 = por %p83, %p84
    %p86 = scmp.ne.s32.totalorder %s78, %s80
    %p87 = scmp.eq.s32.totalorder %s14, 1
    %p88 = por %p86, %p87
    %p89 = scmp.ne.s32.totalorder %s80, %s81
    %p90 = scmp.eq.s32.totalorder %s14, 0
    %p91 = por %p89, %p90
    %p92 = scmp.ne.s32.totalorder %s80, %s81
    %p93 = scmp.eq.s32.totalorder %s15, 1
    %p94 = por %p92, %p93
    %p96 = scmp.ne.s32.totalorder %s81, %s95
    %p97 = scmp.eq.s32.totalorder %s15, 0
    %p98 = por %p96, %p97
    %s99 = ssub.s32 %s16, %s28
    %s100 = ssub.s32 %s17, %s24
    %s101 = sor.u32 %s99, %s100
    %p102 = scmp.eq.s32.totalorder %s101, 0
    %s104 = sadd.s32 %s103, 1
    %s105 = scalar_select %p102, %s103, %s104
    %p108 = pneg %p102
    %p109 = scmp.eq.s32.totalorder %s9, 1
    %p110 = por %p108, %p109
    %p111 = scmp.ne.s32.totalorder %s103, %s106
    %p112 = scmp.eq.s32.totalorder %s9, 0
    %p113 = por %p111, %p112
    %p114 = scmp.ne.s32.totalorder %s103, %s106
    %p115 = scmp.eq.s32.totalorder %s14, 1
    %p116 = por %p114, %p115
    %p117 = scmp.ne.s32.totalorder %s106, %s107
    %p118 = scmp.eq.s32.totalorder %s14, 0
    %p119 = por %p117, %p118
    %p120 = scmp.ne.s32.totalorder %s106, %s107
    %p121 = scmp.eq.s32.totalorder %s15, 1
    %p122 = por %p120, %p121
    %p124 = scmp.ne.s32.totalorder %s107, %s123
    %p125 = scmp.eq.s32.totalorder %s15, 0
    %p126 = por %p124, %p125
    %p127 = scmp.le.s32.totalorder 1, %s9
    %p128 = scmp.lt.s32.totalorder %s9, 3
    %p129 = pnand %p127, %p128
    %p130 = pneg %p129
    // Predicated region
    $region9: #{_lambda_.15} parent=5 // pred_check
      _
    $region10: #{_lambda_.15} parent=5 // pred_check_branch
      %132 = sbr.rel (%p129) target = $region12
    $region11: #{_lambda_.15} parent=5 // pred_region
      %s133 = ssub.s32 %s9, 1
      // Predicated region
      $region13: #{_lambda_.15} parent=11 // pred_check
        %p134 = pneg %p70
      $region14: #{_lambda_.15} parent=11 // pred_check_branch
        %136 = sbr.rel (%p134) target = $region16
      $region15: #{_lambda_.15} parent=11 // pred_region
        _
      $region16: #{_lambda_.15} parent=11 // pred_fallthru
        _
      // Predicated region
      $region17: #{_lambda_.15} parent=11 // pred_check
        %p137 = pneg %p91
      $region18: #{_lambda_.15} parent=11 // pred_check_branch
        %139 = sbr.rel (%p137) target = $region20
      $region19: #{_lambda_.15} parent=11 // pred_region
        _
      $region20: #{_lambda_.15} parent=11 // pred_fallthru
        _
    $region12: #{_lambda_.15} parent=5 // pred_fallthru
      _
    %p140 = scmp.lt.s32.totalorder %s9, 2
    // Predicated region
    $region21: #{_lambda_.15} parent=5 // pred_check
      %p141 = pneg %p140
    $region22: #{_lambda_.15} parent=5 // pred_check_branch
      %143 = sbr.rel (%p141) target = $region24
    $region23: #{_lambda_.15} parent=5 // pred_region
      // Predicated region
      $region25: #{_lambda_.15} parent=23 // pred_check
        %p144 = pneg %p43
      $region26: #{_lambda_.15} parent=23 // pred_check_branch
        %146 = sbr.rel (%p144) target = $region28
      $region27: #{_lambda_.15} parent=23 // pred_region
        %p147 = scmp.lt.s32.totalorder %s16, 1
        %s148 = scalar_select %p147, %s16, 1
        %p149 = scmp.lt.s32.totalorder %s17, 0
        %s150 = scalar_select %p149, %s17, 0
        %s151 = smul.addr %s148, 2
        %s152 = sadd.s32 %s150, %s151
        %s153 = smul.addr %s152, 4
        %s154 = scalar_lea.vmem %s0, %s153
      $region28: #{_lambda_.15} parent=23 // pred_fallthru
        _
    $region24: #{_lambda_.15} parent=5 // pred_fallthru
      _
    %p155 = scmp.le.s32.totalorder 1, %s9
    %p156 = scmp.lt.s32.totalorder %s9, 3
    %p157 = pnand %p155, %p156
    %p158 = pneg %p157
    // Predicated region
    $region29: #{_lambda_.15} parent=5 // pred_check
      _
    $region30: #{_lambda_.15} parent=5 // pred_check_branch
      %160 = sbr.rel (%p157) target = $region32
    $region31: #{_lambda_.15} parent=5 // pred_region
      %s161 = ssub.s32 %s9, 1
      %p162 = scmp.lt.s32.totalorder %s18, 1
      %s163 = scalar_select %p162, %s18, 1
      %p164 = scmp.lt.s32.totalorder %s19, 0
      %s165 = scalar_select %p164, %s19, 0
      %s166 = smul.addr %s163, 2
      %s167 = sadd.s32 %s165, %s166
      %s168 = smul.addr %s167, 4
      %s169 = scalar_lea.vmem %s0, %s168
      %p170 = pneg %p49
      %p171 = pneg %p46
      %p172 = pneg %p70
      %p173 = pneg %p67
      %p174 = pneg %p91
      %p175 = pneg %p88
      %p176 = pneg %p119
      %p177 = pneg %p116
      %p178 = scmp.lt.s32.totalorder %s18, 1
      %s179 = scalar_select %p178, %s18, 1
      %p180 = scmp.lt.s32.totalorder %s19, 0
      %s181 = scalar_select %p180, %s19, 0
      %s182 = smul.addr %s179, 2
      %s183 = sadd.s32 %s181, %s182
      %s184 = smul.addr %s183, 4
      %s185 = scalar_lea.vmem %s3, %s184
      %p186 = scmp.lt.s32.totalorder %s18, 1
      %s187 = scalar_select %p186, %s18, 1
      %p188 = scmp.lt.s32.totalorder %s19, 0
      %s189 = scalar_select %p188, %s19, 0
      %s190 = smul.addr %s187, 2
      %s191 = sadd.s32 %s189, %s190
      %s192 = smul.addr %s191, 4
      %s193 = scalar_lea.vmem %s0, %s192
      %p194 = scmp.lt.s32.totalorder %s18, 1
      %s195 = scalar_select %p194, %s18, 1
      %p196 = scmp.lt.s32.totalorder %s19, 0
      %s197 = scalar_select %p196, %s19, 0
      %s198 = smul.addr %s195, 2
      %s199 = sadd.s32 %s197, %s198
      %s200 = smul.addr %s199, 4
      %s201 = scalar_lea.vmem %s3, %s200
      %v203 = vld [vmem:[%s193] sm:$0xf]
      %v204 = vld [vmem:[%s193 + $0x4] sm:$0x3]
      %v205 = vld [vmem:[%s1] sm:$0xff]
      %v206 = vld [vmem:[%s1 + $0x8] sm:$0xff]
      %v207 = vpack.c.bf16 %v206, %v205
      %v208 = vld [vmem:[%s2] sm:$0xff]
      %v209 = vld [vmem:[%s2 + $0x8] sm:$0xff]
      %211 = vset.pattern.permute.xlu0 0
      %212 = vperm.xlu0 %211, %v208
      %v213 = vpop.permute.xlu0 %212
      %216 = vset.pattern.permute.xlu0 0
      %217 = vperm.xlu0 %216, %v209
      %v218 = vpop.permute.xlu0 %217
      %v222 = vunpack.c.l.b16 %v203
      %v223 = vunpack.c.l.b16 %v204
      %v224 = vpack.c.b16 %v223, %v222
      %vm225 = vcmask 89088
      %v227 = vsel %vm225, %v207, 0
      %vm229 = vcmask 1044480
      %vm230 = vcmask 1045504
      %v231 = vsel %vm229, 4294967295, 65535
      %v232 = vsel %vm230, %v231, 0
      %v234 = vand.u32 %v224, %v232
      %236 = vmatprep.subr.bf16.mxu0 0
      %237 = vmatpush1.bf16.msra.mxu0 0
      %238 = vmatprep.subr.bf16.mxu0 0
      %239 = vmatpush1.bf16.msra.mxu0 0
      %240 = vmatprep.subr.bf16.mxu0 0
      %241 = vmatpush1.bf16.msra.mxu0 0
      %242 = vmatprep.subr.bf16.mxu0 0
      %243 = vmatpush1.bf16.msra.mxu0 0
      %244 = vmatprep.subr.bf16.mxu0 0
      %245 = vmatpush1.bf16.msra.mxu0 0
      %246 = vmatprep.subr.bf16.mxu0 0
      %247 = vmatpush1.bf16.msra.mxu0 0
      %248 = vmatprep.subr.bf16.mxu0 0
      %249 = vmatpush1.bf16.msra.mxu0 0
      %250 = vmatprep.subr.bf16.mxu0 0
      %251 = vmatpush1.bf16.msra.mxu0 %v234
      %252 = vmatprep.subr.bf16.mxu0 0
      %253 = vmatpush2.bf16.msra.mxu0 0
      %254 = vmatprep.subr.bf16.mxu0 0
      %255 = vmatpush2.bf16.msra.mxu0 0
      %256 = vmatprep.subr.bf16.mxu0 0
      %257 = vmatpush2.bf16.msra.mxu0 0
      %258 = vmatprep.subr.bf16.mxu0 0
      %259 = vmatpush2.bf16.msra.mxu0 0
      %260 = vmatprep.subr.bf16.mxu0 0
      %261 = vmatpush2.bf16.msra.mxu0 0
      %262 = vmatprep.subr.bf16.mxu0 0
      %263 = vmatpush2.bf16.msra.mxu0 0
      %264 = vmatprep.subr.bf16.mxu0 0
      %265 = vmatpush2.bf16.msra.mxu0 0
      %266 = vmatprep.subr.bf16.mxu0 0
      %267 = vmatpush2.bf16.msra.mxu0 0
      %268 = vmatprep.mubr.bf16.mxu0 0
      %269 = vmatmul.mubr.bf16.gmra.mxu0 %v227
      %v270 = vpop.f32.mrf.mxu0
      %v271 = vadd.f32 %v213, %v270
      %v272 = vpop.f32.mrf.mxu0
      %v273 = vpop.f32.mrf.mxu0
      %v274 = vadd.f32 %v218, %v273
      %v275 = vpop.f32.mrf.mxu0
      %276 = vdwg.mxu0
      %v277 = vpack.c.bf16 %v274, %v271
      %v279 = vunpack.c.l.b16 %v277
      %v280 = vunpack.c.h.b16 %v277
      %v281 = vpack.c.b16 %v279, %v279
      %v282 = vpack.c.b16 %v280, %v280
      %vm285 = vcmask 519168
      %286 = vst.msk [vmem:[%s201] sm:$0xf] %vm285, %v281
      %287 = vst.msk [vmem:[%s201 + $0x4] sm:$0xf] %vm285, %v282
      %p288 = scmp.lt.s32.totalorder %s18, 1
      %s289 = scalar_select %p288, %s18, 1
      %p290 = scmp.lt.s32.totalorder %s19, 0
      %s291 = scalar_select %p290, %s19, 0
      %s292 = smul.addr %s289, 2
      %s293 = sadd.s32 %s291, %s292
      %s294 = smul.addr %s293, 4
      %s295 = scalar_lea.vmem %s3, %s294
      // Predicated region
      $region33: #{_lambda_.15} parent=31 // pred_check
        %p296 = pneg %p116
      $region34: #{_lambda_.15} parent=31 // pred_check_branch
        %298 = sbr.rel (%p296) target = $region36
      $region35: #{_lambda_.15} parent=31 // pred_region
        _
      $region36: #{_lambda_.15} parent=31 // pred_fallthru
        _
    $region32: #{_lambda_.15} parent=5 // pred_fallthru
      _
    %p299 = scmp.le.s32.totalorder 2, %s9
    // Predicated region
    $region37: #{_lambda_.15} parent=5 // pred_check
      %p300 = pneg %p299
    $region38: #{_lambda_.15} parent=5 // pred_check_branch
      %302 = sbr.rel (%p300) target = $region40
    $region39: #{_lambda_.15} parent=5 // pred_region
      %s303 = ssub.s32 %s9, 2
      // Predicated region
      $region41: #{_lambda_.15} parent=39 // pred_check
        %p304 = pneg %p122
      $region42: #{_lambda_.15} parent=39 // pred_check_branch
        %306 = sbr.rel (%p304) target = $region44
      $region43: #{_lambda_.15} parent=39 // pred_region
        %p307 = scmp.lt.s32.totalorder %s20, 1
        %s308 = scalar_select %p307, %s20, 1
        %p309 = scmp.lt.s32.totalorder %s21, 0
        %s310 = scalar_select %p309, %s21, 0
        %s311 = smul.addr %s308, 2
        %s312 = sadd.s32 %s310, %s311
        %s313 = smul.addr %s312, 4
        %s314 = scalar_lea.vmem %s3, %s313
      $region44: #{_lambda_.15} parent=39 // pred_fallthru
        _
    $region40: #{_lambda_.15} parent=5 // pred_fallthru
      _
  $region6: #{_lambda_.15} parent=0 // loop_footer
    %s13 = sadd.s32 1, %s9
  $region7: #{_lambda_.15} parent=0 // loop_footer_branch
    %8 = sbr.rel target = $region3
  $region8: #{_lambda_.15} parent=0 // loop_exit
    _

// kernel: _lambda_.17
$region0: #{_lambda_.17}
  #allocation0 [shape = 'u32[]', space=smem, size = 0x4, offset = 0x4, fixed_abs, tag = 'smem constant byte address 0x4 - core index']
  #allocation1 [shape = 'u32[144,128]{1,0:T(1,128)}', space=vmem, size = 0x12000, scoped, tag = 'internal scratch']
  %s0 = inlined_call_operand.vmem [shape: bf16[2,19,16], index: 0, kind: input, shape index: {}]
  %s1 = inlined_call_operand.vmem [shape: f32[16,19], index: 1, kind: input, shape index: {}]
  %s2 = inlined_call_operand.vmem [shape: f32[16,1], index: 2, kind: input, shape index: {}]
  %s3 = inlined_call_operand.vmem [shape: bf16[2,16,16], index: 3, kind: output, shape index: {}]
  %s4 = sld [smem:[#allocation0]]
  $region45: #{_lambda_.17} parent=0
    _
  %s6 = ssub.s32 1, %s4
  %s7 = scalar_select 0, %s6, %s4
  loop: start=0, step=1, limit=4
  $region2: #{_lambda_.17} parent=0 // loop_pre_header
    _
  $region3: #{_lambda_.17} parent=0 // loop_header
    %s9 = sphi 0, %s13
    %p10 = scmp.ge.s32.totalorder %s9, 4
    %s16 = sphi 0, %s28
    %s17 = sphi 0, %s24
    %s18 = sphi 0, %s16
    %s19 = sphi 0, %s17
    %s20 = sphi 0, %s18
    %s21 = sphi 0, %s19
    %s33 = sphi 0, %s35
    %s36 = sphi 0, %s33
    %s37 = sphi 0, %s36
    %s53 = sphi 0, %s37
    %s57 = sphi 0, %s57
    %s59 = sphi 0, %s57
    %s60 = sphi 0, %s59
    %s74 = sphi 0, %s60
    %s78 = sphi 0, %s78
    %s80 = sphi 0, %s78
    %s81 = sphi 0, %s80
    %s95 = sphi 0, %s81
    %s103 = sphi 0, %s105
    %s106 = sphi 0, %s103
    %s107 = sphi 0, %s106
    %s123 = sphi 0, %s107
  $region4: #{_lambda_.17} parent=0 // loop_header_branch
    %12 = sbr.rel (%p10) target = $region8
  $region5: #{_lambda_.17} parent=0 // loop_body
    %s14 = ssub.s32 %s9, 1
    %s15 = ssub.s32 %s9, 2
    %s22 = sadd.s32 1, %s17
    %p23 = scmp.ge.s32.totalorder %s22, 1
    %s24 = scalar_select %p23, 0, %s22
    %s25 = sadd.s32 1, %s16
    %s26 = scalar_select %p23, %s25, %s16
    %p27 = scmp.ge.s32.totalorder %s26, 2
    %s28 = scalar_select %p27, 0, %s26
    %s29 = ssub.s32 %s16, %s28
    %s30 = ssub.s32 %s17, %s24
    %s31 = sor.u32 %s29, %s30
    %p32 = scmp.eq.s32.totalorder %s31, 0
    %s34 = sadd.s32 %s33, 1
    %s35 = scalar_select %p32, %s33, %s34
    %p38 = pneg %p32
    %p39 = scmp.eq.s32.totalorder %s9, 1
    %p40 = por %p38, %p39
    %p41 = scmp.ne.s32.totalorder %s33, %s36
    %p42 = scmp.eq.s32.totalorder %s9, 0
    %p43 = por %p41, %p42
    %p44 = scmp.ne.s32.totalorder %s33, %s36
    %p45 = scmp.eq.s32.totalorder %s14, 1
    %p46 = por %p44, %p45
    %p47 = scmp.ne.s32.totalorder %s36, %s37
    %p48 = scmp.eq.s32.totalorder %s14, 0
    %p49 = por %p47, %p48
    %p50 = scmp.ne.s32.totalorder %s36, %s37
    %p51 = scmp.eq.s32.totalorder %s15, 1
    %p52 = por %p50, %p51
    %p54 = scmp.ne.s32.totalorder %s37, %s53
    %p55 = scmp.eq.s32.totalorder %s15, 0
    %p56 = por %p54, %p55
    %s58 = sadd.s32 %s57, 1
    %p61 = scmp.eq.s32.totalorder %s9, 1
    %p62 = scmp.ne.s32.totalorder %s57, %s59
    %p63 = scmp.eq.s32.totalorder %s9, 0
    %p64 = por %p62, %p63
    %p65 = scmp.ne.s32.totalorder %s57, %s59
    %p66 = scmp.eq.s32.totalorder %s14, 1
    %p67 = por %p65, %p66
    %p68 = scmp.ne.s32.totalorder %s59, %s60
    %p69 = scmp.eq.s32.totalorder %s14, 0
    %p70 = por %p68, %p69
    %p71 = scmp.ne.s32.totalorder %s59, %s60
    %p72 = scmp.eq.s32.totalorder %s15, 1
    %p73 = por %p71, %p72
    %p75 = scmp.ne.s32.totalorder %s60, %s74
    %p76 = scmp.eq.s32.totalorder %s15, 0
    %p77 = por %p75, %p76
    %s79 = sadd.s32 %s78, 1
    %p82 = scmp.eq.s32.totalorder %s9, 1
    %p83 = scmp.ne.s32.totalorder %s78, %s80
    %p84 = scmp.eq.s32.totalorder %s9, 0
    %p85 = por %p83, %p84
    %p86 = scmp.ne.s32.totalorder %s78, %s80
    %p87 = scmp.eq.s32.totalorder %s14, 1
    %p88 = por %p86, %p87
    %p89 = scmp.ne.s32.totalorder %s80, %s81
    %p90 = scmp.eq.s32.totalorder %s14, 0
    %p91 = por %p89, %p90
    %p92 = scmp.ne.s32.totalorder %s80, %s81
    %p93 = scmp.eq.s32.totalorder %s15, 1
    %p94 = por %p92, %p93
    %p96 = scmp.ne.s32.totalorder %s81, %s95
    %p97 = scmp.eq.s32.totalorder %s15, 0
    %p98 = por %p96, %p97
    %s99 = ssub.s32 %s16, %s28
    %s100 = ssub.s32 %s17, %s24
    %s101 = sor.u32 %s99, %s100
    %p102 = scmp.eq.s32.totalorder %s101, 0
    %s104 = sadd.s32 %s103, 1
    %s105 = scalar_select %p102, %s103, %s104
    %p108 = pneg %p102
    %p109 = scmp.eq.s32.totalorder %s9, 1
    %p110 = por %p108, %p109
    %p111 = scmp.ne.s32.totalorder %s103, %s106
    %p112 = scmp.eq.s32.totalorder %s9, 0
    %p113 = por %p111, %p112
    %p114 = scmp.ne.s32.totalorder %s103, %s106
    %p115 = scmp.eq.s32.totalorder %s14, 1
    %p116 = por %p114, %p115
    %p117 = scmp.ne.s32.totalorder %s106, %s107
    %p118 = scmp.eq.s32.totalorder %s14, 0
    %p119 = por %p117, %p118
    %p120 = scmp.ne.s32.totalorder %s106, %s107
    %p121 = scmp.eq.s32.totalorder %s15, 1
    %p122 = por %p120, %p121
    %p124 = scmp.ne.s32.totalorder %s107, %s123
    %p125 = scmp.eq.s32.totalorder %s15, 0
    %p126 = por %p124, %p125
    %p127 = scmp.le.s32.totalorder 1, %s9
    %p128 = scmp.lt.s32.totalorder %s9, 3
    %p129 = pnand %p127, %p128
    %p130 = pneg %p129
    // Predicated region
    $region9: #{_lambda_.17} parent=5 // pred_check
      _
    $region10: #{_lambda_.17} parent=5 // pred_check_branch
      %132 = sbr.rel (%p129) target = $region12
    $region11: #{_lambda_.17} parent=5 // pred_region
      %s133 = ssub.s32 %s9, 1
      // Predicated region
      $region13: #{_lambda_.17} parent=11 // pred_check
        %p134 = pneg %p70
      $region14: #{_lambda_.17} parent=11 // pred_check_branch
        %136 = sbr.rel (%p134) target = $region16
      $region15: #{_lambda_.17} parent=11 // pred_region
        _
      $region16: #{_lambda_.17} parent=11 // pred_fallthru
        _
      // Predicated region
      $region17: #{_lambda_.17} parent=11 // pred_check
        %p137 = pneg %p91
      $region18: #{_lambda_.17} parent=11 // pred_check_branch
        %139 = sbr.rel (%p137) target = $region20
      $region19: #{_lambda_.17} parent=11 // pred_region
        _
      $region20: #{_lambda_.17} parent=11 // pred_fallthru
        _
    $region12: #{_lambda_.17} parent=5 // pred_fallthru
      _
    %p140 = scmp.lt.s32.totalorder %s9, 2
    // Predicated region
    $region21: #{_lambda_.17} parent=5 // pred_check
      %p141 = pneg %p140
    $region22: #{_lambda_.17} parent=5 // pred_check_branch
      %143 = sbr.rel (%p141) target = $region24
    $region23: #{_lambda_.17} parent=5 // pred_region
      // Predicated region
      $region25: #{_lambda_.17} parent=23 // pred_check
        %p144 = pneg %p43
      $region26: #{_lambda_.17} parent=23 // pred_check_branch
        %146 = sbr.rel (%p144) target = $region28
      $region27: #{_lambda_.17} parent=23 // pred_region
        %p147 = scmp.lt.s32.totalorder %s16, 1
        %s148 = scalar_select %p147, %s16, 1
        %p149 = scmp.lt.s32.totalorder %s17, 0
        %s150 = scalar_select %p149, %s17, 0
        %s151 = smul.addr %s148, 3
        %s152 = sadd.s32 %s150, %s151
        %s153 = smul.addr %s152, 4
        %s154 = scalar_lea.vmem %s0, %s153
      $region28: #{_lambda_.17} parent=23 // pred_fallthru
        _
    $region24: #{_lambda_.17} parent=5 // pred_fallthru
      _
    %p155 = scmp.le.s32.totalorder 1, %s9
    %p156 = scmp.lt.s32.totalorder %s9, 3
    %p157 = pnand %p155, %p156
    %p158 = pneg %p157
    // Predicated region
    $region29: #{_lambda_.17} parent=5 // pred_check
      _
    $region30: #{_lambda_.17} parent=5 // pred_check_branch
      %160 = sbr.rel (%p157) target = $region32
    $region31: #{_lambda_.17} parent=5 // pred_region
      %s161 = ssub.s32 %s9, 1
      %p162 = scmp.lt.s32.totalorder %s18, 1
      %s163 = scalar_select %p162, %s18, 1
      %p164 = scmp.lt.s32.totalorder %s19, 0
      %s165 = scalar_select %p164, %s19, 0
      %s166 = smul.addr %s163, 3
      %s167 = sadd.s32 %s165, %s166
      %s168 = smul.addr %s167, 4
      %s169 = scalar_lea.vmem %s0, %s168
      %p170 = pneg %p49
      %p171 = pneg %p46
      %p172 = pneg %p70
      %p173 = pneg %p67
      %p174 = pneg %p91
      %p175 = pneg %p88
      %p176 = pneg %p119
      %p177 = pneg %p116
      %p178 = scmp.lt.s32.totalorder %s18, 1
      %s179 = scalar_select %p178, %s18, 1
      %p180 = scmp.lt.s32.totalorder %s19, 0
      %s181 = scalar_select %p180, %s19, 0
      %s182 = smul.addr %s179, 2
      %s183 = sadd.s32 %s181, %s182
      %s184 = smul.addr %s183, 4
      %s185 = scalar_lea.vmem %s3, %s184
      %p186 = scmp.lt.s32.totalorder %s18, 1
      %s187 = scalar_select %p186, %s18, 1
      %p188 = scmp.lt.s32.totalorder %s19, 0
      %s189 = scalar_select %p188, %s19, 0
      %s190 = smul.addr %s187, 3
      %s191 = sadd.s32 %s189, %s190
      %s192 = smul.addr %s191, 4
      %s193 = scalar_lea.vmem %s0, %s192
      %p194 = scmp.lt.s32.totalorder %s18, 1
      %s195 = scalar_select %p194, %s18, 1
      %p196 = scmp.lt.s32.totalorder %s19, 0
      %s197 = scalar_select %p196, %s19, 0
      %s198 = smul.addr %s195, 2
      %s199 = sadd.s32 %s197, %s198
      %s200 = smul.addr %s199, 4
      %s201 = scalar_lea.vmem %s3, %s200
      %v203 = vld [vmem:[%s193] sm:$0xf]
      %v204 = vld [vmem:[%s193 + $0x4] sm:$0xf]
      %v205 = vld [vmem:[%s193 + $0x8] sm:$0x3]
      %v206 = vld [vmem:[%s1] sm:$0xff]
      %v207 = vld [vmem:[%s1 + $0x8] sm:$0xff]
      %v208 = vpack.c.bf16 %v207, %v206
      %v209 = vld [vmem:[%s2] sm:$0xff]
      %v210 = vld [vmem:[%s2 + $0x8] sm:$0xff]
      %212 = vset.pattern.permute.xlu0 0
      %213 = vperm.xlu0 %212, %v209
      %v214 = vpop.permute.xlu0 %213
      %217 = vset.pattern.permute.xlu0 0
      %218 = vperm.xlu0 %217, %v210
      %v219 = vpop.permute.xlu0 %218
      %v224 = vunpack.c.l.b16 %v203
      %v225 = vunpack.c.l.b16 %v204
      %v226 = vunpack.c.l.b16 %v205
      %v227 = vpack.c.b16 %v225, %v224
      %v228 = vpack.c.b16 %v226, %v226
      %vm230 = vcmask 154624
      %v232 = vsel %vm230, %v208, 0
      %vm234 = vcmask 1040384
      %vm235 = vcmask 1041408
      %v236 = vsel %vm234, 4294967295, 65535
      %v237 = vsel %vm235, %v236, 0
      %v239 = vand.u32 %v228, %v237
      %241 = vmatprep.subr.bf16.mxu0 0
      %242 = vmatpush1.bf16.msra.mxu0 0
      %243 = vmatprep.subr.bf16.mxu0 0
      %244 = vmatpush1.bf16.msra.mxu0 0
      %245 = vmatprep.subr.bf16.mxu0 0
      %246 = vmatpush1.bf16.msra.mxu0 0
      %247 = vmatprep.subr.bf16.mxu0 0
      %248 = vmatpush1.bf16.msra.mxu0 0
      %249 = vmatprep.subr.bf16.mxu0 0
      %250 = vmatpush1.bf16.msra.mxu0 0
      %251 = vmatprep.subr.bf16.mxu0 0
      %252 = vmatpush1.bf16.msra.mxu0 0
      %253 = vmatprep.subr.bf16.mxu0 0
      %254 = vmatpush1.bf16.msra.mxu0 %v239
      %255 = vmatprep.subr.bf16.mxu0 0
      %256 = vmatpush1.bf16.msra.mxu0 %v227
      %257 = vmatprep.subr.bf16.mxu0 0
      %258 = vmatpush2.bf16.msra.mxu0 0
      %259 = vmatprep.subr.bf16.mxu0 0
      %260 = vmatpush2.bf16.msra.mxu0 0
      %261 = vmatprep.subr.bf16.mxu0 0
      %262 = vmatpush2.bf16.msra.mxu0 0
      %263 = vmatprep.subr.bf16.mxu0 0
      %264 = vmatpush2.bf16.msra.mxu0 0
      %265 = vmatprep.subr.bf16.mxu0 0
      %266 = vmatpush2.bf16.msra.mxu0 0
      %267 = vmatprep.subr.bf16.mxu0 0
      %268 = vmatpush2.bf16.msra.mxu0 0
      %269 = vmatprep.subr.bf16.mxu0 0
      %270 = vmatpush2.bf16.msra.mxu0 0
      %271 = vmatprep.subr.bf16.mxu0 0
      %272 = vmatpush2.bf16.msra.mxu0 0
      %273 = vmatprep.mubr.bf16.mxu0 0
      %274 = vmatmul.mubr.bf16.gmra.mxu0 %v232
      %v275 = vpop.f32.mrf.mxu0
      %v276 = vadd.f32 %v214, %v275
      %v277 = vpop.f32.mrf.mxu0
      %v278 = vpop.f32.mrf.mxu0
      %v279 = vadd.f32 %v219, %v278
      %v280 = vpop.f32.mrf.mxu0
      %281 = vdwg.mxu0
      %v282 = vpack.c.bf16 %v279, %v276
      %v284 = vunpack.c.l.b16 %v282
      %v285 = vunpack.c.h.b16 %v282
      %v286 = vpack.c.b16 %v284, %v284
      %v287 = vpack.c.b16 %v285, %v285
      %vm290 = vcmask 125952
      %291 = vst.msk [vmem:[%s201] sm:$0xf] %vm290, %v286
      %292 = vst.msk [vmem:[%s201 + $0x4] sm:$0xf] %vm290, %v287
      %p293 = scmp.lt.s32.totalorder %s18, 1
      %s294 = scalar_select %p293, %s18, 1
      %p295 = scmp.lt.s32.totalorder %s19, 0
      %s296 = scalar_select %p295, %s19, 0
      %s297 = smul.addr %s294, 2
      %s298 = sadd.s32 %s296, %s297
      %s299 = smul.addr %s298, 4
      %s300 = scalar_lea.vmem %s3, %s299
      // Predicated region
      $region33: #{_lambda_.17} parent=31 // pred_check
        %p301 = pneg %p116
      $region34: #{_lambda_.17} parent=31 // pred_check_branch
        %303 = sbr.rel (%p301) target = $region36
      $region35: #{_lambda_.17} parent=31 // pred_region
        _
      $region36: #{_lambda_.17} parent=31 // pred_fallthru
        _
    $region32: #{_lambda_.17} parent=5 // pred_fallthru
      _
    %p304 = scmp.le.s32.totalorder 2, %s9
    // Predicated region
    $region37: #{_lambda_.17} parent=5 // pred_check
      %p305 = pneg %p304
    $region38: #{_lambda_.17} parent=5 // pred_check_branch
      %307 = sbr.rel (%p305) target = $region40
    $region39: #{_lambda_.17} parent=5 // pred_region
      %s308 = ssub.s32 %s9, 2
      // Predicated region
      $region41: #{_lambda_.17} parent=39 // pred_check
        %p309 = pneg %p122
      $region42: #{_lambda_.17} parent=39 // pred_check_branch
        %311 = sbr.rel (%p309) target = $region44
      $region43: #{_lambda_.17} parent=39 // pred_region
        %p312 = scmp.lt.s32.totalorder %s20, 1
        %s313 = scalar_select %p312, %s20, 1
        %p314 = scmp.lt.s32.totalorder %s21, 0
        %s315 = scalar_select %p314, %s21, 0
        %s316 = smul.addr %s313, 2
        %s317 = sadd.s32 %s315, %s316
        %s318 = smul.addr %s317, 4
        %s319 = scalar_lea.vmem %s3, %s318
      $region44: #{_lambda_.17} parent=39 // pred_fallthru
        _
    $region40: #{_lambda_.17} parent=5 // pred_fallthru
      _
  $region6: #{_lambda_.17} parent=0 // loop_footer
    %s13 = sadd.s32 1, %s9
  $region7: #{_lambda_.17} parent=0 // loop_footer_branch
    %8 = sbr.rel target = $region3
  $region8: #{_lambda_.17} parent=0 // loop_exit
    _

// kernel: _lambda_.16
$region0: #{_lambda_.16}
  #allocation0 [shape = 'u32[]', space=smem, size = 0x4, offset = 0x4, fixed_abs, tag = 'smem constant byte address 0x4 - core index']
  #allocation1 [shape = 'u32[144,128]{1,0:T(1,128)}', space=vmem, size = 0x12000, scoped, tag = 'internal scratch']
  #allocation2 [shape = 'f32[16,16]{1,0:T(8,128)}', space=vmem, size = 0x2000, scoped, tag = 'scratch operand']
  %s0 = inlined_call_operand.vmem [shape: bf16[2,16,64], index: 0, kind: input, shape index: {}]
  %s1 = inlined_call_operand.vmem [shape: f32[2,3,16], index: 1, kind: input, shape index: {}]
  %s2 = inlined_call_operand.vmem [shape: s32[2,8,1,16], index: 2, kind: input, shape index: {}]
  %s3 = inlined_call_operand.vmem [shape: f32[3,16,1], index: 3, kind: input, shape index: {}]
  %s4 = inlined_call_operand.vmem [shape: f32[16,1], index: 4, kind: input, shape index: {}]
  %s5 = inlined_call_operand.vmem [shape: bf16[2,16,16], index: 5, kind: output, shape index: {}]
  %s6 = sld [smem:[#allocation0]]
  $region61: #{_lambda_.16} parent=0
    _
  %s8 = ssub.s32 1, %s6
  %s9 = scalar_select 0, %s8, %s6
  loop: start=0, step=1, limit=18
  $region2: #{_lambda_.16} parent=0 // loop_pre_header
    _
  $region3: #{_lambda_.16} parent=0 // loop_header
    %s11 = sphi 0, %s15
    %p12 = scmp.ge.s32.totalorder %s11, 18
    %s18 = sphi 0, %s37
    %s19 = sphi 0, %s33
    %s20 = sphi 0, %s29
    %s21 = sphi 0, %s18
    %s22 = sphi 0, %s19
    %s23 = sphi 0, %s20
    %s24 = sphi 0, %s21
    %s25 = sphi 0, %s22
    %s26 = sphi 0, %s23
    %s40 = sphi 0, %s42
    %s43 = sphi 0, %s40
    %s44 = sphi 0, %s43
    %s60 = sphi 0, %s44
    %s68 = sphi 0, %s70
    %s71 = sphi 0, %s68
    %s72 = sphi 0, %s71
    %s88 = sphi 0, %s72
    %s98 = sphi 0, %s100
    %s101 = sphi 0, %s98
    %s102 = sphi 0, %s101
    %s118 = sphi 0, %s102
    %s122 = sphi 0, %s122
    %s124 = sphi 0, %s122
    %s125 = sphi 0, %s124
    %s139 = sphi 0, %s125
    %s143 = sphi 0, %s143
    %s145 = sphi 0, %s143
    %s146 = sphi 0, %s145
    %s160 = sphi 0, %s146
    %s168 = sphi 0, %s170
    %s171 = sphi 0, %s168
    %s172 = sphi 0, %s171
    %s188 = sphi 0, %s172
  $region4: #{_lambda_.16} parent=0 // loop_header_branch
    %14 = sbr.rel (%p12) target = $region8
  $region5: #{_lambda_.16} parent=0 // loop_body
    %s16 = ssub.s32 %s11, 1
    %s17 = ssub.s32 %s11, 2
    %s27 = sadd.s32 1, %s20
    %p28 = scmp.ge.s32.totalorder %s27, 8
    %s29 = scalar_select %p28, 0, %s27
    %s30 = sadd.s32 1, %s19
    %s31 = scalar_select %p28, %s30, %s19
    %p32 = scmp.ge.s32.totalorder %s31, 1
    %s33 = scalar_select %p32, 0, %s31
    %s34 = sadd.s32 1, %s18
    %s35 = scalar_select %p32, %s34, %s18
    %p36 = scmp.ge.s32.totalorder %s35, 2
    %s37 = scalar_select %p36, 0, %s35
    %s38 = ssub.s32 %s18, %s37
    %p39 = scmp.eq.s32.totalorder %s38, 0
    %s41 = sadd.s32 %s40, 1
    %s42 = scalar_select %p39, %s40, %s41
    %p45 = pneg %p39
    %p46 = scmp.eq.s32.totalorder %s11, 15
    %p47 = por %p45, %p46
    %p48 = scmp.ne.s32.totalorder %s40, %s43
    %p49 = scmp.eq.s32.totalorder %s11, 0
    %p50 = por %p48, %p49
    %p51 = scmp.ne.s32.totalorder %s40, %s43
    %p52 = scmp.eq.s32.totalorder %s16, 15
    %p53 = por %p51, %p52
    %p54 = scmp.ne.s32.totalorder %s43, %s44
    %p55 = scmp.eq.s32.totalorder %s16, 0
    %p56 = por %p54, %p55
    %p57 = scmp.ne.s32.totalorder %s43, %s44
    %p58 = scmp.eq.s32.totalorder %s17, 15
    %p59 = por %p57, %p58
    %p61 = scmp.ne.s32.totalorder %s44, %s60
    %p62 = scmp.eq.s32.totalorder %s17, 0
    %p63 = por %p61, %p62
    %s64 = ssub.s32 %s18, %s37
    %s65 = ssub.s32 %s19, %s33
    %s66 = sor.u32 %s64, %s65
    %p67 = scmp.eq.s32.totalorder %s66, 0
    %s69 = sadd.s32 %s68, 1
    %s70 = scalar_select %p67, %s68, %s69
    %p73 = pneg %p67
    %p74 = scmp.eq.s32.totalorder %s11, 15
    %p75 = por %p73, %p74
    %p76 = scmp.ne.s32.totalorder %s68, %s71
    %p77 = scmp.eq.s32.totalorder %s11, 0
    %p78 = por %p76, %p77
    %p79 = scmp.ne.s32.totalorder %s68, %s71
    %p80 = scmp.eq.s32.totalorder %s16, 15
    %p81 = por %p79, %p80
    %p82 = scmp.ne.s32.totalorder %s71, %s72
    %p83 = scmp.eq.s32.totalorder %s16, 0
    %p84 = por %p82, %p83
    %p85 = scmp.ne.s32.totalorder %s71, %s72
    %p86 = scmp.eq.s32.totalorder %s17, 15
    %p87 = por %p85, %p86
    %p89 = scmp.ne.s32.totalorder %s72, %s88
    %p90 = scmp.eq.s32.totalorder %s17, 0
    %p91 = por %p89, %p90
    %s92 = ssub.s32 %s18, %s37
    %s93 = ssub.s32 %s20, %s29
    %s94 = sor.u32 %s92, %s93
    %s95 = ssub.s32 %s19, %s33
    %s96 = sor.u32 %s94, %s95
    %p97 = scmp.eq.s32.totalorder %s96, 0
    %s99 = sadd.s32 %s98, 1
    %s100 = scalar_select %p97, %s98, %s99
    %p103 = pneg %p97
    %p104 = scmp.eq.s32.totalorder %s11, 15
    %p105 = por %p103, %p104
    %p106 = scmp.ne.s32.totalorder %s98, %s101
    %p107 = scmp.eq.s32.totalorder %s11, 0
    %p108 = por %p106, %p107
    %p109 = scmp.ne.s32.totalorder %s98, %s101
    %p110 = scmp.eq.s32.totalorder %s16, 15
    %p111 = por %p109, %p110
    %p112 = scmp.ne.s32.totalorder %s101, %s102
    %p113 = scmp.eq.s32.totalorder %s16, 0
    %p114 = por %p112, %p113
    %p115 = scmp.ne.s32.totalorder %s101, %s102
    %p116 = scmp.eq.s32.totalorder %s17, 15
    %p117 = por %p115, %p116
    %p119 = scmp.ne.s32.totalorder %s102, %s118
    %p120 = scmp.eq.s32.totalorder %s17, 0
    %p121 = por %p119, %p120
    %s123 = sadd.s32 %s122, 1
    %p126 = scmp.eq.s32.totalorder %s11, 15
    %p127 = scmp.ne.s32.totalorder %s122, %s124
    %p128 = scmp.eq.s32.totalorder %s11, 0
    %p129 = por %p127, %p128
    %p130 = scmp.ne.s32.totalorder %s122, %s124
    %p131 = scmp.eq.s32.totalorder %s16, 15
    %p132 = por %p130, %p131
    %p133 = scmp.ne.s32.totalorder %s124, %s125
    %p134 = scmp.eq.s32.totalorder %s16, 0
    %p135 = por %p133, %p134
    %p136 = scmp.ne.s32.totalorder %s124, %s125
    %p137 = scmp.eq.s32.totalorder %s17, 15
    %p138 = por %p136, %p137
    %p140 = scmp.ne.s32.totalorder %s125, %s139
    %p141 = scmp.eq.s32.totalorder %s17, 0
    %p142 = por %p140, %p141
    %s144 = sadd.s32 %s143, 1
    %p147 = scmp.eq.s32.totalorder %s11, 15
    %p148 = scmp.ne.s32.totalorder %s143, %s145
    %p149 = scmp.eq.s32.totalorder %s11, 0
    %p150 = por %p148, %p149
    %p151 = scmp.ne.s32.totalorder %s143, %s145
    %p152 = scmp.eq.s32.totalorder %s16, 15
    %p153 = por %p151, %p152
    %p154 = scmp.ne.s32.totalorder %s145, %s146
    %p155 = scmp.eq.s32.totalorder %s16, 0
    %p156 = por %p154, %p155
    %p157 = scmp.ne.s32.totalorder %s145, %s146
    %p158 = scmp.eq.s32.totalorder %s17, 15
    %p159 = por %p157, %p158
    %p161 = scmp.ne.s32.totalorder %s146, %s160
    %p162 = scmp.eq.s32.totalorder %s17, 0
    %p163 = por %p161, %p162
    %s164 = ssub.s32 %s18, %s37
    %s165 = ssub.s32 %s19, %s33
    %s166 = sor.u32 %s164, %s165
    %p167 = scmp.eq.s32.totalorder %s166, 0
    %s169 = sadd.s32 %s168, 1
    %s170 = scalar_select %p167, %s168, %s169
    %p173 = pneg %p167
    %p174 = scmp.eq.s32.totalorder %s11, 15
    %p175 = por %p173, %p174
    %p176 = scmp.ne.s32.totalorder %s168, %s171
    %p177 = scmp.eq.s32.totalorder %s11, 0
    %p178 = por %p176, %p177
    %p179 = scmp.ne.s32.totalorder %s168, %s171
    %p180 = scmp.eq.s32.totalorder %s16, 15
    %p181 = por %p179, %p180
    %p182 = scmp.ne.s32.totalorder %s171, %s172
    %p183 = scmp.eq.s32.totalorder %s16, 0
    %p184 = por %p182, %p183
    %p185 = scmp.ne.s32.totalorder %s171, %s172
    %p186 = scmp.eq.s32.totalorder %s17, 15
    %p187 = por %p185, %p186
    %p189 = scmp.ne.s32.totalorder %s172, %s188
    %p190 = scmp.eq.s32.totalorder %s17, 0
    %p191 = por %p189, %p190
    %p192 = scmp.le.s32.totalorder 1, %s11
    %p193 = scmp.lt.s32.totalorder %s11, 17
    %p194 = pnand %p192, %p193
    %p195 = pneg %p194
    // Predicated region
    $region9: #{_lambda_.16} parent=5 // pred_check
      _
    $region10: #{_lambda_.16} parent=5 // pred_check_branch
      %197 = sbr.rel (%p194) target = $region12
    $region11: #{_lambda_.16} parent=5 // pred_region
      %s198 = ssub.s32 %s11, 1
      // Predicated region
      $region13: #{_lambda_.16} parent=11 // pred_check
        %p199 = pneg %p135
      $region14: #{_lambda_.16} parent=11 // pred_check_branch
        %201 = sbr.rel (%p199) target = $region16
      $region15: #{_lambda_.16} parent=11 // pred_region
        _
      $region16: #{_lambda_.16} parent=11 // pred_fallthru
        _
      // Predicated region
      $region17: #{_lambda_.16} parent=11 // pred_check
        %p202 = pneg %p156
      $region18: #{_lambda_.16} parent=11 // pred_check_branch
        %204 = sbr.rel (%p202) target = $region20
      $region19: #{_lambda_.16} parent=11 // pred_region
        _
      $region20: #{_lambda_.16} parent=11 // pred_fallthru
        _
    $region12: #{_lambda_.16} parent=5 // pred_fallthru
      _
    %p205 = scmp.lt.s32.totalorder %s11, 16
    // Predicated region
    $region21: #{_lambda_.16} parent=5 // pred_check
      %p206 = pneg %p205
    $region22: #{_lambda_.16} parent=5 // pred_check_branch
      %208 = sbr.rel (%p206) target = $region24
    $region23: #{_lambda_.16} parent=5 // pred_region
      // Predicated region
      $region25: #{_lambda_.16} parent=23 // pred_check
        %p209 = pneg %p50
      $region26: #{_lambda_.16} parent=23 // pred_check_branch
        %211 = sbr.rel (%p209) target = $region28
      $region27: #{_lambda_.16} parent=23 // pred_region
        %p212 = scmp.lt.s32.totalorder %s18, 1
        %s213 = scalar_select %p212, %s18, 1
        %s214 = smul.addr %s213, 2
        %s215 = smul.addr %s214, 4
        %s216 = scalar_lea.vmem %s0, %s215
      $region28: #{_lambda_.16} parent=23 // pred_fallthru
        _
      // Predicated region
      $region29: #{_lambda_.16} parent=23 // pred_check
        %p217 = pneg %p78
      $region30: #{_lambda_.16} parent=23 // pred_check_branch
        %219 = sbr.rel (%p217) target = $region32
      $region31: #{_lambda_.16} parent=23 // pred_region
        %p220 = scmp.lt.s32.totalorder %s18, 1
        %s221 = scalar_select %p220, %s18, 1
        %p222 = scmp.lt.s32.totalorder %s19, 0
        %s223 = scalar_select %p222, %s19, 0
        %s224 = sadd.s32 %s223, %s221
        %s225 = smul.addr %s224, 4
        %s226 = scalar_lea.vmem %s1, %s225
      $region32: #{_lambda_.16} parent=23 // pred_fallthru
        _
      // Predicated region
      $region33: #{_lambda_.16} parent=23 // pred_check
        %p227 = pneg %p108
      $region34: #{_lambda_.16} parent=23 // pred_check_branch
        %229 = sbr.rel (%p227) target = $region36
      $region35: #{_lambda_.16} parent=23 // pred_region
        %p230 = scmp.lt.s32.totalorder %s18, 1
        %s231 = scalar_select %p230, %s18, 1
        %p232 = scmp.lt.s32.totalorder %s20, 7
        %s233 = scalar_select %p232, %s20, 7
        %p234 = scmp.lt.s32.totalorder %s19, 0
        %s235 = scalar_select %p234, %s19, 0
        %s236 = sadd.s32 %s235, %s233
        %s237 = smul.addr %s231, 8
        %s238 = sadd.s32 %s236, %s237
        %s239 = scalar_lea.vmem %s2, %s238
      $region36: #{_lambda_.16} parent=23 // pred_fallthru
        _
    $region24: #{_lambda_.16} parent=5 // pred_fallthru
      _
    %p240 = scmp.le.s32.totalorder 1, %s11
    %p241 = scmp.lt.s32.totalorder %s11, 17
    %p242 = pnand %p240, %p241
    %p243 = pneg %p242
    // Predicated region
    $region37: #{_lambda_.16} parent=5 // pred_check
      _
    $region38: #{_lambda_.16} parent=5 // pred_check_branch
      %245 = sbr.rel (%p242) target = $region40
    $region39: #{_lambda_.16} parent=5 // pred_region
      %s246 = ssub.s32 %s11, 1
      %p247 = scmp.lt.s32.totalorder %s21, 1
      %s248 = scalar_select %p247, %s21, 1
      %s249 = smul.addr %s248, 2
      %s250 = smul.addr %s249, 4
      %s251 = scalar_lea.vmem %s0, %s250
      %p252 = pneg %p56
      %p253 = pneg %p53
      %p254 = scmp.lt.s32.totalorder %s21, 1
      %s255 = scalar_select %p254, %s21, 1
      %p256 = scmp.lt.s32.totalorder %s22, 0
      %s257 = scalar_select %p256, %s22, 0
      %s258 = sadd.s32 %s257, %s255
      %s259 = smul.addr %s258, 4
      %s260 = scalar_lea.vmem %s1, %s259
      %p261 = pneg %p84
      %p262 = pneg %p81
      %p263 = scmp.lt.s32.totalorder %s21, 1
      %s264 = scalar_select %p263, %s21, 1
      %p265 = scmp.lt.s32.totalorder %s23, 7
      %s266 = scalar_select %p265, %s23, 7
      %p267 = scmp.lt.s32.totalorder %s22, 0
      %s268 = scalar_select %p267, %s22, 0
      %s269 = sadd.s32 %s268, %s266
      %s270 = smul.addr %s264, 8
      %s271 = sadd.s32 %s269, %s270
      %s272 = scalar_lea.vmem %s2, %s271
      %p273 = pneg %p114
      %p274 = pneg %p111
      %p275 = pneg %p135
      %p276 = pneg %p132
      %p277 = pneg %p156
      %p278 = pneg %p153
      %p279 = pneg %p184
      %p280 = pneg %p181
      %p281 = scmp.lt.s32.totalorder %s21, 1
      %s282 = scalar_select %p281, %s21, 1
      %p283 = scmp.lt.s32.totalorder %s22, 0
      %s284 = scalar_select %p283, %s22, 0
      %s285 = smul.addr %s282, 2
      %s286 = sadd.s32 %s284, %s285
      %s287 = smul.addr %s286, 4
      %s288 = scalar_lea.vmem %s5, %s287
      %p289 = scmp.lt.s32.totalorder %s21, 1
      %s290 = scalar_select %p289, %s21, 1
      %s291 = smul.addr %s290, 2
      %s292 = smul.addr %s291, 4
      %s293 = scalar_lea.vmem %s0, %s292
      %p294 = scmp.lt.s32.totalorder %s21, 1
      %s295 = scalar_select %p294, %s21, 1
      %p296 = scmp.lt.s32.totalorder %s22, 0
      %s297 = scalar_select %p296, %s22, 0
      %s298 = sadd.s32 %s297, %s295
      %s299 = smul.addr %s298, 4
      %s300 = scalar_lea.vmem %s1, %s299
      %p301 = scmp.lt.s32.totalorder %s21, 1
      %s302 = scalar_select %p301, %s21, 1
      %p303 = scmp.lt.s32.totalorder %s23, 7
      %s304 = scalar_select %p303, %s23, 7
      %p305 = scmp.lt.s32.totalorder %s22, 0
      %s306 = scalar_select %p305, %s22, 0
      %s307 = sadd.s32 %s306, %s304
      %s308 = smul.addr %s302, 8
      %s309 = sadd.s32 %s307, %s308
      %s310 = scalar_lea.vmem %s2, %s309
      %p311 = scmp.lt.s32.totalorder %s21, 1
      %s312 = scalar_select %p311, %s21, 1
      %p313 = scmp.lt.s32.totalorder %s22, 0
      %s314 = scalar_select %p313, %s22, 0
      %s315 = smul.addr %s312, 2
      %s316 = sadd.s32 %s314, %s315
      %s317 = smul.addr %s316, 4
      %s318 = scalar_lea.vmem %s5, %s317
      %p320 = scmp.eq.s32.totalorder %s23, 0
      // Predicated region
      $region41: #{_lambda_.16} parent=39 // pred_check
        %p321 = pneg %p320
      $region42: #{_lambda_.16} parent=39 // pred_check_branch
        %323 = sbr.rel (%p321) target = $region44
      $region43: #{_lambda_.16} parent=39 // pred_region
        %vm324 = vcmask 130048
        %325 = vst.msk [vmem:[#allocation2] sm:$0xff] %vm324, -inf
        %326 = vst.msk [vmem:[#allocation2 + $0x8] sm:$0xff] %vm324, -inf
      $region44: #{_lambda_.16} parent=39 // pred_fallthru
        _
      %v327 = vld [vmem:[%s310] sm:$0x1]
      %v328 = vlaneseq
      %v329 = vshrl.u32 %v328, 7
      %v330 = vadd.s32 %v329, 8
      %v331 = vadd.s32 %v329, 16
      %v332 = vadd.s32 %v329, 24
      %v333 = vadd.s32 %v329, 32
      %v334 = vadd.s32 %v329, 40
      %v335 = vadd.s32 %v329, 48
      %v336 = vadd.s32 %v329, 56
      %v337 = vlaneseq
      %v338 = vshrl.u32 %v337, 7
      %v339 = vsub.s32 0, %v338
      %v340 = vrot.slane %v327, %v339
      %vm341 = vcmp.eq.s32.totalorder %v329, %v340
      %vm342 = vcmp.eq.s32.totalorder %v330, %v340
      %vm343 = vcmp.eq.s32.totalorder %v331, %v340
      %vm344 = vcmp.eq.s32.totalorder %v332, %v340
      %vm345 = vcmp.eq.s32.totalorder %v333, %v340
      %vm346 = vcmp.eq.s32.totalorder %v334, %v340
      %vm347 = vcmp.eq.s32.totalorder %v335, %v340
      %vm348 = vcmp.eq.s32.totalorder %v336, %v340
      %v349 = vsel %vm341, 1.0, 0.0
      %v350 = vsel %vm342, 1.0, 0.0
      %v351 = vsel %vm343, 1.0, 0.0
      %v352 = vsel %vm344, 1.0, 0.0
      %v353 = vsel %vm345, 1.0, 0.0
      %v354 = vsel %vm346, 1.0, 0.0
      %v355 = vsel %vm347, 1.0, 0.0
      %v356 = vsel %vm348, 1.0, 0.0
      %v357 = vpack.c.bf16 %v350, %v349
      %v358 = vpack.c.bf16 %v352, %v351
      %v359 = vpack.c.bf16 %v354, %v353
      %v360 = vpack.c.bf16 %v356, %v355
      %v361 = vld [vmem:[%s293] sm:$0xf]
      %v362 = vld [vmem:[%s293 + $0x4] sm:$0xf]
      %v365 = vunpack.c.l.b16 %v361
      %v366 = vunpack.c.l.b16 %v362
      %v367 = vpack.c.b16 %v366, %v365
      %vm368 = vcmask 523264
      %v370 = vsel %vm368, %v367, 0
      %372 = vmatprep.subr.bf16.mxu0 0
      %373 = vmatpush1.bf16.msra.mxu0 0
      %374 = vmatprep.subr.bf16.mxu0 0
      %375 = vmatpush1.bf16.msra.mxu0 0
      %376 = vmatprep.subr.bf16.mxu0 0
      %377 = vmatpush1.bf16.msra.mxu0 0
      %378 = vmatprep.subr.bf16.mxu0 0
      %379 = vmatpush1.bf16.msra.mxu0 0
      %380 = vmatprep.subr.bf16.mxu0 0
      %381 = vmatpush1.bf16.msra.mxu0 %v360
      %382 = vmatprep.subr.bf16.mxu0 0
      %383 = vmatpush1.bf16.msra.mxu0 %v359
      %384 = vmatprep.subr.bf16.mxu0 0
      %385 = vmatpush1.bf16.msra.mxu0 %v358
      %386 = vmatprep.subr.bf16.mxu0 0
      %387 = vmatpush1.bf16.msra.mxu0 %v357
      %388 = vmatprep.subr.bf16.mxu0 0
      %389 = vmatpush2.bf16.msra.mxu0 0
      %390 = vmatprep.subr.bf16.mxu0 0
      %391 = vmatpush2.bf16.msra.mxu0 0
      %392 = vmatprep.subr.bf16.mxu0 0
      %393 = vmatpush2.bf16.msra.mxu0 0
      %394 = vmatprep.subr.bf16.mxu0 0
      %395 = vmatpush2.bf16.msra.mxu0 0
      %396 = vmatprep.subr.bf16.mxu0 0
      %397 = vmatpush2.bf16.msra.mxu0 0
      %398 = vmatprep.subr.bf16.mxu0 0
      %399 = vmatpush2.bf16.msra.mxu0 0
      %400 = vmatprep.subr.bf16.mxu0 0
      %401 = vmatpush2.bf16.msra.mxu0 0
      %402 = vmatprep.subr.bf16.mxu0 0
      %403 = vmatpush2.bf16.msra.mxu0 0
      %404 = vmatprep.mubr.bf16.mxu0 0
      %405 = vmatmul.mubr.bf16.gmra.mxu0 %v370
      %v406 = vpop.f32.mrf.mxu0
      %v407 = vadd.f32 0.0, %v406
      %v408 = vpop.f32.mrf.mxu0
      %v409 = vpop.f32.mrf.mxu0
      %v410 = vadd.f32 0.0, %v409
      %v411 = vpop.f32.mrf.mxu0
      %412 = vdwg.mxu0
      %v413 = vld [vmem:[%s300] sm:$0x7]
      %v414 = vld [vmem:[%s3] sm:$0xff]
      %v415 = vld [vmem:[%s3 + $0x8] sm:$0xff]
      %417 = vset.pattern.permute.xlu0 0
      %418 = vperm.xlu0 %417, %v414
      %v419 = vpop.permute.xlu0 %418
      %422 = vset.pattern.permute.xlu0 0
      %423 = vperm.xlu0 %422, %v415
      %v424 = vpop.permute.xlu0 %423
      %v426 = vlaneseq
      %v427 = vshrl.u32 %v426, 7
      %v428 = vsub.s32 0, %v427
      %v429 = vrot.slane %v413, %v428
      %v430 = vmul.f32 %v419, %v429
      %v431 = vmul.f32 %v424, %v429
      %s432 = scalar_lea.vmem %s3, 16
      %v433 = vld [vmem:[%s432] sm:$0xff]
      %v434 = vld [vmem:[%s432 + $0x8] sm:$0xff]
      %436 = vset.pattern.permute.xlu0 0
      %437 = vperm.xlu0 %436, %v433
      %v438 = vpop.permute.xlu0 %437
      %441 = vset.pattern.permute.xlu0 0
      %442 = vperm.xlu0 %441, %v434
      %v443 = vpop.permute.xlu0 %442
      %v445 = vlaneseq
      %v446 = vshrl.u32 %v445, 7
      %v447 = vsub.s32 1, %v446
      %v448 = vrot.slane %v413, %v447
      %v449 = vmul.f32 %v438, %v448
      %v450 = vmul.f32 %v443, %v448
      %v451 = vadd.f32 %v430, %v449
      %v452 = vadd.f32 %v431, %v450
      %s453 = scalar_lea.vmem %s3, 32
      %v454 = vld [vmem:[%s453] sm:$0xff]
      %v455 = vld [vmem:[%s453 + $0x8] sm:$0xff]
      %457 = vset.pattern.permute.xlu0 0
      %458 = vperm.xlu0 %457, %v454
      %v459 = vpop.permute.xlu0 %458
      %462 = vset.pattern.permute.xlu0 0
      %463 = vperm.xlu0 %462, %v455
      %v464 = vpop.permute.xlu0 %463
      %v466 = vlaneseq
      %v467 = vshrl.u32 %v466, 7
      %v468 = vsub.s32 2, %v467
      %v469 = vrot.slane %v413, %v468
      %v470 = vmul.f32 %v459, %v469
      %v471 = vmul.f32 %v464, %v469
      %v472 = vadd.f32 %v451, %v470
      %v473 = vadd.f32 %v452, %v471
      %v474 = vsub.f32 %v407, %v472
      %v475 = vsub.f32 %v410, %v473
      %v476 = vld [vmem:[%s4] sm:$0xff]
      %v477 = vld [vmem:[%s4 + $0x8] sm:$0xff]
      %479 = vset.pattern.permute.xlu0 0
      %480 = vperm.xlu0 %479, %v476
      %v481 = vpop.permute.xlu0 %480
      %484 = vset.pattern.permute.xlu0 0
      %485 = vperm.xlu0 %484, %v477
      %v486 = vpop.permute.xlu0 %485
      %v488 = vadd.f32 %v474, %v481
      %v489 = vadd.f32 %v475, %v486
      %v490 = vmax.f32 %v488, 0.0
      %v491 = vmax.f32 %v489, 0.0
      %v492 = vld [vmem:[#allocation2] sm:$0xff]
      %v493 = vld [vmem:[#allocation2 + $0x8] sm:$0xff]
      %v494 = vmax.f32 %v492, %v490
      %v495 = vmax.f32 %v493, %v491
      %vm496 = vcmask 130048
      %497 = vst.msk [vmem:[#allocation2] sm:$0xff] %vm496, %v494
      %498 = vst.msk [vmem:[#allocation2 + $0x8] sm:$0xff] %vm496, %v495
      %p499 = scmp.eq.s32.totalorder %s23, 7
      // Predicated region
      $region45: #{_lambda_.16} parent=39 // pred_check
        %p500 = pneg %p499
      $region46: #{_lambda_.16} parent=39 // pred_check_branch
        %502 = sbr.rel (%p500) target = $region48
      $region47: #{_lambda_.16} parent=39 // pred_region
        %v503 = vld [vmem:[#allocation2] sm:$0xff]
        %v504 = vld [vmem:[#allocation2 + $0x8] sm:$0xff]
        %v505 = vpack.c.bf16 %v504, %v503
        %v507 = vunpack.c.l.b16 %v505
        %v508 = vunpack.c.h.b16 %v505
        %v509 = vpack.c.b16 %v507, %v507
        %v510 = vpack.c.b16 %v508, %v508
        %vm513 = vcmask 125952
        %514 = vst.msk [vmem:[%s318] sm:$0xf] %vm513, %v509
        %515 = vst.msk [vmem:[%s318 + $0x4] sm:$0xf] %vm513, %v510
      $region48: #{_lambda_.16} parent=39 // pred_fallthru
        _
      %p516 = scmp.lt.s32.totalorder %s21, 1
      %s517 = scalar_select %p516, %s21, 1
      %p518 = scmp.lt.s32.totalorder %s22, 0
      %s519 = scalar_select %p518, %s22, 0
      %s520 = smul.addr %s517, 2
      %s521 = sadd.s32 %s519, %s520
      %s522 = smul.addr %s521, 4
      %s523 = scalar_lea.vmem %s5, %s522
      // Predicated region
      $region49: #{_lambda_.16} parent=39 // pred_check
        %p524 = pneg %p181
      $region50: #{_lambda_.16} parent=39 // pred_check_branch
        %526 = sbr.rel (%p524) target = $region52
      $region51: #{_lambda_.16} parent=39 // pred_region
        _
      $region52: #{_lambda_.16} parent=39 // pred_fallthru
        _
    $region40: #{_lambda_.16} parent=5 // pred_fallthru
      _
    %p527 = scmp.le.s32.totalorder 2, %s11
    // Predicated region
    $region53: #{_lambda_.16} parent=5 // pred_check
      %p528 = pneg %p527
    $region54: #{_lambda_.16} parent=5 // pred_check_branch
      %530 = sbr.rel (%p528) target = $region56
    $region55: #{_lambda_.16} parent=5 // pred_region
      %s531 = ssub.s32 %s11, 2
      // Predicated region
      $region57: #{_lambda_.16} parent=55 // pred_check
        %p532 = pneg %p187
      $region58: #{_lambda_.16} parent=55 // pred_check_branch
        %534 = sbr.rel (%p532) target = $region60
      $region59: #{_lambda_.16} parent=55 // pred_region
        %p535 = scmp.lt.s32.totalorder %s24, 1
        %s536 = scalar_select %p535, %s24, 1
        %p537 = scmp.lt.s32.totalorder %s25, 0
        %s538 = scalar_select %p537, %s25, 0
        %s539 = smul.addr %s536, 2
        %s540 = sadd.s32 %s538, %s539
        %s541 = smul.addr %s540, 4
        %s542 = scalar_lea.vmem %s5, %s541
      $region60: #{_lambda_.16} parent=55 // pred_fallthru
        _
    $region56: #{_lambda_.16} parent=5 // pred_fallthru
      _
  $region6: #{_lambda_.16} parent=0 // loop_footer
    %s15 = sadd.s32 1, %s11
  $region7: #{_lambda_.16} parent=0 // loop_footer_branch
    %10 = sbr.rel target = $region3
  $region8: #{_lambda_.16} parent=0 // loop_exit
    _

// kernel: _lambda_.18
$region0: #{_lambda_.18}
  #allocation0 [shape = 'u32[]', space=smem, size = 0x4, offset = 0x4, fixed_abs, tag = 'smem constant byte address 0x4 - core index']
  #allocation1 [shape = 'u32[144,128]{1,0:T(1,128)}', space=vmem, size = 0x12000, scoped, tag = 'internal scratch']
  #allocation2 [shape = 'f32[16,16]{1,0:T(8,128)}', space=vmem, size = 0x2000, scoped, tag = 'scratch operand']
  %s0 = inlined_call_operand.vmem [shape: bf16[2,16,16], index: 0, kind: input, shape index: {}]
  %s1 = inlined_call_operand.vmem [shape: f32[2,3,16], index: 1, kind: input, shape index: {}]
  %s2 = inlined_call_operand.vmem [shape: s32[2,8,1,16], index: 2, kind: input, shape index: {}]
  %s3 = inlined_call_operand.vmem [shape: f32[3,16,1], index: 3, kind: input, shape index: {}]
  %s4 = inlined_call_operand.vmem [shape: f32[16,1], index: 4, kind: input, shape index: {}]
  %s5 = inlined_call_operand.vmem [shape: bf16[2,16,16], index: 5, kind: output, shape index: {}]
  %s6 = sld [smem:[#allocation0]]
  $region61: #{_lambda_.18} parent=0
    _
  %s8 = ssub.s32 1, %s6
  %s9 = scalar_select 0, %s8, %s6
  loop: start=0, step=1, limit=18
  $region2: #{_lambda_.18} parent=0 // loop_pre_header
    _
  $region3: #{_lambda_.18} parent=0 // loop_header
    %s11 = sphi 0, %s15
    %p12 = scmp.ge.s32.totalorder %s11, 18
    %s18 = sphi 0, %s37
    %s19 = sphi 0, %s33
    %s20 = sphi 0, %s29
    %s21 = sphi 0, %s18
    %s22 = sphi 0, %s19
    %s23 = sphi 0, %s20
    %s24 = sphi 0, %s21
    %s25 = sphi 0, %s22
    %s26 = sphi 0, %s23
    %s40 = sphi 0, %s42
    %s43 = sphi 0, %s40
    %s44 = sphi 0, %s43
    %s60 = sphi 0, %s44
    %s68 = sphi 0, %s70
    %s71 = sphi 0, %s68
    %s72 = sphi 0, %s71
    %s88 = sphi 0, %s72
    %s98 = sphi 0, %s100
    %s101 = sphi 0, %s98
    %s102 = sphi 0, %s101
    %s118 = sphi 0, %s102
    %s122 = sphi 0, %s122
    %s124 = sphi 0, %s122
    %s125 = sphi 0, %s124
    %s139 = sphi 0, %s125
    %s143 = sphi 0, %s143
    %s145 = sphi 0, %s143
    %s146 = sphi 0, %s145
    %s160 = sphi 0, %s146
    %s168 = sphi 0, %s170
    %s171 = sphi 0, %s168
    %s172 = sphi 0, %s171
    %s188 = sphi 0, %s172
  $region4: #{_lambda_.18} parent=0 // loop_header_branch
    %14 = sbr.rel (%p12) target = $region8
  $region5: #{_lambda_.18} parent=0 // loop_body
    %s16 = ssub.s32 %s11, 1
    %s17 = ssub.s32 %s11, 2
    %s27 = sadd.s32 1, %s20
    %p28 = scmp.ge.s32.totalorder %s27, 8
    %s29 = scalar_select %p28, 0, %s27
    %s30 = sadd.s32 1, %s19
    %s31 = scalar_select %p28, %s30, %s19
    %p32 = scmp.ge.s32.totalorder %s31, 1
    %s33 = scalar_select %p32, 0, %s31
    %s34 = sadd.s32 1, %s18
    %s35 = scalar_select %p32, %s34, %s18
    %p36 = scmp.ge.s32.totalorder %s35, 2
    %s37 = scalar_select %p36, 0, %s35
    %s38 = ssub.s32 %s18, %s37
    %p39 = scmp.eq.s32.totalorder %s38, 0
    %s41 = sadd.s32 %s40, 1
    %s42 = scalar_select %p39, %s40, %s41
    %p45 = pneg %p39
    %p46 = scmp.eq.s32.totalorder %s11, 15
    %p47 = por %p45, %p46
    %p48 = scmp.ne.s32.totalorder %s40, %s43
    %p49 = scmp.eq.s32.totalorder %s11, 0
    %p50 = por %p48, %p49
    %p51 = scmp.ne.s32.totalorder %s40, %s43
    %p52 = scmp.eq.s32.totalorder %s16, 15
    %p53 = por %p51, %p52
    %p54 = scmp.ne.s32.totalorder %s43, %s44
    %p55 = scmp.eq.s32.totalorder %s16, 0
    %p56 = por %p54, %p55
    %p57 = scmp.ne.s32.totalorder %s43, %s44
    %p58 = scmp.eq.s32.totalorder %s17, 15
    %p59 = por %p57, %p58
    %p61 = scmp.ne.s32.totalorder %s44, %s60
    %p62 = scmp.eq.s32.totalorder %s17, 0
    %p63 = por %p61, %p62
    %s64 = ssub.s32 %s18, %s37
    %s65 = ssub.s32 %s19, %s33
    %s66 = sor.u32 %s64, %s65
    %p67 = scmp.eq.s32.totalorder %s66, 0
    %s69 = sadd.s32 %s68, 1
    %s70 = scalar_select %p67, %s68, %s69
    %p73 = pneg %p67
    %p74 = scmp.eq.s32.totalorder %s11, 15
    %p75 = por %p73, %p74
    %p76 = scmp.ne.s32.totalorder %s68, %s71
    %p77 = scmp.eq.s32.totalorder %s11, 0
    %p78 = por %p76, %p77
    %p79 = scmp.ne.s32.totalorder %s68, %s71
    %p80 = scmp.eq.s32.totalorder %s16, 15
    %p81 = por %p79, %p80
    %p82 = scmp.ne.s32.totalorder %s71, %s72
    %p83 = scmp.eq.s32.totalorder %s16, 0
    %p84 = por %p82, %p83
    %p85 = scmp.ne.s32.totalorder %s71, %s72
    %p86 = scmp.eq.s32.totalorder %s17, 15
    %p87 = por %p85, %p86
    %p89 = scmp.ne.s32.totalorder %s72, %s88
    %p90 = scmp.eq.s32.totalorder %s17, 0
    %p91 = por %p89, %p90
    %s92 = ssub.s32 %s18, %s37
    %s93 = ssub.s32 %s20, %s29
    %s94 = sor.u32 %s92, %s93
    %s95 = ssub.s32 %s19, %s33
    %s96 = sor.u32 %s94, %s95
    %p97 = scmp.eq.s32.totalorder %s96, 0
    %s99 = sadd.s32 %s98, 1
    %s100 = scalar_select %p97, %s98, %s99
    %p103 = pneg %p97
    %p104 = scmp.eq.s32.totalorder %s11, 15
    %p105 = por %p103, %p104
    %p106 = scmp.ne.s32.totalorder %s98, %s101
    %p107 = scmp.eq.s32.totalorder %s11, 0
    %p108 = por %p106, %p107
    %p109 = scmp.ne.s32.totalorder %s98, %s101
    %p110 = scmp.eq.s32.totalorder %s16, 15
    %p111 = por %p109, %p110
    %p112 = scmp.ne.s32.totalorder %s101, %s102
    %p113 = scmp.eq.s32.totalorder %s16, 0
    %p114 = por %p112, %p113
    %p115 = scmp.ne.s32.totalorder %s101, %s102
    %p116 = scmp.eq.s32.totalorder %s17, 15
    %p117 = por %p115, %p116
    %p119 = scmp.ne.s32.totalorder %s102, %s118
    %p120 = scmp.eq.s32.totalorder %s17, 0
    %p121 = por %p119, %p120
    %s123 = sadd.s32 %s122, 1
    %p126 = scmp.eq.s32.totalorder %s11, 15
    %p127 = scmp.ne.s32.totalorder %s122, %s124
    %p128 = scmp.eq.s32.totalorder %s11, 0
    %p129 = por %p127, %p128
    %p130 = scmp.ne.s32.totalorder %s122, %s124
    %p131 = scmp.eq.s32.totalorder %s16, 15
    %p132 = por %p130, %p131
    %p133 = scmp.ne.s32.totalorder %s124, %s125
    %p134 = scmp.eq.s32.totalorder %s16, 0
    %p135 = por %p133, %p134
    %p136 = scmp.ne.s32.totalorder %s124, %s125
    %p137 = scmp.eq.s32.totalorder %s17, 15
    %p138 = por %p136, %p137
    %p140 = scmp.ne.s32.totalorder %s125, %s139
    %p141 = scmp.eq.s32.totalorder %s17, 0
    %p142 = por %p140, %p141
    %s144 = sadd.s32 %s143, 1
    %p147 = scmp.eq.s32.totalorder %s11, 15
    %p148 = scmp.ne.s32.totalorder %s143, %s145
    %p149 = scmp.eq.s32.totalorder %s11, 0
    %p150 = por %p148, %p149
    %p151 = scmp.ne.s32.totalorder %s143, %s145
    %p152 = scmp.eq.s32.totalorder %s16, 15
    %p153 = por %p151, %p152
    %p154 = scmp.ne.s32.totalorder %s145, %s146
    %p155 = scmp.eq.s32.totalorder %s16, 0
    %p156 = por %p154, %p155
    %p157 = scmp.ne.s32.totalorder %s145, %s146
    %p158 = scmp.eq.s32.totalorder %s17, 15
    %p159 = por %p157, %p158
    %p161 = scmp.ne.s32.totalorder %s146, %s160
    %p162 = scmp.eq.s32.totalorder %s17, 0
    %p163 = por %p161, %p162
    %s164 = ssub.s32 %s18, %s37
    %s165 = ssub.s32 %s19, %s33
    %s166 = sor.u32 %s164, %s165
    %p167 = scmp.eq.s32.totalorder %s166, 0
    %s169 = sadd.s32 %s168, 1
    %s170 = scalar_select %p167, %s168, %s169
    %p173 = pneg %p167
    %p174 = scmp.eq.s32.totalorder %s11, 15
    %p175 = por %p173, %p174
    %p176 = scmp.ne.s32.totalorder %s168, %s171
    %p177 = scmp.eq.s32.totalorder %s11, 0
    %p178 = por %p176, %p177
    %p179 = scmp.ne.s32.totalorder %s168, %s171
    %p180 = scmp.eq.s32.totalorder %s16, 15
    %p181 = por %p179, %p180
    %p182 = scmp.ne.s32.totalorder %s171, %s172
    %p183 = scmp.eq.s32.totalorder %s16, 0
    %p184 = por %p182, %p183
    %p185 = scmp.ne.s32.totalorder %s171, %s172
    %p186 = scmp.eq.s32.totalorder %s17, 15
    %p187 = por %p185, %p186
    %p189 = scmp.ne.s32.totalorder %s172, %s188
    %p190 = scmp.eq.s32.totalorder %s17, 0
    %p191 = por %p189, %p190
    %p192 = scmp.le.s32.totalorder 1, %s11
    %p193 = scmp.lt.s32.totalorder %s11, 17
    %p194 = pnand %p192, %p193
    %p195 = pneg %p194
    // Predicated region
    $region9: #{_lambda_.18} parent=5 // pred_check
      _
    $region10: #{_lambda_.18} parent=5 // pred_check_branch
      %197 = sbr.rel (%p194) target = $region12
    $region11: #{_lambda_.18} parent=5 // pred_region
      %s198 = ssub.s32 %s11, 1
      // Predicated region
      $region13: #{_lambda_.18} parent=11 // pred_check
        %p199 = pneg %p135
      $region14: #{_lambda_.18} parent=11 // pred_check_branch
        %201 = sbr.rel (%p199) target = $region16
      $region15: #{_lambda_.18} parent=11 // pred_region
        _
      $region16: #{_lambda_.18} parent=11 // pred_fallthru
        _
      // Predicated region
      $region17: #{_lambda_.18} parent=11 // pred_check
        %p202 = pneg %p156
      $region18: #{_lambda_.18} parent=11 // pred_check_branch
        %204 = sbr.rel (%p202) target = $region20
      $region19: #{_lambda_.18} parent=11 // pred_region
        _
      $region20: #{_lambda_.18} parent=11 // pred_fallthru
        _
    $region12: #{_lambda_.18} parent=5 // pred_fallthru
      _
    %p205 = scmp.lt.s32.totalorder %s11, 16
    // Predicated region
    $region21: #{_lambda_.18} parent=5 // pred_check
      %p206 = pneg %p205
    $region22: #{_lambda_.18} parent=5 // pred_check_branch
      %208 = sbr.rel (%p206) target = $region24
    $region23: #{_lambda_.18} parent=5 // pred_region
      // Predicated region
      $region25: #{_lambda_.18} parent=23 // pred_check
        %p209 = pneg %p50
      $region26: #{_lambda_.18} parent=23 // pred_check_branch
        %211 = sbr.rel (%p209) target = $region28
      $region27: #{_lambda_.18} parent=23 // pred_region
        %p212 = scmp.lt.s32.totalorder %s18, 1
        %s213 = scalar_select %p212, %s18, 1
        %s214 = smul.addr %s213, 2
        %s215 = smul.addr %s214, 4
        %s216 = scalar_lea.vmem %s0, %s215
      $region28: #{_lambda_.18} parent=23 // pred_fallthru
        _
      // Predicated region
      $region29: #{_lambda_.18} parent=23 // pred_check
        %p217 = pneg %p78
      $region30: #{_lambda_.18} parent=23 // pred_check_branch
        %219 = sbr.rel (%p217) target = $region32
      $region31: #{_lambda_.18} parent=23 // pred_region
        %p220 = scmp.lt.s32.totalorder %s18, 1
        %s221 = scalar_select %p220, %s18, 1
        %p222 = scmp.lt.s32.totalorder %s19, 0
        %s223 = scalar_select %p222, %s19, 0
        %s224 = sadd.s32 %s223, %s221
        %s225 = smul.addr %s224, 4
        %s226 = scalar_lea.vmem %s1, %s225
      $region32: #{_lambda_.18} parent=23 // pred_fallthru
        _
      // Predicated region
      $region33: #{_lambda_.18} parent=23 // pred_check
        %p227 = pneg %p108
      $region34: #{_lambda_.18} parent=23 // pred_check_branch
        %229 = sbr.rel (%p227) target = $region36
      $region35: #{_lambda_.18} parent=23 // pred_region
        %p230 = scmp.lt.s32.totalorder %s18, 1
        %s231 = scalar_select %p230, %s18, 1
        %p232 = scmp.lt.s32.totalorder %s20, 7
        %s233 = scalar_select %p232, %s20, 7
        %p234 = scmp.lt.s32.totalorder %s19, 0
        %s235 = scalar_select %p234, %s19, 0
        %s236 = sadd.s32 %s235, %s233
        %s237 = smul.addr %s231, 8
        %s238 = sadd.s32 %s236, %s237
        %s239 = scalar_lea.vmem %s2, %s238
      $region36: #{_lambda_.18} parent=23 // pred_fallthru
        _
    $region24: #{_lambda_.18} parent=5 // pred_fallthru
      _
    %p240 = scmp.le.s32.totalorder 1, %s11
    %p241 = scmp.lt.s32.totalorder %s11, 17
    %p242 = pnand %p240, %p241
    %p243 = pneg %p242
    // Predicated region
    $region37: #{_lambda_.18} parent=5 // pred_check
      _
    $region38: #{_lambda_.18} parent=5 // pred_check_branch
      %245 = sbr.rel (%p242) target = $region40
    $region39: #{_lambda_.18} parent=5 // pred_region
      %s246 = ssub.s32 %s11, 1
      %p247 = scmp.lt.s32.totalorder %s21, 1
      %s248 = scalar_select %p247, %s21, 1
      %s249 = smul.addr %s248, 2
      %s250 = smul.addr %s249, 4
      %s251 = scalar_lea.vmem %s0, %s250
      %p252 = pneg %p56
      %p253 = pneg %p53
      %p254 = scmp.lt.s32.totalorder %s21, 1
      %s255 = scalar_select %p254, %s21, 1
      %p256 = scmp.lt.s32.totalorder %s22, 0
      %s257 = scalar_select %p256, %s22, 0
      %s258 = sadd.s32 %s257, %s255
      %s259 = smul.addr %s258, 4
      %s260 = scalar_lea.vmem %s1, %s259
      %p261 = pneg %p84
      %p262 = pneg %p81
      %p263 = scmp.lt.s32.totalorder %s21, 1
      %s264 = scalar_select %p263, %s21, 1
      %p265 = scmp.lt.s32.totalorder %s23, 7
      %s266 = scalar_select %p265, %s23, 7
      %p267 = scmp.lt.s32.totalorder %s22, 0
      %s268 = scalar_select %p267, %s22, 0
      %s269 = sadd.s32 %s268, %s266
      %s270 = smul.addr %s264, 8
      %s271 = sadd.s32 %s269, %s270
      %s272 = scalar_lea.vmem %s2, %s271
      %p273 = pneg %p114
      %p274 = pneg %p111
      %p275 = pneg %p135
      %p276 = pneg %p132
      %p277 = pneg %p156
      %p278 = pneg %p153
      %p279 = pneg %p184
      %p280 = pneg %p181
      %p281 = scmp.lt.s32.totalorder %s21, 1
      %s282 = scalar_select %p281, %s21, 1
      %p283 = scmp.lt.s32.totalorder %s22, 0
      %s284 = scalar_select %p283, %s22, 0
      %s285 = smul.addr %s282, 2
      %s286 = sadd.s32 %s284, %s285
      %s287 = smul.addr %s286, 4
      %s288 = scalar_lea.vmem %s5, %s287
      %p289 = scmp.lt.s32.totalorder %s21, 1
      %s290 = scalar_select %p289, %s21, 1
      %s291 = smul.addr %s290, 2
      %s292 = smul.addr %s291, 4
      %s293 = scalar_lea.vmem %s0, %s292
      %p294 = scmp.lt.s32.totalorder %s21, 1
      %s295 = scalar_select %p294, %s21, 1
      %p296 = scmp.lt.s32.totalorder %s22, 0
      %s297 = scalar_select %p296, %s22, 0
      %s298 = sadd.s32 %s297, %s295
      %s299 = smul.addr %s298, 4
      %s300 = scalar_lea.vmem %s1, %s299
      %p301 = scmp.lt.s32.totalorder %s21, 1
      %s302 = scalar_select %p301, %s21, 1
      %p303 = scmp.lt.s32.totalorder %s23, 7
      %s304 = scalar_select %p303, %s23, 7
      %p305 = scmp.lt.s32.totalorder %s22, 0
      %s306 = scalar_select %p305, %s22, 0
      %s307 = sadd.s32 %s306, %s304
      %s308 = smul.addr %s302, 8
      %s309 = sadd.s32 %s307, %s308
      %s310 = scalar_lea.vmem %s2, %s309
      %p311 = scmp.lt.s32.totalorder %s21, 1
      %s312 = scalar_select %p311, %s21, 1
      %p313 = scmp.lt.s32.totalorder %s22, 0
      %s314 = scalar_select %p313, %s22, 0
      %s315 = smul.addr %s312, 2
      %s316 = sadd.s32 %s314, %s315
      %s317 = smul.addr %s316, 4
      %s318 = scalar_lea.vmem %s5, %s317
      %p320 = scmp.eq.s32.totalorder %s23, 0
      // Predicated region
      $region41: #{_lambda_.18} parent=39 // pred_check
        %p321 = pneg %p320
      $region42: #{_lambda_.18} parent=39 // pred_check_branch
        %323 = sbr.rel (%p321) target = $region44
      $region43: #{_lambda_.18} parent=39 // pred_region
        %vm324 = vcmask 130048
        %325 = vst.msk [vmem:[#allocation2] sm:$0xff] %vm324, -inf
        %326 = vst.msk [vmem:[#allocation2 + $0x8] sm:$0xff] %vm324, -inf
      $region44: #{_lambda_.18} parent=39 // pred_fallthru
        _
      %v327 = vld [vmem:[%s310] sm:$0x1]
      %v328 = vlaneseq
      %v329 = vshrl.u32 %v328, 7
      %v330 = vadd.s32 %v329, 8
      %v331 = vlaneseq
      %v332 = vshrl.u32 %v331, 7
      %v333 = vsub.s32 0, %v332
      %v334 = vrot.slane %v327, %v333
      %vm335 = vcmp.eq.s32.totalorder %v329, %v334
      %vm336 = vcmp.eq.s32.totalorder %v330, %v334
      %v337 = vsel %vm335, 1.0, 0.0
      %v338 = vsel %vm336, 1.0, 0.0
      %v339 = vpack.c.bf16 %v338, %v337
      %v340 = vld [vmem:[%s293] sm:$0xf]
      %v341 = vld [vmem:[%s293 + $0x4] sm:$0xf]
      %v344 = vunpack.c.l.b16 %v340
      %v345 = vunpack.c.l.b16 %v341
      %v346 = vpack.c.b16 %v345, %v344
      %vm347 = vcmask 130048
      %v349 = vsel %vm347, %v346, 0
      %351 = vmatprep.subr.bf16.mxu0 0
      %352 = vmatpush1.bf16.msra.mxu0 0
      %353 = vmatprep.subr.bf16.mxu0 0
      %354 = vmatpush1.bf16.msra.mxu0 0
      %355 = vmatprep.subr.bf16.mxu0 0
      %356 = vmatpush1.bf16.msra.mxu0 0
      %357 = vmatprep.subr.bf16.mxu0 0
      %358 = vmatpush1.bf16.msra.mxu0 0
      %359 = vmatprep.subr.bf16.mxu0 0
      %360 = vmatpush1.bf16.msra.mxu0 0
      %361 = vmatprep.subr.bf16.mxu0 0
      %362 = vmatpush1.bf16.msra.mxu0 0
      %363 = vmatprep.subr.bf16.mxu0 0
      %364 = vmatpush1.bf16.msra.mxu0 0
      %365 = vmatprep.subr.bf16.mxu0 0
      %366 = vmatpush1.bf16.msra.mxu0 %v339
      %367 = vmatprep.subr.bf16.mxu0 0
      %368 = vmatpush2.bf16.msra.mxu0 0
      %369 = vmatprep.subr.bf16.mxu0 0
      %370 = vmatpush2.bf16.msra.mxu0 0
      %371 = vmatprep.subr.bf16.mxu0 0
      %372 = vmatpush2.bf16.msra.mxu0 0
      %373 = vmatprep.subr.bf16.mxu0 0
      %374 = vmatpush2.bf16.msra.mxu0 0
      %375 = vmatprep.subr.bf16.mxu0 0
      %376 = vmatpush2.bf16.msra.mxu0 0
      %377 = vmatprep.subr.bf16.mxu0 0
      %378 = vmatpush2.bf16.msra.mxu0 0
      %379 = vmatprep.subr.bf16.mxu0 0
      %380 = vmatpush2.bf16.msra.mxu0 0
      %381 = vmatprep.subr.bf16.mxu0 0
      %382 = vmatpush2.bf16.msra.mxu0 0
      %383 = vmatprep.mubr.bf16.mxu0 0
      %384 = vmatmul.mubr.bf16.gmra.mxu0 %v349
      %v385 = vpop.f32.mrf.mxu0
      %v386 = vadd.f32 0.0, %v385
      %v387 = vpop.f32.mrf.mxu0
      %v388 = vpop.f32.mrf.mxu0
      %v389 = vadd.f32 0.0, %v388
      %v390 = vpop.f32.mrf.mxu0
      %391 = vdwg.mxu0
      %v392 = vld [vmem:[%s300] sm:$0x7]
      %v393 = vld [vmem:[%s3] sm:$0xff]
      %v394 = vld [vmem:[%s3 + $0x8] sm:$0xff]
      %396 = vset.pattern.permute.xlu0 0
      %397 = vperm.xlu0 %396, %v393
      %v398 = vpop.permute.xlu0 %397
      %401 = vset.pattern.permute.xlu0 0
      %402 = vperm.xlu0 %401, %v394
      %v403 = vpop.permute.xlu0 %402
      %v405 = vlaneseq
      %v406 = vshrl.u32 %v405, 7
      %v407 = vsub.s32 0, %v406
      %v408 = vrot.slane %v392, %v407
      %v409 = vmul.f32 %v398, %v408
      %v410 = vmul.f32 %v403, %v408
      %s411 = scalar_lea.vmem %s3, 16
      %v412 = vld [vmem:[%s411] sm:$0xff]
      %v413 = vld [vmem:[%s411 + $0x8] sm:$0xff]
      %415 = vset.pattern.permute.xlu0 0
      %416 = vperm.xlu0 %415, %v412
      %v417 = vpop.permute.xlu0 %416
      %420 = vset.pattern.permute.xlu0 0
      %421 = vperm.xlu0 %420, %v413
      %v422 = vpop.permute.xlu0 %421
      %v424 = vlaneseq
      %v425 = vshrl.u32 %v424, 7
      %v426 = vsub.s32 1, %v425
      %v427 = vrot.slane %v392, %v426
      %v428 = vmul.f32 %v417, %v427
      %v429 = vmul.f32 %v422, %v427
      %v430 = vadd.f32 %v409, %v428
      %v431 = vadd.f32 %v410, %v429
      %s432 = scalar_lea.vmem %s3, 32
      %v433 = vld [vmem:[%s432] sm:$0xff]
      %v434 = vld [vmem:[%s432 + $0x8] sm:$0xff]
      %436 = vset.pattern.permute.xlu0 0
      %437 = vperm.xlu0 %436, %v433
      %v438 = vpop.permute.xlu0 %437
      %441 = vset.pattern.permute.xlu0 0
      %442 = vperm.xlu0 %441, %v434
      %v443 = vpop.permute.xlu0 %442
      %v445 = vlaneseq
      %v446 = vshrl.u32 %v445, 7
      %v447 = vsub.s32 2, %v446
      %v448 = vrot.slane %v392, %v447
      %v449 = vmul.f32 %v438, %v448
      %v450 = vmul.f32 %v443, %v448
      %v451 = vadd.f32 %v430, %v449
      %v452 = vadd.f32 %v431, %v450
      %v453 = vsub.f32 %v386, %v451
      %v454 = vsub.f32 %v389, %v452
      %v455 = vld [vmem:[%s4] sm:$0xff]
      %v456 = vld [vmem:[%s4 + $0x8] sm:$0xff]
      %458 = vset.pattern.permute.xlu0 0
      %459 = vperm.xlu0 %458, %v455
      %v460 = vpop.permute.xlu0 %459
      %463 = vset.pattern.permute.xlu0 0
      %464 = vperm.xlu0 %463, %v456
      %v465 = vpop.permute.xlu0 %464
      %v467 = vadd.f32 %v453, %v460
      %v468 = vadd.f32 %v454, %v465
      %v469 = vmax.f32 %v467, 0.0
      %v470 = vmax.f32 %v468, 0.0
      %v471 = vld [vmem:[#allocation2] sm:$0xff]
      %v472 = vld [vmem:[#allocation2 + $0x8] sm:$0xff]
      %v473 = vmax.f32 %v471, %v469
      %v474 = vmax.f32 %v472, %v470
      %475 = vst.msk [vmem:[#allocation2] sm:$0xff] %vm347, %v473
      %476 = vst.msk [vmem:[#allocation2 + $0x8] sm:$0xff] %vm347, %v474
      %p477 = scmp.eq.s32.totalorder %s23, 7
      // Predicated region
      $region45: #{_lambda_.18} parent=39 // pred_check
        %p478 = pneg %p477
      $region46: #{_lambda_.18} parent=39 // pred_check_branch
        %480 = sbr.rel (%p478) target = $region48
      $region47: #{_lambda_.18} parent=39 // pred_region
        %v481 = vld [vmem:[#allocation2] sm:$0xff]
        %v482 = vld [vmem:[#allocation2 + $0x8] sm:$0xff]
        %v483 = vpack.c.bf16 %v482, %v481
        %v485 = vunpack.c.l.b16 %v483
        %v486 = vunpack.c.h.b16 %v483
        %v487 = vpack.c.b16 %v485, %v485
        %v488 = vpack.c.b16 %v486, %v486
        %vm491 = vcmask 125952
        %492 = vst.msk [vmem:[%s318] sm:$0xf] %vm491, %v487
        %493 = vst.msk [vmem:[%s318 + $0x4] sm:$0xf] %vm491, %v488
      $region48: #{_lambda_.18} parent=39 // pred_fallthru
        _
      %p494 = scmp.lt.s32.totalorder %s21, 1
      %s495 = scalar_select %p494, %s21, 1
      %p496 = scmp.lt.s32.totalorder %s22, 0
      %s497 = scalar_select %p496, %s22, 0
      %s498 = smul.addr %s495, 2
      %s499 = sadd.s32 %s497, %s498
      %s500 = smul.addr %s499, 4
      %s501 = scalar_lea.vmem %s5, %s500
      // Predicated region
      $region49: #{_lambda_.18} parent=39 // pred_check
        %p502 = pneg %p181
      $region50: #{_lambda_.18} parent=39 // pred_check_branch
        %504 = sbr.rel (%p502) target = $region52
      $region51: #{_lambda_.18} parent=39 // pred_region
        _
      $region52: #{_lambda_.18} parent=39 // pred_fallthru
        _
    $region40: #{_lambda_.18} parent=5 // pred_fallthru
      _
    %p505 = scmp.le.s32.totalorder 2, %s11
    // Predicated region
    $region53: #{_lambda_.18} parent=5 // pred_check
      %p506 = pneg %p505
    $region54: #{_lambda_.18} parent=5 // pred_check_branch
      %508 = sbr.rel (%p506) target = $region56
    $region55: #{_lambda_.18} parent=5 // pred_region
      %s509 = ssub.s32 %s11, 2
      // Predicated region
      $region57: #{_lambda_.18} parent=55 // pred_check
        %p510 = pneg %p187
      $region58: #{_lambda_.18} parent=55 // pred_check_branch
        %512 = sbr.rel (%p510) target = $region60
      $region59: #{_lambda_.18} parent=55 // pred_region
        %p513 = scmp.lt.s32.totalorder %s24, 1
        %s514 = scalar_select %p513, %s24, 1
        %p515 = scmp.lt.s32.totalorder %s25, 0
        %s516 = scalar_select %p515, %s25, 0
        %s517 = smul.addr %s514, 2
        %s518 = sadd.s32 %s516, %s517
        %s519 = smul.addr %s518, 4
        %s520 = scalar_lea.vmem %s5, %s519
      $region60: #{_lambda_.18} parent=55 // pred_fallthru
        _
    $region56: #{_lambda_.18} parent=5 // pred_fallthru
      _
  $region6: #{_lambda_.18} parent=0 // loop_footer
    %s15 = sadd.s32 1, %s11
  $region7: #{_lambda_.18} parent=0 // loop_footer_branch
    %10 = sbr.rel target = $region3
  $region8: #{_lambda_.18} parent=0 // loop_exit
    _

// kernel: _lambda_.19
$region0: #{_lambda_.19}
  #allocation0 [shape = 'u32[]', space=smem, size = 0x4, offset = 0x4, fixed_abs, tag = 'smem constant byte address 0x4 - core index']
  #allocation1 [shape = 'u32[144,128]{1,0:T(1,128)}', space=vmem, size = 0x12000, scoped, tag = 'internal scratch']
  %s0 = inlined_call_operand.vmem [shape: bf16[2,16,16], index: 0, kind: input, shape index: {}]
  %s1 = inlined_call_operand.vmem [shape: f32[64,16], index: 1, kind: input, shape index: {}]
  %s2 = inlined_call_operand.vmem [shape: f32[64,1], index: 2, kind: input, shape index: {}]
  %s3 = inlined_call_operand.vmem [shape: bf16[2,64,16], index: 3, kind: output, shape index: {}]
  %s4 = sld [smem:[#allocation0]]
  $region45: #{_lambda_.19} parent=0
    _
  %s6 = ssub.s32 1, %s4
  %s7 = scalar_select 0, %s6, %s4
  loop: start=0, step=1, limit=4
  $region2: #{_lambda_.19} parent=0 // loop_pre_header
    _
  $region3: #{_lambda_.19} parent=0 // loop_header
    %s9 = sphi 0, %s13
    %p10 = scmp.ge.s32.totalorder %s9, 4
    %s16 = sphi 0, %s28
    %s17 = sphi 0, %s24
    %s18 = sphi 0, %s16
    %s19 = sphi 0, %s17
    %s20 = sphi 0, %s18
    %s21 = sphi 0, %s19
    %s33 = sphi 0, %s35
    %s36 = sphi 0, %s33
    %s37 = sphi 0, %s36
    %s53 = sphi 0, %s37
    %s57 = sphi 0, %s57
    %s59 = sphi 0, %s57
    %s60 = sphi 0, %s59
    %s74 = sphi 0, %s60
    %s78 = sphi 0, %s78
    %s80 = sphi 0, %s78
    %s81 = sphi 0, %s80
    %s95 = sphi 0, %s81
    %s103 = sphi 0, %s105
    %s106 = sphi 0, %s103
    %s107 = sphi 0, %s106
    %s123 = sphi 0, %s107
  $region4: #{_lambda_.19} parent=0 // loop_header_branch
    %12 = sbr.rel (%p10) target = $region8
  $region5: #{_lambda_.19} parent=0 // loop_body
    %s14 = ssub.s32 %s9, 1
    %s15 = ssub.s32 %s9, 2
    %s22 = sadd.s32 1, %s17
    %p23 = scmp.ge.s32.totalorder %s22, 1
    %s24 = scalar_select %p23, 0, %s22
    %s25 = sadd.s32 1, %s16
    %s26 = scalar_select %p23, %s25, %s16
    %p27 = scmp.ge.s32.totalorder %s26, 2
    %s28 = scalar_select %p27, 0, %s26
    %s29 = ssub.s32 %s16, %s28
    %s30 = ssub.s32 %s17, %s24
    %s31 = sor.u32 %s29, %s30
    %p32 = scmp.eq.s32.totalorder %s31, 0
    %s34 = sadd.s32 %s33, 1
    %s35 = scalar_select %p32, %s33, %s34
    %p38 = pneg %p32
    %p39 = scmp.eq.s32.totalorder %s9, 1
    %p40 = por %p38, %p39
    %p41 = scmp.ne.s32.totalorder %s33, %s36
    %p42 = scmp.eq.s32.totalorder %s9, 0
    %p43 = por %p41, %p42
    %p44 = scmp.ne.s32.totalorder %s33, %s36
    %p45 = scmp.eq.s32.totalorder %s14, 1
    %p46 = por %p44, %p45
    %p47 = scmp.ne.s32.totalorder %s36, %s37
    %p48 = scmp.eq.s32.totalorder %s14, 0
    %p49 = por %p47, %p48
    %p50 = scmp.ne.s32.totalorder %s36, %s37
    %p51 = scmp.eq.s32.totalorder %s15, 1
    %p52 = por %p50, %p51
    %p54 = scmp.ne.s32.totalorder %s37, %s53
    %p55 = scmp.eq.s32.totalorder %s15, 0
    %p56 = por %p54, %p55
    %s58 = sadd.s32 %s57, 1
    %p61 = scmp.eq.s32.totalorder %s9, 1
    %p62 = scmp.ne.s32.totalorder %s57, %s59
    %p63 = scmp.eq.s32.totalorder %s9, 0
    %p64 = por %p62, %p63
    %p65 = scmp.ne.s32.totalorder %s57, %s59
    %p66 = scmp.eq.s32.totalorder %s14, 1
    %p67 = por %p65, %p66
    %p68 = scmp.ne.s32.totalorder %s59, %s60
    %p69 = scmp.eq.s32.totalorder %s14, 0
    %p70 = por %p68, %p69
    %p71 = scmp.ne.s32.totalorder %s59, %s60
    %p72 = scmp.eq.s32.totalorder %s15, 1
    %p73 = por %p71, %p72
    %p75 = scmp.ne.s32.totalorder %s60, %s74
    %p76 = scmp.eq.s32.totalorder %s15, 0
    %p77 = por %p75, %p76
    %s79 = sadd.s32 %s78, 1
    %p82 = scmp.eq.s32.totalorder %s9, 1
    %p83 = scmp.ne.s32.totalorder %s78, %s80
    %p84 = scmp.eq.s32.totalorder %s9, 0
    %p85 = por %p83, %p84
    %p86 = scmp.ne.s32.totalorder %s78, %s80
    %p87 = scmp.eq.s32.totalorder %s14, 1
    %p88 = por %p86, %p87
    %p89 = scmp.ne.s32.totalorder %s80, %s81
    %p90 = scmp.eq.s32.totalorder %s14, 0
    %p91 = por %p89, %p90
    %p92 = scmp.ne.s32.totalorder %s80, %s81
    %p93 = scmp.eq.s32.totalorder %s15, 1
    %p94 = por %p92, %p93
    %p96 = scmp.ne.s32.totalorder %s81, %s95
    %p97 = scmp.eq.s32.totalorder %s15, 0
    %p98 = por %p96, %p97
    %s99 = ssub.s32 %s16, %s28
    %s100 = ssub.s32 %s17, %s24
    %s101 = sor.u32 %s99, %s100
    %p102 = scmp.eq.s32.totalorder %s101, 0
    %s104 = sadd.s32 %s103, 1
    %s105 = scalar_select %p102, %s103, %s104
    %p108 = pneg %p102
    %p109 = scmp.eq.s32.totalorder %s9, 1
    %p110 = por %p108, %p109
    %p111 = scmp.ne.s32.totalorder %s103, %s106
    %p112 = scmp.eq.s32.totalorder %s9, 0
    %p113 = por %p111, %p112
    %p114 = scmp.ne.s32.totalorder %s103, %s106
    %p115 = scmp.eq.s32.totalorder %s14, 1
    %p116 = por %p114, %p115
    %p117 = scmp.ne.s32.totalorder %s106, %s107
    %p118 = scmp.eq.s32.totalorder %s14, 0
    %p119 = por %p117, %p118
    %p120 = scmp.ne.s32.totalorder %s106, %s107
    %p121 = scmp.eq.s32.totalorder %s15, 1
    %p122 = por %p120, %p121
    %p124 = scmp.ne.s32.totalorder %s107, %s123
    %p125 = scmp.eq.s32.totalorder %s15, 0
    %p126 = por %p124, %p125
    %p127 = scmp.le.s32.totalorder 1, %s9
    %p128 = scmp.lt.s32.totalorder %s9, 3
    %p129 = pnand %p127, %p128
    %p130 = pneg %p129
    // Predicated region
    $region9: #{_lambda_.19} parent=5 // pred_check
      _
    $region10: #{_lambda_.19} parent=5 // pred_check_branch
      %132 = sbr.rel (%p129) target = $region12
    $region11: #{_lambda_.19} parent=5 // pred_region
      %s133 = ssub.s32 %s9, 1
      // Predicated region
      $region13: #{_lambda_.19} parent=11 // pred_check
        %p134 = pneg %p70
      $region14: #{_lambda_.19} parent=11 // pred_check_branch
        %136 = sbr.rel (%p134) target = $region16
      $region15: #{_lambda_.19} parent=11 // pred_region
        _
      $region16: #{_lambda_.19} parent=11 // pred_fallthru
        _
      // Predicated region
      $region17: #{_lambda_.19} parent=11 // pred_check
        %p137 = pneg %p91
      $region18: #{_lambda_.19} parent=11 // pred_check_branch
        %139 = sbr.rel (%p137) target = $region20
      $region19: #{_lambda_.19} parent=11 // pred_region
        _
      $region20: #{_lambda_.19} parent=11 // pred_fallthru
        _
    $region12: #{_lambda_.19} parent=5 // pred_fallthru
      _
    %p140 = scmp.lt.s32.totalorder %s9, 2
    // Predicated region
    $region21: #{_lambda_.19} parent=5 // pred_check
      %p141 = pneg %p140
    $region22: #{_lambda_.19} parent=5 // pred_check_branch
      %143 = sbr.rel (%p141) target = $region24
    $region23: #{_lambda_.19} parent=5 // pred_region
      // Predicated region
      $region25: #{_lambda_.19} parent=23 // pred_check
        %p144 = pneg %p43
      $region26: #{_lambda_.19} parent=23 // pred_check_branch
        %146 = sbr.rel (%p144) target = $region28
      $region27: #{_lambda_.19} parent=23 // pred_region
        %p147 = scmp.lt.s32.totalorder %s16, 1
        %s148 = scalar_select %p147, %s16, 1
        %p149 = scmp.lt.s32.totalorder %s17, 0
        %s150 = scalar_select %p149, %s17, 0
        %s151 = smul.addr %s148, 2
        %s152 = sadd.s32 %s150, %s151
        %s153 = smul.addr %s152, 4
        %s154 = scalar_lea.vmem %s0, %s153
      $region28: #{_lambda_.19} parent=23 // pred_fallthru
        _
    $region24: #{_lambda_.19} parent=5 // pred_fallthru
      _
    %p155 = scmp.le.s32.totalorder 1, %s9
    %p156 = scmp.lt.s32.totalorder %s9, 3
    %p157 = pnand %p155, %p156
    %p158 = pneg %p157
    // Predicated region
    $region29: #{_lambda_.19} parent=5 // pred_check
      _
    $region30: #{_lambda_.19} parent=5 // pred_check_branch
      %160 = sbr.rel (%p157) target = $region32
    $region31: #{_lambda_.19} parent=5 // pred_region
      %s161 = ssub.s32 %s9, 1
      %p162 = scmp.lt.s32.totalorder %s18, 1
      %s163 = scalar_select %p162, %s18, 1
      %p164 = scmp.lt.s32.totalorder %s19, 0
      %s165 = scalar_select %p164, %s19, 0
      %s166 = smul.addr %s163, 2
      %s167 = sadd.s32 %s165, %s166
      %s168 = smul.addr %s167, 4
      %s169 = scalar_lea.vmem %s0, %s168
      %p170 = pneg %p49
      %p171 = pneg %p46
      %p172 = pneg %p70
      %p173 = pneg %p67
      %p174 = pneg %p91
      %p175 = pneg %p88
      %p176 = pneg %p119
      %p177 = pneg %p116
      %p178 = scmp.lt.s32.totalorder %s18, 1
      %s179 = scalar_select %p178, %s18, 1
      %p180 = scmp.lt.s32.totalorder %s19, 0
      %s181 = scalar_select %p180, %s19, 0
      %s182 = smul.addr %s179, 8
      %s183 = sadd.s32 %s181, %s182
      %s184 = smul.addr %s183, 4
      %s185 = scalar_lea.vmem %s3, %s184
      %p186 = scmp.lt.s32.totalorder %s18, 1
      %s187 = scalar_select %p186, %s18, 1
      %p188 = scmp.lt.s32.totalorder %s19, 0
      %s189 = scalar_select %p188, %s19, 0
      %s190 = smul.addr %s187, 2
      %s191 = sadd.s32 %s189, %s190
      %s192 = smul.addr %s191, 4
      %s193 = scalar_lea.vmem %s0, %s192
      %p194 = scmp.lt.s32.totalorder %s18, 1
      %s195 = scalar_select %p194, %s18, 1
      %p196 = scmp.lt.s32.totalorder %s19, 0
      %s197 = scalar_select %p196, %s19, 0
      %s198 = smul.addr %s195, 8
      %s199 = sadd.s32 %s197, %s198
      %s200 = smul.addr %s199, 4
      %s201 = scalar_lea.vmem %s3, %s200
      %v203 = vld [vmem:[%s193] sm:$0xf]
      %v204 = vld [vmem:[%s193 + $0x4] sm:$0xf]
      %v205 = vld [vmem:[%s1] sm:$0xff]
      %v206 = vld [vmem:[%s1 + $0x8] sm:$0xff]
      %v207 = vld [vmem:[%s1 + $0x10] sm:$0xff]
      %v208 = vld [vmem:[%s1 + $0x18] sm:$0xff]
      %v209 = vld [vmem:[%s1 + $0x20] sm:$0xff]
      %v210 = vld [vmem:[%s1 + $0x28] sm:$0xff]
      %v211 = vld [vmem:[%s1 + $0x30] sm:$0xff]
      %v212 = vld [vmem:[%s1 + $0x38] sm:$0xff]
      %v213 = vpack.c.bf16 %v206, %v205
      %v214 = vpack.c.bf16 %v208, %v207
      %v215 = vpack.c.bf16 %v210, %v209
      %v216 = vpack.c.bf16 %v212, %v211
      %v217 = vld [vmem:[%s2] sm:$0xff]
      %v218 = vld [vmem:[%s2 + $0x8] sm:$0xff]
      %v219 = vld [vmem:[%s2 + $0x10] sm:$0xff]
      %v220 = vld [vmem:[%s2 + $0x18] sm:$0xff]
      %v221 = vld [vmem:[%s2 + $0x20] sm:$0xff]
      %v222 = vld [vmem:[%s2 + $0x28] sm:$0xff]
      %v223 = vld [vmem:[%s2 + $0x30] sm:$0xff]
      %v224 = vld [vmem:[%s2 + $0x38] sm:$0xff]
      %226 = vset.pattern.permute.xlu0 0
      %227 = vperm.xlu0 %226, %v217
      %v228 = vpop.permute.xlu0 %227
      %231 = vset.pattern.permute.xlu0 0
      %232 = vperm.xlu0 %231, %v218
      %v233 = vpop.permute.xlu0 %232
      %236 = vset.pattern.permute.xlu0 0
      %237 = vperm.xlu0 %236, %v219
      %v238 = vpop.permute.xlu0 %237
      %241 = vset.pattern.permute.xlu0 0
      %242 = vperm.xlu0 %241, %v220
      %v243 = vpop.permute.xlu0 %242
      %246 = vset.pattern.permute.xlu0 0
      %247 = vperm.xlu0 %246, %v221
      %v248 = vpop.permute.xlu0 %247
      %251 = vset.pattern.permute.xlu0 0
      %252 = vperm.xlu0 %251, %v222
      %v253 = vpop.permute.xlu0 %252
      %256 = vset.pattern.permute.xlu0 0
      %257 = vperm.xlu0 %256, %v223
      %v258 = vpop.permute.xlu0 %257
      %261 = vset.pattern.permute.xlu0 0
      %262 = vperm.xlu0 %261, %v224
      %v263 = vpop.permute.xlu0 %262
      %v267 = vunpack.c.l.b16 %v203
      %v268 = vunpack.c.l.b16 %v204
      %v269 = vpack.c.b16 %v268, %v267
      %vm271 = vcmask 130048
      %v273 = vsel %vm271, %v213, 0
      %v276 = vsel %vm271, %v214, 0
      %v279 = vsel %vm271, %v215, 0
      %v282 = vsel %vm271, %v216, 0
      %284 = vmatprep.subr.bf16.mxu0 0
      %285 = vmatpush1.bf16.msra.mxu0 0
      %286 = vmatprep.subr.bf16.mxu0 0
      %287 = vmatpush1.bf16.msra.mxu0 0
      %288 = vmatprep.subr.bf16.mxu0 0
      %289 = vmatpush1.bf16.msra.mxu0 0
      %290 = vmatprep.subr.bf16.mxu0 0
      %291 = vmatpush1.bf16.msra.mxu0 0
      %292 = vmatprep.subr.bf16.mxu0 0
      %293 = vmatpush1.bf16.msra.mxu0 0
      %294 = vmatprep.subr.bf16.mxu0 0
      %295 = vmatpush1.bf16.msra.mxu0 0
      %296 = vmatprep.subr.bf16.mxu0 0
      %297 = vmatpush1.bf16.msra.mxu0 0
      %298 = vmatprep.subr.bf16.mxu0 0
      %299 = vmatpush1.bf16.msra.mxu0 %v269
      %300 = vmatprep.subr.bf16.mxu0 0
      %301 = vmatpush2.bf16.msra.mxu0 0
      %302 = vmatprep.subr.bf16.mxu0 0
      %303 = vmatpush2.bf16.msra.mxu0 0
      %304 = vmatprep.subr.bf16.mxu0 0
      %305 = vmatpush2.bf16.msra.mxu0 0
      %306 = vmatprep.subr.bf16.mxu0 0
      %307 = vmatpush2.bf16.msra.mxu0 0
      %308 = vmatprep.subr.bf16.mxu0 0
      %309 = vmatpush2.bf16.msra.mxu0 0
      %310 = vmatprep.subr.bf16.mxu0 0
      %311 = vmatpush2.bf16.msra.mxu0 0
      %312 = vmatprep.subr.bf16.mxu0 0
      %313 = vmatpush2.bf16.msra.mxu0 0
      %314 = vmatprep.subr.bf16.mxu0 0
      %315 = vmatpush2.bf16.msra.mxu0 0
      %316 = vmatprep.mubr.bf16.mxu0 0
      %317 = vmatmul.mubr.bf16.gmra.mxu0 %v273
      %v318 = vpop.f32.mrf.mxu0
      %v319 = vadd.f32 %v228, %v318
      %v320 = vpop.f32.mrf.mxu0
      %v321 = vpop.f32.mrf.mxu0
      %v322 = vadd.f32 %v233, %v321
      %v323 = vpop.f32.mrf.mxu0
      %324 = vmatprep.mubr.bf16.mxu0 0
      %325 = vmatmul.mubr.bf16.gmra.mxu0 %v276
      %v326 = vpop.f32.mrf.mxu0
      %v327 = vadd.f32 %v238, %v326
      %v328 = vpop.f32.mrf.mxu0
      %v329 = vpop.f32.mrf.mxu0
      %v330 = vadd.f32 %v243, %v329
      %v331 = vpop.f32.mrf.mxu0
      %332 = vmatprep.mubr.bf16.mxu0 0
      %333 = vmatmul.mubr.bf16.gmra.mxu0 %v279
      %v334 = vpop.f32.mrf.mxu0
      %v335 = vadd.f32 %v248, %v334
      %v336 = vpop.f32.mrf.mxu0
      %v337 = vpop.f32.mrf.mxu0
      %v338 = vadd.f32 %v253, %v337
      %v339 = vpop.f32.mrf.mxu0
      %340 = vmatprep.mubr.bf16.mxu0 0
      %341 = vmatmul.mubr.bf16.gmra.mxu0 %v282
      %v342 = vpop.f32.mrf.mxu0
      %v343 = vadd.f32 %v258, %v342
      %v344 = vpop.f32.mrf.mxu0
      %v345 = vpop.f32.mrf.mxu0
      %v346 = vadd.f32 %v263, %v345
      %v347 = vpop.f32.mrf.mxu0
      %348 = vdwg.mxu0
      %v349 = vmax.f32 %v319, 0.0
      %v350 = vmax.f32 %v322, 0.0
      %v351 = vmax.f32 %v327, 0.0
      %v352 = vmax.f32 %v330, 0.0
      %v353 = vmax.f32 %v335, 0.0
      %v354 = vmax.f32 %v338, 0.0
      %v355 = vmax.f32 %v343, 0.0
      %v356 = vmax.f32 %v346, 0.0
      %v357 = vpack.c.bf16 %v350, %v349
      %v358 = vpack.c.bf16 %v352, %v351
      %v359 = vpack.c.bf16 %v354, %v353
      %v360 = vpack.c.bf16 %v356, %v355
      %v365 = vunpack.c.l.b16 %v357
      %v366 = vunpack.c.h.b16 %v357
      %v367 = vunpack.c.l.b16 %v358
      %v368 = vunpack.c.h.b16 %v358
      %v369 = vunpack.c.l.b16 %v359
      %v370 = vunpack.c.h.b16 %v359
      %v371 = vunpack.c.l.b16 %v360
      %v372 = vunpack.c.h.b16 %v360
      %v373 = vpack.c.b16 %v365, %v365
      %v374 = vpack.c.b16 %v366, %v366
      %v375 = vpack.c.b16 %v367, %v367
      %v376 = vpack.c.b16 %v368, %v368
      %v377 = vpack.c.b16 %v369, %v369
      %v378 = vpack.c.b16 %v370, %v370
      %v379 = vpack.c.b16 %v371, %v371
      %v380 = vpack.c.b16 %v372, %v372
      %vm389 = vcmask 125952
      %390 = vst.msk [vmem:[%s201] sm:$0xf] %vm389, %v373
      %391 = vst.msk [vmem:[%s201 + $0x4] sm:$0xf] %vm389, %v374
      %392 = vst.msk [vmem:[%s201 + $0x8] sm:$0xf] %vm389, %v375
      %393 = vst.msk [vmem:[%s201 + $0xc] sm:$0xf] %vm389, %v376
      %394 = vst.msk [vmem:[%s201 + $0x10] sm:$0xf] %vm389, %v377
      %395 = vst.msk [vmem:[%s201 + $0x14] sm:$0xf] %vm389, %v378
      %396 = vst.msk [vmem:[%s201 + $0x18] sm:$0xf] %vm389, %v379
      %397 = vst.msk [vmem:[%s201 + $0x1c] sm:$0xf] %vm389, %v380
      %p398 = scmp.lt.s32.totalorder %s18, 1
      %s399 = scalar_select %p398, %s18, 1
      %p400 = scmp.lt.s32.totalorder %s19, 0
      %s401 = scalar_select %p400, %s19, 0
      %s402 = smul.addr %s399, 8
      %s403 = sadd.s32 %s401, %s402
      %s404 = smul.addr %s403, 4
      %s405 = scalar_lea.vmem %s3, %s404
      // Predicated region
      $region33: #{_lambda_.19} parent=31 // pred_check
        %p406 = pneg %p116
      $region34: #{_lambda_.19} parent=31 // pred_check_branch
        %408 = sbr.rel (%p406) target = $region36
      $region35: #{_lambda_.19} parent=31 // pred_region
        _
      $region36: #{_lambda_.19} parent=31 // pred_fallthru
        _
    $region32: #{_lambda_.19} parent=5 // pred_fallthru
      _
    %p409 = scmp.le.s32.totalorder 2, %s9
    // Predicated region
    $region37: #{_lambda_.19} parent=5 // pred_check
      %p410 = pneg %p409
    $region38: #{_lambda_.19} parent=5 // pred_check_branch
      %412 = sbr.rel (%p410) target = $region40
    $region39: #{_lambda_.19} parent=5 // pred_region
      %s413 = ssub.s32 %s9, 2
      // Predicated region
      $region41: #{_lambda_.19} parent=39 // pred_check
        %p414 = pneg %p122
      $region42: #{_lambda_.19} parent=39 // pred_check_branch
        %416 = sbr.rel (%p414) target = $region44
      $region43: #{_lambda_.19} parent=39 // pred_region
        %p417 = scmp.lt.s32.totalorder %s20, 1
        %s418 = scalar_select %p417, %s20, 1
        %p419 = scmp.lt.s32.totalorder %s21, 0
        %s420 = scalar_select %p419, %s21, 0
        %s421 = smul.addr %s418, 8
        %s422 = sadd.s32 %s420, %s421
        %s423 = smul.addr %s422, 4
        %s424 = scalar_lea.vmem %s3, %s423
      $region44: #{_lambda_.19} parent=39 // pred_fallthru
        _
    $region40: #{_lambda_.19} parent=5 // pred_fallthru
      _
  $region6: #{_lambda_.19} parent=0 // loop_footer
    %s13 = sadd.s32 1, %s9
  $region7: #{_lambda_.19} parent=0 // loop_footer_branch
    %8 = sbr.rel target = $region3
  $region8: #{_lambda_.19} parent=0 // loop_exit
    _

// kernel: _lambda_.20
$region0: #{_lambda_.20}
  #allocation0 [shape = 'u32[]', space=smem, size = 0x4, offset = 0x4, fixed_abs, tag = 'smem constant byte address 0x4 - core index']
  #allocation1 [shape = 'u32[144,128]{1,0:T(1,128)}', space=vmem, size = 0x12000, scoped, tag = 'internal scratch']
  %s0 = inlined_call_operand.vmem [shape: bf16[2,64,16], index: 0, kind: input, shape index: {}]
  %s1 = inlined_call_operand.vmem [shape: f32[16,64], index: 1, kind: input, shape index: {}]
  %s2 = inlined_call_operand.vmem [shape: f32[16,1], index: 2, kind: input, shape index: {}]
  %s3 = inlined_call_operand.vmem [shape: bf16[2,16,16], index: 3, kind: input, shape index: {}]
  %s4 = inlined_call_operand.vmem [shape: bf16[2,16,16], index: 4, kind: output, shape index: {}]
  %s5 = sld [smem:[#allocation0]]
  $region49: #{_lambda_.20} parent=0
    _
  %s7 = ssub.s32 1, %s5
  %s8 = scalar_select 0, %s7, %s5
  loop: start=0, step=1, limit=4
  $region2: #{_lambda_.20} parent=0 // loop_pre_header
    _
  $region3: #{_lambda_.20} parent=0 // loop_header
    %s10 = sphi 0, %s14
    %p11 = scmp.ge.s32.totalorder %s10, 4
    %s17 = sphi 0, %s29
    %s18 = sphi 0, %s25
    %s19 = sphi 0, %s17
    %s20 = sphi 0, %s18
    %s21 = sphi 0, %s19
    %s22 = sphi 0, %s20
    %s34 = sphi 0, %s36
    %s37 = sphi 0, %s34
    %s38 = sphi 0, %s37
    %s54 = sphi 0, %s38
    %s58 = sphi 0, %s58
    %s60 = sphi 0, %s58
    %s61 = sphi 0, %s60
    %s75 = sphi 0, %s61
    %s79 = sphi 0, %s79
    %s81 = sphi 0, %s79
    %s82 = sphi 0, %s81
    %s96 = sphi 0, %s82
    %s104 = sphi 0, %s106
    %s107 = sphi 0, %s104
    %s108 = sphi 0, %s107
    %s124 = sphi 0, %s108
    %s132 = sphi 0, %s134
    %s135 = sphi 0, %s132
    %s136 = sphi 0, %s135
    %s152 = sphi 0, %s136
  $region4: #{_lambda_.20} parent=0 // loop_header_branch
    %13 = sbr.rel (%p11) target = $region8
  $region5: #{_lambda_.20} parent=0 // loop_body
    %s15 = ssub.s32 %s10, 1
    %s16 = ssub.s32 %s10, 2
    %s23 = sadd.s32 1, %s18
    %p24 = scmp.ge.s32.totalorder %s23, 1
    %s25 = scalar_select %p24, 0, %s23
    %s26 = sadd.s32 1, %s17
    %s27 = scalar_select %p24, %s26, %s17
    %p28 = scmp.ge.s32.totalorder %s27, 2
    %s29 = scalar_select %p28, 0, %s27
    %s30 = ssub.s32 %s17, %s29
    %s31 = ssub.s32 %s18, %s25
    %s32 = sor.u32 %s30, %s31
    %p33 = scmp.eq.s32.totalorder %s32, 0
    %s35 = sadd.s32 %s34, 1
    %s36 = scalar_select %p33, %s34, %s35
    %p39 = pneg %p33
    %p40 = scmp.eq.s32.totalorder %s10, 1
    %p41 = por %p39, %p40
    %p42 = scmp.ne.s32.totalorder %s34, %s37
    %p43 = scmp.eq.s32.totalorder %s10, 0
    %p44 = por %p42, %p43
    %p45 = scmp.ne.s32.totalorder %s34, %s37
    %p46 = scmp.eq.s32.totalorder %s15, 1
    %p47 = por %p45, %p46
    %p48 = scmp.ne.s32.totalorder %s37, %s38
    %p49 = scmp.eq.s32.totalorder %s15, 0
    %p50 = por %p48, %p49
    %p51 = scmp.ne.s32.totalorder %s37, %s38
    %p52 = scmp.eq.s32.totalorder %s16, 1
    %p53 = por %p51, %p52
    %p55 = scmp.ne.s32.totalorder %s38, %s54
    %p56 = scmp.eq.s32.totalorder %s16, 0
    %p57 = por %p55, %p56
    %s59 = sadd.s32 %s58, 1
    %p62 = scmp.eq.s32.totalorder %s10, 1
    %p63 = scmp.ne.s32.totalorder %s58, %s60
    %p64 = scmp.eq.s32.totalorder %s10, 0
    %p65 = por %p63, %p64
    %p66 = scmp.ne.s32.totalorder %s58, %s60
    %p67 = scmp.eq.s32.totalorder %s15, 1
    %p68 = por %p66, %p67
    %p69 = scmp.ne.s32.totalorder %s60, %s61
    %p70 = scmp.eq.s32.totalorder %s15, 0
    %p71 = por %p69, %p70
    %p72 = scmp.ne.s32.totalorder %s60, %s61
    %p73 = scmp.eq.s32.totalorder %s16, 1
    %p74 = por %p72, %p73
    %p76 = scmp.ne.s32.totalorder %s61, %s75
    %p77 = scmp.eq.s32.totalorder %s16, 0
    %p78 = por %p76, %p77
    %s80 = sadd.s32 %s79, 1
    %p83 = scmp.eq.s32.totalorder %s10, 1
    %p84 = scmp.ne.s32.totalorder %s79, %s81
    %p85 = scmp.eq.s32.totalorder %s10, 0
    %p86 = por %p84, %p85
    %p87 = scmp.ne.s32.totalorder %s79, %s81
    %p88 = scmp.eq.s32.totalorder %s15, 1
    %p89 = por %p87, %p88
    %p90 = scmp.ne.s32.totalorder %s81, %s82
    %p91 = scmp.eq.s32.totalorder %s15, 0
    %p92 = por %p90, %p91
    %p93 = scmp.ne.s32.totalorder %s81, %s82
    %p94 = scmp.eq.s32.totalorder %s16, 1
    %p95 = por %p93, %p94
    %p97 = scmp.ne.s32.totalorder %s82, %s96
    %p98 = scmp.eq.s32.totalorder %s16, 0
    %p99 = por %p97, %p98
    %s100 = ssub.s32 %s17, %s29
    %s101 = ssub.s32 %s18, %s25
    %s102 = sor.u32 %s100, %s101
    %p103 = scmp.eq.s32.totalorder %s102, 0
    %s105 = sadd.s32 %s104, 1
    %s106 = scalar_select %p103, %s104, %s105
    %p109 = pneg %p103
    %p110 = scmp.eq.s32.totalorder %s10, 1
    %p111 = por %p109, %p110
    %p112 = scmp.ne.s32.totalorder %s104, %s107
    %p113 = scmp.eq.s32.totalorder %s10, 0
    %p114 = por %p112, %p113
    %p115 = scmp.ne.s32.totalorder %s104, %s107
    %p116 = scmp.eq.s32.totalorder %s15, 1
    %p117 = por %p115, %p116
    %p118 = scmp.ne.s32.totalorder %s107, %s108
    %p119 = scmp.eq.s32.totalorder %s15, 0
    %p120 = por %p118, %p119
    %p121 = scmp.ne.s32.totalorder %s107, %s108
    %p122 = scmp.eq.s32.totalorder %s16, 1
    %p123 = por %p121, %p122
    %p125 = scmp.ne.s32.totalorder %s108, %s124
    %p126 = scmp.eq.s32.totalorder %s16, 0
    %p127 = por %p125, %p126
    %s128 = ssub.s32 %s17, %s29
    %s129 = ssub.s32 %s18, %s25
    %s130 = sor.u32 %s128, %s129
    %p131 = scmp.eq.s32.totalorder %s130, 0
    %s133 = sadd.s32 %s132, 1
    %s134 = scalar_select %p131, %s132, %s133
    %p137 = pneg %p131
    %p138 = scmp.eq.s32.totalorder %s10, 1
    %p139 = por %p137, %p138
    %p140 = scmp.ne.s32.totalorder %s132, %s135
    %p141 = scmp.eq.s32.totalorder %s10, 0
    %p142 = por %p140, %p141
    %p143 = scmp.ne.s32.totalorder %s132, %s135
    %p144 = scmp.eq.s32.totalorder %s15, 1
    %p145 = por %p143, %p144
    %p146 = scmp.ne.s32.totalorder %s135, %s136
    %p147 = scmp.eq.s32.totalorder %s15, 0
    %p148 = por %p146, %p147
    %p149 = scmp.ne.s32.totalorder %s135, %s136
    %p150 = scmp.eq.s32.totalorder %s16, 1
    %p151 = por %p149, %p150
    %p153 = scmp.ne.s32.totalorder %s136, %s152
    %p154 = scmp.eq.s32.totalorder %s16, 0
    %p155 = por %p153, %p154
    %p156 = scmp.le.s32.totalorder 1, %s10
    %p157 = scmp.lt.s32.totalorder %s10, 3
    %p158 = pnand %p156, %p157
    %p159 = pneg %p158
    // Predicated region
    $region9: #{_lambda_.20} parent=5 // pred_check
      _
    $region10: #{_lambda_.20} parent=5 // pred_check_branch
      %161 = sbr.rel (%p158) target = $region12
    $region11: #{_lambda_.20} parent=5 // pred_region
      %s162 = ssub.s32 %s10, 1
      // Predicated region
      $region13: #{_lambda_.20} parent=11 // pred_check
        %p163 = pneg %p71
      $region14: #{_lambda_.20} parent=11 // pred_check_branch
        %165 = sbr.rel (%p163) target = $region16
      $region15: #{_lambda_.20} parent=11 // pred_region
        _
      $region16: #{_lambda_.20} parent=11 // pred_fallthru
        _
      // Predicated region
      $region17: #{_lambda_.20} parent=11 // pred_check
        %p166 = pneg %p92
      $region18: #{_lambda_.20} parent=11 // pred_check_branch
        %168 = sbr.rel (%p166) target = $region20
      $region19: #{_lambda_.20} parent=11 // pred_region
        _
      $region20: #{_lambda_.20} parent=11 // pred_fallthru
        _
    $region12: #{_lambda_.20} parent=5 // pred_fallthru
      _
    %p169 = scmp.lt.s32.totalorder %s10, 2
    // Predicated region
    $region21: #{_lambda_.20} parent=5 // pred_check
      %p170 = pneg %p169
    $region22: #{_lambda_.20} parent=5 // pred_check_branch
      %172 = sbr.rel (%p170) target = $region24
    $region23: #{_lambda_.20} parent=5 // pred_region
      // Predicated region
      $region25: #{_lambda_.20} parent=23 // pred_check
        %p173 = pneg %p44
      $region26: #{_lambda_.20} parent=23 // pred_check_branch
        %175 = sbr.rel (%p173) target = $region28
      $region27: #{_lambda_.20} parent=23 // pred_region
        %p176 = scmp.lt.s32.totalorder %s17, 1
        %s177 = scalar_select %p176, %s17, 1
        %p178 = scmp.lt.s32.totalorder %s18, 0
        %s179 = scalar_select %p178, %s18, 0
        %s180 = smul.addr %s177, 8
        %s181 = sadd.s32 %s179, %s180
        %s182 = smul.addr %s181, 4
        %s183 = scalar_lea.vmem %s0, %s182
      $region28: #{_lambda_.20} parent=23 // pred_fallthru
        _
      // Predicated region
      $region29: #{_lambda_.20} parent=23 // pred_check
        %p184 = pneg %p114
      $region30: #{_lambda_.20} parent=23 // pred_check_branch
        %186 = sbr.rel (%p184) target = $region32
      $region31: #{_lambda_.20} parent=23 // pred_region
        %p187 = scmp.lt.s32.totalorder %s17, 1
        %s188 = scalar_select %p187, %s17, 1
        %p189 = scmp.lt.s32.totalorder %s18, 0
        %s190 = scalar_select %p189, %s18, 0
        %s191 = smul.addr %s188, 2
        %s192 = sadd.s32 %s190, %s191
        %s193 = smul.addr %s192, 4
        %s194 = scalar_lea.vmem %s3, %s193
      $region32: #{_lambda_.20} parent=23 // pred_fallthru
        _
    $region24: #{_lambda_.20} parent=5 // pred_fallthru
      _
    %p195 = scmp.le.s32.totalorder 1, %s10
    %p196 = scmp.lt.s32.totalorder %s10, 3
    %p197 = pnand %p195, %p196
    %p198 = pneg %p197
    // Predicated region
    $region33: #{_lambda_.20} parent=5 // pred_check
      _
    $region34: #{_lambda_.20} parent=5 // pred_check_branch
      %200 = sbr.rel (%p197) target = $region36
    $region35: #{_lambda_.20} parent=5 // pred_region
      %s201 = ssub.s32 %s10, 1
      %p202 = scmp.lt.s32.totalorder %s19, 1
      %s203 = scalar_select %p202, %s19, 1
      %p204 = scmp.lt.s32.totalorder %s20, 0
      %s205 = scalar_select %p204, %s20, 0
      %s206 = smul.addr %s203, 8
      %s207 = sadd.s32 %s205, %s206
      %s208 = smul.addr %s207, 4
      %s209 = scalar_lea.vmem %s0, %s208
      %p210 = pneg %p50
      %p211 = pneg %p47
      %p212 = pneg %p71
      %p213 = pneg %p68
      %p214 = pneg %p92
      %p215 = pneg %p89
      %p216 = scmp.lt.s32.totalorder %s19, 1
      %s217 = scalar_select %p216, %s19, 1
      %p218 = scmp.lt.s32.totalorder %s20, 0
      %s219 = scalar_select %p218, %s20, 0
      %s220 = smul.addr %s217, 2
      %s221 = sadd.s32 %s219, %s220
      %s222 = smul.addr %s221, 4
      %s223 = scalar_lea.vmem %s3, %s222
      %p224 = pneg %p120
      %p225 = pneg %p117
      %p226 = pneg %p148
      %p227 = pneg %p145
      %p228 = scmp.lt.s32.totalorder %s19, 1
      %s229 = scalar_select %p228, %s19, 1
      %p230 = scmp.lt.s32.totalorder %s20, 0
      %s231 = scalar_select %p230, %s20, 0
      %s232 = smul.addr %s229, 2
      %s233 = sadd.s32 %s231, %s232
      %s234 = smul.addr %s233, 4
      %s235 = scalar_lea.vmem %s4, %s234
      %p236 = scmp.lt.s32.totalorder %s19, 1
      %s237 = scalar_select %p236, %s19, 1
      %p238 = scmp.lt.s32.totalorder %s20, 0
      %s239 = scalar_select %p238, %s20, 0
      %s240 = smul.addr %s237, 8
      %s241 = sadd.s32 %s239, %s240
      %s242 = smul.addr %s241, 4
      %s243 = scalar_lea.vmem %s0, %s242
      %p244 = scmp.lt.s32.totalorder %s19, 1
      %s245 = scalar_select %p244, %s19, 1
      %p246 = scmp.lt.s32.totalorder %s20, 0
      %s247 = scalar_select %p246, %s20, 0
      %s248 = smul.addr %s245, 2
      %s249 = sadd.s32 %s247, %s248
      %s250 = smul.addr %s249, 4
      %s251 = scalar_lea.vmem %s3, %s250
      %p252 = scmp.lt.s32.totalorder %s19, 1
      %s253 = scalar_select %p252, %s19, 1
      %p254 = scmp.lt.s32.totalorder %s20, 0
      %s255 = scalar_select %p254, %s20, 0
      %s256 = smul.addr %s253, 2
      %s257 = sadd.s32 %s255, %s256
      %s258 = smul.addr %s257, 4
      %s259 = scalar_lea.vmem %s4, %s258
      %v261 = vld [vmem:[%s243] sm:$0xf]
      %v262 = vld [vmem:[%s243 + $0x4] sm:$0xf]
      %v263 = vld [vmem:[%s243 + $0x8] sm:$0xf]
      %v264 = vld [vmem:[%s243 + $0xc] sm:$0xf]
      %v265 = vld [vmem:[%s243 + $0x10] sm:$0xf]
      %v266 = vld [vmem:[%s243 + $0x14] sm:$0xf]
      %v267 = vld [vmem:[%s243 + $0x18] sm:$0xf]
      %v268 = vld [vmem:[%s243 + $0x1c] sm:$0xf]
      %v269 = vld [vmem:[%s1] sm:$0xff]
      %v270 = vld [vmem:[%s1 + $0x8] sm:$0xff]
      %v271 = vpack.c.bf16 %v270, %v269
      %v272 = vld [vmem:[%s2] sm:$0xff]
      %v273 = vld [vmem:[%s2 + $0x8] sm:$0xff]
      %275 = vset.pattern.permute.xlu0 0
      %276 = vperm.xlu0 %275, %v272
      %v277 = vpop.permute.xlu0 %276
      %280 = vset.pattern.permute.xlu0 0
      %281 = vperm.xlu0 %280, %v273
      %v282 = vpop.permute.xlu0 %281
      %v292 = vunpack.c.l.b16 %v261
      %v293 = vunpack.c.l.b16 %v262
      %v294 = vunpack.c.l.b16 %v263
      %v295 = vunpack.c.l.b16 %v264
      %v296 = vunpack.c.l.b16 %v265
      %v297 = vunpack.c.l.b16 %v266
      %v298 = vunpack.c.l.b16 %v267
      %v299 = vunpack.c.l.b16 %v268
      %v300 = vpack.c.b16 %v293, %v292
      %v301 = vpack.c.b16 %v295, %v294
      %v302 = vpack.c.b16 %v297, %v296
      %v303 = vpack.c.b16 %v299, %v298
      %vm308 = vcmask 523264
      %v310 = vsel %vm308, %v271, 0
      %312 = vmatprep.subr.bf16.mxu0 0
      %313 = vmatpush1.bf16.msra.mxu0 0
      %314 = vmatprep.subr.bf16.mxu0 0
      %315 = vmatpush1.bf16.msra.mxu0 0
      %316 = vmatprep.subr.bf16.mxu0 0
      %317 = vmatpush1.bf16.msra.mxu0 0
      %318 = vmatprep.subr.bf16.mxu0 0
      %319 = vmatpush1.bf16.msra.mxu0 0
      %320 = vmatprep.subr.bf16.mxu0 0
      %321 = vmatpush1.bf16.msra.mxu0 %v303
      %322 = vmatprep.subr.bf16.mxu0 0
      %323 = vmatpush1.bf16.msra.mxu0 %v302
      %324 = vmatprep.subr.bf16.mxu0 0
      %325 = vmatpush1.bf16.msra.mxu0 %v301
      %326 = vmatprep.subr.bf16.mxu0 0
      %327 = vmatpush1.bf16.msra.mxu0 %v300
      %328 = vmatprep.subr.bf16.mxu0 0
      %329 = vmatpush2.bf16.msra.mxu0 0
      %330 = vmatprep.subr.bf16.mxu0 0
      %331 = vmatpush2.bf16.msra.mxu0 0
      %332 = vmatprep.subr.bf16.mxu0 0
      %333 = vmatpush2.bf16.msra.mxu0 0
      %334 = vmatprep.subr.bf16.mxu0 0
      %335 = vmatpush2.bf16.msra.mxu0 0
      %336 = vmatprep.subr.bf16.mxu0 0
      %337 = vmatpush2.bf16.msra.mxu0 0
      %338 = vmatprep.subr.bf16.mxu0 0
      %339 = vmatpush2.bf16.msra.mxu0 0
      %340 = vmatprep.subr.bf16.mxu0 0
      %341 = vmatpush2.bf16.msra.mxu0 0
      %342 = vmatprep.subr.bf16.mxu0 0
      %343 = vmatpush2.bf16.msra.mxu0 0
      %344 = vmatprep.mubr.bf16.mxu0 0
      %345 = vmatmul.mubr.bf16.gmra.mxu0 %v310
      %v346 = vpop.f32.mrf.mxu0
      %v347 = vadd.f32 %v277, %v346
      %v348 = vpop.f32.mrf.mxu0
      %v349 = vpop.f32.mrf.mxu0
      %v350 = vadd.f32 %v282, %v349
      %v351 = vpop.f32.mrf.mxu0
      %352 = vdwg.mxu0
      %v353 = vld [vmem:[%s251] sm:$0xf]
      %v354 = vld [vmem:[%s251 + $0x4] sm:$0xf]
      %v355 = vunpack.c.l.bf16 %v353
      %v356 = vunpack.c.l.bf16 %v354
      %v357 = vadd.f32 %v347, %v355
      %v358 = vadd.f32 %v350, %v356
      %v359 = vmax.f32 %v357, 0.0
      %v360 = vmax.f32 %v358, 0.0
      %v361 = vpack.c.bf16 %v360, %v359
      %v363 = vunpack.c.l.b16 %v361
      %v364 = vunpack.c.h.b16 %v361
      %v365 = vpack.c.b16 %v363, %v363
      %v366 = vpack.c.b16 %v364, %v364
      %vm369 = vcmask 125952
      %370 = vst.msk [vmem:[%s259] sm:$0xf] %vm369, %v365
      %371 = vst.msk [vmem:[%s259 + $0x4] sm:$0xf] %vm369, %v366
      %p372 = scmp.lt.s32.totalorder %s19, 1
      %s373 = scalar_select %p372, %s19, 1
      %p374 = scmp.lt.s32.totalorder %s20, 0
      %s375 = scalar_select %p374, %s20, 0
      %s376 = smul.addr %s373, 2
      %s377 = sadd.s32 %s375, %s376
      %s378 = smul.addr %s377, 4
      %s379 = scalar_lea.vmem %s4, %s378
      // Predicated region
      $region37: #{_lambda_.20} parent=35 // pred_check
        %p380 = pneg %p145
      $region38: #{_lambda_.20} parent=35 // pred_check_branch
        %382 = sbr.rel (%p380) target = $region40
      $region39: #{_lambda_.20} parent=35 // pred_region
        _
      $region40: #{_lambda_.20} parent=35 // pred_fallthru
        _
    $region36: #{_lambda_.20} parent=5 // pred_fallthru
      _
    %p383 = scmp.le.s32.totalorder 2, %s10
    // Predicated region
    $region41: #{_lambda_.20} parent=5 // pred_check
      %p384 = pneg %p383
    $region42: #{_lambda_.20} parent=5 // pred_check_branch
      %386 = sbr.rel (%p384) target = $region44
    $region43: #{_lambda_.20} parent=5 // pred_region
      %s387 = ssub.s32 %s10, 2
      // Predicated region
      $region45: #{_lambda_.20} parent=43 // pred_check
        %p388 = pneg %p151
      $region46: #{_lambda_.20} parent=43 // pred_check_branch
        %390 = sbr.rel (%p388) target = $region48
      $region47: #{_lambda_.20} parent=43 // pred_region
        %p391 = scmp.lt.s32.totalorder %s21, 1
        %s392 = scalar_select %p391, %s21, 1
        %p393 = scmp.lt.s32.totalorder %s22, 0
        %s394 = scalar_select %p393, %s22, 0
        %s395 = smul.addr %s392, 2
        %s396 = sadd.s32 %s394, %s395
        %s397 = smul.addr %s396, 4
        %s398 = scalar_lea.vmem %s4, %s397
      $region48: #{_lambda_.20} parent=43 // pred_fallthru
        _
    $region44: #{_lambda_.20} parent=5 // pred_fallthru
      _
  $region6: #{_lambda_.20} parent=0 // loop_footer
    %s14 = sadd.s32 1, %s10
  $region7: #{_lambda_.20} parent=0 // loop_footer_branch
    %9 = sbr.rel target = $region3
  $region8: #{_lambda_.20} parent=0 // loop_exit
    _

// kernel: _lambda_.21
$region0: #{_lambda_.21}
  #allocation0 [shape = 'u32[]', space=smem, size = 0x4, offset = 0x4, fixed_abs, tag = 'smem constant byte address 0x4 - core index']
  #allocation1 [shape = 'u32[144,128]{1,0:T(1,128)}', space=vmem, size = 0x12000, scoped, tag = 'internal scratch']
  %s0 = inlined_call_operand.vmem [shape: bf16[2,19,16], index: 0, kind: input, shape index: {}]
  %s1 = inlined_call_operand.vmem [shape: f32[32,19], index: 1, kind: input, shape index: {}]
  %s2 = inlined_call_operand.vmem [shape: f32[32,1], index: 2, kind: input, shape index: {}]
  %s3 = inlined_call_operand.vmem [shape: bf16[2,32,16], index: 3, kind: output, shape index: {}]
  %s4 = sld [smem:[#allocation0]]
  $region45: #{_lambda_.21} parent=0
    _
  %s6 = ssub.s32 1, %s4
  %s7 = scalar_select 0, %s6, %s4
  loop: start=0, step=1, limit=4
  $region2: #{_lambda_.21} parent=0 // loop_pre_header
    _
  $region3: #{_lambda_.21} parent=0 // loop_header
    %s9 = sphi 0, %s13
    %p10 = scmp.ge.s32.totalorder %s9, 4
    %s16 = sphi 0, %s28
    %s17 = sphi 0, %s24
    %s18 = sphi 0, %s16
    %s19 = sphi 0, %s17
    %s20 = sphi 0, %s18
    %s21 = sphi 0, %s19
    %s33 = sphi 0, %s35
    %s36 = sphi 0, %s33
    %s37 = sphi 0, %s36
    %s53 = sphi 0, %s37
    %s57 = sphi 0, %s57
    %s59 = sphi 0, %s57
    %s60 = sphi 0, %s59
    %s74 = sphi 0, %s60
    %s78 = sphi 0, %s78
    %s80 = sphi 0, %s78
    %s81 = sphi 0, %s80
    %s95 = sphi 0, %s81
    %s103 = sphi 0, %s105
    %s106 = sphi 0, %s103
    %s107 = sphi 0, %s106
    %s123 = sphi 0, %s107
  $region4: #{_lambda_.21} parent=0 // loop_header_branch
    %12 = sbr.rel (%p10) target = $region8
  $region5: #{_lambda_.21} parent=0 // loop_body
    %s14 = ssub.s32 %s9, 1
    %s15 = ssub.s32 %s9, 2
    %s22 = sadd.s32 1, %s17
    %p23 = scmp.ge.s32.totalorder %s22, 1
    %s24 = scalar_select %p23, 0, %s22
    %s25 = sadd.s32 1, %s16
    %s26 = scalar_select %p23, %s25, %s16
    %p27 = scmp.ge.s32.totalorder %s26, 2
    %s28 = scalar_select %p27, 0, %s26
    %s29 = ssub.s32 %s16, %s28
    %s30 = ssub.s32 %s17, %s24
    %s31 = sor.u32 %s29, %s30
    %p32 = scmp.eq.s32.totalorder %s31, 0
    %s34 = sadd.s32 %s33, 1
    %s35 = scalar_select %p32, %s33, %s34
    %p38 = pneg %p32
    %p39 = scmp.eq.s32.totalorder %s9, 1
    %p40 = por %p38, %p39
    %p41 = scmp.ne.s32.totalorder %s33, %s36
    %p42 = scmp.eq.s32.totalorder %s9, 0
    %p43 = por %p41, %p42
    %p44 = scmp.ne.s32.totalorder %s33, %s36
    %p45 = scmp.eq.s32.totalorder %s14, 1
    %p46 = por %p44, %p45
    %p47 = scmp.ne.s32.totalorder %s36, %s37
    %p48 = scmp.eq.s32.totalorder %s14, 0
    %p49 = por %p47, %p48
    %p50 = scmp.ne.s32.totalorder %s36, %s37
    %p51 = scmp.eq.s32.totalorder %s15, 1
    %p52 = por %p50, %p51
    %p54 = scmp.ne.s32.totalorder %s37, %s53
    %p55 = scmp.eq.s32.totalorder %s15, 0
    %p56 = por %p54, %p55
    %s58 = sadd.s32 %s57, 1
    %p61 = scmp.eq.s32.totalorder %s9, 1
    %p62 = scmp.ne.s32.totalorder %s57, %s59
    %p63 = scmp.eq.s32.totalorder %s9, 0
    %p64 = por %p62, %p63
    %p65 = scmp.ne.s32.totalorder %s57, %s59
    %p66 = scmp.eq.s32.totalorder %s14, 1
    %p67 = por %p65, %p66
    %p68 = scmp.ne.s32.totalorder %s59, %s60
    %p69 = scmp.eq.s32.totalorder %s14, 0
    %p70 = por %p68, %p69
    %p71 = scmp.ne.s32.totalorder %s59, %s60
    %p72 = scmp.eq.s32.totalorder %s15, 1
    %p73 = por %p71, %p72
    %p75 = scmp.ne.s32.totalorder %s60, %s74
    %p76 = scmp.eq.s32.totalorder %s15, 0
    %p77 = por %p75, %p76
    %s79 = sadd.s32 %s78, 1
    %p82 = scmp.eq.s32.totalorder %s9, 1
    %p83 = scmp.ne.s32.totalorder %s78, %s80
    %p84 = scmp.eq.s32.totalorder %s9, 0
    %p85 = por %p83, %p84
    %p86 = scmp.ne.s32.totalorder %s78, %s80
    %p87 = scmp.eq.s32.totalorder %s14, 1
    %p88 = por %p86, %p87
    %p89 = scmp.ne.s32.totalorder %s80, %s81
    %p90 = scmp.eq.s32.totalorder %s14, 0
    %p91 = por %p89, %p90
    %p92 = scmp.ne.s32.totalorder %s80, %s81
    %p93 = scmp.eq.s32.totalorder %s15, 1
    %p94 = por %p92, %p93
    %p96 = scmp.ne.s32.totalorder %s81, %s95
    %p97 = scmp.eq.s32.totalorder %s15, 0
    %p98 = por %p96, %p97
    %s99 = ssub.s32 %s16, %s28
    %s100 = ssub.s32 %s17, %s24
    %s101 = sor.u32 %s99, %s100
    %p102 = scmp.eq.s32.totalorder %s101, 0
    %s104 = sadd.s32 %s103, 1
    %s105 = scalar_select %p102, %s103, %s104
    %p108 = pneg %p102
    %p109 = scmp.eq.s32.totalorder %s9, 1
    %p110 = por %p108, %p109
    %p111 = scmp.ne.s32.totalorder %s103, %s106
    %p112 = scmp.eq.s32.totalorder %s9, 0
    %p113 = por %p111, %p112
    %p114 = scmp.ne.s32.totalorder %s103, %s106
    %p115 = scmp.eq.s32.totalorder %s14, 1
    %p116 = por %p114, %p115
    %p117 = scmp.ne.s32.totalorder %s106, %s107
    %p118 = scmp.eq.s32.totalorder %s14, 0
    %p119 = por %p117, %p118
    %p120 = scmp.ne.s32.totalorder %s106, %s107
    %p121 = scmp.eq.s32.totalorder %s15, 1
    %p122 = por %p120, %p121
    %p124 = scmp.ne.s32.totalorder %s107, %s123
    %p125 = scmp.eq.s32.totalorder %s15, 0
    %p126 = por %p124, %p125
    %p127 = scmp.le.s32.totalorder 1, %s9
    %p128 = scmp.lt.s32.totalorder %s9, 3
    %p129 = pnand %p127, %p128
    %p130 = pneg %p129
    // Predicated region
    $region9: #{_lambda_.21} parent=5 // pred_check
      _
    $region10: #{_lambda_.21} parent=5 // pred_check_branch
      %132 = sbr.rel (%p129) target = $region12
    $region11: #{_lambda_.21} parent=5 // pred_region
      %s133 = ssub.s32 %s9, 1
      // Predicated region
      $region13: #{_lambda_.21} parent=11 // pred_check
        %p134 = pneg %p70
      $region14: #{_lambda_.21} parent=11 // pred_check_branch
        %136 = sbr.rel (%p134) target = $region16
      $region15: #{_lambda_.21} parent=11 // pred_region
        _
      $region16: #{_lambda_.21} parent=11 // pred_fallthru
        _
      // Predicated region
      $region17: #{_lambda_.21} parent=11 // pred_check
        %p137 = pneg %p91
      $region18: #{_lambda_.21} parent=11 // pred_check_branch
        %139 = sbr.rel (%p137) target = $region20
      $region19: #{_lambda_.21} parent=11 // pred_region
        _
      $region20: #{_lambda_.21} parent=11 // pred_fallthru
        _
    $region12: #{_lambda_.21} parent=5 // pred_fallthru
      _
    %p140 = scmp.lt.s32.totalorder %s9, 2
    // Predicated region
    $region21: #{_lambda_.21} parent=5 // pred_check
      %p141 = pneg %p140
    $region22: #{_lambda_.21} parent=5 // pred_check_branch
      %143 = sbr.rel (%p141) target = $region24
    $region23: #{_lambda_.21} parent=5 // pred_region
      // Predicated region
      $region25: #{_lambda_.21} parent=23 // pred_check
        %p144 = pneg %p43
      $region26: #{_lambda_.21} parent=23 // pred_check_branch
        %146 = sbr.rel (%p144) target = $region28
      $region27: #{_lambda_.21} parent=23 // pred_region
        %p147 = scmp.lt.s32.totalorder %s16, 1
        %s148 = scalar_select %p147, %s16, 1
        %p149 = scmp.lt.s32.totalorder %s17, 0
        %s150 = scalar_select %p149, %s17, 0
        %s151 = smul.addr %s148, 3
        %s152 = sadd.s32 %s150, %s151
        %s153 = smul.addr %s152, 4
        %s154 = scalar_lea.vmem %s0, %s153
      $region28: #{_lambda_.21} parent=23 // pred_fallthru
        _
    $region24: #{_lambda_.21} parent=5 // pred_fallthru
      _
    %p155 = scmp.le.s32.totalorder 1, %s9
    %p156 = scmp.lt.s32.totalorder %s9, 3
    %p157 = pnand %p155, %p156
    %p158 = pneg %p157
    // Predicated region
    $region29: #{_lambda_.21} parent=5 // pred_check
      _
    $region30: #{_lambda_.21} parent=5 // pred_check_branch
      %160 = sbr.rel (%p157) target = $region32
    $region31: #{_lambda_.21} parent=5 // pred_region
      %s161 = ssub.s32 %s9, 1
      %p162 = scmp.lt.s32.totalorder %s18, 1
      %s163 = scalar_select %p162, %s18, 1
      %p164 = scmp.lt.s32.totalorder %s19, 0
      %s165 = scalar_select %p164, %s19, 0
      %s166 = smul.addr %s163, 3
      %s167 = sadd.s32 %s165, %s166
      %s168 = smul.addr %s167, 4
      %s169 = scalar_lea.vmem %s0, %s168
      %p170 = pneg %p49
      %p171 = pneg %p46
      %p172 = pneg %p70
      %p173 = pneg %p67
      %p174 = pneg %p91
      %p175 = pneg %p88
      %p176 = pneg %p119
      %p177 = pneg %p116
      %p178 = scmp.lt.s32.totalorder %s18, 1
      %s179 = scalar_select %p178, %s18, 1
      %p180 = scmp.lt.s32.totalorder %s19, 0
      %s181 = scalar_select %p180, %s19, 0
      %s182 = smul.addr %s179, 4
      %s183 = sadd.s32 %s181, %s182
      %s184 = smul.addr %s183, 4
      %s185 = scalar_lea.vmem %s3, %s184
      %p186 = scmp.lt.s32.totalorder %s18, 1
      %s187 = scalar_select %p186, %s18, 1
      %p188 = scmp.lt.s32.totalorder %s19, 0
      %s189 = scalar_select %p188, %s19, 0
      %s190 = smul.addr %s187, 3
      %s191 = sadd.s32 %s189, %s190
      %s192 = smul.addr %s191, 4
      %s193 = scalar_lea.vmem %s0, %s192
      %p194 = scmp.lt.s32.totalorder %s18, 1
      %s195 = scalar_select %p194, %s18, 1
      %p196 = scmp.lt.s32.totalorder %s19, 0
      %s197 = scalar_select %p196, %s19, 0
      %s198 = smul.addr %s195, 4
      %s199 = sadd.s32 %s197, %s198
      %s200 = smul.addr %s199, 4
      %s201 = scalar_lea.vmem %s3, %s200
      %v203 = vld [vmem:[%s193] sm:$0xf]
      %v204 = vld [vmem:[%s193 + $0x4] sm:$0xf]
      %v205 = vld [vmem:[%s193 + $0x8] sm:$0x3]
      %v206 = vld [vmem:[%s1] sm:$0xff]
      %v207 = vld [vmem:[%s1 + $0x8] sm:$0xff]
      %v208 = vld [vmem:[%s1 + $0x10] sm:$0xff]
      %v209 = vld [vmem:[%s1 + $0x18] sm:$0xff]
      %v210 = vpack.c.bf16 %v207, %v206
      %v211 = vpack.c.bf16 %v209, %v208
      %v212 = vld [vmem:[%s2] sm:$0xff]
      %v213 = vld [vmem:[%s2 + $0x8] sm:$0xff]
      %v214 = vld [vmem:[%s2 + $0x10] sm:$0xff]
      %v215 = vld [vmem:[%s2 + $0x18] sm:$0xff]
      %217 = vset.pattern.permute.xlu0 0
      %218 = vperm.xlu0 %217, %v212
      %v219 = vpop.permute.xlu0 %218
      %222 = vset.pattern.permute.xlu0 0
      %223 = vperm.xlu0 %222, %v213
      %v224 = vpop.permute.xlu0 %223
      %227 = vset.pattern.permute.xlu0 0
      %228 = vperm.xlu0 %227, %v214
      %v229 = vpop.permute.xlu0 %228
      %232 = vset.pattern.permute.xlu0 0
      %233 = vperm.xlu0 %232, %v215
      %v234 = vpop.permute.xlu0 %233
      %v239 = vunpack.c.l.b16 %v203
      %v240 = vunpack.c.l.b16 %v204
      %v241 = vunpack.c.l.b16 %v205
      %v242 = vpack.c.b16 %v240, %v239
      %v243 = vpack.c.b16 %v241, %v241
      %vm245 = vcmask 154624
      %v247 = vsel %vm245, %v210, 0
      %v250 = vsel %vm245, %v211, 0
      %vm252 = vcmask 1040384
      %vm253 = vcmask 1041408
      %v254 = vsel %vm252, 4294967295, 65535
      %v255 = vsel %vm253, %v254, 0
      %v257 = vand.u32 %v243, %v255
      %259 = vmatprep.subr.bf16.mxu0 0
      %260 = vmatpush1.bf16.msra.mxu0 0
      %261 = vmatprep.subr.bf16.mxu0 0
      %262 = vmatpush1.bf16.msra.mxu0 0
      %263 = vmatprep.subr.bf16.mxu0 0
      %264 = vmatpush1.bf16.msra.mxu0 0
      %265 = vmatprep.subr.bf16.mxu0 0
      %266 = vmatpush1.bf16.msra.mxu0 0
      %267 = vmatprep.subr.bf16.mxu0 0
      %268 = vmatpush1.bf16.msra.mxu0 0
      %269 = vmatprep.subr.bf16.mxu0 0
      %270 = vmatpush1.bf16.msra.mxu0 0
      %271 = vmatprep.subr.bf16.mxu0 0
      %272 = vmatpush1.bf16.msra.mxu0 %v257
      %273 = vmatprep.subr.bf16.mxu0 0
      %274 = vmatpush1.bf16.msra.mxu0 %v242
      %275 = vmatprep.subr.bf16.mxu0 0
      %276 = vmatpush2.bf16.msra.mxu0 0
      %277 = vmatprep.subr.bf16.mxu0 0
      %278 = vmatpush2.bf16.msra.mxu0 0
      %279 = vmatprep.subr.bf16.mxu0 0
      %280 = vmatpush2.bf16.msra.mxu0 0
      %281 = vmatprep.subr.bf16.mxu0 0
      %282 = vmatpush2.bf16.msra.mxu0 0
      %283 = vmatprep.subr.bf16.mxu0 0
      %284 = vmatpush2.bf16.msra.mxu0 0
      %285 = vmatprep.subr.bf16.mxu0 0
      %286 = vmatpush2.bf16.msra.mxu0 0
      %287 = vmatprep.subr.bf16.mxu0 0
      %288 = vmatpush2.bf16.msra.mxu0 0
      %289 = vmatprep.subr.bf16.mxu0 0
      %290 = vmatpush2.bf16.msra.mxu0 0
      %291 = vmatprep.mubr.bf16.mxu0 0
      %292 = vmatmul.mubr.bf16.gmra.mxu0 %v247
      %v293 = vpop.f32.mrf.mxu0
      %v294 = vadd.f32 %v219, %v293
      %v295 = vpop.f32.mrf.mxu0
      %v296 = vpop.f32.mrf.mxu0
      %v297 = vadd.f32 %v224, %v296
      %v298 = vpop.f32.mrf.mxu0
      %299 = vmatprep.mubr.bf16.mxu0 0
      %300 = vmatmul.mubr.bf16.gmra.mxu0 %v250
      %v301 = vpop.f32.mrf.mxu0
      %v302 = vadd.f32 %v229, %v301
      %v303 = vpop.f32.mrf.mxu0
      %v304 = vpop.f32.mrf.mxu0
      %v305 = vadd.f32 %v234, %v304
      %v306 = vpop.f32.mrf.mxu0
      %307 = vdwg.mxu0
      %v308 = vpack.c.bf16 %v297, %v294
      %v309 = vpack.c.bf16 %v305, %v302
      %v312 = vunpack.c.l.b16 %v308
      %v313 = vunpack.c.h.b16 %v308
      %v314 = vunpack.c.l.b16 %v309
      %v315 = vunpack.c.h.b16 %v309
      %v316 = vpack.c.b16 %v312, %v312
      %v317 = vpack.c.b16 %v313, %v313
      %v318 = vpack.c.b16 %v314, %v314
      %v319 = vpack.c.b16 %v315, %v315
      %vm324 = vcmask 125952
      %325 = vst.msk [vmem:[%s201] sm:$0xf] %vm324, %v316
      %326 = vst.msk [vmem:[%s201 + $0x4] sm:$0xf] %vm324, %v317
      %327 = vst.msk [vmem:[%s201 + $0x8] sm:$0xf] %vm324, %v318
      %328 = vst.msk [vmem:[%s201 + $0xc] sm:$0xf] %vm324, %v319
      %p329 = scmp.lt.s32.totalorder %s18, 1
      %s330 = scalar_select %p329, %s18, 1
      %p331 = scmp.lt.s32.totalorder %s19, 0
      %s332 = scalar_select %p331, %s19, 0
      %s333 = smul.addr %s330, 4
      %s334 = sadd.s32 %s332, %s333
      %s335 = smul.addr %s334, 4
      %s336 = scalar_lea.vmem %s3, %s335
      // Predicated region
      $region33: #{_lambda_.21} parent=31 // pred_check
        %p337 = pneg %p116
      $region34: #{_lambda_.21} parent=31 // pred_check_branch
        %339 = sbr.rel (%p337) target = $region36
      $region35: #{_lambda_.21} parent=31 // pred_region
        _
      $region36: #{_lambda_.21} parent=31 // pred_fallthru
        _
    $region32: #{_lambda_.21} parent=5 // pred_fallthru
      _
    %p340 = scmp.le.s32.totalorder 2, %s9
    // Predicated region
    $region37: #{_lambda_.21} parent=5 // pred_check
      %p341 = pneg %p340
    $region38: #{_lambda_.21} parent=5 // pred_check_branch
      %343 = sbr.rel (%p341) target = $region40
    $region39: #{_lambda_.21} parent=5 // pred_region
      %s344 = ssub.s32 %s9, 2
      // Predicated region
      $region41: #{_lambda_.21} parent=39 // pred_check
        %p345 = pneg %p122
      $region42: #{_lambda_.21} parent=39 // pred_check_branch
        %347 = sbr.rel (%p345) target = $region44
      $region43: #{_lambda_.21} parent=39 // pred_region
        %p348 = scmp.lt.s32.totalorder %s20, 1
        %s349 = scalar_select %p348, %s20, 1
        %p350 = scmp.lt.s32.totalorder %s21, 0
        %s351 = scalar_select %p350, %s21, 0
        %s352 = smul.addr %s349, 4
        %s353 = sadd.s32 %s351, %s352
        %s354 = smul.addr %s353, 4
        %s355 = scalar_lea.vmem %s3, %s354
      $region44: #{_lambda_.21} parent=39 // pred_fallthru
        _
    $region40: #{_lambda_.21} parent=5 // pred_fallthru
      _
  $region6: #{_lambda_.21} parent=0 // loop_footer
    %s13 = sadd.s32 1, %s9
  $region7: #{_lambda_.21} parent=0 // loop_footer_branch
    %8 = sbr.rel target = $region3
  $region8: #{_lambda_.21} parent=0 // loop_exit
    _

// kernel: neg.15
$region0: #{neg.15}
  #allocation0 [shape = 's32[1]{0}', space=sflag, size = 0x4, scoped, tag = 'scoped memory for neg.15']
  %s0 = inlined_call_operand.vmem [shape: s32[2,4,4], index: 0, kind: input, shape index: {}]
  %s1 = inlined_call_operand.vmem [shape: s32[2,4,4], index: 1, kind: output, shape index: {}]
  %v2 = vld [vmem:[%s0] sm:$0xf]
  %3 = xla_tuple %v2
  %4 = xla_tuple %3
  %v5 = vsub.s32 0, %v2
  %6 = xla_tuple %v5
  %7 = vst [vmem:[%s1] sm:$0xf] %v5
  %s8 = scalar_lea.vmem %s0, 4
  %v9 = vld [vmem:[%s8] sm:$0xf]
  %10 = xla_tuple %v9
  %11 = xla_tuple %10
  %v12 = vsub.s32 0, %v9
  %13 = xla_tuple %v12
  %s14 = scalar_lea.vmem %s1, 4
  %15 = vst [vmem:[%s14] sm:$0xf] %v12

// kernel: _lambda_.22
$region0: #{_lambda_.22}
  #allocation0 [shape = 'u32[]', space=smem, size = 0x4, offset = 0x4, fixed_abs, tag = 'smem constant byte address 0x4 - core index']
  #allocation1 [shape = 'u32[144,128]{1,0:T(1,128)}', space=vmem, size = 0x12000, scoped, tag = 'internal scratch']
  #allocation2 [shape = 'f32[32,4]{1,0:T(8,128)}', space=vmem, size = 0x4000, scoped, tag = 'scratch operand']
  %s0 = inlined_call_operand.vmem [shape: bf16[2,32,16], index: 0, kind: input, shape index: {}]
  %s1 = inlined_call_operand.vmem [shape: f32[2,3,4], index: 1, kind: input, shape index: {}]
  %s2 = inlined_call_operand.vmem [shape: s32[2,8,1,4], index: 2, kind: input, shape index: {}]
  %s3 = inlined_call_operand.vmem [shape: f32[3,32,1], index: 3, kind: input, shape index: {}]
  %s4 = inlined_call_operand.vmem [shape: f32[32,1], index: 4, kind: input, shape index: {}]
  %s5 = inlined_call_operand.vmem [shape: bf16[2,32,4], index: 5, kind: output, shape index: {}]
  %s6 = sld [smem:[#allocation0]]
  $region61: #{_lambda_.22} parent=0
    _
  %s8 = ssub.s32 1, %s6
  %s9 = scalar_select 0, %s8, %s6
  loop: start=0, step=1, limit=18
  $region2: #{_lambda_.22} parent=0 // loop_pre_header
    _
  $region3: #{_lambda_.22} parent=0 // loop_header
    %s11 = sphi 0, %s15
    %p12 = scmp.ge.s32.totalorder %s11, 18
    %s18 = sphi 0, %s37
    %s19 = sphi 0, %s33
    %s20 = sphi 0, %s29
    %s21 = sphi 0, %s18
    %s22 = sphi 0, %s19
    %s23 = sphi 0, %s20
    %s24 = sphi 0, %s21
    %s25 = sphi 0, %s22
    %s26 = sphi 0, %s23
    %s40 = sphi 0, %s42
    %s43 = sphi 0, %s40
    %s44 = sphi 0, %s43
    %s60 = sphi 0, %s44
    %s68 = sphi 0, %s70
    %s71 = sphi 0, %s68
    %s72 = sphi 0, %s71
    %s88 = sphi 0, %s72
    %s98 = sphi 0, %s100
    %s101 = sphi 0, %s98
    %s102 = sphi 0, %s101
    %s118 = sphi 0, %s102
    %s122 = sphi 0, %s122
    %s124 = sphi 0, %s122
    %s125 = sphi 0, %s124
    %s139 = sphi 0, %s125
    %s143 = sphi 0, %s143
    %s145 = sphi 0, %s143
    %s146 = sphi 0, %s145
    %s160 = sphi 0, %s146
    %s168 = sphi 0, %s170
    %s171 = sphi 0, %s168
    %s172 = sphi 0, %s171
    %s188 = sphi 0, %s172
  $region4: #{_lambda_.22} parent=0 // loop_header_branch
    %14 = sbr.rel (%p12) target = $region8
  $region5: #{_lambda_.22} parent=0 // loop_body
    %s16 = ssub.s32 %s11, 1
    %s17 = ssub.s32 %s11, 2
    %s27 = sadd.s32 1, %s20
    %p28 = scmp.ge.s32.totalorder %s27, 8
    %s29 = scalar_select %p28, 0, %s27
    %s30 = sadd.s32 1, %s19
    %s31 = scalar_select %p28, %s30, %s19
    %p32 = scmp.ge.s32.totalorder %s31, 1
    %s33 = scalar_select %p32, 0, %s31
    %s34 = sadd.s32 1, %s18
    %s35 = scalar_select %p32, %s34, %s18
    %p36 = scmp.ge.s32.totalorder %s35, 2
    %s37 = scalar_select %p36, 0, %s35
    %s38 = ssub.s32 %s18, %s37
    %p39 = scmp.eq.s32.totalorder %s38, 0
    %s41 = sadd.s32 %s40, 1
    %s42 = scalar_select %p39, %s40, %s41
    %p45 = pneg %p39
    %p46 = scmp.eq.s32.totalorder %s11, 15
    %p47 = por %p45, %p46
    %p48 = scmp.ne.s32.totalorder %s40, %s43
    %p49 = scmp.eq.s32.totalorder %s11, 0
    %p50 = por %p48, %p49
    %p51 = scmp.ne.s32.totalorder %s40, %s43
    %p52 = scmp.eq.s32.totalorder %s16, 15
    %p53 = por %p51, %p52
    %p54 = scmp.ne.s32.totalorder %s43, %s44
    %p55 = scmp.eq.s32.totalorder %s16, 0
    %p56 = por %p54, %p55
    %p57 = scmp.ne.s32.totalorder %s43, %s44
    %p58 = scmp.eq.s32.totalorder %s17, 15
    %p59 = por %p57, %p58
    %p61 = scmp.ne.s32.totalorder %s44, %s60
    %p62 = scmp.eq.s32.totalorder %s17, 0
    %p63 = por %p61, %p62
    %s64 = ssub.s32 %s18, %s37
    %s65 = ssub.s32 %s19, %s33
    %s66 = sor.u32 %s64, %s65
    %p67 = scmp.eq.s32.totalorder %s66, 0
    %s69 = sadd.s32 %s68, 1
    %s70 = scalar_select %p67, %s68, %s69
    %p73 = pneg %p67
    %p74 = scmp.eq.s32.totalorder %s11, 15
    %p75 = por %p73, %p74
    %p76 = scmp.ne.s32.totalorder %s68, %s71
    %p77 = scmp.eq.s32.totalorder %s11, 0
    %p78 = por %p76, %p77
    %p79 = scmp.ne.s32.totalorder %s68, %s71
    %p80 = scmp.eq.s32.totalorder %s16, 15
    %p81 = por %p79, %p80
    %p82 = scmp.ne.s32.totalorder %s71, %s72
    %p83 = scmp.eq.s32.totalorder %s16, 0
    %p84 = por %p82, %p83
    %p85 = scmp.ne.s32.totalorder %s71, %s72
    %p86 = scmp.eq.s32.totalorder %s17, 15
    %p87 = por %p85, %p86
    %p89 = scmp.ne.s32.totalorder %s72, %s88
    %p90 = scmp.eq.s32.totalorder %s17, 0
    %p91 = por %p89, %p90
    %s92 = ssub.s32 %s18, %s37
    %s93 = ssub.s32 %s20, %s29
    %s94 = sor.u32 %s92, %s93
    %s95 = ssub.s32 %s19, %s33
    %s96 = sor.u32 %s94, %s95
    %p97 = scmp.eq.s32.totalorder %s96, 0
    %s99 = sadd.s32 %s98, 1
    %s100 = scalar_select %p97, %s98, %s99
    %p103 = pneg %p97
    %p104 = scmp.eq.s32.totalorder %s11, 15
    %p105 = por %p103, %p104
    %p106 = scmp.ne.s32.totalorder %s98, %s101
    %p107 = scmp.eq.s32.totalorder %s11, 0
    %p108 = por %p106, %p107
    %p109 = scmp.ne.s32.totalorder %s98, %s101
    %p110 = scmp.eq.s32.totalorder %s16, 15
    %p111 = por %p109, %p110
    %p112 = scmp.ne.s32.totalorder %s101, %s102
    %p113 = scmp.eq.s32.totalorder %s16, 0
    %p114 = por %p112, %p113
    %p115 = scmp.ne.s32.totalorder %s101, %s102
    %p116 = scmp.eq.s32.totalorder %s17, 15
    %p117 = por %p115, %p116
    %p119 = scmp.ne.s32.totalorder %s102, %s118
    %p120 = scmp.eq.s32.totalorder %s17, 0
    %p121 = por %p119, %p120
    %s123 = sadd.s32 %s122, 1
    %p126 = scmp.eq.s32.totalorder %s11, 15
    %p127 = scmp.ne.s32.totalorder %s122, %s124
    %p128 = scmp.eq.s32.totalorder %s11, 0
    %p129 = por %p127, %p128
    %p130 = scmp.ne.s32.totalorder %s122, %s124
    %p131 = scmp.eq.s32.totalorder %s16, 15
    %p132 = por %p130, %p131
    %p133 = scmp.ne.s32.totalorder %s124, %s125
    %p134 = scmp.eq.s32.totalorder %s16, 0
    %p135 = por %p133, %p134
    %p136 = scmp.ne.s32.totalorder %s124, %s125
    %p137 = scmp.eq.s32.totalorder %s17, 15
    %p138 = por %p136, %p137
    %p140 = scmp.ne.s32.totalorder %s125, %s139
    %p141 = scmp.eq.s32.totalorder %s17, 0
    %p142 = por %p140, %p141
    %s144 = sadd.s32 %s143, 1
    %p147 = scmp.eq.s32.totalorder %s11, 15
    %p148 = scmp.ne.s32.totalorder %s143, %s145
    %p149 = scmp.eq.s32.totalorder %s11, 0
    %p150 = por %p148, %p149
    %p151 = scmp.ne.s32.totalorder %s143, %s145
    %p152 = scmp.eq.s32.totalorder %s16, 15
    %p153 = por %p151, %p152
    %p154 = scmp.ne.s32.totalorder %s145, %s146
    %p155 = scmp.eq.s32.totalorder %s16, 0
    %p156 = por %p154, %p155
    %p157 = scmp.ne.s32.totalorder %s145, %s146
    %p158 = scmp.eq.s32.totalorder %s17, 15
    %p159 = por %p157, %p158
    %p161 = scmp.ne.s32.totalorder %s146, %s160
    %p162 = scmp.eq.s32.totalorder %s17, 0
    %p163 = por %p161, %p162
    %s164 = ssub.s32 %s18, %s37
    %s165 = ssub.s32 %s19, %s33
    %s166 = sor.u32 %s164, %s165
    %p167 = scmp.eq.s32.totalorder %s166, 0
    %s169 = sadd.s32 %s168, 1
    %s170 = scalar_select %p167, %s168, %s169
    %p173 = pneg %p167
    %p174 = scmp.eq.s32.totalorder %s11, 15
    %p175 = por %p173, %p174
    %p176 = scmp.ne.s32.totalorder %s168, %s171
    %p177 = scmp.eq.s32.totalorder %s11, 0
    %p178 = por %p176, %p177
    %p179 = scmp.ne.s32.totalorder %s168, %s171
    %p180 = scmp.eq.s32.totalorder %s16, 15
    %p181 = por %p179, %p180
    %p182 = scmp.ne.s32.totalorder %s171, %s172
    %p183 = scmp.eq.s32.totalorder %s16, 0
    %p184 = por %p182, %p183
    %p185 = scmp.ne.s32.totalorder %s171, %s172
    %p186 = scmp.eq.s32.totalorder %s17, 15
    %p187 = por %p185, %p186
    %p189 = scmp.ne.s32.totalorder %s172, %s188
    %p190 = scmp.eq.s32.totalorder %s17, 0
    %p191 = por %p189, %p190
    %p192 = scmp.le.s32.totalorder 1, %s11
    %p193 = scmp.lt.s32.totalorder %s11, 17
    %p194 = pnand %p192, %p193
    %p195 = pneg %p194
    // Predicated region
    $region9: #{_lambda_.22} parent=5 // pred_check
      _
    $region10: #{_lambda_.22} parent=5 // pred_check_branch
      %197 = sbr.rel (%p194) target = $region12
    $region11: #{_lambda_.22} parent=5 // pred_region
      %s198 = ssub.s32 %s11, 1
      // Predicated region
      $region13: #{_lambda_.22} parent=11 // pred_check
        %p199 = pneg %p135
      $region14: #{_lambda_.22} parent=11 // pred_check_branch
        %201 = sbr.rel (%p199) target = $region16
      $region15: #{_lambda_.22} parent=11 // pred_region
        _
      $region16: #{_lambda_.22} parent=11 // pred_fallthru
        _
      // Predicated region
      $region17: #{_lambda_.22} parent=11 // pred_check
        %p202 = pneg %p156
      $region18: #{_lambda_.22} parent=11 // pred_check_branch
        %204 = sbr.rel (%p202) target = $region20
      $region19: #{_lambda_.22} parent=11 // pred_region
        _
      $region20: #{_lambda_.22} parent=11 // pred_fallthru
        _
    $region12: #{_lambda_.22} parent=5 // pred_fallthru
      _
    %p205 = scmp.lt.s32.totalorder %s11, 16
    // Predicated region
    $region21: #{_lambda_.22} parent=5 // pred_check
      %p206 = pneg %p205
    $region22: #{_lambda_.22} parent=5 // pred_check_branch
      %208 = sbr.rel (%p206) target = $region24
    $region23: #{_lambda_.22} parent=5 // pred_region
      // Predicated region
      $region25: #{_lambda_.22} parent=23 // pred_check
        %p209 = pneg %p50
      $region26: #{_lambda_.22} parent=23 // pred_check_branch
        %211 = sbr.rel (%p209) target = $region28
      $region27: #{_lambda_.22} parent=23 // pred_region
        %p212 = scmp.lt.s32.totalorder %s18, 1
        %s213 = scalar_select %p212, %s18, 1
        %s214 = smul.addr %s213, 4
        %s215 = smul.addr %s214, 4
        %s216 = scalar_lea.vmem %s0, %s215
      $region28: #{_lambda_.22} parent=23 // pred_fallthru
        _
      // Predicated region
      $region29: #{_lambda_.22} parent=23 // pred_check
        %p217 = pneg %p78
      $region30: #{_lambda_.22} parent=23 // pred_check_branch
        %219 = sbr.rel (%p217) target = $region32
      $region31: #{_lambda_.22} parent=23 // pred_region
        %p220 = scmp.lt.s32.totalorder %s18, 1
        %s221 = scalar_select %p220, %s18, 1
        %p222 = scmp.lt.s32.totalorder %s19, 0
        %s223 = scalar_select %p222, %s19, 0
        %s224 = sadd.s32 %s223, %s221
        %s225 = smul.addr %s224, 4
        %s226 = scalar_lea.vmem %s1, %s225
      $region32: #{_lambda_.22} parent=23 // pred_fallthru
        _
      // Predicated region
      $region33: #{_lambda_.22} parent=23 // pred_check
        %p227 = pneg %p108
      $region34: #{_lambda_.22} parent=23 // pred_check_branch
        %229 = sbr.rel (%p227) target = $region36
      $region35: #{_lambda_.22} parent=23 // pred_region
        %p230 = scmp.lt.s32.totalorder %s18, 1
        %s231 = scalar_select %p230, %s18, 1
        %p232 = scmp.lt.s32.totalorder %s20, 7
        %s233 = scalar_select %p232, %s20, 7
        %p234 = scmp.lt.s32.totalorder %s19, 0
        %s235 = scalar_select %p234, %s19, 0
        %s236 = sadd.s32 %s235, %s233
        %s237 = smul.addr %s231, 8
        %s238 = sadd.s32 %s236, %s237
        %s239 = scalar_lea.vmem %s2, %s238
      $region36: #{_lambda_.22} parent=23 // pred_fallthru
        _
    $region24: #{_lambda_.22} parent=5 // pred_fallthru
      _
    %p240 = scmp.le.s32.totalorder 1, %s11
    %p241 = scmp.lt.s32.totalorder %s11, 17
    %p242 = pnand %p240, %p241
    %p243 = pneg %p242
    // Predicated region
    $region37: #{_lambda_.22} parent=5 // pred_check
      _
    $region38: #{_lambda_.22} parent=5 // pred_check_branch
      %245 = sbr.rel (%p242) target = $region40
    $region39: #{_lambda_.22} parent=5 // pred_region
      %s246 = ssub.s32 %s11, 1
      %p247 = scmp.lt.s32.totalorder %s21, 1
      %s248 = scalar_select %p247, %s21, 1
      %s249 = smul.addr %s248, 4
      %s250 = smul.addr %s249, 4
      %s251 = scalar_lea.vmem %s0, %s250
      %p252 = pneg %p56
      %p253 = pneg %p53
      %p254 = scmp.lt.s32.totalorder %s21, 1
      %s255 = scalar_select %p254, %s21, 1
      %p256 = scmp.lt.s32.totalorder %s22, 0
      %s257 = scalar_select %p256, %s22, 0
      %s258 = sadd.s32 %s257, %s255
      %s259 = smul.addr %s258, 4
      %s260 = scalar_lea.vmem %s1, %s259
      %p261 = pneg %p84
      %p262 = pneg %p81
      %p263 = scmp.lt.s32.totalorder %s21, 1
      %s264 = scalar_select %p263, %s21, 1
      %p265 = scmp.lt.s32.totalorder %s23, 7
      %s266 = scalar_select %p265, %s23, 7
      %p267 = scmp.lt.s32.totalorder %s22, 0
      %s268 = scalar_select %p267, %s22, 0
      %s269 = sadd.s32 %s268, %s266
      %s270 = smul.addr %s264, 8
      %s271 = sadd.s32 %s269, %s270
      %s272 = scalar_lea.vmem %s2, %s271
      %p273 = pneg %p114
      %p274 = pneg %p111
      %p275 = pneg %p135
      %p276 = pneg %p132
      %p277 = pneg %p156
      %p278 = pneg %p153
      %p279 = pneg %p184
      %p280 = pneg %p181
      %p281 = scmp.lt.s32.totalorder %s21, 1
      %s282 = scalar_select %p281, %s21, 1
      %p283 = scmp.lt.s32.totalorder %s22, 0
      %s284 = scalar_select %p283, %s22, 0
      %s285 = smul.addr %s282, 4
      %s286 = sadd.s32 %s284, %s285
      %s287 = smul.addr %s286, 4
      %s288 = scalar_lea.vmem %s5, %s287
      %p289 = scmp.lt.s32.totalorder %s21, 1
      %s290 = scalar_select %p289, %s21, 1
      %s291 = smul.addr %s290, 4
      %s292 = smul.addr %s291, 4
      %s293 = scalar_lea.vmem %s0, %s292
      %p294 = scmp.lt.s32.totalorder %s21, 1
      %s295 = scalar_select %p294, %s21, 1
      %p296 = scmp.lt.s32.totalorder %s22, 0
      %s297 = scalar_select %p296, %s22, 0
      %s298 = sadd.s32 %s297, %s295
      %s299 = smul.addr %s298, 4
      %s300 = scalar_lea.vmem %s1, %s299
      %p301 = scmp.lt.s32.totalorder %s21, 1
      %s302 = scalar_select %p301, %s21, 1
      %p303 = scmp.lt.s32.totalorder %s23, 7
      %s304 = scalar_select %p303, %s23, 7
      %p305 = scmp.lt.s32.totalorder %s22, 0
      %s306 = scalar_select %p305, %s22, 0
      %s307 = sadd.s32 %s306, %s304
      %s308 = smul.addr %s302, 8
      %s309 = sadd.s32 %s307, %s308
      %s310 = scalar_lea.vmem %s2, %s309
      %p311 = scmp.lt.s32.totalorder %s21, 1
      %s312 = scalar_select %p311, %s21, 1
      %p313 = scmp.lt.s32.totalorder %s22, 0
      %s314 = scalar_select %p313, %s22, 0
      %s315 = smul.addr %s312, 4
      %s316 = sadd.s32 %s314, %s315
      %s317 = smul.addr %s316, 4
      %s318 = scalar_lea.vmem %s5, %s317
      %p320 = scmp.eq.s32.totalorder %s23, 0
      // Predicated region
      $region41: #{_lambda_.22} parent=39 // pred_check
        %p321 = pneg %p320
      $region42: #{_lambda_.22} parent=39 // pred_check_branch
        %323 = sbr.rel (%p321) target = $region44
      $region43: #{_lambda_.22} parent=39 // pred_region
        %vm324 = vcmask 31744
        %325 = vst.msk [vmem:[#allocation2] sm:$0xff] %vm324, -inf
        %326 = vst.msk [vmem:[#allocation2 + $0x8] sm:$0xff] %vm324, -inf
        %327 = vst.msk [vmem:[#allocation2 + $0x10] sm:$0xff] %vm324, -inf
        %328 = vst.msk [vmem:[#allocation2 + $0x18] sm:$0xff] %vm324, -inf
      $region44: #{_lambda_.22} parent=39 // pred_fallthru
        _
      %v329 = vld [vmem:[%s310] sm:$0x1]
      %v330 = vlaneseq
      %v331 = vshrl.u32 %v330, 7
      %v332 = vadd.s32 %v331, 8
      %v333 = vlaneseq
      %v334 = vshrl.u32 %v333, 7
      %v335 = vsub.s32 0, %v334
      %v336 = vrot.slane %v329, %v335
      %vm337 = vcmp.eq.s32.totalorder %v331, %v336
      %vm338 = vcmp.eq.s32.totalorder %v332, %v336
      %v339 = vsel %vm337, 1.0, 0.0
      %v340 = vsel %vm338, 1.0, 0.0
      %v341 = vpack.c.bf16 %v340, %v339
      %v342 = vld [vmem:[%s293] sm:$0xf]
      %v343 = vld [vmem:[%s293 + $0x4] sm:$0xf]
      %v344 = vld [vmem:[%s293 + $0x8] sm:$0xf]
      %v345 = vld [vmem:[%s293 + $0xc] sm:$0xf]
      %v350 = vunpack.c.l.b16 %v342
      %v351 = vunpack.c.l.b16 %v343
      %v352 = vunpack.c.l.b16 %v344
      %v353 = vunpack.c.l.b16 %v345
      %v354 = vpack.c.b16 %v351, %v350
      %v355 = vpack.c.b16 %v353, %v352
      %vm356 = vcmask 130048
      %v358 = vsel %vm356, %v354, 0
      %v361 = vsel %vm356, %v355, 0
      %363 = vmatprep.subr.bf16.mxu0 0
      %364 = vmatpush1.bf16.msra.mxu0 0
      %365 = vmatprep.subr.bf16.mxu0 0
      %366 = vmatpush1.bf16.msra.mxu0 0
      %367 = vmatprep.subr.bf16.mxu0 0
      %368 = vmatpush1.bf16.msra.mxu0 0
      %369 = vmatprep.subr.bf16.mxu0 0
      %370 = vmatpush1.bf16.msra.mxu0 0
      %371 = vmatprep.subr.bf16.mxu0 0
      %372 = vmatpush1.bf16.msra.mxu0 0
      %373 = vmatprep.subr.bf16.mxu0 0
      %374 = vmatpush1.bf16.msra.mxu0 0
      %375 = vmatprep.subr.bf16.mxu0 0
      %376 = vmatpush1.bf16.msra.mxu0 0
      %377 = vmatprep.subr.bf16.mxu0 0
      %378 = vmatpush1.bf16.msra.mxu0 %v341
      %379 = vmatprep.subr.bf16.mxu0 0
      %380 = vmatpush2.bf16.msra.mxu0 0
      %381 = vmatprep.subr.bf16.mxu0 0
      %382 = vmatpush2.bf16.msra.mxu0 0
      %383 = vmatprep.subr.bf16.mxu0 0
      %384 = vmatpush2.bf16.msra.mxu0 0
      %385 = vmatprep.subr.bf16.mxu0 0
      %386 = vmatpush2.bf16.msra.mxu0 0
      %387 = vmatprep.subr.bf16.mxu0 0
      %388 = vmatpush2.bf16.msra.mxu0 0
      %389 = vmatprep.subr.bf16.mxu0 0
      %390 = vmatpush2.bf16.msra.mxu0 0
      %391 = vmatprep.subr.bf16.mxu0 0
      %392 = vmatpush2.bf16.msra.mxu0 0
      %393 = vmatprep.subr.bf16.mxu0 0
      %394 = vmatpush2.bf16.msra.mxu0 0
      %395 = vmatprep.mubr.bf16.mxu0 0
      %396 = vmatmul.mubr.bf16.gmra.mxu0 %v358
      %v397 = vpop.f32.mrf.mxu0
      %v398 = vadd.f32 0.0, %v397
      %v399 = vpop.f32.mrf.mxu0
      %v400 = vpop.f32.mrf.mxu0
      %v401 = vadd.f32 0.0, %v400
      %v402 = vpop.f32.mrf.mxu0
      %403 = vmatprep.mubr.bf16.mxu0 0
      %404 = vmatmul.mubr.bf16.gmra.mxu0 %v361
      %v405 = vpop.f32.mrf.mxu0
      %v406 = vadd.f32 0.0, %v405
      %v407 = vpop.f32.mrf.mxu0
      %v408 = vpop.f32.mrf.mxu0
      %v409 = vadd.f32 0.0, %v408
      %v410 = vpop.f32.mrf.mxu0
      %411 = vdwg.mxu0
      %v412 = vld [vmem:[%s300] sm:$0x7]
      %v413 = vld [vmem:[%s3] sm:$0xff]
      %v414 = vld [vmem:[%s3 + $0x8] sm:$0xff]
      %v415 = vld [vmem:[%s3 + $0x10] sm:$0xff]
      %v416 = vld [vmem:[%s3 + $0x18] sm:$0xff]
      %418 = vset.pattern.permute.xlu0 0
      %419 = vperm.xlu0 %418, %v413
      %v420 = vpop.permute.xlu0 %419
      %423 = vset.pattern.permute.xlu0 0
      %424 = vperm.xlu0 %423, %v414
      %v425 = vpop.permute.xlu0 %424
      %428 = vset.pattern.permute.xlu0 0
      %429 = vperm.xlu0 %428, %v415
      %v430 = vpop.permute.xlu0 %429
      %433 = vset.pattern.permute.xlu0 0
      %434 = vperm.xlu0 %433, %v416
      %v435 = vpop.permute.xlu0 %434
      %v437 = vlaneseq
      %v438 = vshrl.u32 %v437, 7
      %v439 = vsub.s32 0, %v438
      %v440 = vrot.slane %v412, %v439
      %v441 = vmul.f32 %v420, %v440
      %v442 = vmul.f32 %v425, %v440
      %v443 = vmul.f32 %v430, %v440
      %v444 = vmul.f32 %v435, %v440
      %s445 = scalar_lea.vmem %s3, 32
      %v446 = vld [vmem:[%s445] sm:$0xff]
      %v447 = vld [vmem:[%s445 + $0x8] sm:$0xff]
      %v448 = vld [vmem:[%s445 + $0x10] sm:$0xff]
      %v449 = vld [vmem:[%s445 + $0x18] sm:$0xff]
      %451 = vset.pattern.permute.xlu0 0
      %452 = vperm.xlu0 %451, %v446
      %v453 = vpop.permute.xlu0 %452
      %456 = vset.pattern.permute.xlu0 0
      %457 = vperm.xlu0 %456, %v447
      %v458 = vpop.permute.xlu0 %457
      %461 = vset.pattern.permute.xlu0 0
      %462 = vperm.xlu0 %461, %v448
      %v463 = vpop.permute.xlu0 %462
      %466 = vset.pattern.permute.xlu0 0
      %467 = vperm.xlu0 %466, %v449
      %v468 = vpop.permute.xlu0 %467
      %v470 = vlaneseq
      %v471 = vshrl.u32 %v470, 7
      %v472 = vsub.s32 1, %v471
      %v473 = vrot.slane %v412, %v472
      %v474 = vmul.f32 %v453, %v473
      %v475 = vmul.f32 %v458, %v473
      %v476 = vmul.f32 %v463, %v473
      %v477 = vmul.f32 %v468, %v473
      %v478 = vadd.f32 %v441, %v474
      %v479 = vadd.f32 %v442, %v475
      %v480 = vadd.f32 %v443, %v476
      %v481 = vadd.f32 %v444, %v477
      %s482 = scalar_lea.vmem %s3, 64
      %v483 = vld [vmem:[%s482] sm:$0xff]
      %v484 = vld [vmem:[%s482 + $0x8] sm:$0xff]
      %v485 = vld [vmem:[%s482 + $0x10] sm:$0xff]
      %v486 = vld [vmem:[%s482 + $0x18] sm:$0xff]
      %488 = vset.pattern.permute.xlu0 0
      %489 = vperm.xlu0 %488, %v483
      %v490 = vpop.permute.xlu0 %489
      %493 = vset.pattern.permute.xlu0 0
      %494 = vperm.xlu0 %493, %v484
      %v495 = vpop.permute.xlu0 %494
      %498 = vset.pattern.permute.xlu0 0
      %499 = vperm.xlu0 %498, %v485
      %v500 = vpop.permute.xlu0 %499
      %503 = vset.pattern.permute.xlu0 0
      %504 = vperm.xlu0 %503, %v486
      %v505 = vpop.permute.xlu0 %504
      %v507 = vlaneseq
      %v508 = vshrl.u32 %v507, 7
      %v509 = vsub.s32 2, %v508
      %v510 = vrot.slane %v412, %v509
      %v511 = vmul.f32 %v490, %v510
      %v512 = vmul.f32 %v495, %v510
      %v513 = vmul.f32 %v500, %v510
      %v514 = vmul.f32 %v505, %v510
      %v515 = vadd.f32 %v478, %v511
      %v516 = vadd.f32 %v479, %v512
      %v517 = vadd.f32 %v480, %v513
      %v518 = vadd.f32 %v481, %v514
      %v519 = vsub.f32 %v398, %v515
      %v520 = vsub.f32 %v401, %v516
      %v521 = vsub.f32 %v406, %v517
      %v522 = vsub.f32 %v409, %v518
      %v523 = vld [vmem:[%s4] sm:$0xff]
      %v524 = vld [vmem:[%s4 + $0x8] sm:$0xff]
      %v525 = vld [vmem:[%s4 + $0x10] sm:$0xff]
      %v526 = vld [vmem:[%s4 + $0x18] sm:$0xff]
      %528 = vset.pattern.permute.xlu0 0
      %529 = vperm.xlu0 %528, %v523
      %v530 = vpop.permute.xlu0 %529
      %533 = vset.pattern.permute.xlu0 0
      %534 = vperm.xlu0 %533, %v524
      %v535 = vpop.permute.xlu0 %534
      %538 = vset.pattern.permute.xlu0 0
      %539 = vperm.xlu0 %538, %v525
      %v540 = vpop.permute.xlu0 %539
      %543 = vset.pattern.permute.xlu0 0
      %544 = vperm.xlu0 %543, %v526
      %v545 = vpop.permute.xlu0 %544
      %v547 = vadd.f32 %v519, %v530
      %v548 = vadd.f32 %v520, %v535
      %v549 = vadd.f32 %v521, %v540
      %v550 = vadd.f32 %v522, %v545
      %v551 = vmax.f32 %v547, 0.0
      %v552 = vmax.f32 %v548, 0.0
      %v553 = vmax.f32 %v549, 0.0
      %v554 = vmax.f32 %v550, 0.0
      %v555 = vld [vmem:[#allocation2] sm:$0xff]
      %v556 = vld [vmem:[#allocation2 + $0x8] sm:$0xff]
      %v557 = vld [vmem:[#allocation2 + $0x10] sm:$0xff]
      %v558 = vld [vmem:[#allocation2 + $0x18] sm:$0xff]
      %v559 = vmax.f32 %v555, %v551
      %v560 = vmax.f32 %v556, %v552
      %v561 = vmax.f32 %v557, %v553
      %v562 = vmax.f32 %v558, %v554
      %vm563 = vcmask 31744
      %564 = vst.msk [vmem:[#allocation2] sm:$0xff] %vm563, %v559
      %565 = vst.msk [vmem:[#allocation2 + $0x8] sm:$0xff] %vm563, %v560
      %566 = vst.msk [vmem:[#allocation2 + $0x10] sm:$0xff] %vm563, %v561
      %567 = vst.msk [vmem:[#allocation2 + $0x18] sm:$0xff] %vm563, %v562
      %p568 = scmp.eq.s32.totalorder %s23, 7
      // Predicated region
      $region45: #{_lambda_.22} parent=39 // pred_check
        %p569 = pneg %p568
      $region46: #{_lambda_.22} parent=39 // pred_check_branch
        %571 = sbr.rel (%p569) target = $region48
      $region47: #{_lambda_.22} parent=39 // pred_region
        %v572 = vld [vmem:[#allocation2] sm:$0xff]
        %v573 = vld [vmem:[#allocation2 + $0x8] sm:$0xff]
        %v574 = vld [vmem:[#allocation2 + $0x10] sm:$0xff]
        %v575 = vld [vmem:[#allocation2 + $0x18] sm:$0xff]
        %v576 = vpack.c.bf16 %v573, %v572
        %v577 = vpack.c.bf16 %v575, %v574
        %v580 = vunpack.c.l.b16 %v576
        %v581 = vunpack.c.h.b16 %v576
        %v582 = vunpack.c.l.b16 %v577
        %v583 = vunpack.c.h.b16 %v577
        %v584 = vpack.c.b16 %v580, %v580
        %v585 = vpack.c.b16 %v581, %v581
        %v586 = vpack.c.b16 %v582, %v582
        %v587 = vpack.c.b16 %v583, %v583
        %vm592 = vcmask 27648
        %593 = vst.msk [vmem:[%s318] sm:$0xf] %vm592, %v584
        %594 = vst.msk [vmem:[%s318 + $0x4] sm:$0xf] %vm592, %v585
        %595 = vst.msk [vmem:[%s318 + $0x8] sm:$0xf] %vm592, %v586
        %596 = vst.msk [vmem:[%s318 + $0xc] sm:$0xf] %vm592, %v587
      $region48: #{_lambda_.22} parent=39 // pred_fallthru
        _
      %p597 = scmp.lt.s32.totalorder %s21, 1
      %s598 = scalar_select %p597, %s21, 1
      %p599 = scmp.lt.s32.totalorder %s22, 0
      %s600 = scalar_select %p599, %s22, 0
      %s601 = smul.addr %s598, 4
      %s602 = sadd.s32 %s600, %s601
      %s603 = smul.addr %s602, 4
      %s604 = scalar_lea.vmem %s5, %s603
      // Predicated region
      $region49: #{_lambda_.22} parent=39 // pred_check
        %p605 = pneg %p181
      $region50: #{_lambda_.22} parent=39 // pred_check_branch
        %607 = sbr.rel (%p605) target = $region52
      $region51: #{_lambda_.22} parent=39 // pred_region
        _
      $region52: #{_lambda_.22} parent=39 // pred_fallthru
        _
    $region40: #{_lambda_.22} parent=5 // pred_fallthru
      _
    %p608 = scmp.le.s32.totalorder 2, %s11
    // Predicated region
    $region53: #{_lambda_.22} parent=5 // pred_check
      %p609 = pneg %p608
    $region54: #{_lambda_.22} parent=5 // pred_check_branch
      %611 = sbr.rel (%p609) target = $region56
    $region55: #{_lambda_.22} parent=5 // pred_region
      %s612 = ssub.s32 %s11, 2
      // Predicated region
      $region57: #{_lambda_.22} parent=55 // pred_check
        %p613 = pneg %p187
      $region58: #{_lambda_.22} parent=55 // pred_check_branch
        %615 = sbr.rel (%p613) target = $region60
      $region59: #{_lambda_.22} parent=55 // pred_region
        %p616 = scmp.lt.s32.totalorder %s24, 1
        %s617 = scalar_select %p616, %s24, 1
        %p618 = scmp.lt.s32.totalorder %s25, 0
        %s619 = scalar_select %p618, %s25, 0
        %s620 = smul.addr %s617, 4
        %s621 = sadd.s32 %s619, %s620
        %s622 = smul.addr %s621, 4
        %s623 = scalar_lea.vmem %s5, %s622
      $region60: #{_lambda_.22} parent=55 // pred_fallthru
        _
    $region56: #{_lambda_.22} parent=5 // pred_fallthru
      _
  $region6: #{_lambda_.22} parent=0 // loop_footer
    %s15 = sadd.s32 1, %s11
  $region7: #{_lambda_.22} parent=0 // loop_footer_branch
    %10 = sbr.rel target = $region3
  $region8: #{_lambda_.22} parent=0 // loop_exit
    _

// kernel: _lambda_.23
$region0: #{_lambda_.23}
  #allocation0 [shape = 'u32[]', space=smem, size = 0x4, offset = 0x4, fixed_abs, tag = 'smem constant byte address 0x4 - core index']
  #allocation1 [shape = 'u32[144,128]{1,0:T(1,128)}', space=vmem, size = 0x12000, scoped, tag = 'internal scratch']
  %s0 = inlined_call_operand.vmem [shape: bf16[2,35,4], index: 0, kind: input, shape index: {}]
  %s1 = inlined_call_operand.vmem [shape: f32[32,35], index: 1, kind: input, shape index: {}]
  %s2 = inlined_call_operand.vmem [shape: f32[32,1], index: 2, kind: input, shape index: {}]
  %s3 = inlined_call_operand.vmem [shape: bf16[2,32,4], index: 3, kind: output, shape index: {}]
  %s4 = sld [smem:[#allocation0]]
  $region45: #{_lambda_.23} parent=0
    _
  %s6 = ssub.s32 1, %s4
  %s7 = scalar_select 0, %s6, %s4
  loop: start=0, step=1, limit=4
  $region2: #{_lambda_.23} parent=0 // loop_pre_header
    _
  $region3: #{_lambda_.23} parent=0 // loop_header
    %s9 = sphi 0, %s13
    %p10 = scmp.ge.s32.totalorder %s9, 4
    %s16 = sphi 0, %s28
    %s17 = sphi 0, %s24
    %s18 = sphi 0, %s16
    %s19 = sphi 0, %s17
    %s20 = sphi 0, %s18
    %s21 = sphi 0, %s19
    %s33 = sphi 0, %s35
    %s36 = sphi 0, %s33
    %s37 = sphi 0, %s36
    %s53 = sphi 0, %s37
    %s57 = sphi 0, %s57
    %s59 = sphi 0, %s57
    %s60 = sphi 0, %s59
    %s74 = sphi 0, %s60
    %s78 = sphi 0, %s78
    %s80 = sphi 0, %s78
    %s81 = sphi 0, %s80
    %s95 = sphi 0, %s81
    %s103 = sphi 0, %s105
    %s106 = sphi 0, %s103
    %s107 = sphi 0, %s106
    %s123 = sphi 0, %s107
  $region4: #{_lambda_.23} parent=0 // loop_header_branch
    %12 = sbr.rel (%p10) target = $region8
  $region5: #{_lambda_.23} parent=0 // loop_body
    %s14 = ssub.s32 %s9, 1
    %s15 = ssub.s32 %s9, 2
    %s22 = sadd.s32 1, %s17
    %p23 = scmp.ge.s32.totalorder %s22, 1
    %s24 = scalar_select %p23, 0, %s22
    %s25 = sadd.s32 1, %s16
    %s26 = scalar_select %p23, %s25, %s16
    %p27 = scmp.ge.s32.totalorder %s26, 2
    %s28 = scalar_select %p27, 0, %s26
    %s29 = ssub.s32 %s16, %s28
    %s30 = ssub.s32 %s17, %s24
    %s31 = sor.u32 %s29, %s30
    %p32 = scmp.eq.s32.totalorder %s31, 0
    %s34 = sadd.s32 %s33, 1
    %s35 = scalar_select %p32, %s33, %s34
    %p38 = pneg %p32
    %p39 = scmp.eq.s32.totalorder %s9, 1
    %p40 = por %p38, %p39
    %p41 = scmp.ne.s32.totalorder %s33, %s36
    %p42 = scmp.eq.s32.totalorder %s9, 0
    %p43 = por %p41, %p42
    %p44 = scmp.ne.s32.totalorder %s33, %s36
    %p45 = scmp.eq.s32.totalorder %s14, 1
    %p46 = por %p44, %p45
    %p47 = scmp.ne.s32.totalorder %s36, %s37
    %p48 = scmp.eq.s32.totalorder %s14, 0
    %p49 = por %p47, %p48
    %p50 = scmp.ne.s32.totalorder %s36, %s37
    %p51 = scmp.eq.s32.totalorder %s15, 1
    %p52 = por %p50, %p51
    %p54 = scmp.ne.s32.totalorder %s37, %s53
    %p55 = scmp.eq.s32.totalorder %s15, 0
    %p56 = por %p54, %p55
    %s58 = sadd.s32 %s57, 1
    %p61 = scmp.eq.s32.totalorder %s9, 1
    %p62 = scmp.ne.s32.totalorder %s57, %s59
    %p63 = scmp.eq.s32.totalorder %s9, 0
    %p64 = por %p62, %p63
    %p65 = scmp.ne.s32.totalorder %s57, %s59
    %p66 = scmp.eq.s32.totalorder %s14, 1
    %p67 = por %p65, %p66
    %p68 = scmp.ne.s32.totalorder %s59, %s60
    %p69 = scmp.eq.s32.totalorder %s14, 0
    %p70 = por %p68, %p69
    %p71 = scmp.ne.s32.totalorder %s59, %s60
    %p72 = scmp.eq.s32.totalorder %s15, 1
    %p73 = por %p71, %p72
    %p75 = scmp.ne.s32.totalorder %s60, %s74
    %p76 = scmp.eq.s32.totalorder %s15, 0
    %p77 = por %p75, %p76
    %s79 = sadd.s32 %s78, 1
    %p82 = scmp.eq.s32.totalorder %s9, 1
    %p83 = scmp.ne.s32.totalorder %s78, %s80
    %p84 = scmp.eq.s32.totalorder %s9, 0
    %p85 = por %p83, %p84
    %p86 = scmp.ne.s32.totalorder %s78, %s80
    %p87 = scmp.eq.s32.totalorder %s14, 1
    %p88 = por %p86, %p87
    %p89 = scmp.ne.s32.totalorder %s80, %s81
    %p90 = scmp.eq.s32.totalorder %s14, 0
    %p91 = por %p89, %p90
    %p92 = scmp.ne.s32.totalorder %s80, %s81
    %p93 = scmp.eq.s32.totalorder %s15, 1
    %p94 = por %p92, %p93
    %p96 = scmp.ne.s32.totalorder %s81, %s95
    %p97 = scmp.eq.s32.totalorder %s15, 0
    %p98 = por %p96, %p97
    %s99 = ssub.s32 %s16, %s28
    %s100 = ssub.s32 %s17, %s24
    %s101 = sor.u32 %s99, %s100
    %p102 = scmp.eq.s32.totalorder %s101, 0
    %s104 = sadd.s32 %s103, 1
    %s105 = scalar_select %p102, %s103, %s104
    %p108 = pneg %p102
    %p109 = scmp.eq.s32.totalorder %s9, 1
    %p110 = por %p108, %p109
    %p111 = scmp.ne.s32.totalorder %s103, %s106
    %p112 = scmp.eq.s32.totalorder %s9, 0
    %p113 = por %p111, %p112
    %p114 = scmp.ne.s32.totalorder %s103, %s106
    %p115 = scmp.eq.s32.totalorder %s14, 1
    %p116 = por %p114, %p115
    %p117 = scmp.ne.s32.totalorder %s106, %s107
    %p118 = scmp.eq.s32.totalorder %s14, 0
    %p119 = por %p117, %p118
    %p120 = scmp.ne.s32.totalorder %s106, %s107
    %p121 = scmp.eq.s32.totalorder %s15, 1
    %p122 = por %p120, %p121
    %p124 = scmp.ne.s32.totalorder %s107, %s123
    %p125 = scmp.eq.s32.totalorder %s15, 0
    %p126 = por %p124, %p125
    %p127 = scmp.le.s32.totalorder 1, %s9
    %p128 = scmp.lt.s32.totalorder %s9, 3
    %p129 = pnand %p127, %p128
    %p130 = pneg %p129
    // Predicated region
    $region9: #{_lambda_.23} parent=5 // pred_check
      _
    $region10: #{_lambda_.23} parent=5 // pred_check_branch
      %132 = sbr.rel (%p129) target = $region12
    $region11: #{_lambda_.23} parent=5 // pred_region
      %s133 = ssub.s32 %s9, 1
      // Predicated region
      $region13: #{_lambda_.23} parent=11 // pred_check
        %p134 = pneg %p70
      $region14: #{_lambda_.23} parent=11 // pred_check_branch
        %136 = sbr.rel (%p134) target = $region16
      $region15: #{_lambda_.23} parent=11 // pred_region
        _
      $region16: #{_lambda_.23} parent=11 // pred_fallthru
        _
      // Predicated region
      $region17: #{_lambda_.23} parent=11 // pred_check
        %p137 = pneg %p91
      $region18: #{_lambda_.23} parent=11 // pred_check_branch
        %139 = sbr.rel (%p137) target = $region20
      $region19: #{_lambda_.23} parent=11 // pred_region
        _
      $region20: #{_lambda_.23} parent=11 // pred_fallthru
        _
    $region12: #{_lambda_.23} parent=5 // pred_fallthru
      _
    %p140 = scmp.lt.s32.totalorder %s9, 2
    // Predicated region
    $region21: #{_lambda_.23} parent=5 // pred_check
      %p141 = pneg %p140
    $region22: #{_lambda_.23} parent=5 // pred_check_branch
      %143 = sbr.rel (%p141) target = $region24
    $region23: #{_lambda_.23} parent=5 // pred_region
      // Predicated region
      $region25: #{_lambda_.23} parent=23 // pred_check
        %p144 = pneg %p43
      $region26: #{_lambda_.23} parent=23 // pred_check_branch
        %146 = sbr.rel (%p144) target = $region28
      $region27: #{_lambda_.23} parent=23 // pred_region
        %p147 = scmp.lt.s32.totalorder %s16, 1
        %s148 = scalar_select %p147, %s16, 1
        %p149 = scmp.lt.s32.totalorder %s17, 0
        %s150 = scalar_select %p149, %s17, 0
        %s151 = smul.addr %s148, 5
        %s152 = sadd.s32 %s150, %s151
        %s153 = smul.addr %s152, 4
        %s154 = scalar_lea.vmem %s0, %s153
      $region28: #{_lambda_.23} parent=23 // pred_fallthru
        _
    $region24: #{_lambda_.23} parent=5 // pred_fallthru
      _
    %p155 = scmp.le.s32.totalorder 1, %s9
    %p156 = scmp.lt.s32.totalorder %s9, 3
    %p157 = pnand %p155, %p156
    %p158 = pneg %p157
    // Predicated region
    $region29: #{_lambda_.23} parent=5 // pred_check
      _
    $region30: #{_lambda_.23} parent=5 // pred_check_branch
      %160 = sbr.rel (%p157) target = $region32
    $region31: #{_lambda_.23} parent=5 // pred_region
      %s161 = ssub.s32 %s9, 1
      %p162 = scmp.lt.s32.totalorder %s18, 1
      %s163 = scalar_select %p162, %s18, 1
      %p164 = scmp.lt.s32.totalorder %s19, 0
      %s165 = scalar_select %p164, %s19, 0
      %s166 = smul.addr %s163, 5
      %s167 = sadd.s32 %s165, %s166
      %s168 = smul.addr %s167, 4
      %s169 = scalar_lea.vmem %s0, %s168
      %p170 = pneg %p49
      %p171 = pneg %p46
      %p172 = pneg %p70
      %p173 = pneg %p67
      %p174 = pneg %p91
      %p175 = pneg %p88
      %p176 = pneg %p119
      %p177 = pneg %p116
      %p178 = scmp.lt.s32.totalorder %s18, 1
      %s179 = scalar_select %p178, %s18, 1
      %p180 = scmp.lt.s32.totalorder %s19, 0
      %s181 = scalar_select %p180, %s19, 0
      %s182 = smul.addr %s179, 4
      %s183 = sadd.s32 %s181, %s182
      %s184 = smul.addr %s183, 4
      %s185 = scalar_lea.vmem %s3, %s184
      %p186 = scmp.lt.s32.totalorder %s18, 1
      %s187 = scalar_select %p186, %s18, 1
      %p188 = scmp.lt.s32.totalorder %s19, 0
      %s189 = scalar_select %p188, %s19, 0
      %s190 = smul.addr %s187, 5
      %s191 = sadd.s32 %s189, %s190
      %s192 = smul.addr %s191, 4
      %s193 = scalar_lea.vmem %s0, %s192
      %p194 = scmp.lt.s32.totalorder %s18, 1
      %s195 = scalar_select %p194, %s18, 1
      %p196 = scmp.lt.s32.totalorder %s19, 0
      %s197 = scalar_select %p196, %s19, 0
      %s198 = smul.addr %s195, 4
      %s199 = sadd.s32 %s197, %s198
      %s200 = smul.addr %s199, 4
      %s201 = scalar_lea.vmem %s3, %s200
      %v203 = vld [vmem:[%s193] sm:$0xf]
      %v204 = vld [vmem:[%s193 + $0x4] sm:$0xf]
      %v205 = vld [vmem:[%s193 + $0x8] sm:$0xf]
      %v206 = vld [vmem:[%s193 + $0xc] sm:$0xf]
      %v207 = vld [vmem:[%s193 + $0x10] sm:$0x3]
      %v208 = vld [vmem:[%s1] sm:$0xff]
      %v209 = vld [vmem:[%s1 + $0x8] sm:$0xff]
      %v210 = vld [vmem:[%s1 + $0x10] sm:$0xff]
      %v211 = vld [vmem:[%s1 + $0x18] sm:$0xff]
      %v212 = vpack.c.bf16 %v209, %v208
      %v213 = vpack.c.bf16 %v211, %v210
      %v214 = vld [vmem:[%s2] sm:$0xff]
      %v215 = vld [vmem:[%s2 + $0x8] sm:$0xff]
      %v216 = vld [vmem:[%s2 + $0x10] sm:$0xff]
      %v217 = vld [vmem:[%s2 + $0x18] sm:$0xff]
      %219 = vset.pattern.permute.xlu0 0
      %220 = vperm.xlu0 %219, %v214
      %v221 = vpop.permute.xlu0 %220
      %224 = vset.pattern.permute.xlu0 0
      %225 = vperm.xlu0 %224, %v215
      %v226 = vpop.permute.xlu0 %225
      %229 = vset.pattern.permute.xlu0 0
      %230 = vperm.xlu0 %229, %v216
      %v231 = vpop.permute.xlu0 %230
      %234 = vset.pattern.permute.xlu0 0
      %235 = vperm.xlu0 %234, %v217
      %v236 = vpop.permute.xlu0 %235
      %v243 = vunpack.c.l.b16 %v203
      %v244 = vunpack.c.l.b16 %v204
      %v245 = vunpack.c.l.b16 %v205
      %v246 = vunpack.c.l.b16 %v206
      %v247 = vunpack.c.l.b16 %v207
      %v248 = vpack.c.b16 %v244, %v243
      %v249 = vpack.c.b16 %v246, %v245
      %v250 = vpack.c.b16 %v247, %v247
      %vm253 = vcmask 285696
      %v255 = vsel %vm253, %v212, 0
      %v258 = vsel %vm253, %v213, 0
      %vm260 = vcmask 1040384
      %vm261 = vcmask 1041408
      %v262 = vsel %vm260, 4294967295, 65535
      %v263 = vsel %vm261, %v262, 0
      %v265 = vand.u32 %v250, %v263
      %267 = vmatprep.subr.bf16.mxu0 0
      %268 = vmatpush1.bf16.msra.mxu0 0
      %269 = vmatprep.subr.bf16.mxu0 0
      %270 = vmatpush1.bf16.msra.mxu0 0
      %271 = vmatprep.subr.bf16.mxu0 0
      %272 = vmatpush1.bf16.msra.mxu0 0
      %273 = vmatprep.subr.bf16.mxu0 0
      %274 = vmatpush1.bf16.msra.mxu0 0
      %275 = vmatprep.subr.bf16.mxu0 0
      %276 = vmatpush1.bf16.msra.mxu0 0
      %277 = vmatprep.subr.bf16.mxu0 0
      %278 = vmatpush1.bf16.msra.mxu0 %v265
      %279 = vmatprep.subr.bf16.mxu0 0
      %280 = vmatpush1.bf16.msra.mxu0 %v249
      %281 = vmatprep.subr.bf16.mxu0 0
      %282 = vmatpush1.bf16.msra.mxu0 %v248
      %283 = vmatprep.subr.bf16.mxu0 0
      %284 = vmatpush2.bf16.msra.mxu0 0
      %285 = vmatprep.subr.bf16.mxu0 0
      %286 = vmatpush2.bf16.msra.mxu0 0
      %287 = vmatprep.subr.bf16.mxu0 0
      %288 = vmatpush2.bf16.msra.mxu0 0
      %289 = vmatprep.subr.bf16.mxu0 0
      %290 = vmatpush2.bf16.msra.mxu0 0
      %291 = vmatprep.subr.bf16.mxu0 0
      %292 = vmatpush2.bf16.msra.mxu0 0
      %293 = vmatprep.subr.bf16.mxu0 0
      %294 = vmatpush2.bf16.msra.mxu0 0
      %295 = vmatprep.subr.bf16.mxu0 0
      %296 = vmatpush2.bf16.msra.mxu0 0
      %297 = vmatprep.subr.bf16.mxu0 0
      %298 = vmatpush2.bf16.msra.mxu0 0
      %299 = vmatprep.mubr.bf16.mxu0 0
      %300 = vmatmul.mubr.bf16.gmra.mxu0 %v255
      %v301 = vpop.f32.mrf.mxu0
      %v302 = vadd.f32 %v221, %v301
      %v303 = vpop.f32.mrf.mxu0
      %v304 = vpop.f32.mrf.mxu0
      %v305 = vadd.f32 %v226, %v304
      %v306 = vpop.f32.mrf.mxu0
      %307 = vmatprep.mubr.bf16.mxu0 0
      %308 = vmatmul.mubr.bf16.gmra.mxu0 %v258
      %v309 = vpop.f32.mrf.mxu0
      %v310 = vadd.f32 %v231, %v309
      %v311 = vpop.f32.mrf.mxu0
      %v312 = vpop.f32.mrf.mxu0
      %v313 = vadd.f32 %v236, %v312
      %v314 = vpop.f32.mrf.mxu0
      %315 = vdwg.mxu0
      %v316 = vpack.c.bf16 %v305, %v302
      %v317 = vpack.c.bf16 %v313, %v310
      %v320 = vunpack.c.l.b16 %v316
      %v321 = vunpack.c.h.b16 %v316
      %v322 = vunpack.c.l.b16 %v317
      %v323 = vunpack.c.h.b16 %v317
      %v324 = vpack.c.b16 %v320, %v320
      %v325 = vpack.c.b16 %v321, %v321
      %v326 = vpack.c.b16 %v322, %v322
      %v327 = vpack.c.b16 %v323, %v323
      %vm332 = vcmask 27648
      %333 = vst.msk [vmem:[%s201] sm:$0xf] %vm332, %v324
      %334 = vst.msk [vmem:[%s201 + $0x4] sm:$0xf] %vm332, %v325
      %335 = vst.msk [vmem:[%s201 + $0x8] sm:$0xf] %vm332, %v326
      %336 = vst.msk [vmem:[%s201 + $0xc] sm:$0xf] %vm332, %v327
      %p337 = scmp.lt.s32.totalorder %s18, 1
      %s338 = scalar_select %p337, %s18, 1
      %p339 = scmp.lt.s32.totalorder %s19, 0
      %s340 = scalar_select %p339, %s19, 0
      %s341 = smul.addr %s338, 4
      %s342 = sadd.s32 %s340, %s341
      %s343 = smul.addr %s342, 4
      %s344 = scalar_lea.vmem %s3, %s343
      // Predicated region
      $region33: #{_lambda_.23} parent=31 // pred_check
        %p345 = pneg %p116
      $region34: #{_lambda_.23} parent=31 // pred_check_branch
        %347 = sbr.rel (%p345) target = $region36
      $region35: #{_lambda_.23} parent=31 // pred_region
        _
      $region36: #{_lambda_.23} parent=31 // pred_fallthru
        _
    $region32: #{_lambda_.23} parent=5 // pred_fallthru
      _
    %p348 = scmp.le.s32.totalorder 2, %s9
    // Predicated region
    $region37: #{_lambda_.23} parent=5 // pred_check
      %p349 = pneg %p348
    $region38: #{_lambda_.23} parent=5 // pred_check_branch
      %351 = sbr.rel (%p349) target = $region40
    $region39: #{_lambda_.23} parent=5 // pred_region
      %s352 = ssub.s32 %s9, 2
      // Predicated region
      $region41: #{_lambda_.23} parent=39 // pred_check
        %p353 = pneg %p122
      $region42: #{_lambda_.23} parent=39 // pred_check_branch
        %355 = sbr.rel (%p353) target = $region44
      $region43: #{_lambda_.23} parent=39 // pred_region
        %p356 = scmp.lt.s32.totalorder %s20, 1
        %s357 = scalar_select %p356, %s20, 1
        %p358 = scmp.lt.s32.totalorder %s21, 0
        %s359 = scalar_select %p358, %s21, 0
        %s360 = smul.addr %s357, 4
        %s361 = sadd.s32 %s359, %s360
        %s362 = smul.addr %s361, 4
        %s363 = scalar_lea.vmem %s3, %s362
      $region44: #{_lambda_.23} parent=39 // pred_fallthru
        _
    $region40: #{_lambda_.23} parent=5 // pred_fallthru
      _
  $region6: #{_lambda_.23} parent=0 // loop_footer
    %s13 = sadd.s32 1, %s9
  $region7: #{_lambda_.23} parent=0 // loop_footer_branch
    %8 = sbr.rel target = $region3
  $region8: #{_lambda_.23} parent=0 // loop_exit
    _

// kernel: _lambda_.24
$region0: #{_lambda_.24}
  #allocation0 [shape = 'u32[]', space=smem, size = 0x4, offset = 0x4, fixed_abs, tag = 'smem constant byte address 0x4 - core index']
  #allocation1 [shape = 'u32[144,128]{1,0:T(1,128)}', space=vmem, size = 0x12000, scoped, tag = 'internal scratch']
  #allocation2 [shape = 'f32[32,4]{1,0:T(8,128)}', space=vmem, size = 0x4000, scoped, tag = 'scratch operand']
  %s0 = inlined_call_operand.vmem [shape: bf16[2,32,4], index: 0, kind: input, shape index: {}]
  %s1 = inlined_call_operand.vmem [shape: f32[2,3,4], index: 1, kind: input, shape index: {}]
  %s2 = inlined_call_operand.vmem [shape: s32[2,8,1,4], index: 2, kind: input, shape index: {}]
  %s3 = inlined_call_operand.vmem [shape: f32[3,32,1], index: 3, kind: input, shape index: {}]
  %s4 = inlined_call_operand.vmem [shape: f32[32,1], index: 4, kind: input, shape index: {}]
  %s5 = inlined_call_operand.vmem [shape: bf16[2,32,4], index: 5, kind: output, shape index: {}]
  %s6 = sld [smem:[#allocation0]]
  $region61: #{_lambda_.24} parent=0
    _
  %s8 = ssub.s32 1, %s6
  %s9 = scalar_select 0, %s8, %s6
  loop: start=0, step=1, limit=18
  $region2: #{_lambda_.24} parent=0 // loop_pre_header
    _
  $region3: #{_lambda_.24} parent=0 // loop_header
    %s11 = sphi 0, %s15
    %p12 = scmp.ge.s32.totalorder %s11, 18
    %s18 = sphi 0, %s37
    %s19 = sphi 0, %s33
    %s20 = sphi 0, %s29
    %s21 = sphi 0, %s18
    %s22 = sphi 0, %s19
    %s23 = sphi 0, %s20
    %s24 = sphi 0, %s21
    %s25 = sphi 0, %s22
    %s26 = sphi 0, %s23
    %s40 = sphi 0, %s42
    %s43 = sphi 0, %s40
    %s44 = sphi 0, %s43
    %s60 = sphi 0, %s44
    %s68 = sphi 0, %s70
    %s71 = sphi 0, %s68
    %s72 = sphi 0, %s71
    %s88 = sphi 0, %s72
    %s98 = sphi 0, %s100
    %s101 = sphi 0, %s98
    %s102 = sphi 0, %s101
    %s118 = sphi 0, %s102
    %s122 = sphi 0, %s122
    %s124 = sphi 0, %s122
    %s125 = sphi 0, %s124
    %s139 = sphi 0, %s125
    %s143 = sphi 0, %s143
    %s145 = sphi 0, %s143
    %s146 = sphi 0, %s145
    %s160 = sphi 0, %s146
    %s168 = sphi 0, %s170
    %s171 = sphi 0, %s168
    %s172 = sphi 0, %s171
    %s188 = sphi 0, %s172
  $region4: #{_lambda_.24} parent=0 // loop_header_branch
    %14 = sbr.rel (%p12) target = $region8
  $region5: #{_lambda_.24} parent=0 // loop_body
    %s16 = ssub.s32 %s11, 1
    %s17 = ssub.s32 %s11, 2
    %s27 = sadd.s32 1, %s20
    %p28 = scmp.ge.s32.totalorder %s27, 8
    %s29 = scalar_select %p28, 0, %s27
    %s30 = sadd.s32 1, %s19
    %s31 = scalar_select %p28, %s30, %s19
    %p32 = scmp.ge.s32.totalorder %s31, 1
    %s33 = scalar_select %p32, 0, %s31
    %s34 = sadd.s32 1, %s18
    %s35 = scalar_select %p32, %s34, %s18
    %p36 = scmp.ge.s32.totalorder %s35, 2
    %s37 = scalar_select %p36, 0, %s35
    %s38 = ssub.s32 %s18, %s37
    %p39 = scmp.eq.s32.totalorder %s38, 0
    %s41 = sadd.s32 %s40, 1
    %s42 = scalar_select %p39, %s40, %s41
    %p45 = pneg %p39
    %p46 = scmp.eq.s32.totalorder %s11, 15
    %p47 = por %p45, %p46
    %p48 = scmp.ne.s32.totalorder %s40, %s43
    %p49 = scmp.eq.s32.totalorder %s11, 0
    %p50 = por %p48, %p49
    %p51 = scmp.ne.s32.totalorder %s40, %s43
    %p52 = scmp.eq.s32.totalorder %s16, 15
    %p53 = por %p51, %p52
    %p54 = scmp.ne.s32.totalorder %s43, %s44
    %p55 = scmp.eq.s32.totalorder %s16, 0
    %p56 = por %p54, %p55
    %p57 = scmp.ne.s32.totalorder %s43, %s44
    %p58 = scmp.eq.s32.totalorder %s17, 15
    %p59 = por %p57, %p58
    %p61 = scmp.ne.s32.totalorder %s44, %s60
    %p62 = scmp.eq.s32.totalorder %s17, 0
    %p63 = por %p61, %p62
    %s64 = ssub.s32 %s18, %s37
    %s65 = ssub.s32 %s19, %s33
    %s66 = sor.u32 %s64, %s65
    %p67 = scmp.eq.s32.totalorder %s66, 0
    %s69 = sadd.s32 %s68, 1
    %s70 = scalar_select %p67, %s68, %s69
    %p73 = pneg %p67
    %p74 = scmp.eq.s32.totalorder %s11, 15
    %p75 = por %p73, %p74
    %p76 = scmp.ne.s32.totalorder %s68, %s71
    %p77 = scmp.eq.s32.totalorder %s11, 0
    %p78 = por %p76, %p77
    %p79 = scmp.ne.s32.totalorder %s68, %s71
    %p80 = scmp.eq.s32.totalorder %s16, 15
    %p81 = por %p79, %p80
    %p82 = scmp.ne.s32.totalorder %s71, %s72
    %p83 = scmp.eq.s32.totalorder %s16, 0
    %p84 = por %p82, %p83
    %p85 = scmp.ne.s32.totalorder %s71, %s72
    %p86 = scmp.eq.s32.totalorder %s17, 15
    %p87 = por %p85, %p86
    %p89 = scmp.ne.s32.totalorder %s72, %s88
    %p90 = scmp.eq.s32.totalorder %s17, 0
    %p91 = por %p89, %p90
    %s92 = ssub.s32 %s18, %s37
    %s93 = ssub.s32 %s20, %s29
    %s94 = sor.u32 %s92, %s93
    %s95 = ssub.s32 %s19, %s33
    %s96 = sor.u32 %s94, %s95
    %p97 = scmp.eq.s32.totalorder %s96, 0
    %s99 = sadd.s32 %s98, 1
    %s100 = scalar_select %p97, %s98, %s99
    %p103 = pneg %p97
    %p104 = scmp.eq.s32.totalorder %s11, 15
    %p105 = por %p103, %p104
    %p106 = scmp.ne.s32.totalorder %s98, %s101
    %p107 = scmp.eq.s32.totalorder %s11, 0
    %p108 = por %p106, %p107
    %p109 = scmp.ne.s32.totalorder %s98, %s101
    %p110 = scmp.eq.s32.totalorder %s16, 15
    %p111 = por %p109, %p110
    %p112 = scmp.ne.s32.totalorder %s101, %s102
    %p113 = scmp.eq.s32.totalorder %s16, 0
    %p114 = por %p112, %p113
    %p115 = scmp.ne.s32.totalorder %s101, %s102
    %p116 = scmp.eq.s32.totalorder %s17, 15
    %p117 = por %p115, %p116
    %p119 = scmp.ne.s32.totalorder %s102, %s118
    %p120 = scmp.eq.s32.totalorder %s17, 0
    %p121 = por %p119, %p120
    %s123 = sadd.s32 %s122, 1
    %p126 = scmp.eq.s32.totalorder %s11, 15
    %p127 = scmp.ne.s32.totalorder %s122, %s124
    %p128 = scmp.eq.s32.totalorder %s11, 0
    %p129 = por %p127, %p128
    %p130 = scmp.ne.s32.totalorder %s122, %s124
    %p131 = scmp.eq.s32.totalorder %s16, 15
    %p132 = por %p130, %p131
    %p133 = scmp.ne.s32.totalorder %s124, %s125
    %p134 = scmp.eq.s32.totalorder %s16, 0
    %p135 = por %p133, %p134
    %p136 = scmp.ne.s32.totalorder %s124, %s125
    %p137 = scmp.eq.s32.totalorder %s17, 15
    %p138 = por %p136, %p137
    %p140 = scmp.ne.s32.totalorder %s125, %s139
    %p141 = scmp.eq.s32.totalorder %s17, 0
    %p142 = por %p140, %p141
    %s144 = sadd.s32 %s143, 1
    %p147 = scmp.eq.s32.totalorder %s11, 15
    %p148 = scmp.ne.s32.totalorder %s143, %s145
    %p149 = scmp.eq.s32.totalorder %s11, 0
    %p150 = por %p148, %p149
    %p151 = scmp.ne.s32.totalorder %s143, %s145
    %p152 = scmp.eq.s32.totalorder %s16, 15
    %p153 = por %p151, %p152
    %p154 = scmp.ne.s32.totalorder %s145, %s146
    %p155 = scmp.eq.s32.totalorder %s16, 0
    %p156 = por %p154, %p155
    %p157 = scmp.ne.s32.totalorder %s145, %s146
    %p158 = scmp.eq.s32.totalorder %s17, 15
    %p159 = por %p157, %p158
    %p161 = scmp.ne.s32.totalorder %s146, %s160
    %p162 = scmp.eq.s32.totalorder %s17, 0
    %p163 = por %p161, %p162
    %s164 = ssub.s32 %s18, %s37
    %s165 = ssub.s32 %s19, %s33
    %s166 = sor.u32 %s164, %s165
    %p167 = scmp.eq.s32.totalorder %s166, 0
    %s169 = sadd.s32 %s168, 1
    %s170 = scalar_select %p167, %s168, %s169
    %p173 = pneg %p167
    %p174 = scmp.eq.s32.totalorder %s11, 15
    %p175 = por %p173, %p174
    %p176 = scmp.ne.s32.totalorder %s168, %s171
    %p177 = scmp.eq.s32.totalorder %s11, 0
    %p178 = por %p176, %p177
    %p179 = scmp.ne.s32.totalorder %s168, %s171
    %p180 = scmp.eq.s32.totalorder %s16, 15
    %p181 = por %p179, %p180
    %p182 = scmp.ne.s32.totalorder %s171, %s172
    %p183 = scmp.eq.s32.totalorder %s16, 0
    %p184 = por %p182, %p183
    %p185 = scmp.ne.s32.totalorder %s171, %s172
    %p186 = scmp.eq.s32.totalorder %s17, 15
    %p187 = por %p185, %p186
    %p189 = scmp.ne.s32.totalorder %s172, %s188
    %p190 = scmp.eq.s32.totalorder %s17, 0
    %p191 = por %p189, %p190
    %p192 = scmp.le.s32.totalorder 1, %s11
    %p193 = scmp.lt.s32.totalorder %s11, 17
    %p194 = pnand %p192, %p193
    %p195 = pneg %p194
    // Predicated region
    $region9: #{_lambda_.24} parent=5 // pred_check
      _
    $region10: #{_lambda_.24} parent=5 // pred_check_branch
      %197 = sbr.rel (%p194) target = $region12
    $region11: #{_lambda_.24} parent=5 // pred_region
      %s198 = ssub.s32 %s11, 1
      // Predicated region
      $region13: #{_lambda_.24} parent=11 // pred_check
        %p199 = pneg %p135
      $region14: #{_lambda_.24} parent=11 // pred_check_branch
        %201 = sbr.rel (%p199) target = $region16
      $region15: #{_lambda_.24} parent=11 // pred_region
        _
      $region16: #{_lambda_.24} parent=11 // pred_fallthru
        _
      // Predicated region
      $region17: #{_lambda_.24} parent=11 // pred_check
        %p202 = pneg %p156
      $region18: #{_lambda_.24} parent=11 // pred_check_branch
        %204 = sbr.rel (%p202) target = $region20
      $region19: #{_lambda_.24} parent=11 // pred_region
        _
      $region20: #{_lambda_.24} parent=11 // pred_fallthru
        _
    $region12: #{_lambda_.24} parent=5 // pred_fallthru
      _
    %p205 = scmp.lt.s32.totalorder %s11, 16
    // Predicated region
    $region21: #{_lambda_.24} parent=5 // pred_check
      %p206 = pneg %p205
    $region22: #{_lambda_.24} parent=5 // pred_check_branch
      %208 = sbr.rel (%p206) target = $region24
    $region23: #{_lambda_.24} parent=5 // pred_region
      // Predicated region
      $region25: #{_lambda_.24} parent=23 // pred_check
        %p209 = pneg %p50
      $region26: #{_lambda_.24} parent=23 // pred_check_branch
        %211 = sbr.rel (%p209) target = $region28
      $region27: #{_lambda_.24} parent=23 // pred_region
        %p212 = scmp.lt.s32.totalorder %s18, 1
        %s213 = scalar_select %p212, %s18, 1
        %s214 = smul.addr %s213, 4
        %s215 = smul.addr %s214, 4
        %s216 = scalar_lea.vmem %s0, %s215
      $region28: #{_lambda_.24} parent=23 // pred_fallthru
        _
      // Predicated region
      $region29: #{_lambda_.24} parent=23 // pred_check
        %p217 = pneg %p78
      $region30: #{_lambda_.24} parent=23 // pred_check_branch
        %219 = sbr.rel (%p217) target = $region32
      $region31: #{_lambda_.24} parent=23 // pred_region
        %p220 = scmp.lt.s32.totalorder %s18, 1
        %s221 = scalar_select %p220, %s18, 1
        %p222 = scmp.lt.s32.totalorder %s19, 0
        %s223 = scalar_select %p222, %s19, 0
        %s224 = sadd.s32 %s223, %s221
        %s225 = smul.addr %s224, 4
        %s226 = scalar_lea.vmem %s1, %s225
      $region32: #{_lambda_.24} parent=23 // pred_fallthru
        _
      // Predicated region
      $region33: #{_lambda_.24} parent=23 // pred_check
        %p227 = pneg %p108
      $region34: #{_lambda_.24} parent=23 // pred_check_branch
        %229 = sbr.rel (%p227) target = $region36
      $region35: #{_lambda_.24} parent=23 // pred_region
        %p230 = scmp.lt.s32.totalorder %s18, 1
        %s231 = scalar_select %p230, %s18, 1
        %p232 = scmp.lt.s32.totalorder %s20, 7
        %s233 = scalar_select %p232, %s20, 7
        %p234 = scmp.lt.s32.totalorder %s19, 0
        %s235 = scalar_select %p234, %s19, 0
        %s236 = sadd.s32 %s235, %s233
        %s237 = smul.addr %s231, 8
        %s238 = sadd.s32 %s236, %s237
        %s239 = scalar_lea.vmem %s2, %s238
      $region36: #{_lambda_.24} parent=23 // pred_fallthru
        _
    $region24: #{_lambda_.24} parent=5 // pred_fallthru
      _
    %p240 = scmp.le.s32.totalorder 1, %s11
    %p241 = scmp.lt.s32.totalorder %s11, 17
    %p242 = pnand %p240, %p241
    %p243 = pneg %p242
    // Predicated region
    $region37: #{_lambda_.24} parent=5 // pred_check
      _
    $region38: #{_lambda_.24} parent=5 // pred_check_branch
      %245 = sbr.rel (%p242) target = $region40
    $region39: #{_lambda_.24} parent=5 // pred_region
      %s246 = ssub.s32 %s11, 1
      %p247 = scmp.lt.s32.totalorder %s21, 1
      %s248 = scalar_select %p247, %s21, 1
      %s249 = smul.addr %s248, 4
      %s250 = smul.addr %s249, 4
      %s251 = scalar_lea.vmem %s0, %s250
      %p252 = pneg %p56
      %p253 = pneg %p53
      %p254 = scmp.lt.s32.totalorder %s21, 1
      %s255 = scalar_select %p254, %s21, 1
      %p256 = scmp.lt.s32.totalorder %s22, 0
      %s257 = scalar_select %p256, %s22, 0
      %s258 = sadd.s32 %s257, %s255
      %s259 = smul.addr %s258, 4
      %s260 = scalar_lea.vmem %s1, %s259
      %p261 = pneg %p84
      %p262 = pneg %p81
      %p263 = scmp.lt.s32.totalorder %s21, 1
      %s264 = scalar_select %p263, %s21, 1
      %p265 = scmp.lt.s32.totalorder %s23, 7
      %s266 = scalar_select %p265, %s23, 7
      %p267 = scmp.lt.s32.totalorder %s22, 0
      %s268 = scalar_select %p267, %s22, 0
      %s269 = sadd.s32 %s268, %s266
      %s270 = smul.addr %s264, 8
      %s271 = sadd.s32 %s269, %s270
      %s272 = scalar_lea.vmem %s2, %s271
      %p273 = pneg %p114
      %p274 = pneg %p111
      %p275 = pneg %p135
      %p276 = pneg %p132
      %p277 = pneg %p156
      %p278 = pneg %p153
      %p279 = pneg %p184
      %p280 = pneg %p181
      %p281 = scmp.lt.s32.totalorder %s21, 1
      %s282 = scalar_select %p281, %s21, 1
      %p283 = scmp.lt.s32.totalorder %s22, 0
      %s284 = scalar_select %p283, %s22, 0
      %s285 = smul.addr %s282, 4
      %s286 = sadd.s32 %s284, %s285
      %s287 = smul.addr %s286, 4
      %s288 = scalar_lea.vmem %s5, %s287
      %p289 = scmp.lt.s32.totalorder %s21, 1
      %s290 = scalar_select %p289, %s21, 1
      %s291 = smul.addr %s290, 4
      %s292 = smul.addr %s291, 4
      %s293 = scalar_lea.vmem %s0, %s292
      %p294 = scmp.lt.s32.totalorder %s21, 1
      %s295 = scalar_select %p294, %s21, 1
      %p296 = scmp.lt.s32.totalorder %s22, 0
      %s297 = scalar_select %p296, %s22, 0
      %s298 = sadd.s32 %s297, %s295
      %s299 = smul.addr %s298, 4
      %s300 = scalar_lea.vmem %s1, %s299
      %p301 = scmp.lt.s32.totalorder %s21, 1
      %s302 = scalar_select %p301, %s21, 1
      %p303 = scmp.lt.s32.totalorder %s23, 7
      %s304 = scalar_select %p303, %s23, 7
      %p305 = scmp.lt.s32.totalorder %s22, 0
      %s306 = scalar_select %p305, %s22, 0
      %s307 = sadd.s32 %s306, %s304
      %s308 = smul.addr %s302, 8
      %s309 = sadd.s32 %s307, %s308
      %s310 = scalar_lea.vmem %s2, %s309
      %p311 = scmp.lt.s32.totalorder %s21, 1
      %s312 = scalar_select %p311, %s21, 1
      %p313 = scmp.lt.s32.totalorder %s22, 0
      %s314 = scalar_select %p313, %s22, 0
      %s315 = smul.addr %s312, 4
      %s316 = sadd.s32 %s314, %s315
      %s317 = smul.addr %s316, 4
      %s318 = scalar_lea.vmem %s5, %s317
      %p320 = scmp.eq.s32.totalorder %s23, 0
      // Predicated region
      $region41: #{_lambda_.24} parent=39 // pred_check
        %p321 = pneg %p320
      $region42: #{_lambda_.24} parent=39 // pred_check_branch
        %323 = sbr.rel (%p321) target = $region44
      $region43: #{_lambda_.24} parent=39 // pred_region
        %vm324 = vcmask 31744
        %325 = vst.msk [vmem:[#allocation2] sm:$0xff] %vm324, -inf
        %326 = vst.msk [vmem:[#allocation2 + $0x8] sm:$0xff] %vm324, -inf
        %327 = vst.msk [vmem:[#allocation2 + $0x10] sm:$0xff] %vm324, -inf
        %328 = vst.msk [vmem:[#allocation2 + $0x18] sm:$0xff] %vm324, -inf
      $region44: #{_lambda_.24} parent=39 // pred_fallthru
        _
      %v329 = vld [vmem:[%s310] sm:$0x1]
      %v330 = vlaneseq
      %v331 = vshrl.u32 %v330, 7
      %v332 = vlaneseq
      %v333 = vshrl.u32 %v332, 7
      %v334 = vsub.s32 0, %v333
      %v335 = vrot.slane %v329, %v334
      %vm336 = vcmp.eq.s32.totalorder %v331, %v335
      %v337 = vsel %vm336, 1.0, 0.0
      %v338 = vpack.c.bf16 %v337, %v337
      %v339 = vld [vmem:[%s293] sm:$0xf]
      %v340 = vld [vmem:[%s293 + $0x4] sm:$0xf]
      %v341 = vld [vmem:[%s293 + $0x8] sm:$0xf]
      %v342 = vld [vmem:[%s293 + $0xc] sm:$0xf]
      %v347 = vunpack.c.l.b16 %v339
      %v348 = vunpack.c.l.b16 %v340
      %v349 = vunpack.c.l.b16 %v341
      %v350 = vunpack.c.l.b16 %v342
      %v351 = vpack.c.b16 %v348, %v347
      %v352 = vpack.c.b16 %v350, %v349
      %vm353 = vcmask 31744
      %v355 = vsel %vm353, %v351, 0
      %v358 = vsel %vm353, %v352, 0
      %vm360 = vcmask 1041408
      %v362 = vsel %vm360, %v338, 0
      %364 = vmatprep.subr.bf16.mxu0 0
      %365 = vmatpush1.bf16.msra.mxu0 0
      %366 = vmatprep.subr.bf16.mxu0 0
      %367 = vmatpush1.bf16.msra.mxu0 0
      %368 = vmatprep.subr.bf16.mxu0 0
      %369 = vmatpush1.bf16.msra.mxu0 0
      %370 = vmatprep.subr.bf16.mxu0 0
      %371 = vmatpush1.bf16.msra.mxu0 0
      %372 = vmatprep.subr.bf16.mxu0 0
      %373 = vmatpush1.bf16.msra.mxu0 0
      %374 = vmatprep.subr.bf16.mxu0 0
      %375 = vmatpush1.bf16.msra.mxu0 0
      %376 = vmatprep.subr.bf16.mxu0 0
      %377 = vmatpush1.bf16.msra.mxu0 0
      %378 = vmatprep.subr.bf16.mxu0 0
      %379 = vmatpush1.bf16.msra.mxu0 %v362
      %380 = vmatprep.subr.bf16.mxu0 0
      %381 = vmatpush2.bf16.msra.mxu0 0
      %382 = vmatprep.subr.bf16.mxu0 0
      %383 = vmatpush2.bf16.msra.mxu0 0
      %384 = vmatprep.subr.bf16.mxu0 0
      %385 = vmatpush2.bf16.msra.mxu0 0
      %386 = vmatprep.subr.bf16.mxu0 0
      %387 = vmatpush2.bf16.msra.mxu0 0
      %388 = vmatprep.subr.bf16.mxu0 0
      %389 = vmatpush2.bf16.msra.mxu0 0
      %390 = vmatprep.subr.bf16.mxu0 0
      %391 = vmatpush2.bf16.msra.mxu0 0
      %392 = vmatprep.subr.bf16.mxu0 0
      %393 = vmatpush2.bf16.msra.mxu0 0
      %394 = vmatprep.subr.bf16.mxu0 0
      %395 = vmatpush2.bf16.msra.mxu0 0
      %396 = vmatprep.mubr.bf16.mxu0 0
      %397 = vmatmul.mubr.bf16.gmra.mxu0 %v355
      %v398 = vpop.f32.mrf.mxu0
      %v399 = vadd.f32 0.0, %v398
      %v400 = vpop.f32.mrf.mxu0
      %v401 = vpop.f32.mrf.mxu0
      %v402 = vadd.f32 0.0, %v401
      %v403 = vpop.f32.mrf.mxu0
      %404 = vmatprep.mubr.bf16.mxu0 0
      %405 = vmatmul.mubr.bf16.gmra.mxu0 %v358
      %v406 = vpop.f32.mrf.mxu0
      %v407 = vadd.f32 0.0, %v406
      %v408 = vpop.f32.mrf.mxu0
      %v409 = vpop.f32.mrf.mxu0
      %v410 = vadd.f32 0.0, %v409
      %v411 = vpop.f32.mrf.mxu0
      %412 = vdwg.mxu0
      %v413 = vld [vmem:[%s300] sm:$0x7]
      %v414 = vld [vmem:[%s3] sm:$0xff]
      %v415 = vld [vmem:[%s3 + $0x8] sm:$0xff]
      %v416 = vld [vmem:[%s3 + $0x10] sm:$0xff]
      %v417 = vld [vmem:[%s3 + $0x18] sm:$0xff]
      %419 = vset.pattern.permute.xlu0 0
      %420 = vperm.xlu0 %419, %v414
      %v421 = vpop.permute.xlu0 %420
      %424 = vset.pattern.permute.xlu0 0
      %425 = vperm.xlu0 %424, %v415
      %v426 = vpop.permute.xlu0 %425
      %429 = vset.pattern.permute.xlu0 0
      %430 = vperm.xlu0 %429, %v416
      %v431 = vpop.permute.xlu0 %430
      %434 = vset.pattern.permute.xlu0 0
      %435 = vperm.xlu0 %434, %v417
      %v436 = vpop.permute.xlu0 %435
      %v438 = vlaneseq
      %v439 = vshrl.u32 %v438, 7
      %v440 = vsub.s32 0, %v439
      %v441 = vrot.slane %v413, %v440
      %v442 = vmul.f32 %v421, %v441
      %v443 = vmul.f32 %v426, %v441
      %v444 = vmul.f32 %v431, %v441
      %v445 = vmul.f32 %v436, %v441
      %s446 = scalar_lea.vmem %s3, 32
      %v447 = vld [vmem:[%s446] sm:$0xff]
      %v448 = vld [vmem:[%s446 + $0x8] sm:$0xff]
      %v449 = vld [vmem:[%s446 + $0x10] sm:$0xff]
      %v450 = vld [vmem:[%s446 + $0x18] sm:$0xff]
      %452 = vset.pattern.permute.xlu0 0
      %453 = vperm.xlu0 %452, %v447
      %v454 = vpop.permute.xlu0 %453
      %457 = vset.pattern.permute.xlu0 0
      %458 = vperm.xlu0 %457, %v448
      %v459 = vpop.permute.xlu0 %458
      %462 = vset.pattern.permute.xlu0 0
      %463 = vperm.xlu0 %462, %v449
      %v464 = vpop.permute.xlu0 %463
      %467 = vset.pattern.permute.xlu0 0
      %468 = vperm.xlu0 %467, %v450
      %v469 = vpop.permute.xlu0 %468
      %v471 = vlaneseq
      %v472 = vshrl.u32 %v471, 7
      %v473 = vsub.s32 1, %v472
      %v474 = vrot.slane %v413, %v473
      %v475 = vmul.f32 %v454, %v474
      %v476 = vmul.f32 %v459, %v474
      %v477 = vmul.f32 %v464, %v474
      %v478 = vmul.f32 %v469, %v474
      %v479 = vadd.f32 %v442, %v475
      %v480 = vadd.f32 %v443, %v476
      %v481 = vadd.f32 %v444, %v477
      %v482 = vadd.f32 %v445, %v478
      %s483 = scalar_lea.vmem %s3, 64
      %v484 = vld [vmem:[%s483] sm:$0xff]
      %v485 = vld [vmem:[%s483 + $0x8] sm:$0xff]
      %v486 = vld [vmem:[%s483 + $0x10] sm:$0xff]
      %v487 = vld [vmem:[%s483 + $0x18] sm:$0xff]
      %489 = vset.pattern.permute.xlu0 0
      %490 = vperm.xlu0 %489, %v484
      %v491 = vpop.permute.xlu0 %490
      %494 = vset.pattern.permute.xlu0 0
      %495 = vperm.xlu0 %494, %v485
      %v496 = vpop.permute.xlu0 %495
      %499 = vset.pattern.permute.xlu0 0
      %500 = vperm.xlu0 %499, %v486
      %v501 = vpop.permute.xlu0 %500
      %504 = vset.pattern.permute.xlu0 0
      %505 = vperm.xlu0 %504, %v487
      %v506 = vpop.permute.xlu0 %505
      %v508 = vlaneseq
      %v509 = vshrl.u32 %v508, 7
      %v510 = vsub.s32 2, %v509
      %v511 = vrot.slane %v413, %v510
      %v512 = vmul.f32 %v491, %v511
      %v513 = vmul.f32 %v496, %v511
      %v514 = vmul.f32 %v501, %v511
      %v515 = vmul.f32 %v506, %v511
      %v516 = vadd.f32 %v479, %v512
      %v517 = vadd.f32 %v480, %v513
      %v518 = vadd.f32 %v481, %v514
      %v519 = vadd.f32 %v482, %v515
      %v520 = vsub.f32 %v399, %v516
      %v521 = vsub.f32 %v402, %v517
      %v522 = vsub.f32 %v407, %v518
      %v523 = vsub.f32 %v410, %v519
      %v524 = vld [vmem:[%s4] sm:$0xff]
      %v525 = vld [vmem:[%s4 + $0x8] sm:$0xff]
      %v526 = vld [vmem:[%s4 + $0x10] sm:$0xff]
      %v527 = vld [vmem:[%s4 + $0x18] sm:$0xff]
      %529 = vset.pattern.permute.xlu0 0
      %530 = vperm.xlu0 %529, %v524
      %v531 = vpop.permute.xlu0 %530
      %534 = vset.pattern.permute.xlu0 0
      %535 = vperm.xlu0 %534, %v525
      %v536 = vpop.permute.xlu0 %535
      %539 = vset.pattern.permute.xlu0 0
      %540 = vperm.xlu0 %539, %v526
      %v541 = vpop.permute.xlu0 %540
      %544 = vset.pattern.permute.xlu0 0
      %545 = vperm.xlu0 %544, %v527
      %v546 = vpop.permute.xlu0 %545
      %v548 = vadd.f32 %v520, %v531
      %v549 = vadd.f32 %v521, %v536
      %v550 = vadd.f32 %v522, %v541
      %v551 = vadd.f32 %v523, %v546
      %v552 = vmax.f32 %v548, 0.0
      %v553 = vmax.f32 %v549, 0.0
      %v554 = vmax.f32 %v550, 0.0
      %v555 = vmax.f32 %v551, 0.0
      %v556 = vld [vmem:[#allocation2] sm:$0xff]
      %v557 = vld [vmem:[#allocation2 + $0x8] sm:$0xff]
      %v558 = vld [vmem:[#allocation2 + $0x10] sm:$0xff]
      %v559 = vld [vmem:[#allocation2 + $0x18] sm:$0xff]
      %v560 = vmax.f32 %v556, %v552
      %v561 = vmax.f32 %v557, %v553
      %v562 = vmax.f32 %v558, %v554
      %v563 = vmax.f32 %v559, %v555
      %564 = vst.msk [vmem:[#allocation2] sm:$0xff] %vm353, %v560
      %565 = vst.msk [vmem:[#allocation2 + $0x8] sm:$0xff] %vm353, %v561
      %566 = vst.msk [vmem:[#allocation2 + $0x10] sm:$0xff] %vm353, %v562
      %567 = vst.msk [vmem:[#allocation2 + $0x18] sm:$0xff] %vm353, %v563
      %p568 = scmp.eq.s32.totalorder %s23, 7
      // Predicated region
      $region45: #{_lambda_.24} parent=39 // pred_check
        %p569 = pneg %p568
      $region46: #{_lambda_.24} parent=39 // pred_check_branch
        %571 = sbr.rel (%p569) target = $region48
      $region47: #{_lambda_.24} parent=39 // pred_region
        %v572 = vld [vmem:[#allocation2] sm:$0xff]
        %v573 = vld [vmem:[#allocation2 + $0x8] sm:$0xff]
        %v574 = vld [vmem:[#allocation2 + $0x10] sm:$0xff]
        %v575 = vld [vmem:[#allocation2 + $0x18] sm:$0xff]
        %v576 = vpack.c.bf16 %v573, %v572
        %v577 = vpack.c.bf16 %v575, %v574
        %v580 = vunpack.c.l.b16 %v576
        %v581 = vunpack.c.h.b16 %v576
        %v582 = vunpack.c.l.b16 %v577
        %v583 = vunpack.c.h.b16 %v577
        %v584 = vpack.c.b16 %v580, %v580
        %v585 = vpack.c.b16 %v581, %v581
        %v586 = vpack.c.b16 %v582, %v582
        %v587 = vpack.c.b16 %v583, %v583
        %vm592 = vcmask 27648
        %593 = vst.msk [vmem:[%s318] sm:$0xf] %vm592, %v584
        %594 = vst.msk [vmem:[%s318 + $0x4] sm:$0xf] %vm592, %v585
        %595 = vst.msk [vmem:[%s318 + $0x8] sm:$0xf] %vm592, %v586
        %596 = vst.msk [vmem:[%s318 + $0xc] sm:$0xf] %vm592, %v587
      $region48: #{_lambda_.24} parent=39 // pred_fallthru
        _
      %p597 = scmp.lt.s32.totalorder %s21, 1
      %s598 = scalar_select %p597, %s21, 1
      %p599 = scmp.lt.s32.totalorder %s22, 0
      %s600 = scalar_select %p599, %s22, 0
      %s601 = smul.addr %s598, 4
      %s602 = sadd.s32 %s600, %s601
      %s603 = smul.addr %s602, 4
      %s604 = scalar_lea.vmem %s5, %s603
      // Predicated region
      $region49: #{_lambda_.24} parent=39 // pred_check
        %p605 = pneg %p181
      $region50: #{_lambda_.24} parent=39 // pred_check_branch
        %607 = sbr.rel (%p605) target = $region52
      $region51: #{_lambda_.24} parent=39 // pred_region
        _
      $region52: #{_lambda_.24} parent=39 // pred_fallthru
        _
    $region40: #{_lambda_.24} parent=5 // pred_fallthru
      _
    %p608 = scmp.le.s32.totalorder 2, %s11
    // Predicated region
    $region53: #{_lambda_.24} parent=5 // pred_check
      %p609 = pneg %p608
    $region54: #{_lambda_.24} parent=5 // pred_check_branch
      %611 = sbr.rel (%p609) target = $region56
    $region55: #{_lambda_.24} parent=5 // pred_region
      %s612 = ssub.s32 %s11, 2
      // Predicated region
      $region57: #{_lambda_.24} parent=55 // pred_check
        %p613 = pneg %p187
      $region58: #{_lambda_.24} parent=55 // pred_check_branch
        %615 = sbr.rel (%p613) target = $region60
      $region59: #{_lambda_.24} parent=55 // pred_region
        %p616 = scmp.lt.s32.totalorder %s24, 1
        %s617 = scalar_select %p616, %s24, 1
        %p618 = scmp.lt.s32.totalorder %s25, 0
        %s619 = scalar_select %p618, %s25, 0
        %s620 = smul.addr %s617, 4
        %s621 = sadd.s32 %s619, %s620
        %s622 = smul.addr %s621, 4
        %s623 = scalar_lea.vmem %s5, %s622
      $region60: #{_lambda_.24} parent=55 // pred_fallthru
        _
    $region56: #{_lambda_.24} parent=5 // pred_fallthru
      _
  $region6: #{_lambda_.24} parent=0 // loop_footer
    %s15 = sadd.s32 1, %s11
  $region7: #{_lambda_.24} parent=0 // loop_footer_branch
    %10 = sbr.rel target = $region3
  $region8: #{_lambda_.24} parent=0 // loop_exit
    _

// kernel: _lambda_.27
$region0: #{_lambda_.27}
  #allocation0 [shape = 'u32[]', space=smem, size = 0x4, offset = 0x4, fixed_abs, tag = 'smem constant byte address 0x4 - core index']
  #allocation1 [shape = 'u32[144,128]{1,0:T(1,128)}', space=vmem, size = 0x12000, scoped, tag = 'internal scratch']
  %s0 = inlined_call_operand.vmem [shape: bf16[2,32,4], index: 0, kind: input, shape index: {}]
  %s1 = inlined_call_operand.vmem [shape: bf16[2,32,1], index: 1, kind: output, shape index: {}]
  %s2 = sld [smem:[#allocation0]]
  $region37: #{_lambda_.27} parent=0
    _
  %s4 = ssub.s32 1, %s2
  %s5 = scalar_select 0, %s4, %s2
  loop: start=0, step=1, limit=4
  $region2: #{_lambda_.27} parent=0 // loop_pre_header
    _
  $region3: #{_lambda_.27} parent=0 // loop_header
    %s7 = sphi 0, %s11
    %p8 = scmp.ge.s32.totalorder %s7, 4
    %s17 = sphi 0, %s19
    %s20 = sphi 0, %s17
    %s21 = sphi 0, %s20
    %s37 = sphi 0, %s21
    %s43 = sphi 0, %s45
    %s46 = sphi 0, %s43
    %s47 = sphi 0, %s46
    %s63 = sphi 0, %s47
  $region4: #{_lambda_.27} parent=0 // loop_header_branch
    %10 = sbr.rel (%p8) target = $region8
  $region5: #{_lambda_.27} parent=0 // loop_body
    %s12 = ssub.s32 %s7, 1
    %s13 = ssub.s32 %s7, 2
    %s14 = sadd.s32 %s7, 1
    %s15 = ssub.s32 %s7, %s14
    %p16 = scmp.eq.s32.totalorder %s15, 0
    %s18 = sadd.s32 %s17, 1
    %s19 = scalar_select %p16, %s17, %s18
    %p22 = pneg %p16
    %p23 = scmp.eq.s32.totalorder %s7, 1
    %p24 = por %p22, %p23
    %p25 = scmp.ne.s32.totalorder %s17, %s20
    %p26 = scmp.eq.s32.totalorder %s7, 0
    %p27 = por %p25, %p26
    %p28 = scmp.ne.s32.totalorder %s17, %s20
    %p29 = scmp.eq.s32.totalorder %s12, 1
    %p30 = por %p28, %p29
    %p31 = scmp.ne.s32.totalorder %s20, %s21
    %p32 = scmp.eq.s32.totalorder %s12, 0
    %p33 = por %p31, %p32
    %p34 = scmp.ne.s32.totalorder %s20, %s21
    %p35 = scmp.eq.s32.totalorder %s13, 1
    %p36 = por %p34, %p35
    %p38 = scmp.ne.s32.totalorder %s21, %s37
    %p39 = scmp.eq.s32.totalorder %s13, 0
    %p40 = por %p38, %p39
    %s41 = ssub.s32 %s7, %s14
    %p42 = scmp.eq.s32.totalorder %s41, 0
    %s44 = sadd.s32 %s43, 1
    %s45 = scalar_select %p42, %s43, %s44
    %p48 = pneg %p42
    %p49 = scmp.eq.s32.totalorder %s7, 1
    %p50 = por %p48, %p49
    %p51 = scmp.ne.s32.totalorder %s43, %s46
    %p52 = scmp.eq.s32.totalorder %s7, 0
    %p53 = por %p51, %p52
    %p54 = scmp.ne.s32.totalorder %s43, %s46
    %p55 = scmp.eq.s32.totalorder %s12, 1
    %p56 = por %p54, %p55
    %p57 = scmp.ne.s32.totalorder %s46, %s47
    %p58 = scmp.eq.s32.totalorder %s12, 0
    %p59 = por %p57, %p58
    %p60 = scmp.ne.s32.totalorder %s46, %s47
    %p61 = scmp.eq.s32.totalorder %s13, 1
    %p62 = por %p60, %p61
    %p64 = scmp.ne.s32.totalorder %s47, %s63
    %p65 = scmp.eq.s32.totalorder %s13, 0
    %p66 = por %p64, %p65
    %p67 = scmp.le.s32.totalorder 1, %s7
    %p68 = scmp.lt.s32.totalorder %s7, 3
    %p69 = pnand %p67, %p68
    %p70 = pneg %p69
    // Predicated region
    $region9: #{_lambda_.27} parent=5 // pred_check
      _
    $region10: #{_lambda_.27} parent=5 // pred_check_branch
      %72 = sbr.rel (%p69) target = $region12
    $region11: #{_lambda_.27} parent=5 // pred_region
      %s73 = ssub.s32 %s7, 1
    $region12: #{_lambda_.27} parent=5 // pred_fallthru
      _
    %p74 = scmp.lt.s32.totalorder %s7, 2
    // Predicated region
    $region13: #{_lambda_.27} parent=5 // pred_check
      %p75 = pneg %p74
    $region14: #{_lambda_.27} parent=5 // pred_check_branch
      %77 = sbr.rel (%p75) target = $region16
    $region15: #{_lambda_.27} parent=5 // pred_region
      // Predicated region
      $region17: #{_lambda_.27} parent=15 // pred_check
        %p78 = pneg %p27
      $region18: #{_lambda_.27} parent=15 // pred_check_branch
        %80 = sbr.rel (%p78) target = $region20
      $region19: #{_lambda_.27} parent=15 // pred_region
        %p81 = scmp.lt.s32.totalorder %s7, 1
        %s82 = scalar_select %p81, %s7, 1
        %s83 = smul.addr %s82, 4
        %s84 = smul.addr %s83, 4
        %s85 = scalar_lea.vmem %s0, %s84
      $region20: #{_lambda_.27} parent=15 // pred_fallthru
        _
    $region16: #{_lambda_.27} parent=5 // pred_fallthru
      _
    %p86 = scmp.le.s32.totalorder 1, %s7
    %p87 = scmp.lt.s32.totalorder %s7, 3
    %p88 = pnand %p86, %p87
    %p89 = pneg %p88
    // Predicated region
    $region21: #{_lambda_.27} parent=5 // pred_check
      _
    $region22: #{_lambda_.27} parent=5 // pred_check_branch
      %91 = sbr.rel (%p88) target = $region24
    $region23: #{_lambda_.27} parent=5 // pred_region
      %s92 = ssub.s32 %s7, 1
      %p93 = scmp.lt.s32.totalorder %s12, 1
      %s94 = scalar_select %p93, %s12, 1
      %s95 = smul.addr %s94, 4
      %s96 = smul.addr %s95, 4
      %s97 = scalar_lea.vmem %s0, %s96
      %p98 = pneg %p33
      %p99 = pneg %p30
      %p100 = pneg %p59
      %p101 = pneg %p56
      %p102 = scmp.lt.s32.totalorder %s12, 1
      %s103 = scalar_select %p102, %s12, 1
      %s104 = smul.addr %s103, 4
      %s105 = smul.addr %s104, 4
      %s106 = scalar_lea.vmem %s1, %s105
      %p107 = scmp.lt.s32.totalorder %s12, 1
      %s108 = scalar_select %p107, %s12, 1
      %s109 = smul.addr %s108, 4
      %s110 = smul.addr %s109, 4
      %s111 = scalar_lea.vmem %s0, %s110
      %p112 = scmp.lt.s32.totalorder %s12, 1
      %s113 = scalar_select %p112, %s12, 1
      %s114 = smul.addr %s113, 4
      %s115 = smul.addr %s114, 4
      %s116 = scalar_lea.vmem %s1, %s115
      %v118 = vld [vmem:[%s111] sm:$0xf]
      %v119 = vld [vmem:[%s111 + $0x4] sm:$0xf]
      %v120 = vld [vmem:[%s111 + $0x8] sm:$0xf]
      %v121 = vld [vmem:[%s111 + $0xc] sm:$0xf]
      %v126 = vunpack.c.l.b16 %v118
      %v127 = vunpack.c.l.b16 %v119
      %v128 = vunpack.c.l.b16 %v120
      %v129 = vunpack.c.l.b16 %v121
      %v130 = vpack.c.b16 %v127, %v126
      %v131 = vpack.c.b16 %v129, %v128
      %vm132 = vcmask 31744
      %v135 = vsel %vm132, %v130, 4286644096
      %137 = vmax.xlane.bf16.xlu0 %v135
      %v138 = vpop.xlane.xlu0 %137
      %v140 = vsel %vm132, %v131, 4286644096
      %142 = vmax.xlane.bf16.xlu0 %v140
      %v143 = vpop.xlane.xlu0 %142
      %v147 = vunpack.c.l.s4 839922192
      %v148 = vunpack.c.0.s8 %v147
      %v149 = vlaneseq
      %v150 = vshrl.u32 %v149, 7
      %v151 = vsub.s32 %v148, %v150
      %v152 = vrot.slane %v138, %v151
      %v154 = vunpack.c.l.s4 1985246804
      %v155 = vunpack.c.0.s8 %v154
      %v156 = vlaneseq
      %v157 = vshrl.u32 %v156, 7
      %v158 = vsub.s32 %v155, %v157
      %v159 = vrot.slane %v138, %v158
      %v161 = vunpack.c.l.s4 839922192
      %v162 = vunpack.c.0.s8 %v161
      %v163 = vlaneseq
      %v164 = vshrl.u32 %v163, 7
      %v165 = vsub.s32 %v162, %v164
      %v166 = vrot.slane %v143, %v165
      %v168 = vunpack.c.l.s4 1985246804
      %v169 = vunpack.c.0.s8 %v168
      %v170 = vlaneseq
      %v171 = vshrl.u32 %v170, 7
      %v172 = vsub.s32 %v169, %v171
      %v173 = vrot.slane %v143, %v172
      %vm178 = vcmask 3072
      %179 = vst.msk [vmem:[%s116] sm:$0xf] %vm178, %v152
      %180 = vst.msk [vmem:[%s116 + $0x4] sm:$0xf] %vm178, %v159
      %181 = vst.msk [vmem:[%s116 + $0x8] sm:$0xf] %vm178, %v166
      %182 = vst.msk [vmem:[%s116 + $0xc] sm:$0xf] %vm178, %v173
      %p183 = scmp.lt.s32.totalorder %s12, 1
      %s184 = scalar_select %p183, %s12, 1
      %s185 = smul.addr %s184, 4
      %s186 = smul.addr %s185, 4
      %s187 = scalar_lea.vmem %s1, %s186
      // Predicated region
      $region25: #{_lambda_.27} parent=23 // pred_check
        %p188 = pneg %p56
      $region26: #{_lambda_.27} parent=23 // pred_check_branch
        %190 = sbr.rel (%p188) target = $region28
      $region27: #{_lambda_.27} parent=23 // pred_region
        _
      $region28: #{_lambda_.27} parent=23 // pred_fallthru
        _
    $region24: #{_lambda_.27} parent=5 // pred_fallthru
      _
    %p191 = scmp.le.s32.totalorder 2, %s7
    // Predicated region
    $region29: #{_lambda_.27} parent=5 // pred_check
      %p192 = pneg %p191
    $region30: #{_lambda_.27} parent=5 // pred_check_branch
      %194 = sbr.rel (%p192) target = $region32
    $region31: #{_lambda_.27} parent=5 // pred_region
      %s195 = ssub.s32 %s7, 2
      // Predicated region
      $region33: #{_lambda_.27} parent=31 // pred_check
        %p196 = pneg %p62
      $region34: #{_lambda_.27} parent=31 // pred_check_branch
        %198 = sbr.rel (%p196) target = $region36
      $region35: #{_lambda_.27} parent=31 // pred_region
        %p199 = scmp.lt.s32.totalorder %s13, 1
        %s200 = scalar_select %p199, %s13, 1
        %s201 = smul.addr %s200, 4
        %s202 = smul.addr %s201, 4
        %s203 = scalar_lea.vmem %s1, %s202
      $region36: #{_lambda_.27} parent=31 // pred_fallthru
        _
    $region32: #{_lambda_.27} parent=5 // pred_fallthru
      _
  $region6: #{_lambda_.27} parent=0 // loop_footer
    %s11 = sadd.s32 1, %s7
  $region7: #{_lambda_.27} parent=0 // loop_footer_branch
    %6 = sbr.rel target = $region3
  $region8: #{_lambda_.27} parent=0 // loop_exit
    _

// kernel: _lambda_.25
$region0: #{_lambda_.25}
  #allocation0 [shape = 'u32[]', space=smem, size = 0x4, offset = 0x4, fixed_abs, tag = 'smem constant byte address 0x4 - core index']
  #allocation1 [shape = 'u32[144,128]{1,0:T(1,128)}', space=vmem, size = 0x12000, scoped, tag = 'internal scratch']
  %s0 = inlined_call_operand.vmem [shape: bf16[2,32,4], index: 0, kind: input, shape index: {}]
  %s1 = inlined_call_operand.vmem [shape: f32[128,32], index: 1, kind: input, shape index: {}]
  %s2 = inlined_call_operand.vmem [shape: f32[128,1], index: 2, kind: input, shape index: {}]
  %s3 = inlined_call_operand.vmem [shape: bf16[2,128,4], index: 3, kind: output, shape index: {}]
  %s4 = sld [smem:[#allocation0]]
  $region45: #{_lambda_.25} parent=0
    _
  %s6 = ssub.s32 1, %s4
  %s7 = scalar_select 0, %s6, %s4
  loop: start=0, step=1, limit=4
  $region2: #{_lambda_.25} parent=0 // loop_pre_header
    _
  $region3: #{_lambda_.25} parent=0 // loop_header
    %s9 = sphi 0, %s13
    %p10 = scmp.ge.s32.totalorder %s9, 4
    %s16 = sphi 0, %s28
    %s17 = sphi 0, %s24
    %s18 = sphi 0, %s16
    %s19 = sphi 0, %s17
    %s20 = sphi 0, %s18
    %s21 = sphi 0, %s19
    %s33 = sphi 0, %s35
    %s36 = sphi 0, %s33
    %s37 = sphi 0, %s36
    %s53 = sphi 0, %s37
    %s57 = sphi 0, %s57
    %s59 = sphi 0, %s57
    %s60 = sphi 0, %s59
    %s74 = sphi 0, %s60
    %s78 = sphi 0, %s78
    %s80 = sphi 0, %s78
    %s81 = sphi 0, %s80
    %s95 = sphi 0, %s81
    %s103 = sphi 0, %s105
    %s106 = sphi 0, %s103
    %s107 = sphi 0, %s106
    %s123 = sphi 0, %s107
  $region4: #{_lambda_.25} parent=0 // loop_header_branch
    %12 = sbr.rel (%p10) target = $region8
  $region5: #{_lambda_.25} parent=0 // loop_body
    %s14 = ssub.s32 %s9, 1
    %s15 = ssub.s32 %s9, 2
    %s22 = sadd.s32 1, %s17
    %p23 = scmp.ge.s32.totalorder %s22, 1
    %s24 = scalar_select %p23, 0, %s22
    %s25 = sadd.s32 1, %s16
    %s26 = scalar_select %p23, %s25, %s16
    %p27 = scmp.ge.s32.totalorder %s26, 2
    %s28 = scalar_select %p27, 0, %s26
    %s29 = ssub.s32 %s16, %s28
    %s30 = ssub.s32 %s17, %s24
    %s31 = sor.u32 %s29, %s30
    %p32 = scmp.eq.s32.totalorder %s31, 0
    %s34 = sadd.s32 %s33, 1
    %s35 = scalar_select %p32, %s33, %s34
    %p38 = pneg %p32
    %p39 = scmp.eq.s32.totalorder %s9, 1
    %p40 = por %p38, %p39
    %p41 = scmp.ne.s32.totalorder %s33, %s36
    %p42 = scmp.eq.s32.totalorder %s9, 0
    %p43 = por %p41, %p42
    %p44 = scmp.ne.s32.totalorder %s33, %s36
    %p45 = scmp.eq.s32.totalorder %s14, 1
    %p46 = por %p44, %p45
    %p47 = scmp.ne.s32.totalorder %s36, %s37
    %p48 = scmp.eq.s32.totalorder %s14, 0
    %p49 = por %p47, %p48
    %p50 = scmp.ne.s32.totalorder %s36, %s37
    %p51 = scmp.eq.s32.totalorder %s15, 1
    %p52 = por %p50, %p51
    %p54 = scmp.ne.s32.totalorder %s37, %s53
    %p55 = scmp.eq.s32.totalorder %s15, 0
    %p56 = por %p54, %p55
    %s58 = sadd.s32 %s57, 1
    %p61 = scmp.eq.s32.totalorder %s9, 1
    %p62 = scmp.ne.s32.totalorder %s57, %s59
    %p63 = scmp.eq.s32.totalorder %s9, 0
    %p64 = por %p62, %p63
    %p65 = scmp.ne.s32.totalorder %s57, %s59
    %p66 = scmp.eq.s32.totalorder %s14, 1
    %p67 = por %p65, %p66
    %p68 = scmp.ne.s32.totalorder %s59, %s60
    %p69 = scmp.eq.s32.totalorder %s14, 0
    %p70 = por %p68, %p69
    %p71 = scmp.ne.s32.totalorder %s59, %s60
    %p72 = scmp.eq.s32.totalorder %s15, 1
    %p73 = por %p71, %p72
    %p75 = scmp.ne.s32.totalorder %s60, %s74
    %p76 = scmp.eq.s32.totalorder %s15, 0
    %p77 = por %p75, %p76
    %s79 = sadd.s32 %s78, 1
    %p82 = scmp.eq.s32.totalorder %s9, 1
    %p83 = scmp.ne.s32.totalorder %s78, %s80
    %p84 = scmp.eq.s32.totalorder %s9, 0
    %p85 = por %p83, %p84
    %p86 = scmp.ne.s32.totalorder %s78, %s80
    %p87 = scmp.eq.s32.totalorder %s14, 1
    %p88 = por %p86, %p87
    %p89 = scmp.ne.s32.totalorder %s80, %s81
    %p90 = scmp.eq.s32.totalorder %s14, 0
    %p91 = por %p89, %p90
    %p92 = scmp.ne.s32.totalorder %s80, %s81
    %p93 = scmp.eq.s32.totalorder %s15, 1
    %p94 = por %p92, %p93
    %p96 = scmp.ne.s32.totalorder %s81, %s95
    %p97 = scmp.eq.s32.totalorder %s15, 0
    %p98 = por %p96, %p97
    %s99 = ssub.s32 %s16, %s28
    %s100 = ssub.s32 %s17, %s24
    %s101 = sor.u32 %s99, %s100
    %p102 = scmp.eq.s32.totalorder %s101, 0
    %s104 = sadd.s32 %s103, 1
    %s105 = scalar_select %p102, %s103, %s104
    %p108 = pneg %p102
    %p109 = scmp.eq.s32.totalorder %s9, 1
    %p110 = por %p108, %p109
    %p111 = scmp.ne.s32.totalorder %s103, %s106
    %p112 = scmp.eq.s32.totalorder %s9, 0
    %p113 = por %p111, %p112
    %p114 = scmp.ne.s32.totalorder %s103, %s106
    %p115 = scmp.eq.s32.totalorder %s14, 1
    %p116 = por %p114, %p115
    %p117 = scmp.ne.s32.totalorder %s106, %s107
    %p118 = scmp.eq.s32.totalorder %s14, 0
    %p119 = por %p117, %p118
    %p120 = scmp.ne.s32.totalorder %s106, %s107
    %p121 = scmp.eq.s32.totalorder %s15, 1
    %p122 = por %p120, %p121
    %p124 = scmp.ne.s32.totalorder %s107, %s123
    %p125 = scmp.eq.s32.totalorder %s15, 0
    %p126 = por %p124, %p125
    %p127 = scmp.le.s32.totalorder 1, %s9
    %p128 = scmp.lt.s32.totalorder %s9, 3
    %p129 = pnand %p127, %p128
    %p130 = pneg %p129
    // Predicated region
    $region9: #{_lambda_.25} parent=5 // pred_check
      _
    $region10: #{_lambda_.25} parent=5 // pred_check_branch
      %132 = sbr.rel (%p129) target = $region12
    $region11: #{_lambda_.25} parent=5 // pred_region
      %s133 = ssub.s32 %s9, 1
      // Predicated region
      $region13: #{_lambda_.25} parent=11 // pred_check
        %p134 = pneg %p70
      $region14: #{_lambda_.25} parent=11 // pred_check_branch
        %136 = sbr.rel (%p134) target = $region16
      $region15: #{_lambda_.25} parent=11 // pred_region
        _
      $region16: #{_lambda_.25} parent=11 // pred_fallthru
        _
      // Predicated region
      $region17: #{_lambda_.25} parent=11 // pred_check
        %p137 = pneg %p91
      $region18: #{_lambda_.25} parent=11 // pred_check_branch
        %139 = sbr.rel (%p137) target = $region20
      $region19: #{_lambda_.25} parent=11 // pred_region
        _
      $region20: #{_lambda_.25} parent=11 // pred_fallthru
        _
    $region12: #{_lambda_.25} parent=5 // pred_fallthru
      _
    %p140 = scmp.lt.s32.totalorder %s9, 2
    // Predicated region
    $region21: #{_lambda_.25} parent=5 // pred_check
      %p141 = pneg %p140
    $region22: #{_lambda_.25} parent=5 // pred_check_branch
      %143 = sbr.rel (%p141) target = $region24
    $region23: #{_lambda_.25} parent=5 // pred_region
      // Predicated region
      $region25: #{_lambda_.25} parent=23 // pred_check
        %p144 = pneg %p43
      $region26: #{_lambda_.25} parent=23 // pred_check_branch
        %146 = sbr.rel (%p144) target = $region28
      $region27: #{_lambda_.25} parent=23 // pred_region
        %p147 = scmp.lt.s32.totalorder %s16, 1
        %s148 = scalar_select %p147, %s16, 1
        %p149 = scmp.lt.s32.totalorder %s17, 0
        %s150 = scalar_select %p149, %s17, 0
        %s151 = smul.addr %s148, 4
        %s152 = sadd.s32 %s150, %s151
        %s153 = smul.addr %s152, 4
        %s154 = scalar_lea.vmem %s0, %s153
      $region28: #{_lambda_.25} parent=23 // pred_fallthru
        _
    $region24: #{_lambda_.25} parent=5 // pred_fallthru
      _
    %p155 = scmp.le.s32.totalorder 1, %s9
    %p156 = scmp.lt.s32.totalorder %s9, 3
    %p157 = pnand %p155, %p156
    %p158 = pneg %p157
    // Predicated region
    $region29: #{_lambda_.25} parent=5 // pred_check
      _
    $region30: #{_lambda_.25} parent=5 // pred_check_branch
      %160 = sbr.rel (%p157) target = $region32
    $region31: #{_lambda_.25} parent=5 // pred_region
      %s161 = ssub.s32 %s9, 1
      %p162 = scmp.lt.s32.totalorder %s18, 1
      %s163 = scalar_select %p162, %s18, 1
      %p164 = scmp.lt.s32.totalorder %s19, 0
      %s165 = scalar_select %p164, %s19, 0
      %s166 = smul.addr %s163, 4
      %s167 = sadd.s32 %s165, %s166
      %s168 = smul.addr %s167, 4
      %s169 = scalar_lea.vmem %s0, %s168
      %p170 = pneg %p49
      %p171 = pneg %p46
      %p172 = pneg %p70
      %p173 = pneg %p67
      %p174 = pneg %p91
      %p175 = pneg %p88
      %p176 = pneg %p119
      %p177 = pneg %p116
      %p178 = scmp.lt.s32.totalorder %s18, 1
      %s179 = scalar_select %p178, %s18, 1
      %p180 = scmp.lt.s32.totalorder %s19, 0
      %s181 = scalar_select %p180, %s19, 0
      %s182 = smul.addr %s179, 16
      %s183 = sadd.s32 %s181, %s182
      %s184 = smul.addr %s183, 4
      %s185 = scalar_lea.vmem %s3, %s184
      %p186 = scmp.lt.s32.totalorder %s18, 1
      %s187 = scalar_select %p186, %s18, 1
      %p188 = scmp.lt.s32.totalorder %s19, 0
      %s189 = scalar_select %p188, %s19, 0
      %s190 = smul.addr %s187, 4
      %s191 = sadd.s32 %s189, %s190
      %s192 = smul.addr %s191, 4
      %s193 = scalar_lea.vmem %s0, %s192
      %p194 = scmp.lt.s32.totalorder %s18, 1
      %s195 = scalar_select %p194, %s18, 1
      %p196 = scmp.lt.s32.totalorder %s19, 0
      %s197 = scalar_select %p196, %s19, 0
      %s198 = smul.addr %s195, 16
      %s199 = sadd.s32 %s197, %s198
      %s200 = smul.addr %s199, 4
      %s201 = scalar_lea.vmem %s3, %s200
      %v203 = vld [vmem:[%s193] sm:$0xf]
      %v204 = vld [vmem:[%s193 + $0x4] sm:$0xf]
      %v205 = vld [vmem:[%s193 + $0x8] sm:$0xf]
      %v206 = vld [vmem:[%s193 + $0xc] sm:$0xf]
      %v207 = vld [vmem:[%s1] sm:$0xff]
      %v208 = vld [vmem:[%s1 + $0x8] sm:$0xff]
      %v209 = vld [vmem:[%s1 + $0x10] sm:$0xff]
      %v210 = vld [vmem:[%s1 + $0x18] sm:$0xff]
      %v211 = vld [vmem:[%s1 + $0x20] sm:$0xff]
      %v212 = vld [vmem:[%s1 + $0x28] sm:$0xff]
      %v213 = vld [vmem:[%s1 + $0x30] sm:$0xff]
      %v214 = vld [vmem:[%s1 + $0x38] sm:$0xff]
      %v215 = vld [vmem:[%s1 + $0x40] sm:$0xff]
      %v216 = vld [vmem:[%s1 + $0x48] sm:$0xff]
      %v217 = vld [vmem:[%s1 + $0x50] sm:$0xff]
      %v218 = vld [vmem:[%s1 + $0x58] sm:$0xff]
      %v219 = vld [vmem:[%s1 + $0x60] sm:$0xff]
      %v220 = vld [vmem:[%s1 + $0x68] sm:$0xff]
      %v221 = vld [vmem:[%s1 + $0x70] sm:$0xff]
      %v222 = vld [vmem:[%s1 + $0x78] sm:$0xff]
      %v223 = vpack.c.bf16 %v208, %v207
      %v224 = vpack.c.bf16 %v210, %v209
      %v225 = vpack.c.bf16 %v212, %v211
      %v226 = vpack.c.bf16 %v214, %v213
      %v227 = vpack.c.bf16 %v216, %v215
      %v228 = vpack.c.bf16 %v218, %v217
      %v229 = vpack.c.bf16 %v220, %v219
      %v230 = vpack.c.bf16 %v222, %v221
      %v231 = vld [vmem:[%s2] sm:$0xff]
      %v232 = vld [vmem:[%s2 + $0x8] sm:$0xff]
      %v233 = vld [vmem:[%s2 + $0x10] sm:$0xff]
      %v234 = vld [vmem:[%s2 + $0x18] sm:$0xff]
      %v235 = vld [vmem:[%s2 + $0x20] sm:$0xff]
      %v236 = vld [vmem:[%s2 + $0x28] sm:$0xff]
      %v237 = vld [vmem:[%s2 + $0x30] sm:$0xff]
      %v238 = vld [vmem:[%s2 + $0x38] sm:$0xff]
      %v239 = vld [vmem:[%s2 + $0x40] sm:$0xff]
      %v240 = vld [vmem:[%s2 + $0x48] sm:$0xff]
      %v241 = vld [vmem:[%s2 + $0x50] sm:$0xff]
      %v242 = vld [vmem:[%s2 + $0x58] sm:$0xff]
      %v243 = vld [vmem:[%s2 + $0x60] sm:$0xff]
      %v244 = vld [vmem:[%s2 + $0x68] sm:$0xff]
      %v245 = vld [vmem:[%s2 + $0x70] sm:$0xff]
      %v246 = vld [vmem:[%s2 + $0x78] sm:$0xff]
      %248 = vset.pattern.permute.xlu0 0
      %249 = vperm.xlu0 %248, %v231
      %v250 = vpop.permute.xlu0 %249
      %253 = vset.pattern.permute.xlu0 0
      %254 = vperm.xlu0 %253, %v232
      %v255 = vpop.permute.xlu0 %254
      %258 = vset.pattern.permute.xlu0 0
      %259 = vperm.xlu0 %258, %v233
      %v260 = vpop.permute.xlu0 %259
      %263 = vset.pattern.permute.xlu0 0
      %264 = vperm.xlu0 %263, %v234
      %v265 = vpop.permute.xlu0 %264
      %268 = vset.pattern.permute.xlu0 0
      %269 = vperm.xlu0 %268, %v235
      %v270 = vpop.permute.xlu0 %269
      %273 = vset.pattern.permute.xlu0 0
      %274 = vperm.xlu0 %273, %v236
      %v275 = vpop.permute.xlu0 %274
      %278 = vset.pattern.permute.xlu0 0
      %279 = vperm.xlu0 %278, %v237
      %v280 = vpop.permute.xlu0 %279
      %283 = vset.pattern.permute.xlu0 0
      %284 = vperm.xlu0 %283, %v238
      %v285 = vpop.permute.xlu0 %284
      %288 = vset.pattern.permute.xlu0 0
      %289 = vperm.xlu0 %288, %v239
      %v290 = vpop.permute.xlu0 %289
      %293 = vset.pattern.permute.xlu0 0
      %294 = vperm.xlu0 %293, %v240
      %v295 = vpop.permute.xlu0 %294
      %298 = vset.pattern.permute.xlu0 0
      %299 = vperm.xlu0 %298, %v241
      %v300 = vpop.permute.xlu0 %299
      %303 = vset.pattern.permute.xlu0 0
      %304 = vperm.xlu0 %303, %v242
      %v305 = vpop.permute.xlu0 %304
      %308 = vset.pattern.permute.xlu0 0
      %309 = vperm.xlu0 %308, %v243
      %v310 = vpop.permute.xlu0 %309
      %313 = vset.pattern.permute.xlu0 0
      %314 = vperm.xlu0 %313, %v244
      %v315 = vpop.permute.xlu0 %314
      %318 = vset.pattern.permute.xlu0 0
      %319 = vperm.xlu0 %318, %v245
      %v320 = vpop.permute.xlu0 %319
      %323 = vset.pattern.permute.xlu0 0
      %324 = vperm.xlu0 %323, %v246
      %v325 = vpop.permute.xlu0 %324
      %v331 = vunpack.c.l.b16 %v203
      %v332 = vunpack.c.l.b16 %v204
      %v333 = vunpack.c.l.b16 %v205
      %v334 = vunpack.c.l.b16 %v206
      %v335 = vpack.c.b16 %v332, %v331
      %v336 = vpack.c.b16 %v334, %v333
      %vm339 = vcmask 261120
      %v341 = vsel %vm339, %v223, 0
      %v344 = vsel %vm339, %v224, 0
      %v347 = vsel %vm339, %v225, 0
      %v350 = vsel %vm339, %v226, 0
      %v353 = vsel %vm339, %v227, 0
      %v356 = vsel %vm339, %v228, 0
      %v359 = vsel %vm339, %v229, 0
      %v362 = vsel %vm339, %v230, 0
      %364 = vmatprep.subr.bf16.mxu0 0
      %365 = vmatpush1.bf16.msra.mxu0 0
      %366 = vmatprep.subr.bf16.mxu0 0
      %367 = vmatpush1.bf16.msra.mxu0 0
      %368 = vmatprep.subr.bf16.mxu0 0
      %369 = vmatpush1.bf16.msra.mxu0 0
      %370 = vmatprep.subr.bf16.mxu0 0
      %371 = vmatpush1.bf16.msra.mxu0 0
      %372 = vmatprep.subr.bf16.mxu0 0
      %373 = vmatpush1.bf16.msra.mxu0 0
      %374 = vmatprep.subr.bf16.mxu0 0
      %375 = vmatpush1.bf16.msra.mxu0 0
      %376 = vmatprep.subr.bf16.mxu0 0
      %377 = vmatpush1.bf16.msra.mxu0 %v336
      %378 = vmatprep.subr.bf16.mxu0 0
      %379 = vmatpush1.bf16.msra.mxu0 %v335
      %380 = vmatprep.subr.bf16.mxu0 0
      %381 = vmatpush2.bf16.msra.mxu0 0
      %382 = vmatprep.subr.bf16.mxu0 0
      %383 = vmatpush2.bf16.msra.mxu0 0
      %384 = vmatprep.subr.bf16.mxu0 0
      %385 = vmatpush2.bf16.msra.mxu0 0
      %386 = vmatprep.subr.bf16.mxu0 0
      %387 = vmatpush2.bf16.msra.mxu0 0
      %388 = vmatprep.subr.bf16.mxu0 0
      %389 = vmatpush2.bf16.msra.mxu0 0
      %390 = vmatprep.subr.bf16.mxu0 0
      %391 = vmatpush2.bf16.msra.mxu0 0
      %392 = vmatprep.subr.bf16.mxu0 0
      %393 = vmatpush2.bf16.msra.mxu0 0
      %394 = vmatprep.subr.bf16.mxu0 0
      %395 = vmatpush2.bf16.msra.mxu0 0
      %396 = vmatprep.mubr.bf16.mxu0 0
      %397 = vmatmul.mubr.bf16.gmra.mxu0 %v341
      %v398 = vpop.f32.mrf.mxu0
      %v399 = vadd.f32 %v250, %v398
      %v400 = vpop.f32.mrf.mxu0
      %v401 = vpop.f32.mrf.mxu0
      %v402 = vadd.f32 %v255, %v401
      %v403 = vpop.f32.mrf.mxu0
      %404 = vmatprep.mubr.bf16.mxu0 0
      %405 = vmatmul.mubr.bf16.gmra.mxu0 %v344
      %v406 = vpop.f32.mrf.mxu0
      %v407 = vadd.f32 %v260, %v406
      %v408 = vpop.f32.mrf.mxu0
      %v409 = vpop.f32.mrf.mxu0
      %v410 = vadd.f32 %v265, %v409
      %v411 = vpop.f32.mrf.mxu0
      %412 = vmatprep.mubr.bf16.mxu0 0
      %413 = vmatmul.mubr.bf16.gmra.mxu0 %v347
      %v414 = vpop.f32.mrf.mxu0
      %v415 = vadd.f32 %v270, %v414
      %v416 = vpop.f32.mrf.mxu0
      %v417 = vpop.f32.mrf.mxu0
      %v418 = vadd.f32 %v275, %v417
      %v419 = vpop.f32.mrf.mxu0
      %420 = vmatprep.mubr.bf16.mxu0 0
      %421 = vmatmul.mubr.bf16.gmra.mxu0 %v350
      %v422 = vpop.f32.mrf.mxu0
      %v423 = vadd.f32 %v280, %v422
      %v424 = vpop.f32.mrf.mxu0
      %v425 = vpop.f32.mrf.mxu0
      %v426 = vadd.f32 %v285, %v425
      %v427 = vpop.f32.mrf.mxu0
      %428 = vmatprep.mubr.bf16.mxu0 0
      %429 = vmatmul.mubr.bf16.gmra.mxu0 %v353
      %v430 = vpop.f32.mrf.mxu0
      %v431 = vadd.f32 %v290, %v430
      %v432 = vpop.f32.mrf.mxu0
      %v433 = vpop.f32.mrf.mxu0
      %v434 = vadd.f32 %v295, %v433
      %v435 = vpop.f32.mrf.mxu0
      %436 = vmatprep.mubr.bf16.mxu0 0
      %437 = vmatmul.mubr.bf16.gmra.mxu0 %v356
      %v438 = vpop.f32.mrf.mxu0
      %v439 = vadd.f32 %v300, %v438
      %v440 = vpop.f32.mrf.mxu0
      %v441 = vpop.f32.mrf.mxu0
      %v442 = vadd.f32 %v305, %v441
      %v443 = vpop.f32.mrf.mxu0
      %444 = vmatprep.mubr.bf16.mxu0 0
      %445 = vmatmul.mubr.bf16.gmra.mxu0 %v359
      %v446 = vpop.f32.mrf.mxu0
      %v447 = vadd.f32 %v310, %v446
      %v448 = vpop.f32.mrf.mxu0
      %v449 = vpop.f32.mrf.mxu0
      %v450 = vadd.f32 %v315, %v449
      %v451 = vpop.f32.mrf.mxu0
      %452 = vmatprep.mubr.bf16.mxu0 0
      %453 = vmatmul.mubr.bf16.gmra.mxu0 %v362
      %v454 = vpop.f32.mrf.mxu0
      %v455 = vadd.f32 %v320, %v454
      %v456 = vpop.f32.mrf.mxu0
      %v457 = vpop.f32.mrf.mxu0
      %v458 = vadd.f32 %v325, %v457
      %v459 = vpop.f32.mrf.mxu0
      %460 = vdwg.mxu0
      %v461 = vmax.f32 %v399, 0.0
      %v462 = vmax.f32 %v402, 0.0
      %v463 = vmax.f32 %v407, 0.0
      %v464 = vmax.f32 %v410, 0.0
      %v465 = vmax.f32 %v415, 0.0
      %v466 = vmax.f32 %v418, 0.0
      %v467 = vmax.f32 %v423, 0.0
      %v468 = vmax.f32 %v426, 0.0
      %v469 = vmax.f32 %v431, 0.0
      %v470 = vmax.f32 %v434, 0.0
      %v471 = vmax.f32 %v439, 0.0
      %v472 = vmax.f32 %v442, 0.0
      %v473 = vmax.f32 %v447, 0.0
      %v474 = vmax.f32 %v450, 0.0
      %v475 = vmax.f32 %v455, 0.0
      %v476 = vmax.f32 %v458, 0.0
      %v477 = vpack.c.bf16 %v462, %v461
      %v478 = vpack.c.bf16 %v464, %v463
      %v479 = vpack.c.bf16 %v466, %v465
      %v480 = vpack.c.bf16 %v468, %v467
      %v481 = vpack.c.bf16 %v470, %v469
      %v482 = vpack.c.bf16 %v472, %v471
      %v483 = vpack.c.bf16 %v474, %v473
      %v484 = vpack.c.bf16 %v476, %v475
      %v493 = vunpack.c.l.b16 %v477
      %v494 = vunpack.c.h.b16 %v477
      %v495 = vunpack.c.l.b16 %v478
      %v496 = vunpack.c.h.b16 %v478
      %v497 = vunpack.c.l.b16 %v479
      %v498 = vunpack.c.h.b16 %v479
      %v499 = vunpack.c.l.b16 %v480
      %v500 = vunpack.c.h.b16 %v480
      %v501 = vunpack.c.l.b16 %v481
      %v502 = vunpack.c.h.b16 %v481
      %v503 = vunpack.c.l.b16 %v482
      %v504 = vunpack.c.h.b16 %v482
      %v505 = vunpack.c.l.b16 %v483
      %v506 = vunpack.c.h.b16 %v483
      %v507 = vunpack.c.l.b16 %v484
      %v508 = vunpack.c.h.b16 %v484
      %v509 = vpack.c.b16 %v493, %v493
      %v510 = vpack.c.b16 %v494, %v494
      %v511 = vpack.c.b16 %v495, %v495
      %v512 = vpack.c.b16 %v496, %v496
      %v513 = vpack.c.b16 %v497, %v497
      %v514 = vpack.c.b16 %v498, %v498
      %v515 = vpack.c.b16 %v499, %v499
      %v516 = vpack.c.b16 %v500, %v500
      %v517 = vpack.c.b16 %v501, %v501
      %v518 = vpack.c.b16 %v502, %v502
      %v519 = vpack.c.b16 %v503, %v503
      %v520 = vpack.c.b16 %v504, %v504
      %v521 = vpack.c.b16 %v505, %v505
      %v522 = vpack.c.b16 %v506, %v506
      %v523 = vpack.c.b16 %v507, %v507
      %v524 = vpack.c.b16 %v508, %v508
      %vm541 = vcmask 27648
      %542 = vst.msk [vmem:[%s201] sm:$0xf] %vm541, %v509
      %543 = vst.msk [vmem:[%s201 + $0x4] sm:$0xf] %vm541, %v510
      %544 = vst.msk [vmem:[%s201 + $0x8] sm:$0xf] %vm541, %v511
      %545 = vst.msk [vmem:[%s201 + $0xc] sm:$0xf] %vm541, %v512
      %546 = vst.msk [vmem:[%s201 + $0x10] sm:$0xf] %vm541, %v513
      %547 = vst.msk [vmem:[%s201 + $0x14] sm:$0xf] %vm541, %v514
      %548 = vst.msk [vmem:[%s201 + $0x18] sm:$0xf] %vm541, %v515
      %549 = vst.msk [vmem:[%s201 + $0x1c] sm:$0xf] %vm541, %v516
      %550 = vst.msk [vmem:[%s201 + $0x20] sm:$0xf] %vm541, %v517
      %551 = vst.msk [vmem:[%s201 + $0x24] sm:$0xf] %vm541, %v518
      %552 = vst.msk [vmem:[%s201 + $0x28] sm:$0xf] %vm541, %v519
      %553 = vst.msk [vmem:[%s201 + $0x2c] sm:$0xf] %vm541, %v520
      %554 = vst.msk [vmem:[%s201 + $0x30] sm:$0xf] %vm541, %v521
      %555 = vst.msk [vmem:[%s201 + $0x34] sm:$0xf] %vm541, %v522
      %556 = vst.msk [vmem:[%s201 + $0x38] sm:$0xf] %vm541, %v523
      %557 = vst.msk [vmem:[%s201 + $0x3c] sm:$0xf] %vm541, %v524
      %p558 = scmp.lt.s32.totalorder %s18, 1
      %s559 = scalar_select %p558, %s18, 1
      %p560 = scmp.lt.s32.totalorder %s19, 0
      %s561 = scalar_select %p560, %s19, 0
      %s562 = smul.addr %s559, 16
      %s563 = sadd.s32 %s561, %s562
      %s564 = smul.addr %s563, 4
      %s565 = scalar_lea.vmem %s3, %s564
      // Predicated region
      $region33: #{_lambda_.25} parent=31 // pred_check
        %p566 = pneg %p116
      $region34: #{_lambda_.25} parent=31 // pred_check_branch
        %568 = sbr.rel (%p566) target = $region36
      $region35: #{_lambda_.25} parent=31 // pred_region
        _
      $region36: #{_lambda_.25} parent=31 // pred_fallthru
        _
    $region32: #{_lambda_.25} parent=5 // pred_fallthru
      _
    %p569 = scmp.le.s32.totalorder 2, %s9
    // Predicated region
    $region37: #{_lambda_.25} parent=5 // pred_check
      %p570 = pneg %p569
    $region38: #{_lambda_.25} parent=5 // pred_check_branch
      %572 = sbr.rel (%p570) target = $region40
    $region39: #{_lambda_.25} parent=5 // pred_region
      %s573 = ssub.s32 %s9, 2
      // Predicated region
      $region41: #{_lambda_.25} parent=39 // pred_check
        %p574 = pneg %p122
      $region42: #{_lambda_.25} parent=39 // pred_check_branch
        %576 = sbr.rel (%p574) target = $region44
      $region43: #{_lambda_.25} parent=39 // pred_region
        %p577 = scmp.lt.s32.totalorder %s20, 1
        %s578 = scalar_select %p577, %s20, 1
        %p579 = scmp.lt.s32.totalorder %s21, 0
        %s580 = scalar_select %p579, %s21, 0
        %s581 = smul.addr %s578, 16
        %s582 = sadd.s32 %s580, %s581
        %s583 = smul.addr %s582, 4
        %s584 = scalar_lea.vmem %s3, %s583
      $region44: #{_lambda_.25} parent=39 // pred_fallthru
        _
    $region40: #{_lambda_.25} parent=5 // pred_fallthru
      _
  $region6: #{_lambda_.25} parent=0 // loop_footer
    %s13 = sadd.s32 1, %s9
  $region7: #{_lambda_.25} parent=0 // loop_footer_branch
    %8 = sbr.rel target = $region3
  $region8: #{_lambda_.25} parent=0 // loop_exit
    _

// kernel: _lambda_.26
$region0: #{_lambda_.26}
  #allocation0 [shape = 'u32[]', space=smem, size = 0x4, offset = 0x4, fixed_abs, tag = 'smem constant byte address 0x4 - core index']
  #allocation1 [shape = 'u32[144,128]{1,0:T(1,128)}', space=vmem, size = 0x12000, scoped, tag = 'internal scratch']
  %s0 = inlined_call_operand.vmem [shape: bf16[2,128,4], index: 0, kind: input, shape index: {}]
  %s1 = inlined_call_operand.vmem [shape: f32[32,128], index: 1, kind: input, shape index: {}]
  %s2 = inlined_call_operand.vmem [shape: f32[32,1], index: 2, kind: input, shape index: {}]
  %s3 = inlined_call_operand.vmem [shape: bf16[2,32,4], index: 3, kind: input, shape index: {}]
  %s4 = inlined_call_operand.vmem [shape: bf16[2,32,4], index: 4, kind: output, shape index: {}]
  %s5 = sld [smem:[#allocation0]]
  $region49: #{_lambda_.26} parent=0
    _
  %s7 = ssub.s32 1, %s5
  %s8 = scalar_select 0, %s7, %s5
  loop: start=0, step=1, limit=4
  $region2: #{_lambda_.26} parent=0 // loop_pre_header
    _
  $region3: #{_lambda_.26} parent=0 // loop_header
    %s10 = sphi 0, %s14
    %p11 = scmp.ge.s32.totalorder %s10, 4
    %s17 = sphi 0, %s29
    %s18 = sphi 0, %s25
    %s19 = sphi 0, %s17
    %s20 = sphi 0, %s18
    %s21 = sphi 0, %s19
    %s22 = sphi 0, %s20
    %s34 = sphi 0, %s36
    %s37 = sphi 0, %s34
    %s38 = sphi 0, %s37
    %s54 = sphi 0, %s38
    %s58 = sphi 0, %s58
    %s60 = sphi 0, %s58
    %s61 = sphi 0, %s60
    %s75 = sphi 0, %s61
    %s79 = sphi 0, %s79
    %s81 = sphi 0, %s79
    %s82 = sphi 0, %s81
    %s96 = sphi 0, %s82
    %s104 = sphi 0, %s106
    %s107 = sphi 0, %s104
    %s108 = sphi 0, %s107
    %s124 = sphi 0, %s108
    %s132 = sphi 0, %s134
    %s135 = sphi 0, %s132
    %s136 = sphi 0, %s135
    %s152 = sphi 0, %s136
  $region4: #{_lambda_.26} parent=0 // loop_header_branch
    %13 = sbr.rel (%p11) target = $region8
  $region5: #{_lambda_.26} parent=0 // loop_body
    %s15 = ssub.s32 %s10, 1
    %s16 = ssub.s32 %s10, 2
    %s23 = sadd.s32 1, %s18
    %p24 = scmp.ge.s32.totalorder %s23, 1
    %s25 = scalar_select %p24, 0, %s23
    %s26 = sadd.s32 1, %s17
    %s27 = scalar_select %p24, %s26, %s17
    %p28 = scmp.ge.s32.totalorder %s27, 2
    %s29 = scalar_select %p28, 0, %s27
    %s30 = ssub.s32 %s17, %s29
    %s31 = ssub.s32 %s18, %s25
    %s32 = sor.u32 %s30, %s31
    %p33 = scmp.eq.s32.totalorder %s32, 0
    %s35 = sadd.s32 %s34, 1
    %s36 = scalar_select %p33, %s34, %s35
    %p39 = pneg %p33
    %p40 = scmp.eq.s32.totalorder %s10, 1
    %p41 = por %p39, %p40
    %p42 = scmp.ne.s32.totalorder %s34, %s37
    %p43 = scmp.eq.s32.totalorder %s10, 0
    %p44 = por %p42, %p43
    %p45 = scmp.ne.s32.totalorder %s34, %s37
    %p46 = scmp.eq.s32.totalorder %s15, 1
    %p47 = por %p45, %p46
    %p48 = scmp.ne.s32.totalorder %s37, %s38
    %p49 = scmp.eq.s32.totalorder %s15, 0
    %p50 = por %p48, %p49
    %p51 = scmp.ne.s32.totalorder %s37, %s38
    %p52 = scmp.eq.s32.totalorder %s16, 1
    %p53 = por %p51, %p52
    %p55 = scmp.ne.s32.totalorder %s38, %s54
    %p56 = scmp.eq.s32.totalorder %s16, 0
    %p57 = por %p55, %p56
    %s59 = sadd.s32 %s58, 1
    %p62 = scmp.eq.s32.totalorder %s10, 1
    %p63 = scmp.ne.s32.totalorder %s58, %s60
    %p64 = scmp.eq.s32.totalorder %s10, 0
    %p65 = por %p63, %p64
    %p66 = scmp.ne.s32.totalorder %s58, %s60
    %p67 = scmp.eq.s32.totalorder %s15, 1
    %p68 = por %p66, %p67
    %p69 = scmp.ne.s32.totalorder %s60, %s61
    %p70 = scmp.eq.s32.totalorder %s15, 0
    %p71 = por %p69, %p70
    %p72 = scmp.ne.s32.totalorder %s60, %s61
    %p73 = scmp.eq.s32.totalorder %s16, 1
    %p74 = por %p72, %p73
    %p76 = scmp.ne.s32.totalorder %s61, %s75
    %p77 = scmp.eq.s32.totalorder %s16, 0
    %p78 = por %p76, %p77
    %s80 = sadd.s32 %s79, 1
    %p83 = scmp.eq.s32.totalorder %s10, 1
    %p84 = scmp.ne.s32.totalorder %s79, %s81
    %p85 = scmp.eq.s32.totalorder %s10, 0
    %p86 = por %p84, %p85
    %p87 = scmp.ne.s32.totalorder %s79, %s81
    %p88 = scmp.eq.s32.totalorder %s15, 1
    %p89 = por %p87, %p88
    %p90 = scmp.ne.s32.totalorder %s81, %s82
    %p91 = scmp.eq.s32.totalorder %s15, 0
    %p92 = por %p90, %p91
    %p93 = scmp.ne.s32.totalorder %s81, %s82
    %p94 = scmp.eq.s32.totalorder %s16, 1
    %p95 = por %p93, %p94
    %p97 = scmp.ne.s32.totalorder %s82, %s96
    %p98 = scmp.eq.s32.totalorder %s16, 0
    %p99 = por %p97, %p98
    %s100 = ssub.s32 %s17, %s29
    %s101 = ssub.s32 %s18, %s25
    %s102 = sor.u32 %s100, %s101
    %p103 = scmp.eq.s32.totalorder %s102, 0
    %s105 = sadd.s32 %s104, 1
    %s106 = scalar_select %p103, %s104, %s105
    %p109 = pneg %p103
    %p110 = scmp.eq.s32.totalorder %s10, 1
    %p111 = por %p109, %p110
    %p112 = scmp.ne.s32.totalorder %s104, %s107
    %p113 = scmp.eq.s32.totalorder %s10, 0
    %p114 = por %p112, %p113
    %p115 = scmp.ne.s32.totalorder %s104, %s107
    %p116 = scmp.eq.s32.totalorder %s15, 1
    %p117 = por %p115, %p116
    %p118 = scmp.ne.s32.totalorder %s107, %s108
    %p119 = scmp.eq.s32.totalorder %s15, 0
    %p120 = por %p118, %p119
    %p121 = scmp.ne.s32.totalorder %s107, %s108
    %p122 = scmp.eq.s32.totalorder %s16, 1
    %p123 = por %p121, %p122
    %p125 = scmp.ne.s32.totalorder %s108, %s124
    %p126 = scmp.eq.s32.totalorder %s16, 0
    %p127 = por %p125, %p126
    %s128 = ssub.s32 %s17, %s29
    %s129 = ssub.s32 %s18, %s25
    %s130 = sor.u32 %s128, %s129
    %p131 = scmp.eq.s32.totalorder %s130, 0
    %s133 = sadd.s32 %s132, 1
    %s134 = scalar_select %p131, %s132, %s133
    %p137 = pneg %p131
    %p138 = scmp.eq.s32.totalorder %s10, 1
    %p139 = por %p137, %p138
    %p140 = scmp.ne.s32.totalorder %s132, %s135
    %p141 = scmp.eq.s32.totalorder %s10, 0
    %p142 = por %p140, %p141
    %p143 = scmp.ne.s32.totalorder %s132, %s135
    %p144 = scmp.eq.s32.totalorder %s15, 1
    %p145 = por %p143, %p144
    %p146 = scmp.ne.s32.totalorder %s135, %s136
    %p147 = scmp.eq.s32.totalorder %s15, 0
    %p148 = por %p146, %p147
    %p149 = scmp.ne.s32.totalorder %s135, %s136
    %p150 = scmp.eq.s32.totalorder %s16, 1
    %p151 = por %p149, %p150
    %p153 = scmp.ne.s32.totalorder %s136, %s152
    %p154 = scmp.eq.s32.totalorder %s16, 0
    %p155 = por %p153, %p154
    %p156 = scmp.le.s32.totalorder 1, %s10
    %p157 = scmp.lt.s32.totalorder %s10, 3
    %p158 = pnand %p156, %p157
    %p159 = pneg %p158
    // Predicated region
    $region9: #{_lambda_.26} parent=5 // pred_check
      _
    $region10: #{_lambda_.26} parent=5 // pred_check_branch
      %161 = sbr.rel (%p158) target = $region12
    $region11: #{_lambda_.26} parent=5 // pred_region
      %s162 = ssub.s32 %s10, 1
      // Predicated region
      $region13: #{_lambda_.26} parent=11 // pred_check
        %p163 = pneg %p71
      $region14: #{_lambda_.26} parent=11 // pred_check_branch
        %165 = sbr.rel (%p163) target = $region16
      $region15: #{_lambda_.26} parent=11 // pred_region
        _
      $region16: #{_lambda_.26} parent=11 // pred_fallthru
        _
      // Predicated region
      $region17: #{_lambda_.26} parent=11 // pred_check
        %p166 = pneg %p92
      $region18: #{_lambda_.26} parent=11 // pred_check_branch
        %168 = sbr.rel (%p166) target = $region20
      $region19: #{_lambda_.26} parent=11 // pred_region
        _
      $region20: #{_lambda_.26} parent=11 // pred_fallthru
        _
    $region12: #{_lambda_.26} parent=5 // pred_fallthru
      _
    %p169 = scmp.lt.s32.totalorder %s10, 2
    // Predicated region
    $region21: #{_lambda_.26} parent=5 // pred_check
      %p170 = pneg %p169
    $region22: #{_lambda_.26} parent=5 // pred_check_branch
      %172 = sbr.rel (%p170) target = $region24
    $region23: #{_lambda_.26} parent=5 // pred_region
      // Predicated region
      $region25: #{_lambda_.26} parent=23 // pred_check
        %p173 = pneg %p44
      $region26: #{_lambda_.26} parent=23 // pred_check_branch
        %175 = sbr.rel (%p173) target = $region28
      $region27: #{_lambda_.26} parent=23 // pred_region
        %p176 = scmp.lt.s32.totalorder %s17, 1
        %s177 = scalar_select %p176, %s17, 1
        %p178 = scmp.lt.s32.totalorder %s18, 0
        %s179 = scalar_select %p178, %s18, 0
        %s180 = smul.addr %s177, 16
        %s181 = sadd.s32 %s179, %s180
        %s182 = smul.addr %s181, 4
        %s183 = scalar_lea.vmem %s0, %s182
      $region28: #{_lambda_.26} parent=23 // pred_fallthru
        _
      // Predicated region
      $region29: #{_lambda_.26} parent=23 // pred_check
        %p184 = pneg %p114
      $region30: #{_lambda_.26} parent=23 // pred_check_branch
        %186 = sbr.rel (%p184) target = $region32
      $region31: #{_lambda_.26} parent=23 // pred_region
        %p187 = scmp.lt.s32.totalorder %s17, 1
        %s188 = scalar_select %p187, %s17, 1
        %p189 = scmp.lt.s32.totalorder %s18, 0
        %s190 = scalar_select %p189, %s18, 0
        %s191 = smul.addr %s188, 4
        %s192 = sadd.s32 %s190, %s191
        %s193 = smul.addr %s192, 4
        %s194 = scalar_lea.vmem %s3, %s193
      $region32: #{_lambda_.26} parent=23 // pred_fallthru
        _
    $region24: #{_lambda_.26} parent=5 // pred_fallthru
      _
    %p195 = scmp.le.s32.totalorder 1, %s10
    %p196 = scmp.lt.s32.totalorder %s10, 3
    %p197 = pnand %p195, %p196
    %p198 = pneg %p197
    // Predicated region
    $region33: #{_lambda_.26} parent=5 // pred_check
      _
    $region34: #{_lambda_.26} parent=5 // pred_check_branch
      %200 = sbr.rel (%p197) target = $region36
    $region35: #{_lambda_.26} parent=5 // pred_region
      %s201 = ssub.s32 %s10, 1
      %p202 = scmp.lt.s32.totalorder %s19, 1
      %s203 = scalar_select %p202, %s19, 1
      %p204 = scmp.lt.s32.totalorder %s20, 0
      %s205 = scalar_select %p204, %s20, 0
      %s206 = smul.addr %s203, 16
      %s207 = sadd.s32 %s205, %s206
      %s208 = smul.addr %s207, 4
      %s209 = scalar_lea.vmem %s0, %s208
      %p210 = pneg %p50
      %p211 = pneg %p47
      %p212 = pneg %p71
      %p213 = pneg %p68
      %p214 = pneg %p92
      %p215 = pneg %p89
      %p216 = scmp.lt.s32.totalorder %s19, 1
      %s217 = scalar_select %p216, %s19, 1
      %p218 = scmp.lt.s32.totalorder %s20, 0
      %s219 = scalar_select %p218, %s20, 0
      %s220 = smul.addr %s217, 4
      %s221 = sadd.s32 %s219, %s220
      %s222 = smul.addr %s221, 4
      %s223 = scalar_lea.vmem %s3, %s222
      %p224 = pneg %p120
      %p225 = pneg %p117
      %p226 = pneg %p148
      %p227 = pneg %p145
      %p228 = scmp.lt.s32.totalorder %s19, 1
      %s229 = scalar_select %p228, %s19, 1
      %p230 = scmp.lt.s32.totalorder %s20, 0
      %s231 = scalar_select %p230, %s20, 0
      %s232 = smul.addr %s229, 4
      %s233 = sadd.s32 %s231, %s232
      %s234 = smul.addr %s233, 4
      %s235 = scalar_lea.vmem %s4, %s234
      %p236 = scmp.lt.s32.totalorder %s19, 1
      %s237 = scalar_select %p236, %s19, 1
      %p238 = scmp.lt.s32.totalorder %s20, 0
      %s239 = scalar_select %p238, %s20, 0
      %s240 = smul.addr %s237, 16
      %s241 = sadd.s32 %s239, %s240
      %s242 = smul.addr %s241, 4
      %s243 = scalar_lea.vmem %s0, %s242
      %p244 = scmp.lt.s32.totalorder %s19, 1
      %s245 = scalar_select %p244, %s19, 1
      %p246 = scmp.lt.s32.totalorder %s20, 0
      %s247 = scalar_select %p246, %s20, 0
      %s248 = smul.addr %s245, 4
      %s249 = sadd.s32 %s247, %s248
      %s250 = smul.addr %s249, 4
      %s251 = scalar_lea.vmem %s3, %s250
      %p252 = scmp.lt.s32.totalorder %s19, 1
      %s253 = scalar_select %p252, %s19, 1
      %p254 = scmp.lt.s32.totalorder %s20, 0
      %s255 = scalar_select %p254, %s20, 0
      %s256 = smul.addr %s253, 4
      %s257 = sadd.s32 %s255, %s256
      %s258 = smul.addr %s257, 4
      %s259 = scalar_lea.vmem %s4, %s258
      %v261 = vld [vmem:[%s243] sm:$0xf]
      %v262 = vld [vmem:[%s243 + $0x4] sm:$0xf]
      %v263 = vld [vmem:[%s243 + $0x8] sm:$0xf]
      %v264 = vld [vmem:[%s243 + $0xc] sm:$0xf]
      %v265 = vld [vmem:[%s243 + $0x10] sm:$0xf]
      %v266 = vld [vmem:[%s243 + $0x14] sm:$0xf]
      %v267 = vld [vmem:[%s243 + $0x18] sm:$0xf]
      %v268 = vld [vmem:[%s243 + $0x1c] sm:$0xf]
      %v269 = vld [vmem:[%s243 + $0x20] sm:$0xf]
      %v270 = vld [vmem:[%s243 + $0x24] sm:$0xf]
      %v271 = vld [vmem:[%s243 + $0x28] sm:$0xf]
      %v272 = vld [vmem:[%s243 + $0x2c] sm:$0xf]
      %v273 = vld [vmem:[%s243 + $0x30] sm:$0xf]
      %v274 = vld [vmem:[%s243 + $0x34] sm:$0xf]
      %v275 = vld [vmem:[%s243 + $0x38] sm:$0xf]
      %v276 = vld [vmem:[%s243 + $0x3c] sm:$0xf]
      %v277 = vld [vmem:[%s1] sm:$0xff]
      %v278 = vld [vmem:[%s1 + $0x8] sm:$0xff]
      %v279 = vld [vmem:[%s1 + $0x10] sm:$0xff]
      %v280 = vld [vmem:[%s1 + $0x18] sm:$0xff]
      %v281 = vpack.c.bf16 %v278, %v277
      %v282 = vpack.c.bf16 %v280, %v279
      %v283 = vld [vmem:[%s2] sm:$0xff]
      %v284 = vld [vmem:[%s2 + $0x8] sm:$0xff]
      %v285 = vld [vmem:[%s2 + $0x10] sm:$0xff]
      %v286 = vld [vmem:[%s2 + $0x18] sm:$0xff]
      %288 = vset.pattern.permute.xlu0 0
      %289 = vperm.xlu0 %288, %v283
      %v290 = vpop.permute.xlu0 %289
      %293 = vset.pattern.permute.xlu0 0
      %294 = vperm.xlu0 %293, %v284
      %v295 = vpop.permute.xlu0 %294
      %298 = vset.pattern.permute.xlu0 0
      %299 = vperm.xlu0 %298, %v285
      %v300 = vpop.permute.xlu0 %299
      %303 = vset.pattern.permute.xlu0 0
      %304 = vperm.xlu0 %303, %v286
      %v305 = vpop.permute.xlu0 %304
      %v323 = vunpack.c.l.b16 %v261
      %v324 = vunpack.c.l.b16 %v262
      %v325 = vunpack.c.l.b16 %v263
      %v326 = vunpack.c.l.b16 %v264
      %v327 = vunpack.c.l.b16 %v265
      %v328 = vunpack.c.l.b16 %v266
      %v329 = vunpack.c.l.b16 %v267
      %v330 = vunpack.c.l.b16 %v268
      %v331 = vunpack.c.l.b16 %v269
      %v332 = vunpack.c.l.b16 %v270
      %v333 = vunpack.c.l.b16 %v271
      %v334 = vunpack.c.l.b16 %v272
      %v335 = vunpack.c.l.b16 %v273
      %v336 = vunpack.c.l.b16 %v274
      %v337 = vunpack.c.l.b16 %v275
      %v338 = vunpack.c.l.b16 %v276
      %v339 = vpack.c.b16 %v324, %v323
      %v340 = vpack.c.b16 %v326, %v325
      %v341 = vpack.c.b16 %v328, %v327
      %v342 = vpack.c.b16 %v330, %v329
      %v343 = vpack.c.b16 %v332, %v331
      %v344 = vpack.c.b16 %v334, %v333
      %v345 = vpack.c.b16 %v336, %v335
      %v346 = vpack.c.b16 %v338, %v337
      %355 = vmatprep.subr.bf16.mxu0 0
      %356 = vmatpush1.bf16.msra.mxu0 %v346
      %357 = vmatprep.subr.bf16.mxu0 0
      %358 = vmatpush1.bf16.msra.mxu0 %v345
      %359 = vmatprep.subr.bf16.mxu0 0
      %360 = vmatpush1.bf16.msra.mxu0 %v344
      %361 = vmatprep.subr.bf16.mxu0 0
      %362 = vmatpush1.bf16.msra.mxu0 %v343
      %363 = vmatprep.subr.bf16.mxu0 0
      %364 = vmatpush1.bf16.msra.mxu0 %v342
      %365 = vmatprep.subr.bf16.mxu0 0
      %366 = vmatpush1.bf16.msra.mxu0 %v341
      %367 = vmatprep.subr.bf16.mxu0 0
      %368 = vmatpush1.bf16.msra.mxu0 %v340
      %369 = vmatprep.subr.bf16.mxu0 0
      %370 = vmatpush1.bf16.msra.mxu0 %v339
      %371 = vmatprep.subr.bf16.mxu0 0
      %372 = vmatpush2.bf16.msra.mxu0 0
      %373 = vmatprep.subr.bf16.mxu0 0
      %374 = vmatpush2.bf16.msra.mxu0 0
      %375 = vmatprep.subr.bf16.mxu0 0
      %376 = vmatpush2.bf16.msra.mxu0 0
      %377 = vmatprep.subr.bf16.mxu0 0
      %378 = vmatpush2.bf16.msra.mxu0 0
      %379 = vmatprep.subr.bf16.mxu0 0
      %380 = vmatpush2.bf16.msra.mxu0 0
      %381 = vmatprep.subr.bf16.mxu0 0
      %382 = vmatpush2.bf16.msra.mxu0 0
      %383 = vmatprep.subr.bf16.mxu0 0
      %384 = vmatpush2.bf16.msra.mxu0 0
      %385 = vmatprep.subr.bf16.mxu0 0
      %386 = vmatpush2.bf16.msra.mxu0 0
      %387 = vmatprep.mubr.bf16.mxu0 0
      %388 = vmatmul.mubr.bf16.gmra.mxu0 %v281
      %v389 = vpop.f32.mrf.mxu0
      %v390 = vadd.f32 %v290, %v389
      %v391 = vpop.f32.mrf.mxu0
      %v392 = vpop.f32.mrf.mxu0
      %v393 = vadd.f32 %v295, %v392
      %v394 = vpop.f32.mrf.mxu0
      %395 = vmatprep.mubr.bf16.mxu0 0
      %396 = vmatmul.mubr.bf16.gmra.mxu0 %v282
      %v397 = vpop.f32.mrf.mxu0
      %v398 = vadd.f32 %v300, %v397
      %v399 = vpop.f32.mrf.mxu0
      %v400 = vpop.f32.mrf.mxu0
      %v401 = vadd.f32 %v305, %v400
      %v402 = vpop.f32.mrf.mxu0
      %403 = vdwg.mxu0
      %v404 = vld [vmem:[%s251] sm:$0xf]
      %v405 = vld [vmem:[%s251 + $0x4] sm:$0xf]
      %v406 = vld [vmem:[%s251 + $0x8] sm:$0xf]
      %v407 = vld [vmem:[%s251 + $0xc] sm:$0xf]
      %v408 = vunpack.c.l.bf16 %v404
      %v409 = vunpack.c.l.bf16 %v405
      %v410 = vunpack.c.l.bf16 %v406
      %v411 = vunpack.c.l.bf16 %v407
      %v412 = vadd.f32 %v390, %v408
      %v413 = vadd.f32 %v393, %v409
      %v414 = vadd.f32 %v398, %v410
      %v415 = vadd.f32 %v401, %v411
      %v416 = vmax.f32 %v412, 0.0
      %v417 = vmax.f32 %v413, 0.0
      %v418 = vmax.f32 %v414, 0.0
      %v419 = vmax.f32 %v415, 0.0
      %v420 = vpack.c.bf16 %v417, %v416
      %v421 = vpack.c.bf16 %v419, %v418
      %v424 = vunpack.c.l.b16 %v420
      %v425 = vunpack.c.h.b16 %v420
      %v426 = vunpack.c.l.b16 %v421
      %v427 = vunpack.c.h.b16 %v421
      %v428 = vpack.c.b16 %v424, %v424
      %v429 = vpack.c.b16 %v425, %v425
      %v430 = vpack.c.b16 %v426, %v426
      %v431 = vpack.c.b16 %v427, %v427
      %vm436 = vcmask 27648
      %437 = vst.msk [vmem:[%s259] sm:$0xf] %vm436, %v428
      %438 = vst.msk [vmem:[%s259 + $0x4] sm:$0xf] %vm436, %v429
      %439 = vst.msk [vmem:[%s259 + $0x8] sm:$0xf] %vm436, %v430
      %440 = vst.msk [vmem:[%s259 + $0xc] sm:$0xf] %vm436, %v431
      %p441 = scmp.lt.s32.totalorder %s19, 1
      %s442 = scalar_select %p441, %s19, 1
      %p443 = scmp.lt.s32.totalorder %s20, 0
      %s444 = scalar_select %p443, %s20, 0
      %s445 = smul.addr %s442, 4
      %s446 = sadd.s32 %s444, %s445
      %s447 = smul.addr %s446, 4
      %s448 = scalar_lea.vmem %s4, %s447
      // Predicated region
      $region37: #{_lambda_.26} parent=35 // pred_check
        %p449 = pneg %p145
      $region38: #{_lambda_.26} parent=35 // pred_check_branch
        %451 = sbr.rel (%p449) target = $region40
      $region39: #{_lambda_.26} parent=35 // pred_region
        _
      $region40: #{_lambda_.26} parent=35 // pred_fallthru
        _
    $region36: #{_lambda_.26} parent=5 // pred_fallthru
      _
    %p452 = scmp.le.s32.totalorder 2, %s10
    // Predicated region
    $region41: #{_lambda_.26} parent=5 // pred_check
      %p453 = pneg %p452
    $region42: #{_lambda_.26} parent=5 // pred_check_branch
      %455 = sbr.rel (%p453) target = $region44
    $region43: #{_lambda_.26} parent=5 // pred_region
      %s456 = ssub.s32 %s10, 2
      // Predicated region
      $region45: #{_lambda_.26} parent=43 // pred_check
        %p457 = pneg %p151
      $region46: #{_lambda_.26} parent=43 // pred_check_branch
        %459 = sbr.rel (%p457) target = $region48
      $region47: #{_lambda_.26} parent=43 // pred_region
        %p460 = scmp.lt.s32.totalorder %s21, 1
        %s461 = scalar_select %p460, %s21, 1
        %p462 = scmp.lt.s32.totalorder %s22, 0
        %s463 = scalar_select %p462, %s22, 0
        %s464 = smul.addr %s461, 4
        %s465 = sadd.s32 %s463, %s464
        %s466 = smul.addr %s465, 4
        %s467 = scalar_lea.vmem %s4, %s466
      $region48: #{_lambda_.26} parent=43 // pred_fallthru
        _
    $region44: #{_lambda_.26} parent=5 // pred_fallthru
      _
  $region6: #{_lambda_.26} parent=0 // loop_footer
    %s14 = sadd.s32 1, %s10
  $region7: #{_lambda_.26} parent=0 // loop_footer_branch
    %9 = sbr.rel target = $region3
  $region8: #{_lambda_.26} parent=0 // loop_exit
    _

</llo_original>
